<compile_context>
chip_gen: v7x
topology: tpu7x:2x2x1
jax: 0.10.0
libtpu: 0.0.40
codegen_flags: <defaults>
</compile_context>

<pallas_src>
import numpy as np
import jax
import jax.numpy as jnp
from jax.experimental import pallas as pl
from jax.experimental.pallas import tpu as pltpu

EPS = 1e-5
CP = 128                                   # channel padding -> full 128-lane vregs
_TAPS = [(dy, dx) for dy in range(3) for dx in range(3)]


# --------------------------------------------------------------------------
# Fused Tree kernel
# --------------------------------------------------------------------------
def _make_tree_kernel(N, Ho, Wo):
    """Whole-Tree fused kernel. All activations are (M2, CP) lane-dense slabs."""
    M2 = N * Ho * Wo

    def kernel(xph_ref, w3_ref, w1_ref, b_ref, out_ref, pbuf_ref):
        f32 = jnp.float32
        relu = lambda v: jnp.maximum(v, 0.0)

        def conv3x3_from_phases(layer):
            # stride-2 conv, pad=1: output (i,j), tap (dy,dx) reads
            # xpad[2i+dy, 2j+dx] = phase[(dy%2)*2+(dx%2)][i+dy//2, j+dx//2]
            acc = None
            for t, (dy, dx) in enumerate(_TAPS):
                xt = xph_ref[(dy % 2) * 2 + (dx % 2), :,
                             dy // 2:dy // 2 + Ho, dx // 2:dx // 2 + Wo, :]
                d = jnp.dot(xt.reshape(M2, CP), w3_ref[layer, t],
                            preferred_element_type=f32)
                acc = d if acc is None else acc + d
            return acc

        def conv3x3_from_pbuf(slot, layer):
            # stride-1 conv, pad=1, over the zero-border (Ho+2, Wo+2) buffer
            acc = None
            for t, (dy, dx) in enumerate(_TAPS):
                xt = pbuf_ref[slot, :, dy:dy + Ho, dx:dx + Wo, :]
                d = jnp.dot(xt.reshape(M2, CP), w3_ref[layer, t],
                            preferred_element_type=f32)
                acc = d if acc is None else acc + d
            return acc

        def store_padded(slot, val):
            pbuf_ref[slot, :, 1:1 + Ho, 1:1 + Wo, :] = val.reshape(N, Ho, Wo, CP)

        # Zero scratch once: the never-touched 1-pixel border implements conv pad=1.
        pbuf_ref[...] = jnp.zeros(pbuf_ref.shape, pbuf_ref.dtype)

        # ---- downsample: MaxPool2d(2,2) from the 2x2 phase decomposition ----
        p_a = xph_ref[3, :, 0:Ho, 0:Wo, :]           # xpad[2i+1, 2j+1]
        p_b = xph_ref[2, :, 0:Ho, 1:Wo + 1, :]       # xpad[2i+1, 2j+2]
        p_c = xph_ref[1, :, 1:Ho + 1, 0:Wo, :]       # xpad[2i+2, 2j+1]
        p_d = xph_ref[0, :, 1:Ho + 1, 1:Wo + 1, :]   # xpad[2i+2, 2j+2]
        bottom = jnp.maximum(jnp.maximum(p_a, p_b),
                             jnp.maximum(p_c, p_d)).reshape(M2, CP)

        # ---- project: 1x1 conv + BN (scale pre-folded into W), no ReLU ----
        resid = jnp.dot(bottom, w1_ref[0], preferred_element_type=f32) + b_ref[0]

        # ---- tree1 = BasicBlock(Cin -> Cout, stride=2) ----
        t1m = relu(conv3x3_from_phases(0) + b_ref[1])
        store_padded(0, t1m)
        x1 = relu(conv3x3_from_pbuf(0, 1) + b_ref[2] + resid)
        store_padded(1, x1)

        # ---- tree2 = BasicBlock(Cout -> Cout, stride=1), residual = x1 ----
        t2m = relu(conv3x3_from_pbuf(1, 2) + b_ref[3])
        store_padded(0, t2m)                          # reuse slot 0
        x2 = relu(conv3x3_from_pbuf(0, 3) + b_ref[4] + x1)

        # ---- Root: 1x1 conv on concat([x2, x1, bottom]) == 3 split matmuls ----
        r = (jnp.dot(x2, w1_ref[1], preferred_element_type=f32)
             + jnp.dot(x1, w1_ref[2], preferred_element_type=f32)
             + jnp.dot(bottom, w1_ref[3], preferred_element_type=f32)
             + b_ref[5])
        out_ref[...] = relu(r)

    return kernel


# --------------------------------------------------------------------------
# Wrapper: weight folding / packing (constant folds) + single pallas_call
# --------------------------------------------------------------------------
def _fold_bn(bn):
    s = bn["gamma"] / jnp.sqrt(bn["var"] + EPS)
    b = bn["beta"] - bn["mean"] * s
    return s, b


def _pack_conv3x3(w_oihw, scale):
    # (Cout, Cin, 3, 3) -> (9, CP, CP), tap-major, BN scale folded into columns
    cout, cin = w_oihw.shape[0], w_oihw.shape[1]
    wt = jnp.transpose(w_oihw, (2, 3, 1, 0)).reshape(9, cin, cout)
    wt = wt * scale[None, None, :]
    return jnp.pad(wt, ((0, 0), (0, CP - cin), (0, CP - cout)))


def _pack_mat(w_ci_co, scale):
    # (Cin, Cout) -> (CP, CP), BN scale folded into columns
    ci, co = w_ci_co.shape
    w = w_ci_co * scale[None, :]
    return jnp.pad(w, ((0, CP - ci), (0, CP - co)))


def _pack_bias(b):
    return jnp.pad(b, (0, CP - b.shape[0])).reshape(1, CP)


def _tree_forward_impl(x_nchw, params):
    N, Cin, H, W = x_nchw.shape
    Cout = params["project_w"].shape[0]
    Ho, Wo = H // 2, W // 2
    M2 = N * Ho * Wo

    # Input prep: NHWC, conv-pad by 1, channel-pad to CP, 2x2 phase decompose.
    x_nhwc = jnp.transpose(x_nchw, (0, 2, 3, 1))
    xpad = jnp.pad(x_nhwc, ((0, 0), (1, 1), (1, 1), (0, CP - Cin)))
    Hp, Wp = H + 2, W + 2
    # phase[pr*2+pc, n, i, j, :] = xpad[n, 2i+pr, 2j+pc, :]
    xph = (xpad.reshape(N, Hp // 2, 2, Wp // 2, 2, CP)
               .transpose(2, 4, 0, 1, 3, 5)
               .reshape(4, N, Hp // 2, Wp // 2, CP))

    # Fold BN (inference mode) and pack weights (pure constant folds).
    s_pr, b_pr = _fold_bn(params["project_bn"])
    s11, b11 = _fold_bn(params["tree1"]["bn1"])
    s12, b12 = _fold_bn(params["tree1"]["bn2"])
    s21, b21 = _fold_bn(params["tree2"]["bn1"])
    s22, b22 = _fold_bn(params["tree2"]["bn2"])
    s_rt, b_rt = _fold_bn(params["root_bn"])

    w3 = jnp.stack([
        _pack_conv3x3(params["tree1"]["conv1_w"], s11),
        _pack_conv3x3(params["tree1"]["conv2_w"], s12),
        _pack_conv3x3(params["tree2"]["conv1_w"], s21),
        _pack_conv3x3(params["tree2"]["conv2_w"], s22),
    ])                                               # (4, 9, CP, CP)

    proj_m = params["project_w"].reshape(Cout, Cin).T           # (Cin, Cout)
    root_m = params["root_w"].reshape(Cout, 2 * Cout + Cin).T   # (2*Cout+Cin, Cout)
    w1 = jnp.stack([
        _pack_mat(proj_m, s_pr),                     # project
        _pack_mat(root_m[0:Cout], s_rt),             # root, x2 slice of concat
        _pack_mat(root_m[Cout:2 * Cout], s_rt),      # root, x1 slice
        _pack_mat(root_m[2 * Cout:], s_rt),          # root, bottom slice
    ])                                               # (4, CP, CP)

    biases = jnp.stack([_pack_bias(b_pr), _pack_bias(b11), _pack_bias(b12),
                        _pack_bias(b21), _pack_bias(b22), _pack_bias(b_rt)])  # (6,1,CP)

    kernel = _make_tree_kernel(N, Ho, Wo)
    full = lambda a: pl.BlockSpec(a.shape, lambda i, _nd=a.ndim: (0,) * _nd)

    out = pl.pallas_call(
        kernel,
        out_shape=jax.ShapeDtypeStruct((M2, CP), jnp.float32),
        grid=(1,),
        in_specs=[full(xph), full(w3), full(w1), full(biases)],
        out_specs=pl.BlockSpec((M2, CP), lambda i: (0, 0)),
        scratch_shapes=[pltpu.VMEM((2, N, Ho + 2, Wo + 2, CP), jnp.float32)],
        compiler_params=pltpu.CompilerParams(dimension_semantics=("arbitrary",)),
    )(xph, w3, w1, biases)

    out = out.reshape(N, Ho, Wo, CP)[..., :Cout]
    return jnp.transpose(out, (0, 3, 1, 2))          # back to NCHW


tree_forward = jax.jit(_tree_forward_impl)


# --------------------------------------------------------------------------
# Deterministic parameter init & pure-JAX reference (NCHW, matches PyTorch)
# --------------------------------------------------------------------------
def make_bn(key, c):
    k1, k2, k3, k4 = jax.random.split(key, 4)
    return dict(gamma=1.0 + 0.1 * jax.random.normal(k1, (c,), jnp.float32),
                beta=0.1 * jax.random.normal(k2, (c,), jnp.float32),
                mean=0.1 * jax.random.normal(k3, (c,), jnp.float32),
                var=jnp.abs(1.0 + 0.1 * jax.random.normal(k4, (c,), jnp.float32)))


def init_params(key, cin, cout):
    ks = jax.random.split(key, 12)
    w = lambda k, shp: 0.1 * jax.random.normal(k, shp, jnp.float32)
    root_dim = 2 * cout + cin  # root_dim=0 -> 2*cout, level_root adds cin
    return dict(
        project_w=w(ks[0], (cout, cin, 1, 1)), project_bn=make_bn(ks[1], cout),
        tree1=dict(conv1_w=w(ks[2], (cout, cin, 3, 3)), bn1=make_bn(ks[3], cout),
                   conv2_w=w(ks[4], (cout, cout, 3, 3)), bn2=make_bn(ks[5], cout)),
        tree2=dict(conv1_w=w(ks[6], (cout, cout, 3, 3)), bn1=make_bn(ks[7], cout),
                   conv2_w=w(ks[8], (cout, cout, 3, 3)), bn2=make_bn(ks[9], cout)),
        root_w=w(ks[10], (cout, root_dim, 1, 1)), root_bn=make_bn(ks[11], cout),
    )


def ref_forward(x_nchw, p):
    dn = ("NCHW", "OIHW", "NCHW")
    hp = jax.lax.Precision.HIGHEST

    def conv(x, w, stride, pad):
        return jax.lax.conv_general_dilated(x, w, (stride, stride),
                                            ((pad, pad), (pad, pad)),
                                            dimension_numbers=dn, precision=hp)

    def bn(x, b):
        s = b["gamma"] / jnp.sqrt(b["var"] + EPS)
        o = b["beta"] - b["mean"] * s
        return x * s[None, :, None, None] + o[None, :, None, None]

    relu = lambda v: jnp.maximum(v, 0.0)

    bottom = jax.lax.reduce_window(x_nchw, -jnp.inf, jax.lax.max,
                                   (1, 1, 2, 2), (1, 1, 2, 2), "VALID")
    residual = bn(conv(bottom, p["project_w"], 1, 0), p["project_bn"])

    def basic(x, res, bp, stride):
        if res is None:
            res = x
        out = relu(bn(conv(x, bp["conv1_w"], stride, 1), bp["bn1"]))
        out = bn(conv(out, bp["conv2_w"], 1, 1), bp["bn2"]) + res
        return relu(out)

    x1 = basic(x_nchw, residual, p["tree1"], 2)
    x2 = basic(x1, None, p["tree2"], 1)
    cat = jnp.concatenate([x2, x1, bottom], axis=1)
    return relu(bn(conv(cat, p["root_w"], 1, 0), p["root_bn"]))


# --------------------------------------------------------------------------
if __name__ == "__main__":
    key = jax.random.PRNGKey(0)
    kx, kp = jax.random.split(key)
    N, Cin, H, W = 2, 4, 16, 16
    Cout = 8

    x_nchw = jax.random.normal(kx, (N, Cin, H, W), jnp.float32)
    params = init_params(kp, Cin, Cout)

    out_nchw = tree_forward(x_nchw, params)
    jax.block_until_ready(out_nchw)

    ref = ref_forward(x_nchw, params)
    assert out_nchw.shape == (N, Cout, H // 2, W // 2), out_nchw.shape
    assert np.allclose(np.asarray(out_nchw), np.asarray(ref), rtol=3e-2, atol=3e-2)
    print("KERNEL_OK")
</pallas_src>

<mosaic_0001>
module attributes {stable_mosaic.version = 11 : i64} {
  func.func @kernel(%arg0: i32, %arg1: memref<4x2x9x9x128xf32, #tpu.memory_space<vmem>>, %arg2: memref<4x9x128x128xf32, #tpu.memory_space<vmem>>, %arg3: memref<4x128x128xf32, #tpu.memory_space<vmem>>, %arg4: memref<6x1x128xf32, #tpu.memory_space<vmem>>, %arg5: memref<128x128xf32, #tpu.memory_space<vmem>>, %arg6: memref<2x2x10x10x128xf32, #tpu.memory_space<vmem>>) attributes {dimension_semantics = [#tpu.dimension_semantics<arbitrary>], iteration_bounds = array<i64: 1>, scalar_prefetch = 0 : i64, scratch_operands = 1 : i64, tpu.core_type = #tpu.core_type<tc>, window_params = [{pipeline_mode = #tpu.pipeline_mode<synchronous>, transform_indices = @transform_0, window_bounds = array<i64: 4, 2, 9, 9, 128>}, {pipeline_mode = #tpu.pipeline_mode<synchronous>, transform_indices = @transform_1, window_bounds = array<i64: 4, 9, 128, 128>}, {pipeline_mode = #tpu.pipeline_mode<synchronous>, transform_indices = @transform_2, window_bounds = array<i64: 4, 128, 128>}, {pipeline_mode = #tpu.pipeline_mode<synchronous>, transform_indices = @transform_3, window_bounds = array<i64: 6, 1, 128>}, {pipeline_mode = #tpu.pipeline_mode<synchronous>, transform_indices = @transform_4, window_bounds = array<i64: 128, 128>}]} {
    %cst = arith.constant 0.000000e+00 : f32
    %0 = vector.broadcast %cst : f32 to vector<2x2x10x10x128xf32>
    %c0 = arith.constant 0 : index
    %c0_0 = arith.constant 0 : index
    %c0_1 = arith.constant 0 : index
    %c0_2 = arith.constant 0 : index
    %c0_3 = arith.constant 0 : index
    %1 = vector.load %arg6[%c0, %c0_0, %c0_1, %c0_2, %c0_3] : memref<2x2x10x10x128xf32, #tpu.memory_space<vmem>>, vector<2x2x10x10x128xf32>
    tpu.vector_store %arg6[%c0, %c0_0, %c0_1, %c0_2, %c0_3], %0 {strides = array<i32>} : memref<2x2x10x10x128xf32, #tpu.memory_space<vmem>>, vector<2x2x10x10x128xf32>,
    %c3 = arith.constant 3 : index
    %c0_4 = arith.constant 0 : index
    %c0_5 = arith.constant 0 : index
    %c0_6 = arith.constant 0 : index
    %c0_7 = arith.constant 0 : index
    %2 = vector.load %arg1[%c3, %c0_4, %c0_5, %c0_6, %c0_7] : memref<4x2x9x9x128xf32, #tpu.memory_space<vmem>>, vector<1x2x8x8x128xf32>
    %3 = vector.shape_cast %2 : vector<1x2x8x8x128xf32> to vector<2x8x8x128xf32>
    %c2 = arith.constant 2 : index
    %c0_8 = arith.constant 0 : index
    %c0_9 = arith.constant 0 : index
    %c1 = arith.constant 1 : index
    %c0_10 = arith.constant 0 : index
    %4 = vector.load %arg1[%c2, %c0_8, %c0_9, %c1, %c0_10] : memref<4x2x9x9x128xf32, #tpu.memory_space<vmem>>, vector<1x2x8x8x128xf32>
    %5 = vector.shape_cast %4 : vector<1x2x8x8x128xf32> to vector<2x8x8x128xf32>
    %c1_11 = arith.constant 1 : index
    %c0_12 = arith.constant 0 : index
    %c1_13 = arith.constant 1 : index
    %c0_14 = arith.constant 0 : index
    %c0_15 = arith.constant 0 : index
    %6 = vector.load %arg1[%c1_11, %c0_12, %c1_13, %c0_14, %c0_15] : memref<4x2x9x9x128xf32, #tpu.memory_space<vmem>>, vector<1x2x8x8x128xf32>
    %7 = vector.shape_cast %6 : vector<1x2x8x8x128xf32> to vector<2x8x8x128xf32>
    %c0_16 = arith.constant 0 : index
    %c0_17 = arith.constant 0 : index
    %c1_18 = arith.constant 1 : index
    %c1_19 = arith.constant 1 : index
    %c0_20 = arith.constant 0 : index
    %8 = vector.load %arg1[%c0_16, %c0_17, %c1_18, %c1_19, %c0_20] : memref<4x2x9x9x128xf32, #tpu.memory_space<vmem>>, vector<1x2x8x8x128xf32>
    %9 = vector.shape_cast %8 : vector<1x2x8x8x128xf32> to vector<2x8x8x128xf32>
    %10 = arith.maximumf %3, %5 : vector<2x8x8x128xf32>
    %11 = arith.maximumf %7, %9 : vector<2x8x8x128xf32>
    %12 = arith.maximumf %10, %11 : vector<2x8x8x128xf32>
    %13 = vector.shape_cast %12 : vector<2x8x8x128xf32> to vector<128x128xf32>
    %c0_21 = arith.constant 0 : index
    %c0_22 = arith.constant 0 : index
    %c0_23 = arith.constant 0 : index
    %14 = vector.load %arg3[%c0_21, %c0_22, %c0_23] : memref<4x128x128xf32, #tpu.memory_space<vmem>>, vector<1x128x128xf32>
    %15 = vector.shape_cast %14 : vector<1x128x128xf32> to vector<128x128xf32>
    %cst_24 = arith.constant dense<0.000000e+00> : vector<128x128xf32>
    %16 = tpu.matmul %13, %15, %cst_24 {dimension_numbers = #tpu.dot_dimension_numbers<[1], [0], [0], [1], [0, 0, 1, 1], [], []>} : vector<128x128xf32>, vector<128x128xf32>, vector<128x128xf32> -> vector<128x128xf32>
    %c0_25 = arith.constant 0 : index
    %c0_26 = arith.constant 0 : index
    %c0_27 = arith.constant 0 : index
    %17 = vector.load %arg4[%c0_25, %c0_26, %c0_27] : memref<6x1x128xf32, #tpu.memory_space<vmem>>, vector<1x1x128xf32>
    %18 = vector.shape_cast %17 : vector<1x1x128xf32> to vector<1x128xf32>
    %19 = vector.broadcast %18 : vector<1x128xf32> to vector<128x128xf32>
    %20 = arith.addf %16, %19 : vector<128x128xf32>
    %c0_28 = arith.constant 0 : index
    %c0_29 = arith.constant 0 : index
    %c0_30 = arith.constant 0 : index
    %c0_31 = arith.constant 0 : index
    %c0_32 = arith.constant 0 : index
    %21 = vector.load %arg1[%c0_28, %c0_29, %c0_30, %c0_31, %c0_32] : memref<4x2x9x9x128xf32, #tpu.memory_space<vmem>>, vector<1x2x8x8x128xf32>
    %22 = vector.shape_cast %21 : vector<1x2x8x8x128xf32> to vector<2x8x8x128xf32>
    %23 = vector.shape_cast %22 : vector<2x8x8x128xf32> to vector<128x128xf32>
    %c0_33 = arith.constant 0 : index
    %c0_34 = arith.constant 0 : index
    %c0_35 = arith.constant 0 : index
    %c0_36 = arith.constant 0 : index
    %24 = vector.load %arg2[%c0_33, %c0_34, %c0_35, %c0_36] : memref<4x9x128x128xf32, #tpu.memory_space<vmem>>, vector<1x1x128x128xf32>
    %25 = vector.shape_cast %24 : vector<1x1x128x128xf32> to vector<128x128xf32>
    %cst_37 = arith.constant dense<0.000000e+00> : vector<128x128xf32>
    %26 = tpu.matmul %23, %25, %cst_37 {dimension_numbers = #tpu.dot_dimension_numbers<[1], [0], [0], [1], [0, 0, 1, 1], [], []>} : vector<128x128xf32>, vector<128x128xf32>, vector<128x128xf32> -> vector<128x128xf32>
    %c1_38 = arith.constant 1 : index
    %c0_39 = arith.constant 0 : index
    %c0_40 = arith.constant 0 : index
    %c0_41 = arith.constant 0 : index
    %c0_42 = arith.constant 0 : index
    %27 = vector.load %arg1[%c1_38, %c0_39, %c0_40, %c0_41, %c0_42] : memref<4x2x9x9x128xf32, #tpu.memory_space<vmem>>, vector<1x2x8x8x128xf32>
    %28 = vector.shape_cast %27 : vector<1x2x8x8x128xf32> to vector<2x8x8x128xf32>
    %29 = vector.shape_cast %28 : vector<2x8x8x128xf32> to vector<128x128xf32>
    %c0_43 = arith.constant 0 : index
    %c1_44 = arith.constant 1 : index
    %c0_45 = arith.constant 0 : index
    %c0_46 = arith.constant 0 : index
    %30 = vector.load %arg2[%c0_43, %c1_44, %c0_45, %c0_46] : memref<4x9x128x128xf32, #tpu.memory_space<vmem>>, vector<1x1x128x128xf32>
    %31 = vector.shape_cast %30 : vector<1x1x128x128xf32> to vector<128x128xf32>
    %cst_47 = arith.constant dense<0.000000e+00> : vector<128x128xf32>
    %32 = tpu.matmul %29, %31, %cst_47 {dimension_numbers = #tpu.dot_dimension_numbers<[1], [0], [0], [1], [0, 0, 1, 1], [], []>} : vector<128x128xf32>, vector<128x128xf32>, vector<128x128xf32> -> vector<128x128xf32>
    %33 = arith.addf %26, %32 : vector<128x128xf32>
    %c0_48 = arith.constant 0 : index
    %c0_49 = arith.constant 0 : index
    %c0_50 = arith.constant 0 : index
    %c1_51 = arith.constant 1 : index
    %c0_52 = arith.constant 0 : index
    %34 = vector.load %arg1[%c0_48, %c0_49, %c0_50, %c1_51, %c0_52] : memref<4x2x9x9x128xf32, #tpu.memory_space<vmem>>, vector<1x2x8x8x128xf32>
    %35 = vector.shape_cast %34 : vector<1x2x8x8x128xf32> to vector<2x8x8x128xf32>
    %36 = vector.shape_cast %35 : vector<2x8x8x128xf32> to vector<128x128xf32>
    %c0_53 = arith.constant 0 : index
    %c2_54 = arith.constant 2 : index
    %c0_55 = arith.constant 0 : index
    %c0_56 = arith.constant 0 : index
    %37 = vector.load %arg2[%c0_53, %c2_54, %c0_55, %c0_56] : memref<4x9x128x128xf32, #tpu.memory_space<vmem>>, vector<1x1x128x128xf32>
    %38 = vector.shape_cast %37 : vector<1x1x128x128xf32> to vector<128x128xf32>
    %cst_57 = arith.constant dense<0.000000e+00> : vector<128x128xf32>
    %39 = tpu.matmul %36, %38, %cst_57 {dimension_numbers = #tpu.dot_dimension_numbers<[1], [0], [0], [1], [0, 0, 1, 1], [], []>} : vector<128x128xf32>, vector<128x128xf32>, vector<128x128xf32> -> vector<128x128xf32>
    %40 = arith.addf %33, %39 : vector<128x128xf32>
    %c2_58 = arith.constant 2 : index
    %c0_59 = arith.constant 0 : index
    %c0_60 = arith.constant 0 : index
    %c0_61 = arith.constant 0 : index
    %c0_62 = arith.constant 0 : index
    %41 = vector.load %arg1[%c2_58, %c0_59, %c0_60, %c0_61, %c0_62] : memref<4x2x9x9x128xf32, #tpu.memory_space<vmem>>, vector<1x2x8x8x128xf32>
    %42 = vector.shape_cast %41 : vector<1x2x8x8x128xf32> to vector<2x8x8x128xf32>
    %43 = vector.shape_cast %42 : vector<2x8x8x128xf32> to vector<128x128xf32>
    %c0_63 = arith.constant 0 : index
    %c3_64 = arith.constant 3 : index
    %c0_65 = arith.constant 0 : index
    %c0_66 = arith.constant 0 : index
    %44 = vector.load %arg2[%c0_63, %c3_64, %c0_65, %c0_66] : memref<4x9x128x128xf32, #tpu.memory_space<vmem>>, vector<1x1x128x128xf32>
    %45 = vector.shape_cast %44 : vector<1x1x128x128xf32> to vector<128x128xf32>
    %cst_67 = arith.constant dense<0.000000e+00> : vector<128x128xf32>
    %46 = tpu.matmul %43, %45, %cst_67 {dimension_numbers = #tpu.dot_dimension_numbers<[1], [0], [0], [1], [0, 0, 1, 1], [], []>} : vector<128x128xf32>, vector<128x128xf32>, vector<128x128xf32> -> vector<128x128xf32>
    %47 = arith.addf %40, %46 : vector<128x128xf32>
    %c3_68 = arith.constant 3 : index
    %c0_69 = arith.constant 0 : index
    %c0_70 = arith.constant 0 : index
    %c0_71 = arith.constant 0 : index
    %c0_72 = arith.constant 0 : index
    %48 = vector.load %arg1[%c3_68, %c0_69, %c0_70, %c0_71, %c0_72] : memref<4x2x9x9x128xf32, #tpu.memory_space<vmem>>, vector<1x2x8x8x128xf32>
    %49 = vector.shape_cast %48 : vector<1x2x8x8x128xf32> to vector<2x8x8x128xf32>
    %50 = vector.shape_cast %49 : vector<2x8x8x128xf32> to vector<128x128xf32>
    %c0_73 = arith.constant 0 : index
    %c4 = arith.constant 4 : index
    %c0_74 = arith.constant 0 : index
    %c0_75 = arith.constant 0 : index
    %51 = vector.load %arg2[%c0_73, %c4, %c0_74, %c0_75] : memref<4x9x128x128xf32, #tpu.memory_space<vmem>>, vector<1x1x128x128xf32>
    %52 = vector.shape_cast %51 : vector<1x1x128x128xf32> to vector<128x128xf32>
    %cst_76 = arith.constant dense<0.000000e+00> : vector<128x128xf32>
    %53 = tpu.matmul %50, %52, %cst_76 {dimension_numbers = #tpu.dot_dimension_numbers<[1], [0], [0], [1], [0, 0, 1, 1], [], []>} : vector<128x128xf32>, vector<128x128xf32>, vector<128x128xf32> -> vector<128x128xf32>
    %54 = arith.addf %47, %53 : vector<128x128xf32>
    %c2_77 = arith.constant 2 : index
    %c0_78 = arith.constant 0 : index
    %c0_79 = arith.constant 0 : index
    %c1_80 = arith.constant 1 : index
    %c0_81 = arith.constant 0 : index
    %55 = vector.load %arg1[%c2_77, %c0_78, %c0_79, %c1_80, %c0_81] : memref<4x2x9x9x128xf32, #tpu.memory_space<vmem>>, vector<1x2x8x8x128xf32>
    %56 = vector.shape_cast %55 : vector<1x2x8x8x128xf32> to vector<2x8x8x128xf32>
    %57 = vector.shape_cast %56 : vector<2x8x8x128xf32> to vector<128x128xf32>
    %c0_82 = arith.constant 0 : index
    %c5 = arith.constant 5 : index
    %c0_83 = arith.constant 0 : index
    %c0_84 = arith.constant 0 : index
    %58 = vector.load %arg2[%c0_82, %c5, %c0_83, %c0_84] : memref<4x9x128x128xf32, #tpu.memory_space<vmem>>, vector<1x1x128x128xf32>
    %59 = vector.shape_cast %58 : vector<1x1x128x128xf32> to vector<128x128xf32>
    %cst_85 = arith.constant dense<0.000000e+00> : vector<128x128xf32>
    %60 = tpu.matmul %57, %59, %cst_85 {dimension_numbers = #tpu.dot_dimension_numbers<[1], [0], [0], [1], [0, 0, 1, 1], [], []>} : vector<128x128xf32>, vector<128x128xf32>, vector<128x128xf32> -> vector<128x128xf32>
    %61 = arith.addf %54, %60 : vector<128x128xf32>
    %c0_86 = arith.constant 0 : index
    %c0_87 = arith.constant 0 : index
    %c1_88 = arith.constant 1 : index
    %c0_89 = arith.constant 0 : index
    %c0_90 = arith.constant 0 : index
    %62 = vector.load %arg1[%c0_86, %c0_87, %c1_88, %c0_89, %c0_90] : memref<4x2x9x9x128xf32, #tpu.memory_space<vmem>>, vector<1x2x8x8x128xf32>
    %63 = vector.shape_cast %62 : vector<1x2x8x8x128xf32> to vector<2x8x8x128xf32>
    %64 = vector.shape_cast %63 : vector<2x8x8x128xf32> to vector<128x128xf32>
    %c0_91 = arith.constant 0 : index
    %c6 = arith.constant 6 : index
    %c0_92 = arith.constant 0 : index
    %c0_93 = arith.constant 0 : index
    %65 = vector.load %arg2[%c0_91, %c6, %c0_92, %c0_93] : memref<4x9x128x128xf32, #tpu.memory_space<vmem>>, vector<1x1x128x128xf32>
    %66 = vector.shape_cast %65 : vector<1x1x128x128xf32> to vector<128x128xf32>
    %cst_94 = arith.constant dense<0.000000e+00> : vector<128x128xf32>
    %67 = tpu.matmul %64, %66, %cst_94 {dimension_numbers = #tpu.dot_dimension_numbers<[1], [0], [0], [1], [0, 0, 1, 1], [], []>} : vector<128x128xf32>, vector<128x128xf32>, vector<128x128xf32> -> vector<128x128xf32>
    %68 = arith.addf %61, %67 : vector<128x128xf32>
    %c1_95 = arith.constant 1 : index
    %c0_96 = arith.constant 0 : index
    %c1_97 = arith.constant 1 : index
    %c0_98 = arith.constant 0 : index
    %c0_99 = arith.constant 0 : index
    %69 = vector.load %arg1[%c1_95, %c0_96, %c1_97, %c0_98, %c0_99] : memref<4x2x9x9x128xf32, #tpu.memory_space<vmem>>, vector<1x2x8x8x128xf32>
    %70 = vector.shape_cast %69 : vector<1x2x8x8x128xf32> to vector<2x8x8x128xf32>
    %71 = vector.shape_cast %70 : vector<2x8x8x128xf32> to vector<128x128xf32>
    %c0_100 = arith.constant 0 : index
    %c7 = arith.constant 7 : index
    %c0_101 = arith.constant 0 : index
    %c0_102 = arith.constant 0 : index
    %72 = vector.load %arg2[%c0_100, %c7, %c0_101, %c0_102] : memref<4x9x128x128xf32, #tpu.memory_space<vmem>>, vector<1x1x128x128xf32>
    %73 = vector.shape_cast %72 : vector<1x1x128x128xf32> to vector<128x128xf32>
    %cst_103 = arith.constant dense<0.000000e+00> : vector<128x128xf32>
    %74 = tpu.matmul %71, %73, %cst_103 {dimension_numbers = #tpu.dot_dimension_numbers<[1], [0], [0], [1], [0, 0, 1, 1], [], []>} : vector<128x128xf32>, vector<128x128xf32>, vector<128x128xf32> -> vector<128x128xf32>
    %75 = arith.addf %68, %74 : vector<128x128xf32>
    %c0_104 = arith.constant 0 : index
    %c0_105 = arith.constant 0 : index
    %c1_106 = arith.constant 1 : index
    %c1_107 = arith.constant 1 : index
    %c0_108 = arith.constant 0 : index
    %76 = vector.load %arg1[%c0_104, %c0_105, %c1_106, %c1_107, %c0_108] : memref<4x2x9x9x128xf32, #tpu.memory_space<vmem>>, vector<1x2x8x8x128xf32>
    %77 = vector.shape_cast %76 : vector<1x2x8x8x128xf32> to vector<2x8x8x128xf32>
    %78 = vector.shape_cast %77 : vector<2x8x8x128xf32> to vector<128x128xf32>
    %c0_109 = arith.constant 0 : index
    %c8 = arith.constant 8 : index
    %c0_110 = arith.constant 0 : index
    %c0_111 = arith.constant 0 : index
    %79 = vector.load %arg2[%c0_109, %c8, %c0_110, %c0_111] : memref<4x9x128x128xf32, #tpu.memory_space<vmem>>, vector<1x1x128x128xf32>
    %80 = vector.shape_cast %79 : vector<1x1x128x128xf32> to vector<128x128xf32>
    %cst_112 = arith.constant dense<0.000000e+00> : vector<128x128xf32>
    %81 = tpu.matmul %78, %80, %cst_112 {dimension_numbers = #tpu.dot_dimension_numbers<[1], [0], [0], [1], [0, 0, 1, 1], [], []>} : vector<128x128xf32>, vector<128x128xf32>, vector<128x128xf32> -> vector<128x128xf32>
    %82 = arith.addf %75, %81 : vector<128x128xf32>
    %c1_113 = arith.constant 1 : index
    %c0_114 = arith.constant 0 : index
    %c0_115 = arith.constant 0 : index
    %83 = vector.load %arg4[%c1_113, %c0_114, %c0_115] : memref<6x1x128xf32, #tpu.memory_space<vmem>>, vector<1x1x128xf32>
    %84 = vector.shape_cast %83 : vector<1x1x128xf32> to vector<1x128xf32>
    %85 = vector.broadcast %84 : vector<1x128xf32> to vector<128x128xf32>
    %86 = arith.addf %82, %85 : vector<128x128xf32>
    %cst_116 = arith.constant 0.000000e+00 : f32
    %87 = vector.broadcast %cst_116 : f32 to vector<128x128xf32>
    %88 = arith.maximumf %86, %87 : vector<128x128xf32>
    %89 = vector.shape_cast %88 : vector<128x128xf32> to vector<2x8x8x128xf32>
    %c0_117 = arith.constant 0 : index
    %c0_118 = arith.constant 0 : index
    %c1_119 = arith.constant 1 : index
    %c1_120 = arith.constant 1 : index
    %c0_121 = arith.constant 0 : index
    %90 = vector.load %arg6[%c0_117, %c0_118, %c1_119, %c1_120, %c0_121] : memref<2x2x10x10x128xf32, #tpu.memory_space<vmem>>, vector<1x2x8x8x128xf32>
    %91 = vector.shape_cast %90 : vector<1x2x8x8x128xf32> to vector<2x8x8x128xf32>
    %92 = vector.shape_cast %89 : vector<2x8x8x128xf32> to vector<1x2x8x8x128xf32>
    tpu.vector_store %arg6[%c0_117, %c0_118, %c1_119, %c1_120, %c0_121], %92 {strides = array<i32>} : memref<2x2x10x10x128xf32, #tpu.memory_space<vmem>>, vector<1x2x8x8x128xf32>,
    %c0_122 = arith.constant 0 : index
    %c0_123 = arith.constant 0 : index
    %c0_124 = arith.constant 0 : index
    %c0_125 = arith.constant 0 : index
    %c0_126 = arith.constant 0 : index
    %93 = vector.load %arg6[%c0_122, %c0_123, %c0_124, %c0_125, %c0_126] : memref<2x2x10x10x128xf32, #tpu.memory_space<vmem>>, vector<1x2x8x8x128xf32>
    %94 = vector.shape_cast %93 : vector<1x2x8x8x128xf32> to vector<2x8x8x128xf32>
    %95 = vector.shape_cast %94 : vector<2x8x8x128xf32> to vector<128x128xf32>
    %c1_127 = arith.constant 1 : index
    %c0_128 = arith.constant 0 : index
    %c0_129 = arith.constant 0 : index
    %c0_130 = arith.constant 0 : index
    %96 = vector.load %arg2[%c1_127, %c0_128, %c0_129, %c0_130] : memref<4x9x128x128xf32, #tpu.memory_space<vmem>>, vector<1x1x128x128xf32>
    %97 = vector.shape_cast %96 : vector<1x1x128x128xf32> to vector<128x128xf32>
    %cst_131 = arith.constant dense<0.000000e+00> : vector<128x128xf32>
    %98 = tpu.matmul %95, %97, %cst_131 {dimension_numbers = #tpu.dot_dimension_numbers<[1], [0], [0], [1], [0, 0, 1, 1], [], []>} : vector<128x128xf32>, vector<128x128xf32>, vector<128x128xf32> -> vector<128x128xf32>
    %c0_132 = arith.constant 0 : index
    %c0_133 = arith.constant 0 : index
    %c0_134 = arith.constant 0 : index
    %c1_135 = arith.constant 1 : index
    %c0_136 = arith.constant 0 : index
    %99 = vector.load %arg6[%c0_132, %c0_133, %c0_134, %c1_135, %c0_136] : memref<2x2x10x10x128xf32, #tpu.memory_space<vmem>>, vector<1x2x8x8x128xf32>
    %100 = vector.shape_cast %99 : vector<1x2x8x8x128xf32> to vector<2x8x8x128xf32>
    %101 = vector.shape_cast %100 : vector<2x8x8x128xf32> to vector<128x128xf32>
    %c1_137 = arith.constant 1 : index
    %c1_138 = arith.constant 1 : index
    %c0_139 = arith.constant 0 : index
    %c0_140 = arith.constant 0 : index
    %102 = vector.load %arg2[%c1_137, %c1_138, %c0_139, %c0_140] : memref<4x9x128x128xf32, #tpu.memory_space<vmem>>, vector<1x1x128x128xf32>
    %103 = vector.shape_cast %102 : vector<1x1x128x128xf32> to vector<128x128xf32>
    %cst_141 = arith.constant dense<0.000000e+00> : vector<128x128xf32>
    %104 = tpu.matmul %101, %103, %cst_141 {dimension_numbers = #tpu.dot_dimension_numbers<[1], [0], [0], [1], [0, 0, 1, 1], [], []>} : vector<128x128xf32>, vector<128x128xf32>, vector<128x128xf32> -> vector<128x128xf32>
    %105 = arith.addf %98, %104 : vector<128x128xf32>
    %c0_142 = arith.constant 0 : index
    %c0_143 = arith.constant 0 : index
    %c0_144 = arith.constant 0 : index
    %c2_145 = arith.constant 2 : index
    %c0_146 = arith.constant 0 : index
    %106 = vector.load %arg6[%c0_142, %c0_143, %c0_144, %c2_145, %c0_146] : memref<2x2x10x10x128xf32, #tpu.memory_space<vmem>>, vector<1x2x8x8x128xf32>
    %107 = vector.shape_cast %106 : vector<1x2x8x8x128xf32> to vector<2x8x8x128xf32>
    %108 = vector.shape_cast %107 : vector<2x8x8x128xf32> to vector<128x128xf32>
    %c1_147 = arith.constant 1 : index
    %c2_148 = arith.constant 2 : index
    %c0_149 = arith.constant 0 : index
    %c0_150 = arith.constant 0 : index
    %109 = vector.load %arg2[%c1_147, %c2_148, %c0_149, %c0_150] : memref<4x9x128x128xf32, #tpu.memory_space<vmem>>, vector<1x1x128x128xf32>
    %110 = vector.shape_cast %109 : vector<1x1x128x128xf32> to vector<128x128xf32>
    %cst_151 = arith.constant dense<0.000000e+00> : vector<128x128xf32>
    %111 = tpu.matmul %108, %110, %cst_151 {dimension_numbers = #tpu.dot_dimension_numbers<[1], [0], [0], [1], [0, 0, 1, 1], [], []>} : vector<128x128xf32>, vector<128x128xf32>, vector<128x128xf32> -> vector<128x128xf32>
    %112 = arith.addf %105, %111 : vector<128x128xf32>
    %c0_152 = arith.constant 0 : index
    %c0_153 = arith.constant 0 : index
    %c1_154 = arith.constant 1 : index
    %c0_155 = arith.constant 0 : index
    %c0_156 = arith.constant 0 : index
    %113 = vector.load %arg6[%c0_152, %c0_153, %c1_154, %c0_155, %c0_156] : memref<2x2x10x10x128xf32, #tpu.memory_space<vmem>>, vector<1x2x8x8x128xf32>
    %114 = vector.shape_cast %113 : vector<1x2x8x8x128xf32> to vector<2x8x8x128xf32>
    %115 = vector.shape_cast %114 : vector<2x8x8x128xf32> to vector<128x128xf32>
    %c1_157 = arith.constant 1 : index
    %c3_158 = arith.constant 3 : index
    %c0_159 = arith.constant 0 : index
    %c0_160 = arith.constant 0 : index
    %116 = vector.load %arg2[%c1_157, %c3_158, %c0_159, %c0_160] : memref<4x9x128x128xf32, #tpu.memory_space<vmem>>, vector<1x1x128x128xf32>
    %117 = vector.shape_cast %116 : vector<1x1x128x128xf32> to vector<128x128xf32>
    %cst_161 = arith.constant dense<0.000000e+00> : vector<128x128xf32>
    %118 = tpu.matmul %115, %117, %cst_161 {dimension_numbers = #tpu.dot_dimension_numbers<[1], [0], [0], [1], [0, 0, 1, 1], [], []>} : vector<128x128xf32>, vector<128x128xf32>, vector<128x128xf32> -> vector<128x128xf32>
    %119 = arith.addf %112, %118 : vector<128x128xf32>
    %c0_162 = arith.constant 0 : index
    %c0_163 = arith.constant 0 : index
    %c1_164 = arith.constant 1 : index
    %c1_165 = arith.constant 1 : index
    %c0_166 = arith.constant 0 : index
    %120 = vector.load %arg6[%c0_162, %c0_163, %c1_164, %c1_165, %c0_166] : memref<2x2x10x10x128xf32, #tpu.memory_space<vmem>>, vector<1x2x8x8x128xf32>
    %121 = vector.shape_cast %120 : vector<1x2x8x8x128xf32> to vector<2x8x8x128xf32>
    %122 = vector.shape_cast %121 : vector<2x8x8x128xf32> to vector<128x128xf32>
    %c1_167 = arith.constant 1 : index
    %c4_168 = arith.constant 4 : index
    %c0_169 = arith.constant 0 : index
    %c0_170 = arith.constant 0 : index
    %123 = vector.load %arg2[%c1_167, %c4_168, %c0_169, %c0_170] : memref<4x9x128x128xf32, #tpu.memory_space<vmem>>, vector<1x1x128x128xf32>
    %124 = vector.shape_cast %123 : vector<1x1x128x128xf32> to vector<128x128xf32>
    %cst_171 = arith.constant dense<0.000000e+00> : vector<128x128xf32>
    %125 = tpu.matmul %122, %124, %cst_171 {dimension_numbers = #tpu.dot_dimension_numbers<[1], [0], [0], [1], [0, 0, 1, 1], [], []>} : vector<128x128xf32>, vector<128x128xf32>, vector<128x128xf32> -> vector<128x128xf32>
    %126 = arith.addf %119, %125 : vector<128x128xf32>
    %c0_172 = arith.constant 0 : index
    %c0_173 = arith.constant 0 : index
    %c1_174 = arith.constant 1 : index
    %c2_175 = arith.constant 2 : index
    %c0_176 = arith.constant 0 : index
    %127 = vector.load %arg6[%c0_172, %c0_173, %c1_174, %c2_175, %c0_176] : memref<2x2x10x10x128xf32, #tpu.memory_space<vmem>>, vector<1x2x8x8x128xf32>
    %128 = vector.shape_cast %127 : vector<1x2x8x8x128xf32> to vector<2x8x8x128xf32>
    %129 = vector.shape_cast %128 : vector<2x8x8x128xf32> to vector<128x128xf32>
    %c1_177 = arith.constant 1 : index
    %c5_178 = arith.constant 5 : index
    %c0_179 = arith.constant 0 : index
    %c0_180 = arith.constant 0 : index
    %130 = vector.load %arg2[%c1_177, %c5_178, %c0_179, %c0_180] : memref<4x9x128x128xf32, #tpu.memory_space<vmem>>, vector<1x1x128x128xf32>
    %131 = vector.shape_cast %130 : vector<1x1x128x128xf32> to vector<128x128xf32>
    %cst_181 = arith.constant dense<0.000000e+00> : vector<128x128xf32>
    %132 = tpu.matmul %129, %131, %cst_181 {dimension_numbers = #tpu.dot_dimension_numbers<[1], [0], [0], [1], [0, 0, 1, 1], [], []>} : vector<128x128xf32>, vector<128x128xf32>, vector<128x128xf32> -> vector<128x128xf32>
    %133 = arith.addf %126, %132 : vector<128x128xf32>
    %c0_182 = arith.constant 0 : index
    %c0_183 = arith.constant 0 : index
    %c2_184 = arith.constant 2 : index
    %c0_185 = arith.constant 0 : index
    %c0_186 = arith.constant 0 : index
    %134 = vector.load %arg6[%c0_182, %c0_183, %c2_184, %c0_185, %c0_186] : memref<2x2x10x10x128xf32, #tpu.memory_space<vmem>>, vector<1x2x8x8x128xf32>
    %135 = vector.shape_cast %134 : vector<1x2x8x8x128xf32> to vector<2x8x8x128xf32>
    %136 = vector.shape_cast %135 : vector<2x8x8x128xf32> to vector<128x128xf32>
    %c1_187 = arith.constant 1 : index
    %c6_188 = arith.constant 6 : index
    %c0_189 = arith.constant 0 : index
    %c0_190 = arith.constant 0 : index
    %137 = vector.load %arg2[%c1_187, %c6_188, %c0_189, %c0_190] : memref<4x9x128x128xf32, #tpu.memory_space<vmem>>, vector<1x1x128x128xf32>
    %138 = vector.shape_cast %137 : vector<1x1x128x128xf32> to vector<128x128xf32>
    %cst_191 = arith.constant dense<0.000000e+00> : vector<128x128xf32>
    %139 = tpu.matmul %136, %138, %cst_191 {dimension_numbers = #tpu.dot_dimension_numbers<[1], [0], [0], [1], [0, 0, 1, 1], [], []>} : vector<128x128xf32>, vector<128x128xf32>, vector<128x128xf32> -> vector<128x128xf32>
    %140 = arith.addf %133, %139 : vector<128x128xf32>
    %c0_192 = arith.constant 0 : index
    %c0_193 = arith.constant 0 : index
    %c2_194 = arith.constant 2 : index
    %c1_195 = arith.constant 1 : index
    %c0_196 = arith.constant 0 : index
    %141 = vector.load %arg6[%c0_192, %c0_193, %c2_194, %c1_195, %c0_196] : memref<2x2x10x10x128xf32, #tpu.memory_space<vmem>>, vector<1x2x8x8x128xf32>
    %142 = vector.shape_cast %141 : vector<1x2x8x8x128xf32> to vector<2x8x8x128xf32>
    %143 = vector.shape_cast %142 : vector<2x8x8x128xf32> to vector<128x128xf32>
    %c1_197 = arith.constant 1 : index
    %c7_198 = arith.constant 7 : index
    %c0_199 = arith.constant 0 : index
    %c0_200 = arith.constant 0 : index
    %144 = vector.load %arg2[%c1_197, %c7_198, %c0_199, %c0_200] : memref<4x9x128x128xf32, #tpu.memory_space<vmem>>, vector<1x1x128x128xf32>
    %145 = vector.shape_cast %144 : vector<1x1x128x128xf32> to vector<128x128xf32>
    %cst_201 = arith.constant dense<0.000000e+00> : vector<128x128xf32>
    %146 = tpu.matmul %143, %145, %cst_201 {dimension_numbers = #tpu.dot_dimension_numbers<[1], [0], [0], [1], [0, 0, 1, 1], [], []>} : vector<128x128xf32>, vector<128x128xf32>, vector<128x128xf32> -> vector<128x128xf32>
    %147 = arith.addf %140, %146 : vector<128x128xf32>
    %c0_202 = arith.constant 0 : index
    %c0_203 = arith.constant 0 : index
    %c2_204 = arith.constant 2 : index
    %c2_205 = arith.constant 2 : index
    %c0_206 = arith.constant 0 : index
    %148 = vector.load %arg6[%c0_202, %c0_203, %c2_204, %c2_205, %c0_206] : memref<2x2x10x10x128xf32, #tpu.memory_space<vmem>>, vector<1x2x8x8x128xf32>
    %149 = vector.shape_cast %148 : vector<1x2x8x8x128xf32> to vector<2x8x8x128xf32>
    %150 = vector.shape_cast %149 : vector<2x8x8x128xf32> to vector<128x128xf32>
    %c1_207 = arith.constant 1 : index
    %c8_208 = arith.constant 8 : index
    %c0_209 = arith.constant 0 : index
    %c0_210 = arith.constant 0 : index
    %151 = vector.load %arg2[%c1_207, %c8_208, %c0_209, %c0_210] : memref<4x9x128x128xf32, #tpu.memory_space<vmem>>, vector<1x1x128x128xf32>
    %152 = vector.shape_cast %151 : vector<1x1x128x128xf32> to vector<128x128xf32>
    %cst_211 = arith.constant dense<0.000000e+00> : vector<128x128xf32>
    %153 = tpu.matmul %150, %152, %cst_211 {dimension_numbers = #tpu.dot_dimension_numbers<[1], [0], [0], [1], [0, 0, 1, 1], [], []>} : vector<128x128xf32>, vector<128x128xf32>, vector<128x128xf32> -> vector<128x128xf32>
    %154 = arith.addf %147, %153 : vector<128x128xf32>
    %c2_212 = arith.constant 2 : index
    %c0_213 = arith.constant 0 : index
    %c0_214 = arith.constant 0 : index
    %155 = vector.load %arg4[%c2_212, %c0_213, %c0_214] : memref<6x1x128xf32, #tpu.memory_space<vmem>>, vector<1x1x128xf32>
    %156 = vector.shape_cast %155 : vector<1x1x128xf32> to vector<1x128xf32>
    %157 = vector.broadcast %156 : vector<1x128xf32> to vector<128x128xf32>
    %158 = arith.addf %154, %157 : vector<128x128xf32>
    %159 = arith.addf %158, %20 : vector<128x128xf32>
    %cst_215 = arith.constant 0.000000e+00 : f32
    %160 = vector.broadcast %cst_215 : f32 to vector<128x128xf32>
    %161 = arith.maximumf %159, %160 : vector<128x128xf32>
    %162 = vector.shape_cast %161 : vector<128x128xf32> to vector<2x8x8x128xf32>
    %c1_216 = arith.constant 1 : index
    %c0_217 = arith.constant 0 : index
    %c1_218 = arith.constant 1 : index
    %c1_219 = arith.constant 1 : index
    %c0_220 = arith.constant 0 : index
    %163 = vector.load %arg6[%c1_216, %c0_217, %c1_218, %c1_219, %c0_220] : memref<2x2x10x10x128xf32, #tpu.memory_space<vmem>>, vector<1x2x8x8x128xf32>
    %164 = vector.shape_cast %163 : vector<1x2x8x8x128xf32> to vector<2x8x8x128xf32>
    %165 = vector.shape_cast %162 : vector<2x8x8x128xf32> to vector<1x2x8x8x128xf32>
    tpu.vector_store %arg6[%c1_216, %c0_217, %c1_218, %c1_219, %c0_220], %165 {strides = array<i32>} : memref<2x2x10x10x128xf32, #tpu.memory_space<vmem>>, vector<1x2x8x8x128xf32>,
    %c1_221 = arith.constant 1 : index
    %c0_222 = arith.constant 0 : index
    %c0_223 = arith.constant 0 : index
    %c0_224 = arith.constant 0 : index
    %c0_225 = arith.constant 0 : index
    %166 = vector.load %arg6[%c1_221, %c0_222, %c0_223, %c0_224, %c0_225] : memref<2x2x10x10x128xf32, #tpu.memory_space<vmem>>, vector<1x2x8x8x128xf32>
    %167 = vector.shape_cast %166 : vector<1x2x8x8x128xf32> to vector<2x8x8x128xf32>
    %168 = vector.shape_cast %167 : vector<2x8x8x128xf32> to vector<128x128xf32>
    %c2_226 = arith.constant 2 : index
    %c0_227 = arith.constant 0 : index
    %c0_228 = arith.constant 0 : index
    %c0_229 = arith.constant 0 : index
    %169 = vector.load %arg2[%c2_226, %c0_227, %c0_228, %c0_229] : memref<4x9x128x128xf32, #tpu.memory_space<vmem>>, vector<1x1x128x128xf32>
    %170 = vector.shape_cast %169 : vector<1x1x128x128xf32> to vector<128x128xf32>
    %cst_230 = arith.constant dense<0.000000e+00> : vector<128x128xf32>
    %171 = tpu.matmul %168, %170, %cst_230 {dimension_numbers = #tpu.dot_dimension_numbers<[1], [0], [0], [1], [0, 0, 1, 1], [], []>} : vector<128x128xf32>, vector<128x128xf32>, vector<128x128xf32> -> vector<128x128xf32>
    %c1_231 = arith.constant 1 : index
    %c0_232 = arith.constant 0 : index
    %c0_233 = arith.constant 0 : index
    %c1_234 = arith.constant 1 : index
    %c0_235 = arith.constant 0 : index
    %172 = vector.load %arg6[%c1_231, %c0_232, %c0_233, %c1_234, %c0_235] : memref<2x2x10x10x128xf32, #tpu.memory_space<vmem>>, vector<1x2x8x8x128xf32>
    %173 = vector.shape_cast %172 : vector<1x2x8x8x128xf32> to vector<2x8x8x128xf32>
    %174 = vector.shape_cast %173 : vector<2x8x8x128xf32> to vector<128x128xf32>
    %c2_236 = arith.constant 2 : index
    %c1_237 = arith.constant 1 : index
    %c0_238 = arith.constant 0 : index
    %c0_239 = arith.constant 0 : index
    %175 = vector.load %arg2[%c2_236, %c1_237, %c0_238, %c0_239] : memref<4x9x128x128xf32, #tpu.memory_space<vmem>>, vector<1x1x128x128xf32>
    %176 = vector.shape_cast %175 : vector<1x1x128x128xf32> to vector<128x128xf32>
    %cst_240 = arith.constant dense<0.000000e+00> : vector<128x128xf32>
    %177 = tpu.matmul %174, %176, %cst_240 {dimension_numbers = #tpu.dot_dimension_numbers<[1], [0], [0], [1], [0, 0, 1, 1], [], []>} : vector<128x128xf32>, vector<128x128xf32>, vector<128x128xf32> -> vector<128x128xf32>
    %178 = arith.addf %171, %177 : vector<128x128xf32>
    %c1_241 = arith.constant 1 : index
    %c0_242 = arith.constant 0 : index
    %c0_243 = arith.constant 0 : index
    %c2_244 = arith.constant 2 : index
    %c0_245 = arith.constant 0 : index
    %179 = vector.load %arg6[%c1_241, %c0_242, %c0_243, %c2_244, %c0_245] : memref<2x2x10x10x128xf32, #tpu.memory_space<vmem>>, vector<1x2x8x8x128xf32>
    %180 = vector.shape_cast %179 : vector<1x2x8x8x128xf32> to vector<2x8x8x128xf32>
    %181 = vector.shape_cast %180 : vector<2x8x8x128xf32> to vector<128x128xf32>
    %c2_246 = arith.constant 2 : index
    %c2_247 = arith.constant 2 : index
    %c0_248 = arith.constant 0 : index
    %c0_249 = arith.constant 0 : index
    %182 = vector.load %arg2[%c2_246, %c2_247, %c0_248, %c0_249] : memref<4x9x128x128xf32, #tpu.memory_space<vmem>>, vector<1x1x128x128xf32>
    %183 = vector.shape_cast %182 : vector<1x1x128x128xf32> to vector<128x128xf32>
    %cst_250 = arith.constant dense<0.000000e+00> : vector<128x128xf32>
    %184 = tpu.matmul %181, %183, %cst_250 {dimension_numbers = #tpu.dot_dimension_numbers<[1], [0], [0], [1], [0, 0, 1, 1], [], []>} : vector<128x128xf32>, vector<128x128xf32>, vector<128x128xf32> -> vector<128x128xf32>
    %185 = arith.addf %178, %184 : vector<128x128xf32>
    %c1_251 = arith.constant 1 : index
    %c0_252 = arith.constant 0 : index
    %c1_253 = arith.constant 1 : index
    %c0_254 = arith.constant 0 : index
    %c0_255 = arith.constant 0 : index
    %186 = vector.load %arg6[%c1_251, %c0_252, %c1_253, %c0_254, %c0_255] : memref<2x2x10x10x128xf32, #tpu.memory_space<vmem>>, vector<1x2x8x8x128xf32>
    %187 = vector.shape_cast %186 : vector<1x2x8x8x128xf32> to vector<2x8x8x128xf32>
    %188 = vector.shape_cast %187 : vector<2x8x8x128xf32> to vector<128x128xf32>
    %c2_256 = arith.constant 2 : index
    %c3_257 = arith.constant 3 : index
    %c0_258 = arith.constant 0 : index
    %c0_259 = arith.constant 0 : index
    %189 = vector.load %arg2[%c2_256, %c3_257, %c0_258, %c0_259] : memref<4x9x128x128xf32, #tpu.memory_space<vmem>>, vector<1x1x128x128xf32>
    %190 = vector.shape_cast %189 : vector<1x1x128x128xf32> to vector<128x128xf32>
    %cst_260 = arith.constant dense<0.000000e+00> : vector<128x128xf32>
    %191 = tpu.matmul %188, %190, %cst_260 {dimension_numbers = #tpu.dot_dimension_numbers<[1], [0], [0], [1], [0, 0, 1, 1], [], []>} : vector<128x128xf32>, vector<128x128xf32>, vector<128x128xf32> -> vector<128x128xf32>
    %192 = arith.addf %185, %191 : vector<128x128xf32>
    %c1_261 = arith.constant 1 : index
    %c0_262 = arith.constant 0 : index
    %c1_263 = arith.constant 1 : index
    %c1_264 = arith.constant 1 : index
    %c0_265 = arith.constant 0 : index
    %193 = vector.load %arg6[%c1_261, %c0_262, %c1_263, %c1_264, %c0_265] : memref<2x2x10x10x128xf32, #tpu.memory_space<vmem>>, vector<1x2x8x8x128xf32>
    %194 = vector.shape_cast %193 : vector<1x2x8x8x128xf32> to vector<2x8x8x128xf32>
    %195 = vector.shape_cast %194 : vector<2x8x8x128xf32> to vector<128x128xf32>
    %c2_266 = arith.constant 2 : index
    %c4_267 = arith.constant 4 : index
    %c0_268 = arith.constant 0 : index
    %c0_269 = arith.constant 0 : index
    %196 = vector.load %arg2[%c2_266, %c4_267, %c0_268, %c0_269] : memref<4x9x128x128xf32, #tpu.memory_space<vmem>>, vector<1x1x128x128xf32>
    %197 = vector.shape_cast %196 : vector<1x1x128x128xf32> to vector<128x128xf32>
    %cst_270 = arith.constant dense<0.000000e+00> : vector<128x128xf32>
    %198 = tpu.matmul %195, %197, %cst_270 {dimension_numbers = #tpu.dot_dimension_numbers<[1], [0], [0], [1], [0, 0, 1, 1], [], []>} : vector<128x128xf32>, vector<128x128xf32>, vector<128x128xf32> -> vector<128x128xf32>
    %199 = arith.addf %192, %198 : vector<128x128xf32>
    %c1_271 = arith.constant 1 : index
    %c0_272 = arith.constant 0 : index
    %c1_273 = arith.constant 1 : index
    %c2_274 = arith.constant 2 : index
    %c0_275 = arith.constant 0 : index
    %200 = vector.load %arg6[%c1_271, %c0_272, %c1_273, %c2_274, %c0_275] : memref<2x2x10x10x128xf32, #tpu.memory_space<vmem>>, vector<1x2x8x8x128xf32>
    %201 = vector.shape_cast %200 : vector<1x2x8x8x128xf32> to vector<2x8x8x128xf32>
    %202 = vector.shape_cast %201 : vector<2x8x8x128xf32> to vector<128x128xf32>
    %c2_276 = arith.constant 2 : index
    %c5_277 = arith.constant 5 : index
    %c0_278 = arith.constant 0 : index
    %c0_279 = arith.constant 0 : index
    %203 = vector.load %arg2[%c2_276, %c5_277, %c0_278, %c0_279] : memref<4x9x128x128xf32, #tpu.memory_space<vmem>>, vector<1x1x128x128xf32>
    %204 = vector.shape_cast %203 : vector<1x1x128x128xf32> to vector<128x128xf32>
    %cst_280 = arith.constant dense<0.000000e+00> : vector<128x128xf32>
    %205 = tpu.matmul %202, %204, %cst_280 {dimension_numbers = #tpu.dot_dimension_numbers<[1], [0], [0], [1], [0, 0, 1, 1], [], []>} : vector<128x128xf32>, vector<128x128xf32>, vector<128x128xf32> -> vector<128x128xf32>
    %206 = arith.addf %199, %205 : vector<128x128xf32>
    %c1_281 = arith.constant 1 : index
    %c0_282 = arith.constant 0 : index
    %c2_283 = arith.constant 2 : index
    %c0_284 = arith.constant 0 : index
    %c0_285 = arith.constant 0 : index
    %207 = vector.load %arg6[%c1_281, %c0_282, %c2_283, %c0_284, %c0_285] : memref<2x2x10x10x128xf32, #tpu.memory_space<vmem>>, vector<1x2x8x8x128xf32>
    %208 = vector.shape_cast %207 : vector<1x2x8x8x128xf32> to vector<2x8x8x128xf32>
    %209 = vector.shape_cast %208 : vector<2x8x8x128xf32> to vector<128x128xf32>
    %c2_286 = arith.constant 2 : index
    %c6_287 = arith.constant 6 : index
    %c0_288 = arith.constant 0 : index
    %c0_289 = arith.constant 0 : index
    %210 = vector.load %arg2[%c2_286, %c6_287, %c0_288, %c0_289] : memref<4x9x128x128xf32, #tpu.memory_space<vmem>>, vector<1x1x128x128xf32>
    %211 = vector.shape_cast %210 : vector<1x1x128x128xf32> to vector<128x128xf32>
    %cst_290 = arith.constant dense<0.000000e+00> : vector<128x128xf32>
    %212 = tpu.matmul %209, %211, %cst_290 {dimension_numbers = #tpu.dot_dimension_numbers<[1], [0], [0], [1], [0, 0, 1, 1], [], []>} : vector<128x128xf32>, vector<128x128xf32>, vector<128x128xf32> -> vector<128x128xf32>
    %213 = arith.addf %206, %212 : vector<128x128xf32>
    %c1_291 = arith.constant 1 : index
    %c0_292 = arith.constant 0 : index
    %c2_293 = arith.constant 2 : index
    %c1_294 = arith.constant 1 : index
    %c0_295 = arith.constant 0 : index
    %214 = vector.load %arg6[%c1_291, %c0_292, %c2_293, %c1_294, %c0_295] : memref<2x2x10x10x128xf32, #tpu.memory_space<vmem>>, vector<1x2x8x8x128xf32>
    %215 = vector.shape_cast %214 : vector<1x2x8x8x128xf32> to vector<2x8x8x128xf32>
    %216 = vector.shape_cast %215 : vector<2x8x8x128xf32> to vector<128x128xf32>
    %c2_296 = arith.constant 2 : index
    %c7_297 = arith.constant 7 : index
    %c0_298 = arith.constant 0 : index
    %c0_299 = arith.constant 0 : index
    %217 = vector.load %arg2[%c2_296, %c7_297, %c0_298, %c0_299] : memref<4x9x128x128xf32, #tpu.memory_space<vmem>>, vector<1x1x128x128xf32>
    %218 = vector.shape_cast %217 : vector<1x1x128x128xf32> to vector<128x128xf32>
    %cst_300 = arith.constant dense<0.000000e+00> : vector<128x128xf32>
    %219 = tpu.matmul %216, %218, %cst_300 {dimension_numbers = #tpu.dot_dimension_numbers<[1], [0], [0], [1], [0, 0, 1, 1], [], []>} : vector<128x128xf32>, vector<128x128xf32>, vector<128x128xf32> -> vector<128x128xf32>
    %220 = arith.addf %213, %219 : vector<128x128xf32>
    %c1_301 = arith.constant 1 : index
    %c0_302 = arith.constant 0 : index
    %c2_303 = arith.constant 2 : index
    %c2_304 = arith.constant 2 : index
    %c0_305 = arith.constant 0 : index
    %221 = vector.load %arg6[%c1_301, %c0_302, %c2_303, %c2_304, %c0_305] : memref<2x2x10x10x128xf32, #tpu.memory_space<vmem>>, vector<1x2x8x8x128xf32>
    %222 = vector.shape_cast %221 : vector<1x2x8x8x128xf32> to vector<2x8x8x128xf32>
    %223 = vector.shape_cast %222 : vector<2x8x8x128xf32> to vector<128x128xf32>
    %c2_306 = arith.constant 2 : index
    %c8_307 = arith.constant 8 : index
    %c0_308 = arith.constant 0 : index
    %c0_309 = arith.constant 0 : index
    %224 = vector.load %arg2[%c2_306, %c8_307, %c0_308, %c0_309] : memref<4x9x128x128xf32, #tpu.memory_space<vmem>>, vector<1x1x128x128xf32>
    %225 = vector.shape_cast %224 : vector<1x1x128x128xf32> to vector<128x128xf32>
    %cst_310 = arith.constant dense<0.000000e+00> : vector<128x128xf32>
    %226 = tpu.matmul %223, %225, %cst_310 {dimension_numbers = #tpu.dot_dimension_numbers<[1], [0], [0], [1], [0, 0, 1, 1], [], []>} : vector<128x128xf32>, vector<128x128xf32>, vector<128x128xf32> -> vector<128x128xf32>
    %227 = arith.addf %220, %226 : vector<128x128xf32>
    %c3_311 = arith.constant 3 : index
    %c0_312 = arith.constant 0 : index
    %c0_313 = arith.constant 0 : index
    %228 = vector.load %arg4[%c3_311, %c0_312, %c0_313] : memref<6x1x128xf32, #tpu.memory_space<vmem>>, vector<1x1x128xf32>
    %229 = vector.shape_cast %228 : vector<1x1x128xf32> to vector<1x128xf32>
    %230 = vector.broadcast %229 : vector<1x128xf32> to vector<128x128xf32>
    %231 = arith.addf %227, %230 : vector<128x128xf32>
    %cst_314 = arith.constant 0.000000e+00 : f32
    %232 = vector.broadcast %cst_314 : f32 to vector<128x128xf32>
    %233 = arith.maximumf %231, %232 : vector<128x128xf32>
    %234 = vector.shape_cast %233 : vector<128x128xf32> to vector<2x8x8x128xf32>
    %c0_315 = arith.constant 0 : index
    %c0_316 = arith.constant 0 : index
    %c1_317 = arith.constant 1 : index
    %c1_318 = arith.constant 1 : index
    %c0_319 = arith.constant 0 : index
    %235 = vector.load %arg6[%c0_315, %c0_316, %c1_317, %c1_318, %c0_319] : memref<2x2x10x10x128xf32, #tpu.memory_space<vmem>>, vector<1x2x8x8x128xf32>
    %236 = vector.shape_cast %235 : vector<1x2x8x8x128xf32> to vector<2x8x8x128xf32>
    %237 = vector.shape_cast %234 : vector<2x8x8x128xf32> to vector<1x2x8x8x128xf32>
    tpu.vector_store %arg6[%c0_315, %c0_316, %c1_317, %c1_318, %c0_319], %237 {strides = array<i32>} : memref<2x2x10x10x128xf32, #tpu.memory_space<vmem>>, vector<1x2x8x8x128xf32>,
    %c0_320 = arith.constant 0 : index
    %c0_321 = arith.constant 0 : index
    %c0_322 = arith.constant 0 : index
    %c0_323 = arith.constant 0 : index
    %c0_324 = arith.constant 0 : index
    %238 = vector.load %arg6[%c0_320, %c0_321, %c0_322, %c0_323, %c0_324] : memref<2x2x10x10x128xf32, #tpu.memory_space<vmem>>, vector<1x2x8x8x128xf32>
    %239 = vector.shape_cast %238 : vector<1x2x8x8x128xf32> to vector<2x8x8x128xf32>
    %240 = vector.shape_cast %239 : vector<2x8x8x128xf32> to vector<128x128xf32>
    %c3_325 = arith.constant 3 : index
    %c0_326 = arith.constant 0 : index
    %c0_327 = arith.constant 0 : index
    %c0_328 = arith.constant 0 : index
    %241 = vector.load %arg2[%c3_325, %c0_326, %c0_327, %c0_328] : memref<4x9x128x128xf32, #tpu.memory_space<vmem>>, vector<1x1x128x128xf32>
    %242 = vector.shape_cast %241 : vector<1x1x128x128xf32> to vector<128x128xf32>
    %cst_329 = arith.constant dense<0.000000e+00> : vector<128x128xf32>
    %243 = tpu.matmul %240, %242, %cst_329 {dimension_numbers = #tpu.dot_dimension_numbers<[1], [0], [0], [1], [0, 0, 1, 1], [], []>} : vector<128x128xf32>, vector<128x128xf32>, vector<128x128xf32> -> vector<128x128xf32>
    %c0_330 = arith.constant 0 : index
    %c0_331 = arith.constant 0 : index
    %c0_332 = arith.constant 0 : index
    %c1_333 = arith.constant 1 : index
    %c0_334 = arith.constant 0 : index
    %244 = vector.load %arg6[%c0_330, %c0_331, %c0_332, %c1_333, %c0_334] : memref<2x2x10x10x128xf32, #tpu.memory_space<vmem>>, vector<1x2x8x8x128xf32>
    %245 = vector.shape_cast %244 : vector<1x2x8x8x128xf32> to vector<2x8x8x128xf32>
    %246 = vector.shape_cast %245 : vector<2x8x8x128xf32> to vector<128x128xf32>
    %c3_335 = arith.constant 3 : index
    %c1_336 = arith.constant 1 : index
    %c0_337 = arith.constant 0 : index
    %c0_338 = arith.constant 0 : index
    %247 = vector.load %arg2[%c3_335, %c1_336, %c0_337, %c0_338] : memref<4x9x128x128xf32, #tpu.memory_space<vmem>>, vector<1x1x128x128xf32>
    %248 = vector.shape_cast %247 : vector<1x1x128x128xf32> to vector<128x128xf32>
    %cst_339 = arith.constant dense<0.000000e+00> : vector<128x128xf32>
    %249 = tpu.matmul %246, %248, %cst_339 {dimension_numbers = #tpu.dot_dimension_numbers<[1], [0], [0], [1], [0, 0, 1, 1], [], []>} : vector<128x128xf32>, vector<128x128xf32>, vector<128x128xf32> -> vector<128x128xf32>
    %250 = arith.addf %243, %249 : vector<128x128xf32>
    %c0_340 = arith.constant 0 : index
    %c0_341 = arith.constant 0 : index
    %c0_342 = arith.constant 0 : index
    %c2_343 = arith.constant 2 : index
    %c0_344 = arith.constant 0 : index
    %251 = vector.load %arg6[%c0_340, %c0_341, %c0_342, %c2_343, %c0_344] : memref<2x2x10x10x128xf32, #tpu.memory_space<vmem>>, vector<1x2x8x8x128xf32>
    %252 = vector.shape_cast %251 : vector<1x2x8x8x128xf32> to vector<2x8x8x128xf32>
    %253 = vector.shape_cast %252 : vector<2x8x8x128xf32> to vector<128x128xf32>
    %c3_345 = arith.constant 3 : index
    %c2_346 = arith.constant 2 : index
    %c0_347 = arith.constant 0 : index
    %c0_348 = arith.constant 0 : index
    %254 = vector.load %arg2[%c3_345, %c2_346, %c0_347, %c0_348] : memref<4x9x128x128xf32, #tpu.memory_space<vmem>>, vector<1x1x128x128xf32>
    %255 = vector.shape_cast %254 : vector<1x1x128x128xf32> to vector<128x128xf32>
    %cst_349 = arith.constant dense<0.000000e+00> : vector<128x128xf32>
    %256 = tpu.matmul %253, %255, %cst_349 {dimension_numbers = #tpu.dot_dimension_numbers<[1], [0], [0], [1], [0, 0, 1, 1], [], []>} : vector<128x128xf32>, vector<128x128xf32>, vector<128x128xf32> -> vector<128x128xf32>
    %257 = arith.addf %250, %256 : vector<128x128xf32>
    %c0_350 = arith.constant 0 : index
    %c0_351 = arith.constant 0 : index
    %c1_352 = arith.constant 1 : index
    %c0_353 = arith.constant 0 : index
    %c0_354 = arith.constant 0 : index
    %258 = vector.load %arg6[%c0_350, %c0_351, %c1_352, %c0_353, %c0_354] : memref<2x2x10x10x128xf32, #tpu.memory_space<vmem>>, vector<1x2x8x8x128xf32>
    %259 = vector.shape_cast %258 : vector<1x2x8x8x128xf32> to vector<2x8x8x128xf32>
    %260 = vector.shape_cast %259 : vector<2x8x8x128xf32> to vector<128x128xf32>
    %c3_355 = arith.constant 3 : index
    %c3_356 = arith.constant 3 : index
    %c0_357 = arith.constant 0 : index
    %c0_358 = arith.constant 0 : index
    %261 = vector.load %arg2[%c3_355, %c3_356, %c0_357, %c0_358] : memref<4x9x128x128xf32, #tpu.memory_space<vmem>>, vector<1x1x128x128xf32>
    %262 = vector.shape_cast %261 : vector<1x1x128x128xf32> to vector<128x128xf32>
    %cst_359 = arith.constant dense<0.000000e+00> : vector<128x128xf32>
    %263 = tpu.matmul %260, %262, %cst_359 {dimension_numbers = #tpu.dot_dimension_numbers<[1], [0], [0], [1], [0, 0, 1, 1], [], []>} : vector<128x128xf32>, vector<128x128xf32>, vector<128x128xf32> -> vector<128x128xf32>
    %264 = arith.addf %257, %263 : vector<128x128xf32>
    %c0_360 = arith.constant 0 : index
    %c0_361 = arith.constant 0 : index
    %c1_362 = arith.constant 1 : index
    %c1_363 = arith.constant 1 : index
    %c0_364 = arith.constant 0 : index
    %265 = vector.load %arg6[%c0_360, %c0_361, %c1_362, %c1_363, %c0_364] : memref<2x2x10x10x128xf32, #tpu.memory_space<vmem>>, vector<1x2x8x8x128xf32>
    %266 = vector.shape_cast %265 : vector<1x2x8x8x128xf32> to vector<2x8x8x128xf32>
    %267 = vector.shape_cast %266 : vector<2x8x8x128xf32> to vector<128x128xf32>
    %c3_365 = arith.constant 3 : index
    %c4_366 = arith.constant 4 : index
    %c0_367 = arith.constant 0 : index
    %c0_368 = arith.constant 0 : index
    %268 = vector.load %arg2[%c3_365, %c4_366, %c0_367, %c0_368] : memref<4x9x128x128xf32, #tpu.memory_space<vmem>>, vector<1x1x128x128xf32>
    %269 = vector.shape_cast %268 : vector<1x1x128x128xf32> to vector<128x128xf32>
    %cst_369 = arith.constant dense<0.000000e+00> : vector<128x128xf32>
    %270 = tpu.matmul %267, %269, %cst_369 {dimension_numbers = #tpu.dot_dimension_numbers<[1], [0], [0], [1], [0, 0, 1, 1], [], []>} : vector<128x128xf32>, vector<128x128xf32>, vector<128x128xf32> -> vector<128x128xf32>
    %271 = arith.addf %264, %270 : vector<128x128xf32>
    %c0_370 = arith.constant 0 : index
    %c0_371 = arith.constant 0 : index
    %c1_372 = arith.constant 1 : index
    %c2_373 = arith.constant 2 : index
    %c0_374 = arith.constant 0 : index
    %272 = vector.load %arg6[%c0_370, %c0_371, %c1_372, %c2_373, %c0_374] : memref<2x2x10x10x128xf32, #tpu.memory_space<vmem>>, vector<1x2x8x8x128xf32>
    %273 = vector.shape_cast %272 : vector<1x2x8x8x128xf32> to vector<2x8x8x128xf32>
    %274 = vector.shape_cast %273 : vector<2x8x8x128xf32> to vector<128x128xf32>
    %c3_375 = arith.constant 3 : index
    %c5_376 = arith.constant 5 : index
    %c0_377 = arith.constant 0 : index
    %c0_378 = arith.constant 0 : index
    %275 = vector.load %arg2[%c3_375, %c5_376, %c0_377, %c0_378] : memref<4x9x128x128xf32, #tpu.memory_space<vmem>>, vector<1x1x128x128xf32>
    %276 = vector.shape_cast %275 : vector<1x1x128x128xf32> to vector<128x128xf32>
    %cst_379 = arith.constant dense<0.000000e+00> : vector<128x128xf32>
    %277 = tpu.matmul %274, %276, %cst_379 {dimension_numbers = #tpu.dot_dimension_numbers<[1], [0], [0], [1], [0, 0, 1, 1], [], []>} : vector<128x128xf32>, vector<128x128xf32>, vector<128x128xf32> -> vector<128x128xf32>
    %278 = arith.addf %271, %277 : vector<128x128xf32>
    %c0_380 = arith.constant 0 : index
    %c0_381 = arith.constant 0 : index
    %c2_382 = arith.constant 2 : index
    %c0_383 = arith.constant 0 : index
    %c0_384 = arith.constant 0 : index
    %279 = vector.load %arg6[%c0_380, %c0_381, %c2_382, %c0_383, %c0_384] : memref<2x2x10x10x128xf32, #tpu.memory_space<vmem>>, vector<1x2x8x8x128xf32>
    %280 = vector.shape_cast %279 : vector<1x2x8x8x128xf32> to vector<2x8x8x128xf32>
    %281 = vector.shape_cast %280 : vector<2x8x8x128xf32> to vector<128x128xf32>
    %c3_385 = arith.constant 3 : index
    %c6_386 = arith.constant 6 : index
    %c0_387 = arith.constant 0 : index
    %c0_388 = arith.constant 0 : index
    %282 = vector.load %arg2[%c3_385, %c6_386, %c0_387, %c0_388] : memref<4x9x128x128xf32, #tpu.memory_space<vmem>>, vector<1x1x128x128xf32>
    %283 = vector.shape_cast %282 : vector<1x1x128x128xf32> to vector<128x128xf32>
    %cst_389 = arith.constant dense<0.000000e+00> : vector<128x128xf32>
    %284 = tpu.matmul %281, %283, %cst_389 {dimension_numbers = #tpu.dot_dimension_numbers<[1], [0], [0], [1], [0, 0, 1, 1], [], []>} : vector<128x128xf32>, vector<128x128xf32>, vector<128x128xf32> -> vector<128x128xf32>
    %285 = arith.addf %278, %284 : vector<128x128xf32>
    %c0_390 = arith.constant 0 : index
    %c0_391 = arith.constant 0 : index
    %c2_392 = arith.constant 2 : index
    %c1_393 = arith.constant 1 : index
    %c0_394 = arith.constant 0 : index
    %286 = vector.load %arg6[%c0_390, %c0_391, %c2_392, %c1_393, %c0_394] : memref<2x2x10x10x128xf32, #tpu.memory_space<vmem>>, vector<1x2x8x8x128xf32>
    %287 = vector.shape_cast %286 : vector<1x2x8x8x128xf32> to vector<2x8x8x128xf32>
    %288 = vector.shape_cast %287 : vector<2x8x8x128xf32> to vector<128x128xf32>
    %c3_395 = arith.constant 3 : index
    %c7_396 = arith.constant 7 : index
    %c0_397 = arith.constant 0 : index
    %c0_398 = arith.constant 0 : index
    %289 = vector.load %arg2[%c3_395, %c7_396, %c0_397, %c0_398] : memref<4x9x128x128xf32, #tpu.memory_space<vmem>>, vector<1x1x128x128xf32>
    %290 = vector.shape_cast %289 : vector<1x1x128x128xf32> to vector<128x128xf32>
    %cst_399 = arith.constant dense<0.000000e+00> : vector<128x128xf32>
    %291 = tpu.matmul %288, %290, %cst_399 {dimension_numbers = #tpu.dot_dimension_numbers<[1], [0], [0], [1], [0, 0, 1, 1], [], []>} : vector<128x128xf32>, vector<128x128xf32>, vector<128x128xf32> -> vector<128x128xf32>
    %292 = arith.addf %285, %291 : vector<128x128xf32>
    %c0_400 = arith.constant 0 : index
    %c0_401 = arith.constant 0 : index
    %c2_402 = arith.constant 2 : index
    %c2_403 = arith.constant 2 : index
    %c0_404 = arith.constant 0 : index
    %293 = vector.load %arg6[%c0_400, %c0_401, %c2_402, %c2_403, %c0_404] : memref<2x2x10x10x128xf32, #tpu.memory_space<vmem>>, vector<1x2x8x8x128xf32>
    %294 = vector.shape_cast %293 : vector<1x2x8x8x128xf32> to vector<2x8x8x128xf32>
    %295 = vector.shape_cast %294 : vector<2x8x8x128xf32> to vector<128x128xf32>
    %c3_405 = arith.constant 3 : index
    %c8_406 = arith.constant 8 : index
    %c0_407 = arith.constant 0 : index
    %c0_408 = arith.constant 0 : index
    %296 = vector.load %arg2[%c3_405, %c8_406, %c0_407, %c0_408] : memref<4x9x128x128xf32, #tpu.memory_space<vmem>>, vector<1x1x128x128xf32>
    %297 = vector.shape_cast %296 : vector<1x1x128x128xf32> to vector<128x128xf32>
    %cst_409 = arith.constant dense<0.000000e+00> : vector<128x128xf32>
    %298 = tpu.matmul %295, %297, %cst_409 {dimension_numbers = #tpu.dot_dimension_numbers<[1], [0], [0], [1], [0, 0, 1, 1], [], []>} : vector<128x128xf32>, vector<128x128xf32>, vector<128x128xf32> -> vector<128x128xf32>
    %299 = arith.addf %292, %298 : vector<128x128xf32>
    %c4_410 = arith.constant 4 : index
    %c0_411 = arith.constant 0 : index
    %c0_412 = arith.constant 0 : index
    %300 = vector.load %arg4[%c4_410, %c0_411, %c0_412] : memref<6x1x128xf32, #tpu.memory_space<vmem>>, vector<1x1x128xf32>
    %301 = vector.shape_cast %300 : vector<1x1x128xf32> to vector<1x128xf32>
    %302 = vector.broadcast %301 : vector<1x128xf32> to vector<128x128xf32>
    %303 = arith.addf %299, %302 : vector<128x128xf32>
    %304 = arith.addf %303, %161 : vector<128x128xf32>
    %cst_413 = arith.constant 0.000000e+00 : f32
    %305 = vector.broadcast %cst_413 : f32 to vector<128x128xf32>
    %306 = arith.maximumf %304, %305 : vector<128x128xf32>
    %c1_414 = arith.constant 1 : index
    %c0_415 = arith.constant 0 : index
    %c0_416 = arith.constant 0 : index
    %307 = vector.load %arg3[%c1_414, %c0_415, %c0_416] : memref<4x128x128xf32, #tpu.memory_space<vmem>>, vector<1x128x128xf32>
    %308 = vector.shape_cast %307 : vector<1x128x128xf32> to vector<128x128xf32>
    %cst_417 = arith.constant dense<0.000000e+00> : vector<128x128xf32>
    %309 = tpu.matmul %306, %308, %cst_417 {dimension_numbers = #tpu.dot_dimension_numbers<[1], [0], [0], [1], [0, 0, 1, 1], [], []>} : vector<128x128xf32>, vector<128x128xf32>, vector<128x128xf32> -> vector<128x128xf32>
    %c2_418 = arith.constant 2 : index
    %c0_419 = arith.constant 0 : index
    %c0_420 = arith.constant 0 : index
    %310 = vector.load %arg3[%c2_418, %c0_419, %c0_420] : memref<4x128x128xf32, #tpu.memory_space<vmem>>, vector<1x128x128xf32>
    %311 = vector.shape_cast %310 : vector<1x128x128xf32> to vector<128x128xf32>
    %cst_421 = arith.constant dense<0.000000e+00> : vector<128x128xf32>
    %312 = tpu.matmul %161, %311, %cst_421 {dimension_numbers = #tpu.dot_dimension_numbers<[1], [0], [0], [1], [0, 0, 1, 1], [], []>} : vector<128x128xf32>, vector<128x128xf32>, vector<128x128xf32> -> vector<128x128xf32>
    %313 = arith.addf %309, %312 : vector<128x128xf32>
    %c3_422 = arith.constant 3 : index
    %c0_423 = arith.constant 0 : index
    %c0_424 = arith.constant 0 : index
    %314 = vector.load %arg3[%c3_422, %c0_423, %c0_424] : memref<4x128x128xf32, #tpu.memory_space<vmem>>, vector<1x128x128xf32>
    %315 = vector.shape_cast %314 : vector<1x128x128xf32> to vector<128x128xf32>
    %cst_425 = arith.constant dense<0.000000e+00> : vector<128x128xf32>
    %316 = tpu.matmul %13, %315, %cst_425 {dimension_numbers = #tpu.dot_dimension_numbers<[1], [0], [0], [1], [0, 0, 1, 1], [], []>} : vector<128x128xf32>, vector<128x128xf32>, vector<128x128xf32> -> vector<128x128xf32>
    %317 = arith.addf %313, %316 : vector<128x128xf32>
    %c5_426 = arith.constant 5 : index
    %c0_427 = arith.constant 0 : index
    %c0_428 = arith.constant 0 : index
    %318 = vector.load %arg4[%c5_426, %c0_427, %c0_428] : memref<6x1x128xf32, #tpu.memory_space<vmem>>, vector<1x1x128xf32>
    %319 = vector.shape_cast %318 : vector<1x1x128xf32> to vector<1x128xf32>
    %320 = vector.broadcast %319 : vector<1x128xf32> to vector<128x128xf32>
    %321 = arith.addf %317, %320 : vector<128x128xf32>
    %cst_429 = arith.constant 0.000000e+00 : f32
    %322 = vector.broadcast %cst_429 : f32 to vector<128x128xf32>
    %323 = arith.maximumf %321, %322 : vector<128x128xf32>
    %c0_430 = arith.constant 0 : index
    %c0_431 = arith.constant 0 : index
    %324 = vector.load %arg5[%c0_430, %c0_431] : memref<128x128xf32, #tpu.memory_space<vmem>>, vector<128x128xf32>
    tpu.vector_store %arg5[%c0_430, %c0_431], %323 {strides = array<i32>} : memref<128x128xf32, #tpu.memory_space<vmem>>, vector<128x128xf32>,
    return
  }
  func.func @transform_0(%arg0: i32) -> (i32, i32, i32, i32, i32) {
    %c0_i32 = arith.constant 0 : i32
    %c0_i32_0 = arith.constant 0 : i32
    %c0_i32_1 = arith.constant 0 : i32
    %c0_i32_2 = arith.constant 0 : i32
    %c0_i32_3 = arith.constant 0 : i32
    %c0_i32_4 = arith.constant 0 : i32
    return %c0_i32, %c0_i32_0, %c0_i32_1, %c0_i32_2, %c0_i32_3 : i32, i32, i32, i32, i32
  }
  func.func @transform_1(%arg0: i32) -> (i32, i32, i32, i32) {
    %c0_i32 = arith.constant 0 : i32
    %c0_i32_0 = arith.constant 0 : i32
    %c0_i32_1 = arith.constant 0 : i32
    %c0_i32_2 = arith.constant 0 : i32
    %c0_i32_3 = arith.constant 0 : i32
    return %c0_i32, %c0_i32_0, %c0_i32_1, %c0_i32_2 : i32, i32, i32, i32
  }
  func.func @transform_2(%arg0: i32) -> (i32, i32, i32) {
    %c0_i32 = arith.constant 0 : i32
    %c0_i32_0 = arith.constant 0 : i32
    %c0_i32_1 = arith.constant 0 : i32
    %c0_i32_2 = arith.constant 0 : i32
    return %c0_i32, %c0_i32_0, %c0_i32_1 : i32, i32, i32
  }
  func.func @transform_3(%arg0: i32) -> (i32, i32, i32) {
    %c0_i32 = arith.constant 0 : i32
    %c0_i32_0 = arith.constant 0 : i32
    %c0_i32_1 = arith.constant 0 : i32
    %c0_i32_2 = arith.constant 0 : i32
    return %c0_i32, %c0_i32_0, %c0_i32_1 : i32, i32, i32
  }
  func.func @transform_4(%arg0: i32) -> (i32, i32) {
    %c0_i32 = arith.constant 0 : i32
    %c0_i32_0 = arith.constant 0 : i32
    %c0_i32_1 = arith.constant 0 : i32
    return %c0_i32, %c0_i32_0 : i32, i32
  }
}

</mosaic_0001>

<llo_original>
// kernel: _tree_forward_impl.1
$region0: #{_tree_forward_impl.1}
  #allocation0 [shape = 'u32[]', space=smem, size = 0x4, offset = 0x4, fixed_abs, tag = 'smem constant byte address 0x4 - core index']
  #allocation1 [shape = 'u32[144,128]{1,0:T(1,128)}', space=vmem, size = 0x12000, scoped, tag = 'internal scratch']
  #allocation2 [shape = 'f32[2,2,10,10,128]{4,3,2,1,0:T(8,128)}', space=vmem, size = 0x50000, scoped, tag = 'scratch operand']
  %s0 = inlined_call_operand.vmem [shape: f32[4,2,9,9,128], index: 0, kind: input, shape index: {}]
  %s1 = inlined_call_operand.vmem [shape: f32[4,9,128,128], index: 1, kind: input, shape index: {}]
  %s2 = inlined_call_operand.vmem [shape: f32[4,128,128], index: 2, kind: input, shape index: {}]
  %s3 = inlined_call_operand.vmem [shape: f32[6,1,128], index: 3, kind: input, shape index: {}]
  %s4 = inlined_call_operand.vmem [shape: f32[128,128], index: 4, kind: output, shape index: {}]
  %s5 = sld [smem:[#allocation0]]
  $region26: #{_tree_forward_impl.1} parent=0
    _
  %s7 = ssub.s32 1, %s5
  %s8 = scalar_select 0, %s7, %s5
  // Predicated region
  $region2: #{_tree_forward_impl.1} parent=0 // pred_check
    _
  $region3: #{_tree_forward_impl.1} parent=0 // pred_check_branch
    %10 = sbr.rel (0) target = $region5
  $region4: #{_tree_forward_impl.1} parent=0 // pred_region
    _
  $region5: #{_tree_forward_impl.1} parent=0 // pred_fallthru
    _
  // Predicated region
  $region6: #{_tree_forward_impl.1} parent=0 // pred_check
    _
  $region7: #{_tree_forward_impl.1} parent=0 // pred_check_branch
    %12 = sbr.rel (0) target = $region9
  $region8: #{_tree_forward_impl.1} parent=0 // pred_region
    _
  $region9: #{_tree_forward_impl.1} parent=0 // pred_fallthru
    _
  // Predicated region
  $region10: #{_tree_forward_impl.1} parent=0 // pred_check
    _
  $region11: #{_tree_forward_impl.1} parent=0 // pred_check_branch
    %14 = sbr.rel (0) target = $region13
  $region12: #{_tree_forward_impl.1} parent=0 // pred_region
    _
  $region13: #{_tree_forward_impl.1} parent=0 // pred_fallthru
    _
  // Predicated region
  $region14: #{_tree_forward_impl.1} parent=0 // pred_check
    _
  $region15: #{_tree_forward_impl.1} parent=0 // pred_check_branch
    %16 = sbr.rel (0) target = $region17
  $region16: #{_tree_forward_impl.1} parent=0 // pred_region
    _
  $region17: #{_tree_forward_impl.1} parent=0 // pred_fallthru
    _
  %17 = vst [vmem:[#allocation2] sm:$0xff] 0.0
  %18 = vst [vmem:[#allocation2 + $0x8] sm:$0x3] 0.0
  %19 = vst [vmem:[#allocation2 + $0x10] sm:$0xff] 0.0
  %20 = vst [vmem:[#allocation2 + $0x18] sm:$0x3] 0.0
  %21 = vst [vmem:[#allocation2 + $0x20] sm:$0xff] 0.0
  %22 = vst [vmem:[#allocation2 + $0x28] sm:$0x3] 0.0
  %23 = vst [vmem:[#allocation2 + $0x30] sm:$0xff] 0.0
  %24 = vst [vmem:[#allocation2 + $0x38] sm:$0x3] 0.0
  %25 = vst [vmem:[#allocation2 + $0x40] sm:$0xff] 0.0
  %26 = vst [vmem:[#allocation2 + $0x48] sm:$0x3] 0.0
  %27 = vst [vmem:[#allocation2 + $0x50] sm:$0xff] 0.0
  %28 = vst [vmem:[#allocation2 + $0x58] sm:$0x3] 0.0
  %29 = vst [vmem:[#allocation2 + $0x60] sm:$0xff] 0.0
  %30 = vst [vmem:[#allocation2 + $0x68] sm:$0x3] 0.0
  %31 = vst [vmem:[#allocation2 + $0x70] sm:$0xff] 0.0
  %32 = vst [vmem:[#allocation2 + $0x78] sm:$0x3] 0.0
  %33 = vst [vmem:[#allocation2 + $0x80] sm:$0xff] 0.0
  %34 = vst [vmem:[#allocation2 + $0x88] sm:$0x3] 0.0
  %35 = vst [vmem:[#allocation2 + $0x90] sm:$0xff] 0.0
  %36 = vst [vmem:[#allocation2 + $0x98] sm:$0x3] 0.0
  %37 = vst [vmem:[#allocation2 + $0xa0] sm:$0xff] 0.0
  %38 = vst [vmem:[#allocation2 + $0xa8] sm:$0x3] 0.0
  %39 = vst [vmem:[#allocation2 + $0xb0] sm:$0xff] 0.0
  %40 = vst [vmem:[#allocation2 + $0xb8] sm:$0x3] 0.0
  %41 = vst [vmem:[#allocation2 + $0xc0] sm:$0xff] 0.0
  %42 = vst [vmem:[#allocation2 + $0xc8] sm:$0x3] 0.0
  %43 = vst [vmem:[#allocation2 + $0xd0] sm:$0xff] 0.0
  %44 = vst [vmem:[#allocation2 + $0xd8] sm:$0x3] 0.0
  %45 = vst [vmem:[#allocation2 + $0xe0] sm:$0xff] 0.0
  %46 = vst [vmem:[#allocation2 + $0xe8] sm:$0x3] 0.0
  %47 = vst [vmem:[#allocation2 + $0xf0] sm:$0xff] 0.0
  %48 = vst [vmem:[#allocation2 + $0xf8] sm:$0x3] 0.0
  %49 = vst [vmem:[#allocation2 + $0x100] sm:$0xff] 0.0
  %50 = vst [vmem:[#allocation2 + $0x108] sm:$0x3] 0.0
  %51 = vst [vmem:[#allocation2 + $0x110] sm:$0xff] 0.0
  %52 = vst [vmem:[#allocation2 + $0x118] sm:$0x3] 0.0
  %53 = vst [vmem:[#allocation2 + $0x120] sm:$0xff] 0.0
  %54 = vst [vmem:[#allocation2 + $0x128] sm:$0x3] 0.0
  %55 = vst [vmem:[#allocation2 + $0x130] sm:$0xff] 0.0
  %56 = vst [vmem:[#allocation2 + $0x138] sm:$0x3] 0.0
  %57 = vst [vmem:[#allocation2 + $0x140] sm:$0xff] 0.0
  %58 = vst [vmem:[#allocation2 + $0x148] sm:$0x3] 0.0
  %59 = vst [vmem:[#allocation2 + $0x150] sm:$0xff] 0.0
  %60 = vst [vmem:[#allocation2 + $0x158] sm:$0x3] 0.0
  %61 = vst [vmem:[#allocation2 + $0x160] sm:$0xff] 0.0
  %62 = vst [vmem:[#allocation2 + $0x168] sm:$0x3] 0.0
  %63 = vst [vmem:[#allocation2 + $0x170] sm:$0xff] 0.0
  %64 = vst [vmem:[#allocation2 + $0x178] sm:$0x3] 0.0
  %65 = vst [vmem:[#allocation2 + $0x180] sm:$0xff] 0.0
  %66 = vst [vmem:[#allocation2 + $0x188] sm:$0x3] 0.0
  %67 = vst [vmem:[#allocation2 + $0x190] sm:$0xff] 0.0
  %68 = vst [vmem:[#allocation2 + $0x198] sm:$0x3] 0.0
  %69 = vst [vmem:[#allocation2 + $0x1a0] sm:$0xff] 0.0
  %70 = vst [vmem:[#allocation2 + $0x1a8] sm:$0x3] 0.0
  %71 = vst [vmem:[#allocation2 + $0x1b0] sm:$0xff] 0.0
  %72 = vst [vmem:[#allocation2 + $0x1b8] sm:$0x3] 0.0
  %73 = vst [vmem:[#allocation2 + $0x1c0] sm:$0xff] 0.0
  %74 = vst [vmem:[#allocation2 + $0x1c8] sm:$0x3] 0.0
  %75 = vst [vmem:[#allocation2 + $0x1d0] sm:$0xff] 0.0
  %76 = vst [vmem:[#allocation2 + $0x1d8] sm:$0x3] 0.0
  %77 = vst [vmem:[#allocation2 + $0x1e0] sm:$0xff] 0.0
  %78 = vst [vmem:[#allocation2 + $0x1e8] sm:$0x3] 0.0
  %79 = vst [vmem:[#allocation2 + $0x1f0] sm:$0xff] 0.0
  %80 = vst [vmem:[#allocation2 + $0x1f8] sm:$0x3] 0.0
  %81 = vst [vmem:[#allocation2 + $0x200] sm:$0xff] 0.0
  %82 = vst [vmem:[#allocation2 + $0x208] sm:$0x3] 0.0
  %83 = vst [vmem:[#allocation2 + $0x210] sm:$0xff] 0.0
  %84 = vst [vmem:[#allocation2 + $0x218] sm:$0x3] 0.0
  %85 = vst [vmem:[#allocation2 + $0x220] sm:$0xff] 0.0
  %86 = vst [vmem:[#allocation2 + $0x228] sm:$0x3] 0.0
  %87 = vst [vmem:[#allocation2 + $0x230] sm:$0xff] 0.0
  %88 = vst [vmem:[#allocation2 + $0x238] sm:$0x3] 0.0
  %89 = vst [vmem:[#allocation2 + $0x240] sm:$0xff] 0.0
  %90 = vst [vmem:[#allocation2 + $0x248] sm:$0x3] 0.0
  %91 = vst [vmem:[#allocation2 + $0x250] sm:$0xff] 0.0
  %92 = vst [vmem:[#allocation2 + $0x258] sm:$0x3] 0.0
  %93 = vst [vmem:[#allocation2 + $0x260] sm:$0xff] 0.0
  %94 = vst [vmem:[#allocation2 + $0x268] sm:$0x3] 0.0
  %95 = vst [vmem:[#allocation2 + $0x270] sm:$0xff] 0.0
  %96 = vst [vmem:[#allocation2 + $0x278] sm:$0x3] 0.0
  %s97 = scalar_lea.vmem %s0, 864
  %v98 = vld [vmem:[%s97] sm:$0xff]
  %v99 = vld [vmem:[%s97 + $0x10] sm:$0xff]
  %v100 = vld [vmem:[%s97 + $0x20] sm:$0xff]
  %v101 = vld [vmem:[%s97 + $0x30] sm:$0xff]
  %v102 = vld [vmem:[%s97 + $0x40] sm:$0xff]
  %v103 = vld [vmem:[%s97 + $0x50] sm:$0xff]
  %v104 = vld [vmem:[%s97 + $0x60] sm:$0xff]
  %v105 = vld [vmem:[%s97 + $0x70] sm:$0xff]
  %v106 = vld [vmem:[%s97 + $0x90] sm:$0xff]
  %v107 = vld [vmem:[%s97 + $0xa0] sm:$0xff]
  %v108 = vld [vmem:[%s97 + $0xb0] sm:$0xff]
  %v109 = vld [vmem:[%s97 + $0xc0] sm:$0xff]
  %v110 = vld [vmem:[%s97 + $0xd0] sm:$0xff]
  %v111 = vld [vmem:[%s97 + $0xe0] sm:$0xff]
  %v112 = vld [vmem:[%s97 + $0xf0] sm:$0xff]
  %v113 = vld [vmem:[%s97 + $0x100] sm:$0xff]
  %s114 = scalar_lea.vmem %s0, 576
  %v115 = vld [vmem:[%s114 + $0x1] sm:$0xff]
  %v116 = vld [vmem:[%s114 + $0x11] sm:$0xff]
  %v117 = vld [vmem:[%s114 + $0x21] sm:$0xff]
  %v118 = vld [vmem:[%s114 + $0x31] sm:$0xff]
  %v119 = vld [vmem:[%s114 + $0x41] sm:$0xff]
  %v120 = vld [vmem:[%s114 + $0x51] sm:$0xff]
  %v121 = vld [vmem:[%s114 + $0x61] sm:$0xff]
  %v122 = vld [vmem:[%s114 + $0x71] sm:$0xff]
  %v123 = vld [vmem:[%s114 + $0x91] sm:$0xff]
  %v124 = vld [vmem:[%s114 + $0xa1] sm:$0xff]
  %v125 = vld [vmem:[%s114 + $0xb1] sm:$0xff]
  %v126 = vld [vmem:[%s114 + $0xc1] sm:$0xff]
  %v127 = vld [vmem:[%s114 + $0xd1] sm:$0xff]
  %v128 = vld [vmem:[%s114 + $0xe1] sm:$0xff]
  %v129 = vld [vmem:[%s114 + $0xf1] sm:$0xff]
  %v130 = vld [vmem:[%s114 + $0x101] sm:$0xff]
  %s131 = scalar_lea.vmem %s0, 304
  %v132 = vld [vmem:[%s131] sm:$0xff]
  %v133 = vld [vmem:[%s131 + $0x10] sm:$0xff]
  %v134 = vld [vmem:[%s131 + $0x20] sm:$0xff]
  %v135 = vld [vmem:[%s131 + $0x30] sm:$0xff]
  %v136 = vld [vmem:[%s131 + $0x40] sm:$0xff]
  %v137 = vld [vmem:[%s131 + $0x50] sm:$0xff]
  %v138 = vld [vmem:[%s131 + $0x60] sm:$0xff]
  %v139 = vld [vmem:[%s131 + $0x70] sm:$0xff]
  %v140 = vld [vmem:[%s131 + $0x90] sm:$0xff]
  %v141 = vld [vmem:[%s131 + $0xa0] sm:$0xff]
  %v142 = vld [vmem:[%s131 + $0xb0] sm:$0xff]
  %v143 = vld [vmem:[%s131 + $0xc0] sm:$0xff]
  %v144 = vld [vmem:[%s131 + $0xd0] sm:$0xff]
  %v145 = vld [vmem:[%s131 + $0xe0] sm:$0xff]
  %v146 = vld [vmem:[%s131 + $0xf0] sm:$0xff]
  %v147 = vld [vmem:[%s131 + $0x100] sm:$0xff]
  %s148 = scalar_lea.vmem %s0, 16
  %v149 = vld [vmem:[%s148 + $0x1] sm:$0xff]
  %v150 = vld [vmem:[%s148 + $0x11] sm:$0xff]
  %v151 = vld [vmem:[%s148 + $0x21] sm:$0xff]
  %v152 = vld [vmem:[%s148 + $0x31] sm:$0xff]
  %v153 = vld [vmem:[%s148 + $0x41] sm:$0xff]
  %v154 = vld [vmem:[%s148 + $0x51] sm:$0xff]
  %v155 = vld [vmem:[%s148 + $0x61] sm:$0xff]
  %v156 = vld [vmem:[%s148 + $0x71] sm:$0xff]
  %v157 = vld [vmem:[%s148 + $0x91] sm:$0xff]
  %v158 = vld [vmem:[%s148 + $0xa1] sm:$0xff]
  %v159 = vld [vmem:[%s148 + $0xb1] sm:$0xff]
  %v160 = vld [vmem:[%s148 + $0xc1] sm:$0xff]
  %v161 = vld [vmem:[%s148 + $0xd1] sm:$0xff]
  %v162 = vld [vmem:[%s148 + $0xe1] sm:$0xff]
  %v163 = vld [vmem:[%s148 + $0xf1] sm:$0xff]
  %v164 = vld [vmem:[%s148 + $0x101] sm:$0xff]
  %v165 = vmax.f32 %v98, %v115
  %v166 = vmax.f32 %v99, %v116
  %v167 = vmax.f32 %v100, %v117
  %v168 = vmax.f32 %v101, %v118
  %v169 = vmax.f32 %v102, %v119
  %v170 = vmax.f32 %v103, %v120
  %v171 = vmax.f32 %v104, %v121
  %v172 = vmax.f32 %v105, %v122
  %v173 = vmax.f32 %v106, %v123
  %v174 = vmax.f32 %v107, %v124
  %v175 = vmax.f32 %v108, %v125
  %v176 = vmax.f32 %v109, %v126
  %v177 = vmax.f32 %v110, %v127
  %v178 = vmax.f32 %v111, %v128
  %v179 = vmax.f32 %v112, %v129
  %v180 = vmax.f32 %v113, %v130
  %v181 = vmax.f32 %v132, %v149
  %v182 = vmax.f32 %v133, %v150
  %v183 = vmax.f32 %v134, %v151
  %v184 = vmax.f32 %v135, %v152
  %v185 = vmax.f32 %v136, %v153
  %v186 = vmax.f32 %v137, %v154
  %v187 = vmax.f32 %v138, %v155
  %v188 = vmax.f32 %v139, %v156
  %v189 = vmax.f32 %v140, %v157
  %v190 = vmax.f32 %v141, %v158
  %v191 = vmax.f32 %v142, %v159
  %v192 = vmax.f32 %v143, %v160
  %v193 = vmax.f32 %v144, %v161
  %v194 = vmax.f32 %v145, %v162
  %v195 = vmax.f32 %v146, %v163
  %v196 = vmax.f32 %v147, %v164
  %v197 = vmax.f32 %v165, %v181
  %v198 = vmax.f32 %v166, %v182
  %v199 = vmax.f32 %v167, %v183
  %v200 = vmax.f32 %v168, %v184
  %v201 = vmax.f32 %v169, %v185
  %v202 = vmax.f32 %v170, %v186
  %v203 = vmax.f32 %v171, %v187
  %v204 = vmax.f32 %v172, %v188
  %v205 = vmax.f32 %v173, %v189
  %v206 = vmax.f32 %v174, %v190
  %v207 = vmax.f32 %v175, %v191
  %v208 = vmax.f32 %v176, %v192
  %v209 = vmax.f32 %v177, %v193
  %v210 = vmax.f32 %v178, %v194
  %v211 = vmax.f32 %v179, %v195
  %v212 = vmax.f32 %v180, %v196
  %v213 = vld [vmem:[%s2] sm:$0xff]
  %v214 = vld [vmem:[%s2 + $0x8] sm:$0xff]
  %v215 = vld [vmem:[%s2 + $0x10] sm:$0xff]
  %v216 = vld [vmem:[%s2 + $0x18] sm:$0xff]
  %v217 = vld [vmem:[%s2 + $0x20] sm:$0xff]
  %v218 = vld [vmem:[%s2 + $0x28] sm:$0xff]
  %v219 = vld [vmem:[%s2 + $0x30] sm:$0xff]
  %v220 = vld [vmem:[%s2 + $0x38] sm:$0xff]
  %v221 = vld [vmem:[%s2 + $0x40] sm:$0xff]
  %v222 = vld [vmem:[%s2 + $0x48] sm:$0xff]
  %v223 = vld [vmem:[%s2 + $0x50] sm:$0xff]
  %v224 = vld [vmem:[%s2 + $0x58] sm:$0xff]
  %v225 = vld [vmem:[%s2 + $0x60] sm:$0xff]
  %v226 = vld [vmem:[%s2 + $0x68] sm:$0xff]
  %v227 = vld [vmem:[%s2 + $0x70] sm:$0xff]
  %v228 = vld [vmem:[%s2 + $0x78] sm:$0xff]
  %v229 = vld [vmem:[%s3] sm:$0x1]
  %v231 = vlaneseq
  %v232 = vshrl.u32 %v231, 7
  %v233 = vsub.s32 0, %v232
  %v234 = vrot.slane %v229, %v233
  %236 = vmatprep.subr.mxu0 0.0
  %237 = vmatpush1.msra.mxu0 %v213
  %238 = vmatprep.subr.mxu0 0.0
  %239 = vmatpush1.msra.mxu0 %v214
  %240 = vmatprep.subr.mxu0 0.0
  %241 = vmatpush1.msra.mxu0 %v215
  %242 = vmatprep.subr.mxu0 0.0
  %243 = vmatpush1.msra.mxu0 %v216
  %244 = vmatprep.subr.mxu0 0.0
  %245 = vmatpush1.msra.mxu0 %v217
  %246 = vmatprep.subr.mxu0 0.0
  %247 = vmatpush1.msra.mxu0 %v218
  %248 = vmatprep.subr.mxu0 0.0
  %249 = vmatpush1.msra.mxu0 %v219
  %250 = vmatprep.subr.mxu0 0.0
  %251 = vmatpush1.msra.mxu0 %v220
  %252 = vmatprep.subr.mxu0 0.0
  %253 = vmatpush1.msra.mxu0 %v221
  %254 = vmatprep.subr.mxu0 0.0
  %255 = vmatpush1.msra.mxu0 %v222
  %256 = vmatprep.subr.mxu0 0.0
  %257 = vmatpush1.msra.mxu0 %v223
  %258 = vmatprep.subr.mxu0 0.0
  %259 = vmatpush1.msra.mxu0 %v224
  %260 = vmatprep.subr.mxu0 0.0
  %261 = vmatpush1.msra.mxu0 %v225
  %262 = vmatprep.subr.mxu0 0.0
  %263 = vmatpush1.msra.mxu0 %v226
  %264 = vmatprep.subr.mxu0 0.0
  %265 = vmatpush1.msra.mxu0 %v227
  %266 = vmatprep.subr.mxu0 0.0
  %267 = vmatpush1.msra.mxu0 %v228
  %268 = vmatprep.subr.mxu0 0.0
  %269 = vmatpush1.msra.mxu0 0.0
  %270 = vmatprep.subr.mxu0 0.0
  %271 = vmatpush1.msra.mxu0 0.0
  %272 = vmatprep.subr.mxu0 0.0
  %273 = vmatpush1.msra.mxu0 0.0
  %274 = vmatprep.subr.mxu0 0.0
  %275 = vmatpush1.msra.mxu0 0.0
  %276 = vmatprep.subr.mxu0 0.0
  %277 = vmatpush1.msra.mxu0 0.0
  %278 = vmatprep.subr.mxu0 0.0
  %279 = vmatpush1.msra.mxu0 0.0
  %280 = vmatprep.subr.mxu0 0.0
  %281 = vmatpush1.msra.mxu0 0.0
  %282 = vmatprep.subr.mxu0 0.0
  %283 = vmatpush1.msra.mxu0 0.0
  %284 = vmatprep.subr.mxu0 0.0
  %285 = vmatpush1.msra.mxu0 0.0
  %286 = vmatprep.subr.mxu0 0.0
  %287 = vmatpush1.msra.mxu0 0.0
  %288 = vmatprep.subr.mxu0 0.0
  %289 = vmatpush1.msra.mxu0 0.0
  %290 = vmatprep.subr.mxu0 0.0
  %291 = vmatpush1.msra.mxu0 0.0
  %292 = vmatprep.subr.mxu0 0.0
  %293 = vmatpush1.msra.mxu0 0.0
  %294 = vmatprep.subr.mxu0 0.0
  %295 = vmatpush1.msra.mxu0 0.0
  %296 = vmatprep.subr.mxu0 0.0
  %297 = vmatpush1.msra.mxu0 0.0
  %298 = vmatprep.subr.mxu0 0.0
  %299 = vmatpush1.msra.mxu0 0.0
  %300 = vmatprep.mubr.f32.mxu0 0.0
  %301 = vmatmul.mubr.f32.gmra.mrb[0].mxu0 %v197
  %v302 = vpop.f32.mrb[0].mxu0
  %v303 = vadd.f32 %v234, %v302
  %v304 = vpop.f32.mrb[0].mxu0
  %305 = vmatprep.mubr.f32.mxu0 0.0
  %306 = vmatmul.mubr.f32.gmra.mrb[0].mxu0 %v198
  %v307 = vpop.f32.mrb[0].mxu0
  %v308 = vadd.f32 %v234, %v307
  %v309 = vpop.f32.mrb[0].mxu0
  %310 = vmatprep.mubr.f32.mxu0 0.0
  %311 = vmatmul.mubr.f32.gmra.mrb[0].mxu0 %v199
  %v312 = vpop.f32.mrb[0].mxu0
  %v313 = vadd.f32 %v234, %v312
  %v314 = vpop.f32.mrb[0].mxu0
  %315 = vmatprep.mubr.f32.mxu0 0.0
  %316 = vmatmul.mubr.f32.gmra.mrb[0].mxu0 %v200
  %v317 = vpop.f32.mrb[0].mxu0
  %v318 = vadd.f32 %v234, %v317
  %v319 = vpop.f32.mrb[0].mxu0
  %320 = vmatprep.mubr.f32.mxu0 0.0
  %321 = vmatmul.mubr.f32.gmra.mrb[0].mxu0 %v201
  %v322 = vpop.f32.mrb[0].mxu0
  %v323 = vadd.f32 %v234, %v322
  %v324 = vpop.f32.mrb[0].mxu0
  %325 = vmatprep.mubr.f32.mxu0 0.0
  %326 = vmatmul.mubr.f32.gmra.mrb[0].mxu0 %v202
  %v327 = vpop.f32.mrb[0].mxu0
  %v328 = vadd.f32 %v234, %v327
  %v329 = vpop.f32.mrb[0].mxu0
  %330 = vmatprep.mubr.f32.mxu0 0.0
  %331 = vmatmul.mubr.f32.gmra.mrb[0].mxu0 %v203
  %v332 = vpop.f32.mrb[0].mxu0
  %v333 = vadd.f32 %v234, %v332
  %v334 = vpop.f32.mrb[0].mxu0
  %335 = vmatprep.mubr.f32.mxu0 0.0
  %336 = vmatmul.mubr.f32.gmra.mrb[0].mxu0 %v204
  %v337 = vpop.f32.mrb[0].mxu0
  %v338 = vadd.f32 %v234, %v337
  %v339 = vpop.f32.mrb[0].mxu0
  %340 = vmatprep.mubr.f32.mxu0 0.0
  %341 = vmatmul.mubr.f32.gmra.mrb[0].mxu0 %v205
  %v342 = vpop.f32.mrb[0].mxu0
  %v343 = vadd.f32 %v234, %v342
  %v344 = vpop.f32.mrb[0].mxu0
  %345 = vmatprep.mubr.f32.mxu0 0.0
  %346 = vmatmul.mubr.f32.gmra.mrb[0].mxu0 %v206
  %v347 = vpop.f32.mrb[0].mxu0
  %v348 = vadd.f32 %v234, %v347
  %v349 = vpop.f32.mrb[0].mxu0
  %350 = vmatprep.mubr.f32.mxu0 0.0
  %351 = vmatmul.mubr.f32.gmra.mrb[0].mxu0 %v207
  %v352 = vpop.f32.mrb[0].mxu0
  %v353 = vadd.f32 %v234, %v352
  %v354 = vpop.f32.mrb[0].mxu0
  %355 = vmatprep.mubr.f32.mxu0 0.0
  %356 = vmatmul.mubr.f32.gmra.mrb[0].mxu0 %v208
  %v357 = vpop.f32.mrb[0].mxu0
  %v358 = vadd.f32 %v234, %v357
  %v359 = vpop.f32.mrb[0].mxu0
  %360 = vmatprep.mubr.f32.mxu0 0.0
  %361 = vmatmul.mubr.f32.gmra.mrb[0].mxu0 %v209
  %v362 = vpop.f32.mrb[0].mxu0
  %v363 = vadd.f32 %v234, %v362
  %v364 = vpop.f32.mrb[0].mxu0
  %365 = vmatprep.mubr.f32.mxu0 0.0
  %366 = vmatmul.mubr.f32.gmra.mrb[0].mxu0 %v210
  %v367 = vpop.f32.mrb[0].mxu0
  %v368 = vadd.f32 %v234, %v367
  %v369 = vpop.f32.mrb[0].mxu0
  %370 = vmatprep.mubr.f32.mxu0 0.0
  %371 = vmatmul.mubr.f32.gmra.mrb[0].mxu0 %v211
  %v372 = vpop.f32.mrb[0].mxu0
  %v373 = vadd.f32 %v234, %v372
  %v374 = vpop.f32.mrb[0].mxu0
  %375 = vmatprep.mubr.f32.mxu0 0.0
  %376 = vmatmul.mubr.f32.gmra.mrb[0].mxu0 %v212
  %v377 = vpop.f32.mrb[0].mxu0
  %v378 = vadd.f32 %v234, %v377
  %v379 = vpop.f32.mrb[0].mxu0
  %380 = vdwg.mxu0
  %v381 = vld [vmem:[%s0] sm:$0xff]
  %v382 = vld [vmem:[%s0 + $0x10] sm:$0xff]
  %v383 = vld [vmem:[%s0 + $0x20] sm:$0xff]
  %v384 = vld [vmem:[%s0 + $0x30] sm:$0xff]
  %v385 = vld [vmem:[%s0 + $0x40] sm:$0xff]
  %v386 = vld [vmem:[%s0 + $0x50] sm:$0xff]
  %v387 = vld [vmem:[%s0 + $0x60] sm:$0xff]
  %v388 = vld [vmem:[%s0 + $0x70] sm:$0xff]
  %v389 = vld [vmem:[%s0 + $0x90] sm:$0xff]
  %v390 = vld [vmem:[%s0 + $0xa0] sm:$0xff]
  %v391 = vld [vmem:[%s0 + $0xb0] sm:$0xff]
  %v392 = vld [vmem:[%s0 + $0xc0] sm:$0xff]
  %v393 = vld [vmem:[%s0 + $0xd0] sm:$0xff]
  %v394 = vld [vmem:[%s0 + $0xe0] sm:$0xff]
  %v395 = vld [vmem:[%s0 + $0xf0] sm:$0xff]
  %v396 = vld [vmem:[%s0 + $0x100] sm:$0xff]
  %v397 = vld [vmem:[%s1] sm:$0xff]
  %v398 = vld [vmem:[%s1 + $0x8] sm:$0xff]
  %v399 = vld [vmem:[%s1 + $0x10] sm:$0xff]
  %v400 = vld [vmem:[%s1 + $0x18] sm:$0xff]
  %v401 = vld [vmem:[%s1 + $0x20] sm:$0xff]
  %v402 = vld [vmem:[%s1 + $0x28] sm:$0xff]
  %v403 = vld [vmem:[%s1 + $0x30] sm:$0xff]
  %v404 = vld [vmem:[%s1 + $0x38] sm:$0xff]
  %v405 = vld [vmem:[%s1 + $0x40] sm:$0xff]
  %v406 = vld [vmem:[%s1 + $0x48] sm:$0xff]
  %v407 = vld [vmem:[%s1 + $0x50] sm:$0xff]
  %v408 = vld [vmem:[%s1 + $0x58] sm:$0xff]
  %v409 = vld [vmem:[%s1 + $0x60] sm:$0xff]
  %v410 = vld [vmem:[%s1 + $0x68] sm:$0xff]
  %v411 = vld [vmem:[%s1 + $0x70] sm:$0xff]
  %v412 = vld [vmem:[%s1 + $0x78] sm:$0xff]
  %s413 = scalar_lea.vmem %s0, 288
  %v414 = vld [vmem:[%s413] sm:$0xff]
  %v415 = vld [vmem:[%s413 + $0x10] sm:$0xff]
  %v416 = vld [vmem:[%s413 + $0x20] sm:$0xff]
  %v417 = vld [vmem:[%s413 + $0x30] sm:$0xff]
  %v418 = vld [vmem:[%s413 + $0x40] sm:$0xff]
  %v419 = vld [vmem:[%s413 + $0x50] sm:$0xff]
  %v420 = vld [vmem:[%s413 + $0x60] sm:$0xff]
  %v421 = vld [vmem:[%s413 + $0x70] sm:$0xff]
  %v422 = vld [vmem:[%s413 + $0x90] sm:$0xff]
  %v423 = vld [vmem:[%s413 + $0xa0] sm:$0xff]
  %v424 = vld [vmem:[%s413 + $0xb0] sm:$0xff]
  %v425 = vld [vmem:[%s413 + $0xc0] sm:$0xff]
  %v426 = vld [vmem:[%s413 + $0xd0] sm:$0xff]
  %v427 = vld [vmem:[%s413 + $0xe0] sm:$0xff]
  %v428 = vld [vmem:[%s413 + $0xf0] sm:$0xff]
  %v429 = vld [vmem:[%s413 + $0x100] sm:$0xff]
  %s430 = scalar_lea.vmem %s1, 128
  %v431 = vld [vmem:[%s430] sm:$0xff]
  %v432 = vld [vmem:[%s430 + $0x8] sm:$0xff]
  %v433 = vld [vmem:[%s430 + $0x10] sm:$0xff]
  %v434 = vld [vmem:[%s430 + $0x18] sm:$0xff]
  %v435 = vld [vmem:[%s430 + $0x20] sm:$0xff]
  %v436 = vld [vmem:[%s430 + $0x28] sm:$0xff]
  %v437 = vld [vmem:[%s430 + $0x30] sm:$0xff]
  %v438 = vld [vmem:[%s430 + $0x38] sm:$0xff]
  %v439 = vld [vmem:[%s430 + $0x40] sm:$0xff]
  %v440 = vld [vmem:[%s430 + $0x48] sm:$0xff]
  %v441 = vld [vmem:[%s430 + $0x50] sm:$0xff]
  %v442 = vld [vmem:[%s430 + $0x58] sm:$0xff]
  %v443 = vld [vmem:[%s430 + $0x60] sm:$0xff]
  %v444 = vld [vmem:[%s430 + $0x68] sm:$0xff]
  %v445 = vld [vmem:[%s430 + $0x70] sm:$0xff]
  %v446 = vld [vmem:[%s430 + $0x78] sm:$0xff]
  %447 = vmatprep.subr.mxu0 0.0
  %448 = vmatpush1.msra.mxu0 %v431
  %449 = vmatprep.subr.mxu0 0.0
  %450 = vmatpush1.msra.mxu0 %v432
  %451 = vmatprep.subr.mxu0 0.0
  %452 = vmatpush1.msra.mxu0 %v433
  %453 = vmatprep.subr.mxu0 0.0
  %454 = vmatpush1.msra.mxu0 %v434
  %455 = vmatprep.subr.mxu0 0.0
  %456 = vmatpush1.msra.mxu0 %v435
  %457 = vmatprep.subr.mxu0 0.0
  %458 = vmatpush1.msra.mxu0 %v436
  %459 = vmatprep.subr.mxu0 0.0
  %460 = vmatpush1.msra.mxu0 %v437
  %461 = vmatprep.subr.mxu0 0.0
  %462 = vmatpush1.msra.mxu0 %v438
  %463 = vmatprep.subr.mxu0 0.0
  %464 = vmatpush1.msra.mxu0 %v439
  %465 = vmatprep.subr.mxu0 0.0
  %466 = vmatpush1.msra.mxu0 %v440
  %467 = vmatprep.subr.mxu0 0.0
  %468 = vmatpush1.msra.mxu0 %v441
  %469 = vmatprep.subr.mxu0 0.0
  %470 = vmatpush1.msra.mxu0 %v442
  %471 = vmatprep.subr.mxu0 0.0
  %472 = vmatpush1.msra.mxu0 %v443
  %473 = vmatprep.subr.mxu0 0.0
  %474 = vmatpush1.msra.mxu0 %v444
  %475 = vmatprep.subr.mxu0 0.0
  %476 = vmatpush1.msra.mxu0 %v445
  %477 = vmatprep.subr.mxu0 0.0
  %478 = vmatpush1.msra.mxu0 %v446
  %479 = vmatprep.subr.mxu0 0.0
  %480 = vmatpush1.msra.mxu0 0.0
  %481 = vmatprep.subr.mxu0 0.0
  %482 = vmatpush1.msra.mxu0 0.0
  %483 = vmatprep.subr.mxu0 0.0
  %484 = vmatpush1.msra.mxu0 0.0
  %485 = vmatprep.subr.mxu0 0.0
  %486 = vmatpush1.msra.mxu0 0.0
  %487 = vmatprep.subr.mxu0 0.0
  %488 = vmatpush1.msra.mxu0 0.0
  %489 = vmatprep.subr.mxu0 0.0
  %490 = vmatpush1.msra.mxu0 0.0
  %491 = vmatprep.subr.mxu0 0.0
  %492 = vmatpush1.msra.mxu0 0.0
  %493 = vmatprep.subr.mxu0 0.0
  %494 = vmatpush1.msra.mxu0 0.0
  %495 = vmatprep.subr.mxu0 0.0
  %496 = vmatpush1.msra.mxu0 0.0
  %497 = vmatprep.subr.mxu0 0.0
  %498 = vmatpush1.msra.mxu0 0.0
  %499 = vmatprep.subr.mxu0 0.0
  %500 = vmatpush1.msra.mxu0 0.0
  %501 = vmatprep.subr.mxu0 0.0
  %502 = vmatpush1.msra.mxu0 0.0
  %503 = vmatprep.subr.mxu0 0.0
  %504 = vmatpush1.msra.mxu0 0.0
  %505 = vmatprep.subr.mxu0 0.0
  %506 = vmatpush1.msra.mxu0 0.0
  %507 = vmatprep.subr.mxu0 0.0
  %508 = vmatpush1.msra.mxu0 0.0
  %509 = vmatprep.subr.mxu0 0.0
  %510 = vmatpush1.msra.mxu0 0.0
  %511 = vmatprep.mubr.f32.mxu0 0.0
  %512 = vmatmul.mubr.f32.gmra.mrb[0].mxu0 %v414
  %v513 = vpop.f32.mrb[0].mxu0
  %v514 = vadd.f32 0.0, %v513
  %v515 = vpop.f32.mrb[0].mxu0
  %516 = vmatprep.mubr.f32.mxu0 0.0
  %517 = vmatmul.mubr.f32.gmra.mrb[0].mxu0 %v415
  %v518 = vpop.f32.mrb[0].mxu0
  %v519 = vadd.f32 0.0, %v518
  %v520 = vpop.f32.mrb[0].mxu0
  %521 = vmatprep.mubr.f32.mxu0 0.0
  %522 = vmatmul.mubr.f32.gmra.mrb[0].mxu0 %v416
  %v523 = vpop.f32.mrb[0].mxu0
  %v524 = vadd.f32 0.0, %v523
  %v525 = vpop.f32.mrb[0].mxu0
  %526 = vmatprep.mubr.f32.mxu0 0.0
  %527 = vmatmul.mubr.f32.gmra.mrb[0].mxu0 %v417
  %v528 = vpop.f32.mrb[0].mxu0
  %v529 = vadd.f32 0.0, %v528
  %v530 = vpop.f32.mrb[0].mxu0
  %531 = vmatprep.mubr.f32.mxu0 0.0
  %532 = vmatmul.mubr.f32.gmra.mrb[0].mxu0 %v418
  %v533 = vpop.f32.mrb[0].mxu0
  %v534 = vadd.f32 0.0, %v533
  %v535 = vpop.f32.mrb[0].mxu0
  %536 = vmatprep.mubr.f32.mxu0 0.0
  %537 = vmatmul.mubr.f32.gmra.mrb[0].mxu0 %v419
  %v538 = vpop.f32.mrb[0].mxu0
  %v539 = vadd.f32 0.0, %v538
  %v540 = vpop.f32.mrb[0].mxu0
  %541 = vmatprep.mubr.f32.mxu0 0.0
  %542 = vmatmul.mubr.f32.gmra.mrb[0].mxu0 %v420
  %v543 = vpop.f32.mrb[0].mxu0
  %v544 = vadd.f32 0.0, %v543
  %v545 = vpop.f32.mrb[0].mxu0
  %546 = vmatprep.mubr.f32.mxu0 0.0
  %547 = vmatmul.mubr.f32.gmra.mrb[0].mxu0 %v421
  %v548 = vpop.f32.mrb[0].mxu0
  %v549 = vadd.f32 0.0, %v548
  %v550 = vpop.f32.mrb[0].mxu0
  %551 = vmatprep.mubr.f32.mxu0 0.0
  %552 = vmatmul.mubr.f32.gmra.mrb[0].mxu0 %v422
  %v553 = vpop.f32.mrb[0].mxu0
  %v554 = vadd.f32 0.0, %v553
  %v555 = vpop.f32.mrb[0].mxu0
  %556 = vmatprep.mubr.f32.mxu0 0.0
  %557 = vmatmul.mubr.f32.gmra.mrb[0].mxu0 %v423
  %v558 = vpop.f32.mrb[0].mxu0
  %v559 = vadd.f32 0.0, %v558
  %v560 = vpop.f32.mrb[0].mxu0
  %561 = vmatprep.mubr.f32.mxu0 0.0
  %562 = vmatmul.mubr.f32.gmra.mrb[0].mxu0 %v424
  %v563 = vpop.f32.mrb[0].mxu0
  %v564 = vadd.f32 0.0, %v563
  %v565 = vpop.f32.mrb[0].mxu0
  %566 = vmatprep.mubr.f32.mxu0 0.0
  %567 = vmatmul.mubr.f32.gmra.mrb[0].mxu0 %v425
  %v568 = vpop.f32.mrb[0].mxu0
  %v569 = vadd.f32 0.0, %v568
  %v570 = vpop.f32.mrb[0].mxu0
  %571 = vmatprep.mubr.f32.mxu0 0.0
  %572 = vmatmul.mubr.f32.gmra.mrb[0].mxu0 %v426
  %v573 = vpop.f32.mrb[0].mxu0
  %v574 = vadd.f32 0.0, %v573
  %v575 = vpop.f32.mrb[0].mxu0
  %576 = vmatprep.mubr.f32.mxu0 0.0
  %577 = vmatmul.mubr.f32.gmra.mrb[0].mxu0 %v427
  %v578 = vpop.f32.mrb[0].mxu0
  %v579 = vadd.f32 0.0, %v578
  %v580 = vpop.f32.mrb[0].mxu0
  %581 = vmatprep.mubr.f32.mxu0 0.0
  %582 = vmatmul.mubr.f32.gmra.mrb[0].mxu0 %v428
  %v583 = vpop.f32.mrb[0].mxu0
  %v584 = vadd.f32 0.0, %v583
  %v585 = vpop.f32.mrb[0].mxu0
  %586 = vmatprep.mubr.f32.mxu0 0.0
  %587 = vmatmul.mubr.f32.gmra.mrb[0].mxu0 %v429
  %v588 = vpop.f32.mrb[0].mxu0
  %v589 = vadd.f32 0.0, %v588
  %v590 = vpop.f32.mrb[0].mxu0
  %591 = vdwg.mxu0
  %592 = vmatprep.subr.mxu0 0.0
  %593 = vmatpush1.msra.mxu0 %v397
  %594 = vmatprep.subr.mxu0 0.0
  %595 = vmatpush1.msra.mxu0 %v398
  %596 = vmatprep.subr.mxu0 0.0
  %597 = vmatpush1.msra.mxu0 %v399
  %598 = vmatprep.subr.mxu0 0.0
  %599 = vmatpush1.msra.mxu0 %v400
  %600 = vmatprep.subr.mxu0 0.0
  %601 = vmatpush1.msra.mxu0 %v401
  %602 = vmatprep.subr.mxu0 0.0
  %603 = vmatpush1.msra.mxu0 %v402
  %604 = vmatprep.subr.mxu0 0.0
  %605 = vmatpush1.msra.mxu0 %v403
  %606 = vmatprep.subr.mxu0 0.0
  %607 = vmatpush1.msra.mxu0 %v404
  %608 = vmatprep.subr.mxu0 0.0
  %609 = vmatpush1.msra.mxu0 %v405
  %610 = vmatprep.subr.mxu0 0.0
  %611 = vmatpush1.msra.mxu0 %v406
  %612 = vmatprep.subr.mxu0 0.0
  %613 = vmatpush1.msra.mxu0 %v407
  %614 = vmatprep.subr.mxu0 0.0
  %615 = vmatpush1.msra.mxu0 %v408
  %616 = vmatprep.subr.mxu0 0.0
  %617 = vmatpush1.msra.mxu0 %v409
  %618 = vmatprep.subr.mxu0 0.0
  %619 = vmatpush1.msra.mxu0 %v410
  %620 = vmatprep.subr.mxu0 0.0
  %621 = vmatpush1.msra.mxu0 %v411
  %622 = vmatprep.subr.mxu0 0.0
  %623 = vmatpush1.msra.mxu0 %v412
  %624 = vmatprep.subr.mxu0 0.0
  %625 = vmatpush1.msra.mxu0 0.0
  %626 = vmatprep.subr.mxu0 0.0
  %627 = vmatpush1.msra.mxu0 0.0
  %628 = vmatprep.subr.mxu0 0.0
  %629 = vmatpush1.msra.mxu0 0.0
  %630 = vmatprep.subr.mxu0 0.0
  %631 = vmatpush1.msra.mxu0 0.0
  %632 = vmatprep.subr.mxu0 0.0
  %633 = vmatpush1.msra.mxu0 0.0
  %634 = vmatprep.subr.mxu0 0.0
  %635 = vmatpush1.msra.mxu0 0.0
  %636 = vmatprep.subr.mxu0 0.0
  %637 = vmatpush1.msra.mxu0 0.0
  %638 = vmatprep.subr.mxu0 0.0
  %639 = vmatpush1.msra.mxu0 0.0
  %640 = vmatprep.subr.mxu0 0.0
  %641 = vmatpush1.msra.mxu0 0.0
  %642 = vmatprep.subr.mxu0 0.0
  %643 = vmatpush1.msra.mxu0 0.0
  %644 = vmatprep.subr.mxu0 0.0
  %645 = vmatpush1.msra.mxu0 0.0
  %646 = vmatprep.subr.mxu0 0.0
  %647 = vmatpush1.msra.mxu0 0.0
  %648 = vmatprep.subr.mxu0 0.0
  %649 = vmatpush1.msra.mxu0 0.0
  %650 = vmatprep.subr.mxu0 0.0
  %651 = vmatpush1.msra.mxu0 0.0
  %652 = vmatprep.subr.mxu0 0.0
  %653 = vmatpush1.msra.mxu0 0.0
  %654 = vmatprep.subr.mxu0 0.0
  %655 = vmatpush1.msra.mxu0 0.0
  %656 = vmatprep.mubr.f32.mxu0 0.0
  %657 = vmatmul.mubr.f32.gmra.mrb[0].mxu0 %v381
  %v658 = vpop.f32.mrb[0].mxu0
  %v659 = vadd.f32 %v514, %v658
  %v660 = vpop.f32.mrb[0].mxu0
  %661 = vmatprep.mubr.f32.mxu0 0.0
  %662 = vmatmul.mubr.f32.gmra.mrb[0].mxu0 %v382
  %v663 = vpop.f32.mrb[0].mxu0
  %v664 = vadd.f32 %v519, %v663
  %v665 = vpop.f32.mrb[0].mxu0
  %666 = vmatprep.mubr.f32.mxu0 0.0
  %667 = vmatmul.mubr.f32.gmra.mrb[0].mxu0 %v383
  %v668 = vpop.f32.mrb[0].mxu0
  %v669 = vadd.f32 %v524, %v668
  %v670 = vpop.f32.mrb[0].mxu0
  %671 = vmatprep.mubr.f32.mxu0 0.0
  %672 = vmatmul.mubr.f32.gmra.mrb[0].mxu0 %v384
  %v673 = vpop.f32.mrb[0].mxu0
  %v674 = vadd.f32 %v529, %v673
  %v675 = vpop.f32.mrb[0].mxu0
  %676 = vmatprep.mubr.f32.mxu0 0.0
  %677 = vmatmul.mubr.f32.gmra.mrb[0].mxu0 %v385
  %v678 = vpop.f32.mrb[0].mxu0
  %v679 = vadd.f32 %v534, %v678
  %v680 = vpop.f32.mrb[0].mxu0
  %681 = vmatprep.mubr.f32.mxu0 0.0
  %682 = vmatmul.mubr.f32.gmra.mrb[0].mxu0 %v386
  %v683 = vpop.f32.mrb[0].mxu0
  %v684 = vadd.f32 %v539, %v683
  %v685 = vpop.f32.mrb[0].mxu0
  %686 = vmatprep.mubr.f32.mxu0 0.0
  %687 = vmatmul.mubr.f32.gmra.mrb[0].mxu0 %v387
  %v688 = vpop.f32.mrb[0].mxu0
  %v689 = vadd.f32 %v544, %v688
  %v690 = vpop.f32.mrb[0].mxu0
  %691 = vmatprep.mubr.f32.mxu0 0.0
  %692 = vmatmul.mubr.f32.gmra.mrb[0].mxu0 %v388
  %v693 = vpop.f32.mrb[0].mxu0
  %v694 = vadd.f32 %v549, %v693
  %v695 = vpop.f32.mrb[0].mxu0
  %696 = vmatprep.mubr.f32.mxu0 0.0
  %697 = vmatmul.mubr.f32.gmra.mrb[0].mxu0 %v389
  %v698 = vpop.f32.mrb[0].mxu0
  %v699 = vadd.f32 %v554, %v698
  %v700 = vpop.f32.mrb[0].mxu0
  %701 = vmatprep.mubr.f32.mxu0 0.0
  %702 = vmatmul.mubr.f32.gmra.mrb[0].mxu0 %v390
  %v703 = vpop.f32.mrb[0].mxu0
  %v704 = vadd.f32 %v559, %v703
  %v705 = vpop.f32.mrb[0].mxu0
  %706 = vmatprep.mubr.f32.mxu0 0.0
  %707 = vmatmul.mubr.f32.gmra.mrb[0].mxu0 %v391
  %v708 = vpop.f32.mrb[0].mxu0
  %v709 = vadd.f32 %v564, %v708
  %v710 = vpop.f32.mrb[0].mxu0
  %711 = vmatprep.mubr.f32.mxu0 0.0
  %712 = vmatmul.mubr.f32.gmra.mrb[0].mxu0 %v392
  %v713 = vpop.f32.mrb[0].mxu0
  %v714 = vadd.f32 %v569, %v713
  %v715 = vpop.f32.mrb[0].mxu0
  %716 = vmatprep.mubr.f32.mxu0 0.0
  %717 = vmatmul.mubr.f32.gmra.mrb[0].mxu0 %v393
  %v718 = vpop.f32.mrb[0].mxu0
  %v719 = vadd.f32 %v574, %v718
  %v720 = vpop.f32.mrb[0].mxu0
  %721 = vmatprep.mubr.f32.mxu0 0.0
  %722 = vmatmul.mubr.f32.gmra.mrb[0].mxu0 %v394
  %v723 = vpop.f32.mrb[0].mxu0
  %v724 = vadd.f32 %v579, %v723
  %v725 = vpop.f32.mrb[0].mxu0
  %726 = vmatprep.mubr.f32.mxu0 0.0
  %727 = vmatmul.mubr.f32.gmra.mrb[0].mxu0 %v395
  %v728 = vpop.f32.mrb[0].mxu0
  %v729 = vadd.f32 %v584, %v728
  %v730 = vpop.f32.mrb[0].mxu0
  %731 = vmatprep.mubr.f32.mxu0 0.0
  %732 = vmatmul.mubr.f32.gmra.mrb[0].mxu0 %v396
  %v733 = vpop.f32.mrb[0].mxu0
  %v734 = vadd.f32 %v589, %v733
  %v735 = vpop.f32.mrb[0].mxu0
  %736 = vdwg.mxu0
  %v737 = vld [vmem:[%s0 + $0x1] sm:$0xff]
  %v738 = vld [vmem:[%s0 + $0x11] sm:$0xff]
  %v739 = vld [vmem:[%s0 + $0x21] sm:$0xff]
  %v740 = vld [vmem:[%s0 + $0x31] sm:$0xff]
  %v741 = vld [vmem:[%s0 + $0x41] sm:$0xff]
  %v742 = vld [vmem:[%s0 + $0x51] sm:$0xff]
  %v743 = vld [vmem:[%s0 + $0x61] sm:$0xff]
  %v744 = vld [vmem:[%s0 + $0x71] sm:$0xff]
  %v745 = vld [vmem:[%s0 + $0x91] sm:$0xff]
  %v746 = vld [vmem:[%s0 + $0xa1] sm:$0xff]
  %v747 = vld [vmem:[%s0 + $0xb1] sm:$0xff]
  %v748 = vld [vmem:[%s0 + $0xc1] sm:$0xff]
  %v749 = vld [vmem:[%s0 + $0xd1] sm:$0xff]
  %v750 = vld [vmem:[%s0 + $0xe1] sm:$0xff]
  %v751 = vld [vmem:[%s0 + $0xf1] sm:$0xff]
  %v752 = vld [vmem:[%s0 + $0x101] sm:$0xff]
  %s753 = scalar_lea.vmem %s1, 256
  %v754 = vld [vmem:[%s753] sm:$0xff]
  %v755 = vld [vmem:[%s753 + $0x8] sm:$0xff]
  %v756 = vld [vmem:[%s753 + $0x10] sm:$0xff]
  %v757 = vld [vmem:[%s753 + $0x18] sm:$0xff]
  %v758 = vld [vmem:[%s753 + $0x20] sm:$0xff]
  %v759 = vld [vmem:[%s753 + $0x28] sm:$0xff]
  %v760 = vld [vmem:[%s753 + $0x30] sm:$0xff]
  %v761 = vld [vmem:[%s753 + $0x38] sm:$0xff]
  %v762 = vld [vmem:[%s753 + $0x40] sm:$0xff]
  %v763 = vld [vmem:[%s753 + $0x48] sm:$0xff]
  %v764 = vld [vmem:[%s753 + $0x50] sm:$0xff]
  %v765 = vld [vmem:[%s753 + $0x58] sm:$0xff]
  %v766 = vld [vmem:[%s753 + $0x60] sm:$0xff]
  %v767 = vld [vmem:[%s753 + $0x68] sm:$0xff]
  %v768 = vld [vmem:[%s753 + $0x70] sm:$0xff]
  %v769 = vld [vmem:[%s753 + $0x78] sm:$0xff]
  %770 = vmatprep.subr.mxu0 0.0
  %771 = vmatpush1.msra.mxu0 %v754
  %772 = vmatprep.subr.mxu0 0.0
  %773 = vmatpush1.msra.mxu0 %v755
  %774 = vmatprep.subr.mxu0 0.0
  %775 = vmatpush1.msra.mxu0 %v756
  %776 = vmatprep.subr.mxu0 0.0
  %777 = vmatpush1.msra.mxu0 %v757
  %778 = vmatprep.subr.mxu0 0.0
  %779 = vmatpush1.msra.mxu0 %v758
  %780 = vmatprep.subr.mxu0 0.0
  %781 = vmatpush1.msra.mxu0 %v759
  %782 = vmatprep.subr.mxu0 0.0
  %783 = vmatpush1.msra.mxu0 %v760
  %784 = vmatprep.subr.mxu0 0.0
  %785 = vmatpush1.msra.mxu0 %v761
  %786 = vmatprep.subr.mxu0 0.0
  %787 = vmatpush1.msra.mxu0 %v762
  %788 = vmatprep.subr.mxu0 0.0
  %789 = vmatpush1.msra.mxu0 %v763
  %790 = vmatprep.subr.mxu0 0.0
  %791 = vmatpush1.msra.mxu0 %v764
  %792 = vmatprep.subr.mxu0 0.0
  %793 = vmatpush1.msra.mxu0 %v765
  %794 = vmatprep.subr.mxu0 0.0
  %795 = vmatpush1.msra.mxu0 %v766
  %796 = vmatprep.subr.mxu0 0.0
  %797 = vmatpush1.msra.mxu0 %v767
  %798 = vmatprep.subr.mxu0 0.0
  %799 = vmatpush1.msra.mxu0 %v768
  %800 = vmatprep.subr.mxu0 0.0
  %801 = vmatpush1.msra.mxu0 %v769
  %802 = vmatprep.subr.mxu0 0.0
  %803 = vmatpush1.msra.mxu0 0.0
  %804 = vmatprep.subr.mxu0 0.0
  %805 = vmatpush1.msra.mxu0 0.0
  %806 = vmatprep.subr.mxu0 0.0
  %807 = vmatpush1.msra.mxu0 0.0
  %808 = vmatprep.subr.mxu0 0.0
  %809 = vmatpush1.msra.mxu0 0.0
  %810 = vmatprep.subr.mxu0 0.0
  %811 = vmatpush1.msra.mxu0 0.0
  %812 = vmatprep.subr.mxu0 0.0
  %813 = vmatpush1.msra.mxu0 0.0
  %814 = vmatprep.subr.mxu0 0.0
  %815 = vmatpush1.msra.mxu0 0.0
  %816 = vmatprep.subr.mxu0 0.0
  %817 = vmatpush1.msra.mxu0 0.0
  %818 = vmatprep.subr.mxu0 0.0
  %819 = vmatpush1.msra.mxu0 0.0
  %820 = vmatprep.subr.mxu0 0.0
  %821 = vmatpush1.msra.mxu0 0.0
  %822 = vmatprep.subr.mxu0 0.0
  %823 = vmatpush1.msra.mxu0 0.0
  %824 = vmatprep.subr.mxu0 0.0
  %825 = vmatpush1.msra.mxu0 0.0
  %826 = vmatprep.subr.mxu0 0.0
  %827 = vmatpush1.msra.mxu0 0.0
  %828 = vmatprep.subr.mxu0 0.0
  %829 = vmatpush1.msra.mxu0 0.0
  %830 = vmatprep.subr.mxu0 0.0
  %831 = vmatpush1.msra.mxu0 0.0
  %832 = vmatprep.subr.mxu0 0.0
  %833 = vmatpush1.msra.mxu0 0.0
  %834 = vmatprep.mubr.f32.mxu0 0.0
  %835 = vmatmul.mubr.f32.gmra.mrb[0].mxu0 %v737
  %v836 = vpop.f32.mrb[0].mxu0
  %v837 = vadd.f32 0.0, %v836
  %v838 = vpop.f32.mrb[0].mxu0
  %839 = vmatprep.mubr.f32.mxu0 0.0
  %840 = vmatmul.mubr.f32.gmra.mrb[0].mxu0 %v738
  %v841 = vpop.f32.mrb[0].mxu0
  %v842 = vadd.f32 0.0, %v841
  %v843 = vpop.f32.mrb[0].mxu0
  %844 = vmatprep.mubr.f32.mxu0 0.0
  %845 = vmatmul.mubr.f32.gmra.mrb[0].mxu0 %v739
  %v846 = vpop.f32.mrb[0].mxu0
  %v847 = vadd.f32 0.0, %v846
  %v848 = vpop.f32.mrb[0].mxu0
  %849 = vmatprep.mubr.f32.mxu0 0.0
  %850 = vmatmul.mubr.f32.gmra.mrb[0].mxu0 %v740
  %v851 = vpop.f32.mrb[0].mxu0
  %v852 = vadd.f32 0.0, %v851
  %v853 = vpop.f32.mrb[0].mxu0
  %854 = vmatprep.mubr.f32.mxu0 0.0
  %855 = vmatmul.mubr.f32.gmra.mrb[0].mxu0 %v741
  %v856 = vpop.f32.mrb[0].mxu0
  %v857 = vadd.f32 0.0, %v856
  %v858 = vpop.f32.mrb[0].mxu0
  %859 = vmatprep.mubr.f32.mxu0 0.0
  %860 = vmatmul.mubr.f32.gmra.mrb[0].mxu0 %v742
  %v861 = vpop.f32.mrb[0].mxu0
  %v862 = vadd.f32 0.0, %v861
  %v863 = vpop.f32.mrb[0].mxu0
  %864 = vmatprep.mubr.f32.mxu0 0.0
  %865 = vmatmul.mubr.f32.gmra.mrb[0].mxu0 %v743
  %v866 = vpop.f32.mrb[0].mxu0
  %v867 = vadd.f32 0.0, %v866
  %v868 = vpop.f32.mrb[0].mxu0
  %869 = vmatprep.mubr.f32.mxu0 0.0
  %870 = vmatmul.mubr.f32.gmra.mrb[0].mxu0 %v744
  %v871 = vpop.f32.mrb[0].mxu0
  %v872 = vadd.f32 0.0, %v871
  %v873 = vpop.f32.mrb[0].mxu0
  %874 = vmatprep.mubr.f32.mxu0 0.0
  %875 = vmatmul.mubr.f32.gmra.mrb[0].mxu0 %v745
  %v876 = vpop.f32.mrb[0].mxu0
  %v877 = vadd.f32 0.0, %v876
  %v878 = vpop.f32.mrb[0].mxu0
  %879 = vmatprep.mubr.f32.mxu0 0.0
  %880 = vmatmul.mubr.f32.gmra.mrb[0].mxu0 %v746
  %v881 = vpop.f32.mrb[0].mxu0
  %v882 = vadd.f32 0.0, %v881
  %v883 = vpop.f32.mrb[0].mxu0
  %884 = vmatprep.mubr.f32.mxu0 0.0
  %885 = vmatmul.mubr.f32.gmra.mrb[0].mxu0 %v747
  %v886 = vpop.f32.mrb[0].mxu0
  %v887 = vadd.f32 0.0, %v886
  %v888 = vpop.f32.mrb[0].mxu0
  %889 = vmatprep.mubr.f32.mxu0 0.0
  %890 = vmatmul.mubr.f32.gmra.mrb[0].mxu0 %v748
  %v891 = vpop.f32.mrb[0].mxu0
  %v892 = vadd.f32 0.0, %v891
  %v893 = vpop.f32.mrb[0].mxu0
  %894 = vmatprep.mubr.f32.mxu0 0.0
  %895 = vmatmul.mubr.f32.gmra.mrb[0].mxu0 %v749
  %v896 = vpop.f32.mrb[0].mxu0
  %v897 = vadd.f32 0.0, %v896
  %v898 = vpop.f32.mrb[0].mxu0
  %899 = vmatprep.mubr.f32.mxu0 0.0
  %900 = vmatmul.mubr.f32.gmra.mrb[0].mxu0 %v750
  %v901 = vpop.f32.mrb[0].mxu0
  %v902 = vadd.f32 0.0, %v901
  %v903 = vpop.f32.mrb[0].mxu0
  %904 = vmatprep.mubr.f32.mxu0 0.0
  %905 = vmatmul.mubr.f32.gmra.mrb[0].mxu0 %v751
  %v906 = vpop.f32.mrb[0].mxu0
  %v907 = vadd.f32 0.0, %v906
  %v908 = vpop.f32.mrb[0].mxu0
  %909 = vmatprep.mubr.f32.mxu0 0.0
  %910 = vmatmul.mubr.f32.gmra.mrb[0].mxu0 %v752
  %v911 = vpop.f32.mrb[0].mxu0
  %v912 = vadd.f32 0.0, %v911
  %v913 = vpop.f32.mrb[0].mxu0
  %914 = vdwg.mxu0
  %v915 = vadd.f32 %v659, %v837
  %v916 = vadd.f32 %v664, %v842
  %v917 = vadd.f32 %v669, %v847
  %v918 = vadd.f32 %v674, %v852
  %v919 = vadd.f32 %v679, %v857
  %v920 = vadd.f32 %v684, %v862
  %v921 = vadd.f32 %v689, %v867
  %v922 = vadd.f32 %v694, %v872
  %v923 = vadd.f32 %v699, %v877
  %v924 = vadd.f32 %v704, %v882
  %v925 = vadd.f32 %v709, %v887
  %v926 = vadd.f32 %v714, %v892
  %v927 = vadd.f32 %v719, %v897
  %v928 = vadd.f32 %v724, %v902
  %v929 = vadd.f32 %v729, %v907
  %v930 = vadd.f32 %v734, %v912
  %v931 = vld [vmem:[%s114] sm:$0xff]
  %v932 = vld [vmem:[%s114 + $0x10] sm:$0xff]
  %v933 = vld [vmem:[%s114 + $0x20] sm:$0xff]
  %v934 = vld [vmem:[%s114 + $0x30] sm:$0xff]
  %v935 = vld [vmem:[%s114 + $0x40] sm:$0xff]
  %v936 = vld [vmem:[%s114 + $0x50] sm:$0xff]
  %v937 = vld [vmem:[%s114 + $0x60] sm:$0xff]
  %v938 = vld [vmem:[%s114 + $0x70] sm:$0xff]
  %v939 = vld [vmem:[%s114 + $0x90] sm:$0xff]
  %v940 = vld [vmem:[%s114 + $0xa0] sm:$0xff]
  %v941 = vld [vmem:[%s114 + $0xb0] sm:$0xff]
  %v942 = vld [vmem:[%s114 + $0xc0] sm:$0xff]
  %v943 = vld [vmem:[%s114 + $0xd0] sm:$0xff]
  %v944 = vld [vmem:[%s114 + $0xe0] sm:$0xff]
  %v945 = vld [vmem:[%s114 + $0xf0] sm:$0xff]
  %v946 = vld [vmem:[%s114 + $0x100] sm:$0xff]
  %s947 = scalar_lea.vmem %s1, 384
  %v948 = vld [vmem:[%s947] sm:$0xff]
  %v949 = vld [vmem:[%s947 + $0x8] sm:$0xff]
  %v950 = vld [vmem:[%s947 + $0x10] sm:$0xff]
  %v951 = vld [vmem:[%s947 + $0x18] sm:$0xff]
  %v952 = vld [vmem:[%s947 + $0x20] sm:$0xff]
  %v953 = vld [vmem:[%s947 + $0x28] sm:$0xff]
  %v954 = vld [vmem:[%s947 + $0x30] sm:$0xff]
  %v955 = vld [vmem:[%s947 + $0x38] sm:$0xff]
  %v956 = vld [vmem:[%s947 + $0x40] sm:$0xff]
  %v957 = vld [vmem:[%s947 + $0x48] sm:$0xff]
  %v958 = vld [vmem:[%s947 + $0x50] sm:$0xff]
  %v959 = vld [vmem:[%s947 + $0x58] sm:$0xff]
  %v960 = vld [vmem:[%s947 + $0x60] sm:$0xff]
  %v961 = vld [vmem:[%s947 + $0x68] sm:$0xff]
  %v962 = vld [vmem:[%s947 + $0x70] sm:$0xff]
  %v963 = vld [vmem:[%s947 + $0x78] sm:$0xff]
  %964 = vmatprep.subr.mxu0 0.0
  %965 = vmatpush1.msra.mxu0 %v948
  %966 = vmatprep.subr.mxu0 0.0
  %967 = vmatpush1.msra.mxu0 %v949
  %968 = vmatprep.subr.mxu0 0.0
  %969 = vmatpush1.msra.mxu0 %v950
  %970 = vmatprep.subr.mxu0 0.0
  %971 = vmatpush1.msra.mxu0 %v951
  %972 = vmatprep.subr.mxu0 0.0
  %973 = vmatpush1.msra.mxu0 %v952
  %974 = vmatprep.subr.mxu0 0.0
  %975 = vmatpush1.msra.mxu0 %v953
  %976 = vmatprep.subr.mxu0 0.0
  %977 = vmatpush1.msra.mxu0 %v954
  %978 = vmatprep.subr.mxu0 0.0
  %979 = vmatpush1.msra.mxu0 %v955
  %980 = vmatprep.subr.mxu0 0.0
  %981 = vmatpush1.msra.mxu0 %v956
  %982 = vmatprep.subr.mxu0 0.0
  %983 = vmatpush1.msra.mxu0 %v957
  %984 = vmatprep.subr.mxu0 0.0
  %985 = vmatpush1.msra.mxu0 %v958
  %986 = vmatprep.subr.mxu0 0.0
  %987 = vmatpush1.msra.mxu0 %v959
  %988 = vmatprep.subr.mxu0 0.0
  %989 = vmatpush1.msra.mxu0 %v960
  %990 = vmatprep.subr.mxu0 0.0
  %991 = vmatpush1.msra.mxu0 %v961
  %992 = vmatprep.subr.mxu0 0.0
  %993 = vmatpush1.msra.mxu0 %v962
  %994 = vmatprep.subr.mxu0 0.0
  %995 = vmatpush1.msra.mxu0 %v963
  %996 = vmatprep.subr.mxu0 0.0
  %997 = vmatpush1.msra.mxu0 0.0
  %998 = vmatprep.subr.mxu0 0.0
  %999 = vmatpush1.msra.mxu0 0.0
  %1000 = vmatprep.subr.mxu0 0.0
  %1001 = vmatpush1.msra.mxu0 0.0
  %1002 = vmatprep.subr.mxu0 0.0
  %1003 = vmatpush1.msra.mxu0 0.0
  %1004 = vmatprep.subr.mxu0 0.0
  %1005 = vmatpush1.msra.mxu0 0.0
  %1006 = vmatprep.subr.mxu0 0.0
  %1007 = vmatpush1.msra.mxu0 0.0
  %1008 = vmatprep.subr.mxu0 0.0
  %1009 = vmatpush1.msra.mxu0 0.0
  %1010 = vmatprep.subr.mxu0 0.0
  %1011 = vmatpush1.msra.mxu0 0.0
  %1012 = vmatprep.subr.mxu0 0.0
  %1013 = vmatpush1.msra.mxu0 0.0
  %1014 = vmatprep.subr.mxu0 0.0
  %1015 = vmatpush1.msra.mxu0 0.0
  %1016 = vmatprep.subr.mxu0 0.0
  %1017 = vmatpush1.msra.mxu0 0.0
  %1018 = vmatprep.subr.mxu0 0.0
  %1019 = vmatpush1.msra.mxu0 0.0
  %1020 = vmatprep.subr.mxu0 0.0
  %1021 = vmatpush1.msra.mxu0 0.0
  %1022 = vmatprep.subr.mxu0 0.0
  %1023 = vmatpush1.msra.mxu0 0.0
  %1024 = vmatprep.subr.mxu0 0.0
  %1025 = vmatpush1.msra.mxu0 0.0
  %1026 = vmatprep.subr.mxu0 0.0
  %1027 = vmatpush1.msra.mxu0 0.0
  %1028 = vmatprep.mubr.f32.mxu0 0.0
  %1029 = vmatmul.mubr.f32.gmra.mrb[0].mxu0 %v931
  %v1030 = vpop.f32.mrb[0].mxu0
  %v1031 = vadd.f32 0.0, %v1030
  %v1032 = vpop.f32.mrb[0].mxu0
  %1033 = vmatprep.mubr.f32.mxu0 0.0
  %1034 = vmatmul.mubr.f32.gmra.mrb[0].mxu0 %v932
  %v1035 = vpop.f32.mrb[0].mxu0
  %v1036 = vadd.f32 0.0, %v1035
  %v1037 = vpop.f32.mrb[0].mxu0
  %1038 = vmatprep.mubr.f32.mxu0 0.0
  %1039 = vmatmul.mubr.f32.gmra.mrb[0].mxu0 %v933
  %v1040 = vpop.f32.mrb[0].mxu0
  %v1041 = vadd.f32 0.0, %v1040
  %v1042 = vpop.f32.mrb[0].mxu0
  %1043 = vmatprep.mubr.f32.mxu0 0.0
  %1044 = vmatmul.mubr.f32.gmra.mrb[0].mxu0 %v934
  %v1045 = vpop.f32.mrb[0].mxu0
  %v1046 = vadd.f32 0.0, %v1045
  %v1047 = vpop.f32.mrb[0].mxu0
  %1048 = vmatprep.mubr.f32.mxu0 0.0
  %1049 = vmatmul.mubr.f32.gmra.mrb[0].mxu0 %v935
  %v1050 = vpop.f32.mrb[0].mxu0
  %v1051 = vadd.f32 0.0, %v1050
  %v1052 = vpop.f32.mrb[0].mxu0
  %1053 = vmatprep.mubr.f32.mxu0 0.0
  %1054 = vmatmul.mubr.f32.gmra.mrb[0].mxu0 %v936
  %v1055 = vpop.f32.mrb[0].mxu0
  %v1056 = vadd.f32 0.0, %v1055
  %v1057 = vpop.f32.mrb[0].mxu0
  %1058 = vmatprep.mubr.f32.mxu0 0.0
  %1059 = vmatmul.mubr.f32.gmra.mrb[0].mxu0 %v937
  %v1060 = vpop.f32.mrb[0].mxu0
  %v1061 = vadd.f32 0.0, %v1060
  %v1062 = vpop.f32.mrb[0].mxu0
  %1063 = vmatprep.mubr.f32.mxu0 0.0
  %1064 = vmatmul.mubr.f32.gmra.mrb[0].mxu0 %v938
  %v1065 = vpop.f32.mrb[0].mxu0
  %v1066 = vadd.f32 0.0, %v1065
  %v1067 = vpop.f32.mrb[0].mxu0
  %1068 = vmatprep.mubr.f32.mxu0 0.0
  %1069 = vmatmul.mubr.f32.gmra.mrb[0].mxu0 %v939
  %v1070 = vpop.f32.mrb[0].mxu0
  %v1071 = vadd.f32 0.0, %v1070
  %v1072 = vpop.f32.mrb[0].mxu0
  %1073 = vmatprep.mubr.f32.mxu0 0.0
  %1074 = vmatmul.mubr.f32.gmra.mrb[0].mxu0 %v940
  %v1075 = vpop.f32.mrb[0].mxu0
  %v1076 = vadd.f32 0.0, %v1075
  %v1077 = vpop.f32.mrb[0].mxu0
  %1078 = vmatprep.mubr.f32.mxu0 0.0
  %1079 = vmatmul.mubr.f32.gmra.mrb[0].mxu0 %v941
  %v1080 = vpop.f32.mrb[0].mxu0
  %v1081 = vadd.f32 0.0, %v1080
  %v1082 = vpop.f32.mrb[0].mxu0
  %1083 = vmatprep.mubr.f32.mxu0 0.0
  %1084 = vmatmul.mubr.f32.gmra.mrb[0].mxu0 %v942
  %v1085 = vpop.f32.mrb[0].mxu0
  %v1086 = vadd.f32 0.0, %v1085
  %v1087 = vpop.f32.mrb[0].mxu0
  %1088 = vmatprep.mubr.f32.mxu0 0.0
  %1089 = vmatmul.mubr.f32.gmra.mrb[0].mxu0 %v943
  %v1090 = vpop.f32.mrb[0].mxu0
  %v1091 = vadd.f32 0.0, %v1090
  %v1092 = vpop.f32.mrb[0].mxu0
  %1093 = vmatprep.mubr.f32.mxu0 0.0
  %1094 = vmatmul.mubr.f32.gmra.mrb[0].mxu0 %v944
  %v1095 = vpop.f32.mrb[0].mxu0
  %v1096 = vadd.f32 0.0, %v1095
  %v1097 = vpop.f32.mrb[0].mxu0
  %1098 = vmatprep.mubr.f32.mxu0 0.0
  %1099 = vmatmul.mubr.f32.gmra.mrb[0].mxu0 %v945
  %v1100 = vpop.f32.mrb[0].mxu0
  %v1101 = vadd.f32 0.0, %v1100
  %v1102 = vpop.f32.mrb[0].mxu0
  %1103 = vmatprep.mubr.f32.mxu0 0.0
  %1104 = vmatmul.mubr.f32.gmra.mrb[0].mxu0 %v946
  %v1105 = vpop.f32.mrb[0].mxu0
  %v1106 = vadd.f32 0.0, %v1105
  %v1107 = vpop.f32.mrb[0].mxu0
  %1108 = vdwg.mxu0
  %v1109 = vadd.f32 %v915, %v1031
  %v1110 = vadd.f32 %v916, %v1036
  %v1111 = vadd.f32 %v917, %v1041
  %v1112 = vadd.f32 %v918, %v1046
  %v1113 = vadd.f32 %v919, %v1051
  %v1114 = vadd.f32 %v920, %v1056
  %v1115 = vadd.f32 %v921, %v1061
  %v1116 = vadd.f32 %v922, %v1066
  %v1117 = vadd.f32 %v923, %v1071
  %v1118 = vadd.f32 %v924, %v1076
  %v1119 = vadd.f32 %v925, %v1081
  %v1120 = vadd.f32 %v926, %v1086
  %v1121 = vadd.f32 %v927, %v1091
  %v1122 = vadd.f32 %v928, %v1096
  %v1123 = vadd.f32 %v929, %v1101
  %v1124 = vadd.f32 %v930, %v1106
  %s1125 = scalar_lea.vmem %s1, 512
  %v1126 = vld [vmem:[%s1125] sm:$0xff]
  %v1127 = vld [vmem:[%s1125 + $0x8] sm:$0xff]
  %v1128 = vld [vmem:[%s1125 + $0x10] sm:$0xff]
  %v1129 = vld [vmem:[%s1125 + $0x18] sm:$0xff]
  %v1130 = vld [vmem:[%s1125 + $0x20] sm:$0xff]
  %v1131 = vld [vmem:[%s1125 + $0x28] sm:$0xff]
  %v1132 = vld [vmem:[%s1125 + $0x30] sm:$0xff]
  %v1133 = vld [vmem:[%s1125 + $0x38] sm:$0xff]
  %v1134 = vld [vmem:[%s1125 + $0x40] sm:$0xff]
  %v1135 = vld [vmem:[%s1125 + $0x48] sm:$0xff]
  %v1136 = vld [vmem:[%s1125 + $0x50] sm:$0xff]
  %v1137 = vld [vmem:[%s1125 + $0x58] sm:$0xff]
  %v1138 = vld [vmem:[%s1125 + $0x60] sm:$0xff]
  %v1139 = vld [vmem:[%s1125 + $0x68] sm:$0xff]
  %v1140 = vld [vmem:[%s1125 + $0x70] sm:$0xff]
  %v1141 = vld [vmem:[%s1125 + $0x78] sm:$0xff]
  %1142 = vmatprep.subr.mxu0 0.0
  %1143 = vmatpush1.msra.mxu0 %v1126
  %1144 = vmatprep.subr.mxu0 0.0
  %1145 = vmatpush1.msra.mxu0 %v1127
  %1146 = vmatprep.subr.mxu0 0.0
  %1147 = vmatpush1.msra.mxu0 %v1128
  %1148 = vmatprep.subr.mxu0 0.0
  %1149 = vmatpush1.msra.mxu0 %v1129
  %1150 = vmatprep.subr.mxu0 0.0
  %1151 = vmatpush1.msra.mxu0 %v1130
  %1152 = vmatprep.subr.mxu0 0.0
  %1153 = vmatpush1.msra.mxu0 %v1131
  %1154 = vmatprep.subr.mxu0 0.0
  %1155 = vmatpush1.msra.mxu0 %v1132
  %1156 = vmatprep.subr.mxu0 0.0
  %1157 = vmatpush1.msra.mxu0 %v1133
  %1158 = vmatprep.subr.mxu0 0.0
  %1159 = vmatpush1.msra.mxu0 %v1134
  %1160 = vmatprep.subr.mxu0 0.0
  %1161 = vmatpush1.msra.mxu0 %v1135
  %1162 = vmatprep.subr.mxu0 0.0
  %1163 = vmatpush1.msra.mxu0 %v1136
  %1164 = vmatprep.subr.mxu0 0.0
  %1165 = vmatpush1.msra.mxu0 %v1137
  %1166 = vmatprep.subr.mxu0 0.0
  %1167 = vmatpush1.msra.mxu0 %v1138
  %1168 = vmatprep.subr.mxu0 0.0
  %1169 = vmatpush1.msra.mxu0 %v1139
  %1170 = vmatprep.subr.mxu0 0.0
  %1171 = vmatpush1.msra.mxu0 %v1140
  %1172 = vmatprep.subr.mxu0 0.0
  %1173 = vmatpush1.msra.mxu0 %v1141
  %1174 = vmatprep.subr.mxu0 0.0
  %1175 = vmatpush1.msra.mxu0 0.0
  %1176 = vmatprep.subr.mxu0 0.0
  %1177 = vmatpush1.msra.mxu0 0.0
  %1178 = vmatprep.subr.mxu0 0.0
  %1179 = vmatpush1.msra.mxu0 0.0
  %1180 = vmatprep.subr.mxu0 0.0
  %1181 = vmatpush1.msra.mxu0 0.0
  %1182 = vmatprep.subr.mxu0 0.0
  %1183 = vmatpush1.msra.mxu0 0.0
  %1184 = vmatprep.subr.mxu0 0.0
  %1185 = vmatpush1.msra.mxu0 0.0
  %1186 = vmatprep.subr.mxu0 0.0
  %1187 = vmatpush1.msra.mxu0 0.0
  %1188 = vmatprep.subr.mxu0 0.0
  %1189 = vmatpush1.msra.mxu0 0.0
  %1190 = vmatprep.subr.mxu0 0.0
  %1191 = vmatpush1.msra.mxu0 0.0
  %1192 = vmatprep.subr.mxu0 0.0
  %1193 = vmatpush1.msra.mxu0 0.0
  %1194 = vmatprep.subr.mxu0 0.0
  %1195 = vmatpush1.msra.mxu0 0.0
  %1196 = vmatprep.subr.mxu0 0.0
  %1197 = vmatpush1.msra.mxu0 0.0
  %1198 = vmatprep.subr.mxu0 0.0
  %1199 = vmatpush1.msra.mxu0 0.0
  %1200 = vmatprep.subr.mxu0 0.0
  %1201 = vmatpush1.msra.mxu0 0.0
  %1202 = vmatprep.subr.mxu0 0.0
  %1203 = vmatpush1.msra.mxu0 0.0
  %1204 = vmatprep.subr.mxu0 0.0
  %1205 = vmatpush1.msra.mxu0 0.0
  %1206 = vmatprep.mubr.f32.mxu0 0.0
  %1207 = vmatmul.mubr.f32.gmra.mrb[0].mxu0 %v98
  %v1208 = vpop.f32.mrb[0].mxu0
  %v1209 = vadd.f32 0.0, %v1208
  %v1210 = vpop.f32.mrb[0].mxu0
  %1211 = vmatprep.mubr.f32.mxu0 0.0
  %1212 = vmatmul.mubr.f32.gmra.mrb[0].mxu0 %v99
  %v1213 = vpop.f32.mrb[0].mxu0
  %v1214 = vadd.f32 0.0, %v1213
  %v1215 = vpop.f32.mrb[0].mxu0
  %1216 = vmatprep.mubr.f32.mxu0 0.0
  %1217 = vmatmul.mubr.f32.gmra.mrb[0].mxu0 %v100
  %v1218 = vpop.f32.mrb[0].mxu0
  %v1219 = vadd.f32 0.0, %v1218
  %v1220 = vpop.f32.mrb[0].mxu0
  %1221 = vmatprep.mubr.f32.mxu0 0.0
  %1222 = vmatmul.mubr.f32.gmra.mrb[0].mxu0 %v101
  %v1223 = vpop.f32.mrb[0].mxu0
  %v1224 = vadd.f32 0.0, %v1223
  %v1225 = vpop.f32.mrb[0].mxu0
  %1226 = vmatprep.mubr.f32.mxu0 0.0
  %1227 = vmatmul.mubr.f32.gmra.mrb[0].mxu0 %v102
  %v1228 = vpop.f32.mrb[0].mxu0
  %v1229 = vadd.f32 0.0, %v1228
  %v1230 = vpop.f32.mrb[0].mxu0
  %1231 = vmatprep.mubr.f32.mxu0 0.0
  %1232 = vmatmul.mubr.f32.gmra.mrb[0].mxu0 %v103
  %v1233 = vpop.f32.mrb[0].mxu0
  %v1234 = vadd.f32 0.0, %v1233
  %v1235 = vpop.f32.mrb[0].mxu0
  %1236 = vmatprep.mubr.f32.mxu0 0.0
  %1237 = vmatmul.mubr.f32.gmra.mrb[0].mxu0 %v104
  %v1238 = vpop.f32.mrb[0].mxu0
  %v1239 = vadd.f32 0.0, %v1238
  %v1240 = vpop.f32.mrb[0].mxu0
  %1241 = vmatprep.mubr.f32.mxu0 0.0
  %1242 = vmatmul.mubr.f32.gmra.mrb[0].mxu0 %v105
  %v1243 = vpop.f32.mrb[0].mxu0
  %v1244 = vadd.f32 0.0, %v1243
  %v1245 = vpop.f32.mrb[0].mxu0
  %1246 = vmatprep.mubr.f32.mxu0 0.0
  %1247 = vmatmul.mubr.f32.gmra.mrb[0].mxu0 %v106
  %v1248 = vpop.f32.mrb[0].mxu0
  %v1249 = vadd.f32 0.0, %v1248
  %v1250 = vpop.f32.mrb[0].mxu0
  %1251 = vmatprep.mubr.f32.mxu0 0.0
  %1252 = vmatmul.mubr.f32.gmra.mrb[0].mxu0 %v107
  %v1253 = vpop.f32.mrb[0].mxu0
  %v1254 = vadd.f32 0.0, %v1253
  %v1255 = vpop.f32.mrb[0].mxu0
  %1256 = vmatprep.mubr.f32.mxu0 0.0
  %1257 = vmatmul.mubr.f32.gmra.mrb[0].mxu0 %v108
  %v1258 = vpop.f32.mrb[0].mxu0
  %v1259 = vadd.f32 0.0, %v1258
  %v1260 = vpop.f32.mrb[0].mxu0
  %1261 = vmatprep.mubr.f32.mxu0 0.0
  %1262 = vmatmul.mubr.f32.gmra.mrb[0].mxu0 %v109
  %v1263 = vpop.f32.mrb[0].mxu0
  %v1264 = vadd.f32 0.0, %v1263
  %v1265 = vpop.f32.mrb[0].mxu0
  %1266 = vmatprep.mubr.f32.mxu0 0.0
  %1267 = vmatmul.mubr.f32.gmra.mrb[0].mxu0 %v110
  %v1268 = vpop.f32.mrb[0].mxu0
  %v1269 = vadd.f32 0.0, %v1268
  %v1270 = vpop.f32.mrb[0].mxu0
  %1271 = vmatprep.mubr.f32.mxu0 0.0
  %1272 = vmatmul.mubr.f32.gmra.mrb[0].mxu0 %v111
  %v1273 = vpop.f32.mrb[0].mxu0
  %v1274 = vadd.f32 0.0, %v1273
  %v1275 = vpop.f32.mrb[0].mxu0
  %1276 = vmatprep.mubr.f32.mxu0 0.0
  %1277 = vmatmul.mubr.f32.gmra.mrb[0].mxu0 %v112
  %v1278 = vpop.f32.mrb[0].mxu0
  %v1279 = vadd.f32 0.0, %v1278
  %v1280 = vpop.f32.mrb[0].mxu0
  %1281 = vmatprep.mubr.f32.mxu0 0.0
  %1282 = vmatmul.mubr.f32.gmra.mrb[0].mxu0 %v113
  %v1283 = vpop.f32.mrb[0].mxu0
  %v1284 = vadd.f32 0.0, %v1283
  %v1285 = vpop.f32.mrb[0].mxu0
  %1286 = vdwg.mxu0
  %v1287 = vadd.f32 %v1109, %v1209
  %v1288 = vadd.f32 %v1110, %v1214
  %v1289 = vadd.f32 %v1111, %v1219
  %v1290 = vadd.f32 %v1112, %v1224
  %v1291 = vadd.f32 %v1113, %v1229
  %v1292 = vadd.f32 %v1114, %v1234
  %v1293 = vadd.f32 %v1115, %v1239
  %v1294 = vadd.f32 %v1116, %v1244
  %v1295 = vadd.f32 %v1117, %v1249
  %v1296 = vadd.f32 %v1118, %v1254
  %v1297 = vadd.f32 %v1119, %v1259
  %v1298 = vadd.f32 %v1120, %v1264
  %v1299 = vadd.f32 %v1121, %v1269
  %v1300 = vadd.f32 %v1122, %v1274
  %v1301 = vadd.f32 %v1123, %v1279
  %v1302 = vadd.f32 %v1124, %v1284
  %s1303 = scalar_lea.vmem %s1, 640
  %v1304 = vld [vmem:[%s1303] sm:$0xff]
  %v1305 = vld [vmem:[%s1303 + $0x8] sm:$0xff]
  %v1306 = vld [vmem:[%s1303 + $0x10] sm:$0xff]
  %v1307 = vld [vmem:[%s1303 + $0x18] sm:$0xff]
  %v1308 = vld [vmem:[%s1303 + $0x20] sm:$0xff]
  %v1309 = vld [vmem:[%s1303 + $0x28] sm:$0xff]
  %v1310 = vld [vmem:[%s1303 + $0x30] sm:$0xff]
  %v1311 = vld [vmem:[%s1303 + $0x38] sm:$0xff]
  %v1312 = vld [vmem:[%s1303 + $0x40] sm:$0xff]
  %v1313 = vld [vmem:[%s1303 + $0x48] sm:$0xff]
  %v1314 = vld [vmem:[%s1303 + $0x50] sm:$0xff]
  %v1315 = vld [vmem:[%s1303 + $0x58] sm:$0xff]
  %v1316 = vld [vmem:[%s1303 + $0x60] sm:$0xff]
  %v1317 = vld [vmem:[%s1303 + $0x68] sm:$0xff]
  %v1318 = vld [vmem:[%s1303 + $0x70] sm:$0xff]
  %v1319 = vld [vmem:[%s1303 + $0x78] sm:$0xff]
  %1320 = vmatprep.subr.mxu0 0.0
  %1321 = vmatpush1.msra.mxu0 %v1304
  %1322 = vmatprep.subr.mxu0 0.0
  %1323 = vmatpush1.msra.mxu0 %v1305
  %1324 = vmatprep.subr.mxu0 0.0
  %1325 = vmatpush1.msra.mxu0 %v1306
  %1326 = vmatprep.subr.mxu0 0.0
  %1327 = vmatpush1.msra.mxu0 %v1307
  %1328 = vmatprep.subr.mxu0 0.0
  %1329 = vmatpush1.msra.mxu0 %v1308
  %1330 = vmatprep.subr.mxu0 0.0
  %1331 = vmatpush1.msra.mxu0 %v1309
  %1332 = vmatprep.subr.mxu0 0.0
  %1333 = vmatpush1.msra.mxu0 %v1310
  %1334 = vmatprep.subr.mxu0 0.0
  %1335 = vmatpush1.msra.mxu0 %v1311
  %1336 = vmatprep.subr.mxu0 0.0
  %1337 = vmatpush1.msra.mxu0 %v1312
  %1338 = vmatprep.subr.mxu0 0.0
  %1339 = vmatpush1.msra.mxu0 %v1313
  %1340 = vmatprep.subr.mxu0 0.0
  %1341 = vmatpush1.msra.mxu0 %v1314
  %1342 = vmatprep.subr.mxu0 0.0
  %1343 = vmatpush1.msra.mxu0 %v1315
  %1344 = vmatprep.subr.mxu0 0.0
  %1345 = vmatpush1.msra.mxu0 %v1316
  %1346 = vmatprep.subr.mxu0 0.0
  %1347 = vmatpush1.msra.mxu0 %v1317
  %1348 = vmatprep.subr.mxu0 0.0
  %1349 = vmatpush1.msra.mxu0 %v1318
  %1350 = vmatprep.subr.mxu0 0.0
  %1351 = vmatpush1.msra.mxu0 %v1319
  %1352 = vmatprep.subr.mxu0 0.0
  %1353 = vmatpush1.msra.mxu0 0.0
  %1354 = vmatprep.subr.mxu0 0.0
  %1355 = vmatpush1.msra.mxu0 0.0
  %1356 = vmatprep.subr.mxu0 0.0
  %1357 = vmatpush1.msra.mxu0 0.0
  %1358 = vmatprep.subr.mxu0 0.0
  %1359 = vmatpush1.msra.mxu0 0.0
  %1360 = vmatprep.subr.mxu0 0.0
  %1361 = vmatpush1.msra.mxu0 0.0
  %1362 = vmatprep.subr.mxu0 0.0
  %1363 = vmatpush1.msra.mxu0 0.0
  %1364 = vmatprep.subr.mxu0 0.0
  %1365 = vmatpush1.msra.mxu0 0.0
  %1366 = vmatprep.subr.mxu0 0.0
  %1367 = vmatpush1.msra.mxu0 0.0
  %1368 = vmatprep.subr.mxu0 0.0
  %1369 = vmatpush1.msra.mxu0 0.0
  %1370 = vmatprep.subr.mxu0 0.0
  %1371 = vmatpush1.msra.mxu0 0.0
  %1372 = vmatprep.subr.mxu0 0.0
  %1373 = vmatpush1.msra.mxu0 0.0
  %1374 = vmatprep.subr.mxu0 0.0
  %1375 = vmatpush1.msra.mxu0 0.0
  %1376 = vmatprep.subr.mxu0 0.0
  %1377 = vmatpush1.msra.mxu0 0.0
  %1378 = vmatprep.subr.mxu0 0.0
  %1379 = vmatpush1.msra.mxu0 0.0
  %1380 = vmatprep.subr.mxu0 0.0
  %1381 = vmatpush1.msra.mxu0 0.0
  %1382 = vmatprep.subr.mxu0 0.0
  %1383 = vmatpush1.msra.mxu0 0.0
  %1384 = vmatprep.mubr.f32.mxu0 0.0
  %1385 = vmatmul.mubr.f32.gmra.mrb[0].mxu0 %v115
  %v1386 = vpop.f32.mrb[0].mxu0
  %v1387 = vadd.f32 0.0, %v1386
  %v1388 = vpop.f32.mrb[0].mxu0
  %1389 = vmatprep.mubr.f32.mxu0 0.0
  %1390 = vmatmul.mubr.f32.gmra.mrb[0].mxu0 %v116
  %v1391 = vpop.f32.mrb[0].mxu0
  %v1392 = vadd.f32 0.0, %v1391
  %v1393 = vpop.f32.mrb[0].mxu0
  %1394 = vmatprep.mubr.f32.mxu0 0.0
  %1395 = vmatmul.mubr.f32.gmra.mrb[0].mxu0 %v117
  %v1396 = vpop.f32.mrb[0].mxu0
  %v1397 = vadd.f32 0.0, %v1396
  %v1398 = vpop.f32.mrb[0].mxu0
  %1399 = vmatprep.mubr.f32.mxu0 0.0
  %1400 = vmatmul.mubr.f32.gmra.mrb[0].mxu0 %v118
  %v1401 = vpop.f32.mrb[0].mxu0
  %v1402 = vadd.f32 0.0, %v1401
  %v1403 = vpop.f32.mrb[0].mxu0
  %1404 = vmatprep.mubr.f32.mxu0 0.0
  %1405 = vmatmul.mubr.f32.gmra.mrb[0].mxu0 %v119
  %v1406 = vpop.f32.mrb[0].mxu0
  %v1407 = vadd.f32 0.0, %v1406
  %v1408 = vpop.f32.mrb[0].mxu0
  %1409 = vmatprep.mubr.f32.mxu0 0.0
  %1410 = vmatmul.mubr.f32.gmra.mrb[0].mxu0 %v120
  %v1411 = vpop.f32.mrb[0].mxu0
  %v1412 = vadd.f32 0.0, %v1411
  %v1413 = vpop.f32.mrb[0].mxu0
  %1414 = vmatprep.mubr.f32.mxu0 0.0
  %1415 = vmatmul.mubr.f32.gmra.mrb[0].mxu0 %v121
  %v1416 = vpop.f32.mrb[0].mxu0
  %v1417 = vadd.f32 0.0, %v1416
  %v1418 = vpop.f32.mrb[0].mxu0
  %1419 = vmatprep.mubr.f32.mxu0 0.0
  %1420 = vmatmul.mubr.f32.gmra.mrb[0].mxu0 %v122
  %v1421 = vpop.f32.mrb[0].mxu0
  %v1422 = vadd.f32 0.0, %v1421
  %v1423 = vpop.f32.mrb[0].mxu0
  %1424 = vmatprep.mubr.f32.mxu0 0.0
  %1425 = vmatmul.mubr.f32.gmra.mrb[0].mxu0 %v123
  %v1426 = vpop.f32.mrb[0].mxu0
  %v1427 = vadd.f32 0.0, %v1426
  %v1428 = vpop.f32.mrb[0].mxu0
  %1429 = vmatprep.mubr.f32.mxu0 0.0
  %1430 = vmatmul.mubr.f32.gmra.mrb[0].mxu0 %v124
  %v1431 = vpop.f32.mrb[0].mxu0
  %v1432 = vadd.f32 0.0, %v1431
  %v1433 = vpop.f32.mrb[0].mxu0
  %1434 = vmatprep.mubr.f32.mxu0 0.0
  %1435 = vmatmul.mubr.f32.gmra.mrb[0].mxu0 %v125
  %v1436 = vpop.f32.mrb[0].mxu0
  %v1437 = vadd.f32 0.0, %v1436
  %v1438 = vpop.f32.mrb[0].mxu0
  %1439 = vmatprep.mubr.f32.mxu0 0.0
  %1440 = vmatmul.mubr.f32.gmra.mrb[0].mxu0 %v126
  %v1441 = vpop.f32.mrb[0].mxu0
  %v1442 = vadd.f32 0.0, %v1441
  %v1443 = vpop.f32.mrb[0].mxu0
  %1444 = vmatprep.mubr.f32.mxu0 0.0
  %1445 = vmatmul.mubr.f32.gmra.mrb[0].mxu0 %v127
  %v1446 = vpop.f32.mrb[0].mxu0
  %v1447 = vadd.f32 0.0, %v1446
  %v1448 = vpop.f32.mrb[0].mxu0
  %1449 = vmatprep.mubr.f32.mxu0 0.0
  %1450 = vmatmul.mubr.f32.gmra.mrb[0].mxu0 %v128
  %v1451 = vpop.f32.mrb[0].mxu0
  %v1452 = vadd.f32 0.0, %v1451
  %v1453 = vpop.f32.mrb[0].mxu0
  %1454 = vmatprep.mubr.f32.mxu0 0.0
  %1455 = vmatmul.mubr.f32.gmra.mrb[0].mxu0 %v129
  %v1456 = vpop.f32.mrb[0].mxu0
  %v1457 = vadd.f32 0.0, %v1456
  %v1458 = vpop.f32.mrb[0].mxu0
  %1459 = vmatprep.mubr.f32.mxu0 0.0
  %1460 = vmatmul.mubr.f32.gmra.mrb[0].mxu0 %v130
  %v1461 = vpop.f32.mrb[0].mxu0
  %v1462 = vadd.f32 0.0, %v1461
  %v1463 = vpop.f32.mrb[0].mxu0
  %1464 = vdwg.mxu0
  %v1465 = vadd.f32 %v1287, %v1387
  %v1466 = vadd.f32 %v1288, %v1392
  %v1467 = vadd.f32 %v1289, %v1397
  %v1468 = vadd.f32 %v1290, %v1402
  %v1469 = vadd.f32 %v1291, %v1407
  %v1470 = vadd.f32 %v1292, %v1412
  %v1471 = vadd.f32 %v1293, %v1417
  %v1472 = vadd.f32 %v1294, %v1422
  %v1473 = vadd.f32 %v1295, %v1427
  %v1474 = vadd.f32 %v1296, %v1432
  %v1475 = vadd.f32 %v1297, %v1437
  %v1476 = vadd.f32 %v1298, %v1442
  %v1477 = vadd.f32 %v1299, %v1447
  %v1478 = vadd.f32 %v1300, %v1452
  %v1479 = vadd.f32 %v1301, %v1457
  %v1480 = vadd.f32 %v1302, %v1462
  %v1481 = vld [vmem:[%s148] sm:$0xff]
  %v1482 = vld [vmem:[%s148 + $0x10] sm:$0xff]
  %v1483 = vld [vmem:[%s148 + $0x20] sm:$0xff]
  %v1484 = vld [vmem:[%s148 + $0x30] sm:$0xff]
  %v1485 = vld [vmem:[%s148 + $0x40] sm:$0xff]
  %v1486 = vld [vmem:[%s148 + $0x50] sm:$0xff]
  %v1487 = vld [vmem:[%s148 + $0x60] sm:$0xff]
  %v1488 = vld [vmem:[%s148 + $0x70] sm:$0xff]
  %v1489 = vld [vmem:[%s148 + $0x90] sm:$0xff]
  %v1490 = vld [vmem:[%s148 + $0xa0] sm:$0xff]
  %v1491 = vld [vmem:[%s148 + $0xb0] sm:$0xff]
  %v1492 = vld [vmem:[%s148 + $0xc0] sm:$0xff]
  %v1493 = vld [vmem:[%s148 + $0xd0] sm:$0xff]
  %v1494 = vld [vmem:[%s148 + $0xe0] sm:$0xff]
  %v1495 = vld [vmem:[%s148 + $0xf0] sm:$0xff]
  %v1496 = vld [vmem:[%s148 + $0x100] sm:$0xff]
  %s1497 = scalar_lea.vmem %s1, 768
  %v1498 = vld [vmem:[%s1497] sm:$0xff]
  %v1499 = vld [vmem:[%s1497 + $0x8] sm:$0xff]
  %v1500 = vld [vmem:[%s1497 + $0x10] sm:$0xff]
  %v1501 = vld [vmem:[%s1497 + $0x18] sm:$0xff]
  %v1502 = vld [vmem:[%s1497 + $0x20] sm:$0xff]
  %v1503 = vld [vmem:[%s1497 + $0x28] sm:$0xff]
  %v1504 = vld [vmem:[%s1497 + $0x30] sm:$0xff]
  %v1505 = vld [vmem:[%s1497 + $0x38] sm:$0xff]
  %v1506 = vld [vmem:[%s1497 + $0x40] sm:$0xff]
  %v1507 = vld [vmem:[%s1497 + $0x48] sm:$0xff]
  %v1508 = vld [vmem:[%s1497 + $0x50] sm:$0xff]
  %v1509 = vld [vmem:[%s1497 + $0x58] sm:$0xff]
  %v1510 = vld [vmem:[%s1497 + $0x60] sm:$0xff]
  %v1511 = vld [vmem:[%s1497 + $0x68] sm:$0xff]
  %v1512 = vld [vmem:[%s1497 + $0x70] sm:$0xff]
  %v1513 = vld [vmem:[%s1497 + $0x78] sm:$0xff]
  %1514 = vmatprep.subr.mxu0 0.0
  %1515 = vmatpush1.msra.mxu0 %v1498
  %1516 = vmatprep.subr.mxu0 0.0
  %1517 = vmatpush1.msra.mxu0 %v1499
  %1518 = vmatprep.subr.mxu0 0.0
  %1519 = vmatpush1.msra.mxu0 %v1500
  %1520 = vmatprep.subr.mxu0 0.0
  %1521 = vmatpush1.msra.mxu0 %v1501
  %1522 = vmatprep.subr.mxu0 0.0
  %1523 = vmatpush1.msra.mxu0 %v1502
  %1524 = vmatprep.subr.mxu0 0.0
  %1525 = vmatpush1.msra.mxu0 %v1503
  %1526 = vmatprep.subr.mxu0 0.0
  %1527 = vmatpush1.msra.mxu0 %v1504
  %1528 = vmatprep.subr.mxu0 0.0
  %1529 = vmatpush1.msra.mxu0 %v1505
  %1530 = vmatprep.subr.mxu0 0.0
  %1531 = vmatpush1.msra.mxu0 %v1506
  %1532 = vmatprep.subr.mxu0 0.0
  %1533 = vmatpush1.msra.mxu0 %v1507
  %1534 = vmatprep.subr.mxu0 0.0
  %1535 = vmatpush1.msra.mxu0 %v1508
  %1536 = vmatprep.subr.mxu0 0.0
  %1537 = vmatpush1.msra.mxu0 %v1509
  %1538 = vmatprep.subr.mxu0 0.0
  %1539 = vmatpush1.msra.mxu0 %v1510
  %1540 = vmatprep.subr.mxu0 0.0
  %1541 = vmatpush1.msra.mxu0 %v1511
  %1542 = vmatprep.subr.mxu0 0.0
  %1543 = vmatpush1.msra.mxu0 %v1512
  %1544 = vmatprep.subr.mxu0 0.0
  %1545 = vmatpush1.msra.mxu0 %v1513
  %1546 = vmatprep.subr.mxu0 0.0
  %1547 = vmatpush1.msra.mxu0 0.0
  %1548 = vmatprep.subr.mxu0 0.0
  %1549 = vmatpush1.msra.mxu0 0.0
  %1550 = vmatprep.subr.mxu0 0.0
  %1551 = vmatpush1.msra.mxu0 0.0
  %1552 = vmatprep.subr.mxu0 0.0
  %1553 = vmatpush1.msra.mxu0 0.0
  %1554 = vmatprep.subr.mxu0 0.0
  %1555 = vmatpush1.msra.mxu0 0.0
  %1556 = vmatprep.subr.mxu0 0.0
  %1557 = vmatpush1.msra.mxu0 0.0
  %1558 = vmatprep.subr.mxu0 0.0
  %1559 = vmatpush1.msra.mxu0 0.0
  %1560 = vmatprep.subr.mxu0 0.0
  %1561 = vmatpush1.msra.mxu0 0.0
  %1562 = vmatprep.subr.mxu0 0.0
  %1563 = vmatpush1.msra.mxu0 0.0
  %1564 = vmatprep.subr.mxu0 0.0
  %1565 = vmatpush1.msra.mxu0 0.0
  %1566 = vmatprep.subr.mxu0 0.0
  %1567 = vmatpush1.msra.mxu0 0.0
  %1568 = vmatprep.subr.mxu0 0.0
  %1569 = vmatpush1.msra.mxu0 0.0
  %1570 = vmatprep.subr.mxu0 0.0
  %1571 = vmatpush1.msra.mxu0 0.0
  %1572 = vmatprep.subr.mxu0 0.0
  %1573 = vmatpush1.msra.mxu0 0.0
  %1574 = vmatprep.subr.mxu0 0.0
  %1575 = vmatpush1.msra.mxu0 0.0
  %1576 = vmatprep.subr.mxu0 0.0
  %1577 = vmatpush1.msra.mxu0 0.0
  %1578 = vmatprep.mubr.f32.mxu0 0.0
  %1579 = vmatmul.mubr.f32.gmra.mrb[0].mxu0 %v1481
  %v1580 = vpop.f32.mrb[0].mxu0
  %v1581 = vadd.f32 0.0, %v1580
  %v1582 = vpop.f32.mrb[0].mxu0
  %1583 = vmatprep.mubr.f32.mxu0 0.0
  %1584 = vmatmul.mubr.f32.gmra.mrb[0].mxu0 %v1482
  %v1585 = vpop.f32.mrb[0].mxu0
  %v1586 = vadd.f32 0.0, %v1585
  %v1587 = vpop.f32.mrb[0].mxu0
  %1588 = vmatprep.mubr.f32.mxu0 0.0
  %1589 = vmatmul.mubr.f32.gmra.mrb[0].mxu0 %v1483
  %v1590 = vpop.f32.mrb[0].mxu0
  %v1591 = vadd.f32 0.0, %v1590
  %v1592 = vpop.f32.mrb[0].mxu0
  %1593 = vmatprep.mubr.f32.mxu0 0.0
  %1594 = vmatmul.mubr.f32.gmra.mrb[0].mxu0 %v1484
  %v1595 = vpop.f32.mrb[0].mxu0
  %v1596 = vadd.f32 0.0, %v1595
  %v1597 = vpop.f32.mrb[0].mxu0
  %1598 = vmatprep.mubr.f32.mxu0 0.0
  %1599 = vmatmul.mubr.f32.gmra.mrb[0].mxu0 %v1485
  %v1600 = vpop.f32.mrb[0].mxu0
  %v1601 = vadd.f32 0.0, %v1600
  %v1602 = vpop.f32.mrb[0].mxu0
  %1603 = vmatprep.mubr.f32.mxu0 0.0
  %1604 = vmatmul.mubr.f32.gmra.mrb[0].mxu0 %v1486
  %v1605 = vpop.f32.mrb[0].mxu0
  %v1606 = vadd.f32 0.0, %v1605
  %v1607 = vpop.f32.mrb[0].mxu0
  %1608 = vmatprep.mubr.f32.mxu0 0.0
  %1609 = vmatmul.mubr.f32.gmra.mrb[0].mxu0 %v1487
  %v1610 = vpop.f32.mrb[0].mxu0
  %v1611 = vadd.f32 0.0, %v1610
  %v1612 = vpop.f32.mrb[0].mxu0
  %1613 = vmatprep.mubr.f32.mxu0 0.0
  %1614 = vmatmul.mubr.f32.gmra.mrb[0].mxu0 %v1488
  %v1615 = vpop.f32.mrb[0].mxu0
  %v1616 = vadd.f32 0.0, %v1615
  %v1617 = vpop.f32.mrb[0].mxu0
  %1618 = vmatprep.mubr.f32.mxu0 0.0
  %1619 = vmatmul.mubr.f32.gmra.mrb[0].mxu0 %v1489
  %v1620 = vpop.f32.mrb[0].mxu0
  %v1621 = vadd.f32 0.0, %v1620
  %v1622 = vpop.f32.mrb[0].mxu0
  %1623 = vmatprep.mubr.f32.mxu0 0.0
  %1624 = vmatmul.mubr.f32.gmra.mrb[0].mxu0 %v1490
  %v1625 = vpop.f32.mrb[0].mxu0
  %v1626 = vadd.f32 0.0, %v1625
  %v1627 = vpop.f32.mrb[0].mxu0
  %1628 = vmatprep.mubr.f32.mxu0 0.0
  %1629 = vmatmul.mubr.f32.gmra.mrb[0].mxu0 %v1491
  %v1630 = vpop.f32.mrb[0].mxu0
  %v1631 = vadd.f32 0.0, %v1630
  %v1632 = vpop.f32.mrb[0].mxu0
  %1633 = vmatprep.mubr.f32.mxu0 0.0
  %1634 = vmatmul.mubr.f32.gmra.mrb[0].mxu0 %v1492
  %v1635 = vpop.f32.mrb[0].mxu0
  %v1636 = vadd.f32 0.0, %v1635
  %v1637 = vpop.f32.mrb[0].mxu0
  %1638 = vmatprep.mubr.f32.mxu0 0.0
  %1639 = vmatmul.mubr.f32.gmra.mrb[0].mxu0 %v1493
  %v1640 = vpop.f32.mrb[0].mxu0
  %v1641 = vadd.f32 0.0, %v1640
  %v1642 = vpop.f32.mrb[0].mxu0
  %1643 = vmatprep.mubr.f32.mxu0 0.0
  %1644 = vmatmul.mubr.f32.gmra.mrb[0].mxu0 %v1494
  %v1645 = vpop.f32.mrb[0].mxu0
  %v1646 = vadd.f32 0.0, %v1645
  %v1647 = vpop.f32.mrb[0].mxu0
  %1648 = vmatprep.mubr.f32.mxu0 0.0
  %1649 = vmatmul.mubr.f32.gmra.mrb[0].mxu0 %v1495
  %v1650 = vpop.f32.mrb[0].mxu0
  %v1651 = vadd.f32 0.0, %v1650
  %v1652 = vpop.f32.mrb[0].mxu0
  %1653 = vmatprep.mubr.f32.mxu0 0.0
  %1654 = vmatmul.mubr.f32.gmra.mrb[0].mxu0 %v1496
  %v1655 = vpop.f32.mrb[0].mxu0
  %v1656 = vadd.f32 0.0, %v1655
  %v1657 = vpop.f32.mrb[0].mxu0
  %1658 = vdwg.mxu0
  %v1659 = vadd.f32 %v1465, %v1581
  %v1660 = vadd.f32 %v1466, %v1586
  %v1661 = vadd.f32 %v1467, %v1591
  %v1662 = vadd.f32 %v1468, %v1596
  %v1663 = vadd.f32 %v1469, %v1601
  %v1664 = vadd.f32 %v1470, %v1606
  %v1665 = vadd.f32 %v1471, %v1611
  %v1666 = vadd.f32 %v1472, %v1616
  %v1667 = vadd.f32 %v1473, %v1621
  %v1668 = vadd.f32 %v1474, %v1626
  %v1669 = vadd.f32 %v1475, %v1631
  %v1670 = vadd.f32 %v1476, %v1636
  %v1671 = vadd.f32 %v1477, %v1641
  %v1672 = vadd.f32 %v1478, %v1646
  %v1673 = vadd.f32 %v1479, %v1651
  %v1674 = vadd.f32 %v1480, %v1656
  %s1675 = scalar_lea.vmem %s1, 896
  %v1676 = vld [vmem:[%s1675] sm:$0xff]
  %v1677 = vld [vmem:[%s1675 + $0x8] sm:$0xff]
  %v1678 = vld [vmem:[%s1675 + $0x10] sm:$0xff]
  %v1679 = vld [vmem:[%s1675 + $0x18] sm:$0xff]
  %v1680 = vld [vmem:[%s1675 + $0x20] sm:$0xff]
  %v1681 = vld [vmem:[%s1675 + $0x28] sm:$0xff]
  %v1682 = vld [vmem:[%s1675 + $0x30] sm:$0xff]
  %v1683 = vld [vmem:[%s1675 + $0x38] sm:$0xff]
  %v1684 = vld [vmem:[%s1675 + $0x40] sm:$0xff]
  %v1685 = vld [vmem:[%s1675 + $0x48] sm:$0xff]
  %v1686 = vld [vmem:[%s1675 + $0x50] sm:$0xff]
  %v1687 = vld [vmem:[%s1675 + $0x58] sm:$0xff]
  %v1688 = vld [vmem:[%s1675 + $0x60] sm:$0xff]
  %v1689 = vld [vmem:[%s1675 + $0x68] sm:$0xff]
  %v1690 = vld [vmem:[%s1675 + $0x70] sm:$0xff]
  %v1691 = vld [vmem:[%s1675 + $0x78] sm:$0xff]
  %1692 = vmatprep.subr.mxu0 0.0
  %1693 = vmatpush1.msra.mxu0 %v1676
  %1694 = vmatprep.subr.mxu0 0.0
  %1695 = vmatpush1.msra.mxu0 %v1677
  %1696 = vmatprep.subr.mxu0 0.0
  %1697 = vmatpush1.msra.mxu0 %v1678
  %1698 = vmatprep.subr.mxu0 0.0
  %1699 = vmatpush1.msra.mxu0 %v1679
  %1700 = vmatprep.subr.mxu0 0.0
  %1701 = vmatpush1.msra.mxu0 %v1680
  %1702 = vmatprep.subr.mxu0 0.0
  %1703 = vmatpush1.msra.mxu0 %v1681
  %1704 = vmatprep.subr.mxu0 0.0
  %1705 = vmatpush1.msra.mxu0 %v1682
  %1706 = vmatprep.subr.mxu0 0.0
  %1707 = vmatpush1.msra.mxu0 %v1683
  %1708 = vmatprep.subr.mxu0 0.0
  %1709 = vmatpush1.msra.mxu0 %v1684
  %1710 = vmatprep.subr.mxu0 0.0
  %1711 = vmatpush1.msra.mxu0 %v1685
  %1712 = vmatprep.subr.mxu0 0.0
  %1713 = vmatpush1.msra.mxu0 %v1686
  %1714 = vmatprep.subr.mxu0 0.0
  %1715 = vmatpush1.msra.mxu0 %v1687
  %1716 = vmatprep.subr.mxu0 0.0
  %1717 = vmatpush1.msra.mxu0 %v1688
  %1718 = vmatprep.subr.mxu0 0.0
  %1719 = vmatpush1.msra.mxu0 %v1689
  %1720 = vmatprep.subr.mxu0 0.0
  %1721 = vmatpush1.msra.mxu0 %v1690
  %1722 = vmatprep.subr.mxu0 0.0
  %1723 = vmatpush1.msra.mxu0 %v1691
  %1724 = vmatprep.subr.mxu0 0.0
  %1725 = vmatpush1.msra.mxu0 0.0
  %1726 = vmatprep.subr.mxu0 0.0
  %1727 = vmatpush1.msra.mxu0 0.0
  %1728 = vmatprep.subr.mxu0 0.0
  %1729 = vmatpush1.msra.mxu0 0.0
  %1730 = vmatprep.subr.mxu0 0.0
  %1731 = vmatpush1.msra.mxu0 0.0
  %1732 = vmatprep.subr.mxu0 0.0
  %1733 = vmatpush1.msra.mxu0 0.0
  %1734 = vmatprep.subr.mxu0 0.0
  %1735 = vmatpush1.msra.mxu0 0.0
  %1736 = vmatprep.subr.mxu0 0.0
  %1737 = vmatpush1.msra.mxu0 0.0
  %1738 = vmatprep.subr.mxu0 0.0
  %1739 = vmatpush1.msra.mxu0 0.0
  %1740 = vmatprep.subr.mxu0 0.0
  %1741 = vmatpush1.msra.mxu0 0.0
  %1742 = vmatprep.subr.mxu0 0.0
  %1743 = vmatpush1.msra.mxu0 0.0
  %1744 = vmatprep.subr.mxu0 0.0
  %1745 = vmatpush1.msra.mxu0 0.0
  %1746 = vmatprep.subr.mxu0 0.0
  %1747 = vmatpush1.msra.mxu0 0.0
  %1748 = vmatprep.subr.mxu0 0.0
  %1749 = vmatpush1.msra.mxu0 0.0
  %1750 = vmatprep.subr.mxu0 0.0
  %1751 = vmatpush1.msra.mxu0 0.0
  %1752 = vmatprep.subr.mxu0 0.0
  %1753 = vmatpush1.msra.mxu0 0.0
  %1754 = vmatprep.subr.mxu0 0.0
  %1755 = vmatpush1.msra.mxu0 0.0
  %1756 = vmatprep.mubr.f32.mxu0 0.0
  %1757 = vmatmul.mubr.f32.gmra.mrb[0].mxu0 %v132
  %v1758 = vpop.f32.mrb[0].mxu0
  %v1759 = vadd.f32 0.0, %v1758
  %v1760 = vpop.f32.mrb[0].mxu0
  %1761 = vmatprep.mubr.f32.mxu0 0.0
  %1762 = vmatmul.mubr.f32.gmra.mrb[0].mxu0 %v133
  %v1763 = vpop.f32.mrb[0].mxu0
  %v1764 = vadd.f32 0.0, %v1763
  %v1765 = vpop.f32.mrb[0].mxu0
  %1766 = vmatprep.mubr.f32.mxu0 0.0
  %1767 = vmatmul.mubr.f32.gmra.mrb[0].mxu0 %v134
  %v1768 = vpop.f32.mrb[0].mxu0
  %v1769 = vadd.f32 0.0, %v1768
  %v1770 = vpop.f32.mrb[0].mxu0
  %1771 = vmatprep.mubr.f32.mxu0 0.0
  %1772 = vmatmul.mubr.f32.gmra.mrb[0].mxu0 %v135
  %v1773 = vpop.f32.mrb[0].mxu0
  %v1774 = vadd.f32 0.0, %v1773
  %v1775 = vpop.f32.mrb[0].mxu0
  %1776 = vmatprep.mubr.f32.mxu0 0.0
  %1777 = vmatmul.mubr.f32.gmra.mrb[0].mxu0 %v136
  %v1778 = vpop.f32.mrb[0].mxu0
  %v1779 = vadd.f32 0.0, %v1778
  %v1780 = vpop.f32.mrb[0].mxu0
  %1781 = vmatprep.mubr.f32.mxu0 0.0
  %1782 = vmatmul.mubr.f32.gmra.mrb[0].mxu0 %v137
  %v1783 = vpop.f32.mrb[0].mxu0
  %v1784 = vadd.f32 0.0, %v1783
  %v1785 = vpop.f32.mrb[0].mxu0
  %1786 = vmatprep.mubr.f32.mxu0 0.0
  %1787 = vmatmul.mubr.f32.gmra.mrb[0].mxu0 %v138
  %v1788 = vpop.f32.mrb[0].mxu0
  %v1789 = vadd.f32 0.0, %v1788
  %v1790 = vpop.f32.mrb[0].mxu0
  %1791 = vmatprep.mubr.f32.mxu0 0.0
  %1792 = vmatmul.mubr.f32.gmra.mrb[0].mxu0 %v139
  %v1793 = vpop.f32.mrb[0].mxu0
  %v1794 = vadd.f32 0.0, %v1793
  %v1795 = vpop.f32.mrb[0].mxu0
  %1796 = vmatprep.mubr.f32.mxu0 0.0
  %1797 = vmatmul.mubr.f32.gmra.mrb[0].mxu0 %v140
  %v1798 = vpop.f32.mrb[0].mxu0
  %v1799 = vadd.f32 0.0, %v1798
  %v1800 = vpop.f32.mrb[0].mxu0
  %1801 = vmatprep.mubr.f32.mxu0 0.0
  %1802 = vmatmul.mubr.f32.gmra.mrb[0].mxu0 %v141
  %v1803 = vpop.f32.mrb[0].mxu0
  %v1804 = vadd.f32 0.0, %v1803
  %v1805 = vpop.f32.mrb[0].mxu0
  %1806 = vmatprep.mubr.f32.mxu0 0.0
  %1807 = vmatmul.mubr.f32.gmra.mrb[0].mxu0 %v142
  %v1808 = vpop.f32.mrb[0].mxu0
  %v1809 = vadd.f32 0.0, %v1808
  %v1810 = vpop.f32.mrb[0].mxu0
  %1811 = vmatprep.mubr.f32.mxu0 0.0
  %1812 = vmatmul.mubr.f32.gmra.mrb[0].mxu0 %v143
  %v1813 = vpop.f32.mrb[0].mxu0
  %v1814 = vadd.f32 0.0, %v1813
  %v1815 = vpop.f32.mrb[0].mxu0
  %1816 = vmatprep.mubr.f32.mxu0 0.0
  %1817 = vmatmul.mubr.f32.gmra.mrb[0].mxu0 %v144
  %v1818 = vpop.f32.mrb[0].mxu0
  %v1819 = vadd.f32 0.0, %v1818
  %v1820 = vpop.f32.mrb[0].mxu0
  %1821 = vmatprep.mubr.f32.mxu0 0.0
  %1822 = vmatmul.mubr.f32.gmra.mrb[0].mxu0 %v145
  %v1823 = vpop.f32.mrb[0].mxu0
  %v1824 = vadd.f32 0.0, %v1823
  %v1825 = vpop.f32.mrb[0].mxu0
  %1826 = vmatprep.mubr.f32.mxu0 0.0
  %1827 = vmatmul.mubr.f32.gmra.mrb[0].mxu0 %v146
  %v1828 = vpop.f32.mrb[0].mxu0
  %v1829 = vadd.f32 0.0, %v1828
  %v1830 = vpop.f32.mrb[0].mxu0
  %1831 = vmatprep.mubr.f32.mxu0 0.0
  %1832 = vmatmul.mubr.f32.gmra.mrb[0].mxu0 %v147
  %v1833 = vpop.f32.mrb[0].mxu0
  %v1834 = vadd.f32 0.0, %v1833
  %v1835 = vpop.f32.mrb[0].mxu0
  %1836 = vdwg.mxu0
  %v1837 = vadd.f32 %v1659, %v1759
  %v1838 = vadd.f32 %v1660, %v1764
  %v1839 = vadd.f32 %v1661, %v1769
  %v1840 = vadd.f32 %v1662, %v1774
  %v1841 = vadd.f32 %v1663, %v1779
  %v1842 = vadd.f32 %v1664, %v1784
  %v1843 = vadd.f32 %v1665, %v1789
  %v1844 = vadd.f32 %v1666, %v1794
  %v1845 = vadd.f32 %v1667, %v1799
  %v1846 = vadd.f32 %v1668, %v1804
  %v1847 = vadd.f32 %v1669, %v1809
  %v1848 = vadd.f32 %v1670, %v1814
  %v1849 = vadd.f32 %v1671, %v1819
  %v1850 = vadd.f32 %v1672, %v1824
  %v1851 = vadd.f32 %v1673, %v1829
  %v1852 = vadd.f32 %v1674, %v1834
  %s1853 = scalar_lea.vmem %s1, 1024
  %v1854 = vld [vmem:[%s1853] sm:$0xff]
  %v1855 = vld [vmem:[%s1853 + $0x8] sm:$0xff]
  %v1856 = vld [vmem:[%s1853 + $0x10] sm:$0xff]
  %v1857 = vld [vmem:[%s1853 + $0x18] sm:$0xff]
  %v1858 = vld [vmem:[%s1853 + $0x20] sm:$0xff]
  %v1859 = vld [vmem:[%s1853 + $0x28] sm:$0xff]
  %v1860 = vld [vmem:[%s1853 + $0x30] sm:$0xff]
  %v1861 = vld [vmem:[%s1853 + $0x38] sm:$0xff]
  %v1862 = vld [vmem:[%s1853 + $0x40] sm:$0xff]
  %v1863 = vld [vmem:[%s1853 + $0x48] sm:$0xff]
  %v1864 = vld [vmem:[%s1853 + $0x50] sm:$0xff]
  %v1865 = vld [vmem:[%s1853 + $0x58] sm:$0xff]
  %v1866 = vld [vmem:[%s1853 + $0x60] sm:$0xff]
  %v1867 = vld [vmem:[%s1853 + $0x68] sm:$0xff]
  %v1868 = vld [vmem:[%s1853 + $0x70] sm:$0xff]
  %v1869 = vld [vmem:[%s1853 + $0x78] sm:$0xff]
  %1870 = vmatprep.subr.mxu0 0.0
  %1871 = vmatpush1.msra.mxu0 %v1854
  %1872 = vmatprep.subr.mxu0 0.0
  %1873 = vmatpush1.msra.mxu0 %v1855
  %1874 = vmatprep.subr.mxu0 0.0
  %1875 = vmatpush1.msra.mxu0 %v1856
  %1876 = vmatprep.subr.mxu0 0.0
  %1877 = vmatpush1.msra.mxu0 %v1857
  %1878 = vmatprep.subr.mxu0 0.0
  %1879 = vmatpush1.msra.mxu0 %v1858
  %1880 = vmatprep.subr.mxu0 0.0
  %1881 = vmatpush1.msra.mxu0 %v1859
  %1882 = vmatprep.subr.mxu0 0.0
  %1883 = vmatpush1.msra.mxu0 %v1860
  %1884 = vmatprep.subr.mxu0 0.0
  %1885 = vmatpush1.msra.mxu0 %v1861
  %1886 = vmatprep.subr.mxu0 0.0
  %1887 = vmatpush1.msra.mxu0 %v1862
  %1888 = vmatprep.subr.mxu0 0.0
  %1889 = vmatpush1.msra.mxu0 %v1863
  %1890 = vmatprep.subr.mxu0 0.0
  %1891 = vmatpush1.msra.mxu0 %v1864
  %1892 = vmatprep.subr.mxu0 0.0
  %1893 = vmatpush1.msra.mxu0 %v1865
  %1894 = vmatprep.subr.mxu0 0.0
  %1895 = vmatpush1.msra.mxu0 %v1866
  %1896 = vmatprep.subr.mxu0 0.0
  %1897 = vmatpush1.msra.mxu0 %v1867
  %1898 = vmatprep.subr.mxu0 0.0
  %1899 = vmatpush1.msra.mxu0 %v1868
  %1900 = vmatprep.subr.mxu0 0.0
  %1901 = vmatpush1.msra.mxu0 %v1869
  %1902 = vmatprep.subr.mxu0 0.0
  %1903 = vmatpush1.msra.mxu0 0.0
  %1904 = vmatprep.subr.mxu0 0.0
  %1905 = vmatpush1.msra.mxu0 0.0
  %1906 = vmatprep.subr.mxu0 0.0
  %1907 = vmatpush1.msra.mxu0 0.0
  %1908 = vmatprep.subr.mxu0 0.0
  %1909 = vmatpush1.msra.mxu0 0.0
  %1910 = vmatprep.subr.mxu0 0.0
  %1911 = vmatpush1.msra.mxu0 0.0
  %1912 = vmatprep.subr.mxu0 0.0
  %1913 = vmatpush1.msra.mxu0 0.0
  %1914 = vmatprep.subr.mxu0 0.0
  %1915 = vmatpush1.msra.mxu0 0.0
  %1916 = vmatprep.subr.mxu0 0.0
  %1917 = vmatpush1.msra.mxu0 0.0
  %1918 = vmatprep.subr.mxu0 0.0
  %1919 = vmatpush1.msra.mxu0 0.0
  %1920 = vmatprep.subr.mxu0 0.0
  %1921 = vmatpush1.msra.mxu0 0.0
  %1922 = vmatprep.subr.mxu0 0.0
  %1923 = vmatpush1.msra.mxu0 0.0
  %1924 = vmatprep.subr.mxu0 0.0
  %1925 = vmatpush1.msra.mxu0 0.0
  %1926 = vmatprep.subr.mxu0 0.0
  %1927 = vmatpush1.msra.mxu0 0.0
  %1928 = vmatprep.subr.mxu0 0.0
  %1929 = vmatpush1.msra.mxu0 0.0
  %1930 = vmatprep.subr.mxu0 0.0
  %1931 = vmatpush1.msra.mxu0 0.0
  %1932 = vmatprep.subr.mxu0 0.0
  %1933 = vmatpush1.msra.mxu0 0.0
  %1934 = vmatprep.mubr.f32.mxu0 0.0
  %1935 = vmatmul.mubr.f32.gmra.mrb[0].mxu0 %v149
  %v1936 = vpop.f32.mrb[0].mxu0
  %v1937 = vadd.f32 0.0, %v1936
  %v1938 = vpop.f32.mrb[0].mxu0
  %1939 = vmatprep.mubr.f32.mxu0 0.0
  %1940 = vmatmul.mubr.f32.gmra.mrb[0].mxu0 %v150
  %v1941 = vpop.f32.mrb[0].mxu0
  %v1942 = vadd.f32 0.0, %v1941
  %v1943 = vpop.f32.mrb[0].mxu0
  %1944 = vmatprep.mubr.f32.mxu0 0.0
  %1945 = vmatmul.mubr.f32.gmra.mrb[0].mxu0 %v151
  %v1946 = vpop.f32.mrb[0].mxu0
  %v1947 = vadd.f32 0.0, %v1946
  %v1948 = vpop.f32.mrb[0].mxu0
  %1949 = vmatprep.mubr.f32.mxu0 0.0
  %1950 = vmatmul.mubr.f32.gmra.mrb[0].mxu0 %v152
  %v1951 = vpop.f32.mrb[0].mxu0
  %v1952 = vadd.f32 0.0, %v1951
  %v1953 = vpop.f32.mrb[0].mxu0
  %1954 = vmatprep.mubr.f32.mxu0 0.0
  %1955 = vmatmul.mubr.f32.gmra.mrb[0].mxu0 %v153
  %v1956 = vpop.f32.mrb[0].mxu0
  %v1957 = vadd.f32 0.0, %v1956
  %v1958 = vpop.f32.mrb[0].mxu0
  %1959 = vmatprep.mubr.f32.mxu0 0.0
  %1960 = vmatmul.mubr.f32.gmra.mrb[0].mxu0 %v154
  %v1961 = vpop.f32.mrb[0].mxu0
  %v1962 = vadd.f32 0.0, %v1961
  %v1963 = vpop.f32.mrb[0].mxu0
  %1964 = vmatprep.mubr.f32.mxu0 0.0
  %1965 = vmatmul.mubr.f32.gmra.mrb[0].mxu0 %v155
  %v1966 = vpop.f32.mrb[0].mxu0
  %v1967 = vadd.f32 0.0, %v1966
  %v1968 = vpop.f32.mrb[0].mxu0
  %1969 = vmatprep.mubr.f32.mxu0 0.0
  %1970 = vmatmul.mubr.f32.gmra.mrb[0].mxu0 %v156
  %v1971 = vpop.f32.mrb[0].mxu0
  %v1972 = vadd.f32 0.0, %v1971
  %v1973 = vpop.f32.mrb[0].mxu0
  %1974 = vmatprep.mubr.f32.mxu0 0.0
  %1975 = vmatmul.mubr.f32.gmra.mrb[0].mxu0 %v157
  %v1976 = vpop.f32.mrb[0].mxu0
  %v1977 = vadd.f32 0.0, %v1976
  %v1978 = vpop.f32.mrb[0].mxu0
  %1979 = vmatprep.mubr.f32.mxu0 0.0
  %1980 = vmatmul.mubr.f32.gmra.mrb[0].mxu0 %v158
  %v1981 = vpop.f32.mrb[0].mxu0
  %v1982 = vadd.f32 0.0, %v1981
  %v1983 = vpop.f32.mrb[0].mxu0
  %1984 = vmatprep.mubr.f32.mxu0 0.0
  %1985 = vmatmul.mubr.f32.gmra.mrb[0].mxu0 %v159
  %v1986 = vpop.f32.mrb[0].mxu0
  %v1987 = vadd.f32 0.0, %v1986
  %v1988 = vpop.f32.mrb[0].mxu0
  %1989 = vmatprep.mubr.f32.mxu0 0.0
  %1990 = vmatmul.mubr.f32.gmra.mrb[0].mxu0 %v160
  %v1991 = vpop.f32.mrb[0].mxu0
  %v1992 = vadd.f32 0.0, %v1991
  %v1993 = vpop.f32.mrb[0].mxu0
  %1994 = vmatprep.mubr.f32.mxu0 0.0
  %1995 = vmatmul.mubr.f32.gmra.mrb[0].mxu0 %v161
  %v1996 = vpop.f32.mrb[0].mxu0
  %v1997 = vadd.f32 0.0, %v1996
  %v1998 = vpop.f32.mrb[0].mxu0
  %1999 = vmatprep.mubr.f32.mxu0 0.0
  %2000 = vmatmul.mubr.f32.gmra.mrb[0].mxu0 %v162
  %v2001 = vpop.f32.mrb[0].mxu0
  %v2002 = vadd.f32 0.0, %v2001
  %v2003 = vpop.f32.mrb[0].mxu0
  %2004 = vmatprep.mubr.f32.mxu0 0.0
  %2005 = vmatmul.mubr.f32.gmra.mrb[0].mxu0 %v163
  %v2006 = vpop.f32.mrb[0].mxu0
  %v2007 = vadd.f32 0.0, %v2006
  %v2008 = vpop.f32.mrb[0].mxu0
  %2009 = vmatprep.mubr.f32.mxu0 0.0
  %2010 = vmatmul.mubr.f32.gmra.mrb[0].mxu0 %v164
  %v2011 = vpop.f32.mrb[0].mxu0
  %v2012 = vadd.f32 0.0, %v2011
  %v2013 = vpop.f32.mrb[0].mxu0
  %2014 = vdwg.mxu0
  %v2015 = vadd.f32 %v1837, %v1937
  %v2016 = vadd.f32 %v1838, %v1942
  %v2017 = vadd.f32 %v1839, %v1947
  %v2018 = vadd.f32 %v1840, %v1952
  %v2019 = vadd.f32 %v1841, %v1957
  %v2020 = vadd.f32 %v1842, %v1962
  %v2021 = vadd.f32 %v1843, %v1967
  %v2022 = vadd.f32 %v1844, %v1972
  %v2023 = vadd.f32 %v1845, %v1977
  %v2024 = vadd.f32 %v1846, %v1982
  %v2025 = vadd.f32 %v1847, %v1987
  %v2026 = vadd.f32 %v1848, %v1992
  %v2027 = vadd.f32 %v1849, %v1997
  %v2028 = vadd.f32 %v1850, %v2002
  %v2029 = vadd.f32 %v1851, %v2007
  %v2030 = vadd.f32 %v1852, %v2012
  %s2031 = scalar_lea.vmem %s3, 1
  %v2032 = vld [vmem:[%s2031] sm:$0x1]
  %v2034 = vlaneseq
  %v2035 = vshrl.u32 %v2034, 7
  %v2036 = vsub.s32 0, %v2035
  %v2037 = vrot.slane %v2032, %v2036
  %v2039 = vadd.f32 %v2015, %v2037
  %v2040 = vadd.f32 %v2016, %v2037
  %v2041 = vadd.f32 %v2017, %v2037
  %v2042 = vadd.f32 %v2018, %v2037
  %v2043 = vadd.f32 %v2019, %v2037
  %v2044 = vadd.f32 %v2020, %v2037
  %v2045 = vadd.f32 %v2021, %v2037
  %v2046 = vadd.f32 %v2022, %v2037
  %v2047 = vadd.f32 %v2023, %v2037
  %v2048 = vadd.f32 %v2024, %v2037
  %v2049 = vadd.f32 %v2025, %v2037
  %v2050 = vadd.f32 %v2026, %v2037
  %v2051 = vadd.f32 %v2027, %v2037
  %v2052 = vadd.f32 %v2028, %v2037
  %v2053 = vadd.f32 %v2029, %v2037
  %v2054 = vadd.f32 %v2030, %v2037
  %v2055 = vmax.f32 %v2039, 0.0
  %v2056 = vmax.f32 %v2040, 0.0
  %v2057 = vmax.f32 %v2041, 0.0
  %v2058 = vmax.f32 %v2042, 0.0
  %v2059 = vmax.f32 %v2043, 0.0
  %v2060 = vmax.f32 %v2044, 0.0
  %v2061 = vmax.f32 %v2045, 0.0
  %v2062 = vmax.f32 %v2046, 0.0
  %v2063 = vmax.f32 %v2047, 0.0
  %v2064 = vmax.f32 %v2048, 0.0
  %v2065 = vmax.f32 %v2049, 0.0
  %v2066 = vmax.f32 %v2050, 0.0
  %v2067 = vmax.f32 %v2051, 0.0
  %v2068 = vmax.f32 %v2052, 0.0
  %v2069 = vmax.f32 %v2053, 0.0
  %v2070 = vmax.f32 %v2054, 0.0
  %s2071 = scalar_lea.vmem [#allocation2], 16
  %2072 = vst [vmem:[%s2071 + $0x1] sm:$0xff] %v2055
  %2073 = vst [vmem:[%s2071 + $0x11] sm:$0xff] %v2056
  %2074 = vst [vmem:[%s2071 + $0x21] sm:$0xff] %v2057
  %2075 = vst [vmem:[%s2071 + $0x31] sm:$0xff] %v2058
  %2076 = vst [vmem:[%s2071 + $0x41] sm:$0xff] %v2059
  %2077 = vst [vmem:[%s2071 + $0x51] sm:$0xff] %v2060
  %2078 = vst [vmem:[%s2071 + $0x61] sm:$0xff] %v2061
  %2079 = vst [vmem:[%s2071 + $0x71] sm:$0xff] %v2062
  %2080 = vst [vmem:[%s2071 + $0xa1] sm:$0xff] %v2063
  %2081 = vst [vmem:[%s2071 + $0xb1] sm:$0xff] %v2064
  %2082 = vst [vmem:[%s2071 + $0xc1] sm:$0xff] %v2065
  %2083 = vst [vmem:[%s2071 + $0xd1] sm:$0xff] %v2066
  %2084 = vst [vmem:[%s2071 + $0xe1] sm:$0xff] %v2067
  %2085 = vst [vmem:[%s2071 + $0xf1] sm:$0xff] %v2068
  %2086 = vst [vmem:[%s2071 + $0x101] sm:$0xff] %v2069
  %2087 = vst [vmem:[%s2071 + $0x111] sm:$0xff] %v2070
  %v2088 = vld [vmem:[#allocation2] sm:$0xff]
  %v2089 = vld [vmem:[#allocation2 + $0x10] sm:$0xff]
  %v2090 = vld [vmem:[#allocation2 + $0x20] sm:$0xff]
  %v2091 = vld [vmem:[#allocation2 + $0x30] sm:$0xff]
  %v2092 = vld [vmem:[#allocation2 + $0x40] sm:$0xff]
  %v2093 = vld [vmem:[#allocation2 + $0x50] sm:$0xff]
  %v2094 = vld [vmem:[#allocation2 + $0x60] sm:$0xff]
  %v2095 = vld [vmem:[#allocation2 + $0x70] sm:$0xff]
  %v2096 = vld [vmem:[#allocation2 + $0xa0] sm:$0xff]
  %v2097 = vld [vmem:[#allocation2 + $0xb0] sm:$0xff]
  %v2098 = vld [vmem:[#allocation2 + $0xc0] sm:$0xff]
  %v2099 = vld [vmem:[#allocation2 + $0xd0] sm:$0xff]
  %v2100 = vld [vmem:[#allocation2 + $0xe0] sm:$0xff]
  %v2101 = vld [vmem:[#allocation2 + $0xf0] sm:$0xff]
  %v2102 = vld [vmem:[#allocation2 + $0x100] sm:$0xff]
  %v2103 = vld [vmem:[#allocation2 + $0x110] sm:$0xff]
  %s2104 = scalar_lea.vmem %s1, 1152
  %v2105 = vld [vmem:[%s2104] sm:$0xff]
  %v2106 = vld [vmem:[%s2104 + $0x8] sm:$0xff]
  %v2107 = vld [vmem:[%s2104 + $0x10] sm:$0xff]
  %v2108 = vld [vmem:[%s2104 + $0x18] sm:$0xff]
  %v2109 = vld [vmem:[%s2104 + $0x20] sm:$0xff]
  %v2110 = vld [vmem:[%s2104 + $0x28] sm:$0xff]
  %v2111 = vld [vmem:[%s2104 + $0x30] sm:$0xff]
  %v2112 = vld [vmem:[%s2104 + $0x38] sm:$0xff]
  %v2113 = vld [vmem:[%s2104 + $0x40] sm:$0xff]
  %v2114 = vld [vmem:[%s2104 + $0x48] sm:$0xff]
  %v2115 = vld [vmem:[%s2104 + $0x50] sm:$0xff]
  %v2116 = vld [vmem:[%s2104 + $0x58] sm:$0xff]
  %v2117 = vld [vmem:[%s2104 + $0x60] sm:$0xff]
  %v2118 = vld [vmem:[%s2104 + $0x68] sm:$0xff]
  %v2119 = vld [vmem:[%s2104 + $0x70] sm:$0xff]
  %v2120 = vld [vmem:[%s2104 + $0x78] sm:$0xff]
  %v2121 = vld [vmem:[#allocation2 + $0x1] sm:$0xff]
  %v2122 = vld [vmem:[#allocation2 + $0x11] sm:$0xff]
  %v2123 = vld [vmem:[#allocation2 + $0x21] sm:$0xff]
  %v2124 = vld [vmem:[#allocation2 + $0x31] sm:$0xff]
  %v2125 = vld [vmem:[#allocation2 + $0x41] sm:$0xff]
  %v2126 = vld [vmem:[#allocation2 + $0x51] sm:$0xff]
  %v2127 = vld [vmem:[#allocation2 + $0x61] sm:$0xff]
  %v2128 = vld [vmem:[#allocation2 + $0x71] sm:$0xff]
  %v2129 = vld [vmem:[#allocation2 + $0xa1] sm:$0xff]
  %v2130 = vld [vmem:[#allocation2 + $0xb1] sm:$0xff]
  %v2131 = vld [vmem:[#allocation2 + $0xc1] sm:$0xff]
  %v2132 = vld [vmem:[#allocation2 + $0xd1] sm:$0xff]
  %v2133 = vld [vmem:[#allocation2 + $0xe1] sm:$0xff]
  %v2134 = vld [vmem:[#allocation2 + $0xf1] sm:$0xff]
  %v2135 = vld [vmem:[#allocation2 + $0x101] sm:$0xff]
  %v2136 = vld [vmem:[#allocation2 + $0x111] sm:$0xff]
  %s2137 = scalar_lea.vmem %s1, 1280
  %v2138 = vld [vmem:[%s2137] sm:$0xff]
  %v2139 = vld [vmem:[%s2137 + $0x8] sm:$0xff]
  %v2140 = vld [vmem:[%s2137 + $0x10] sm:$0xff]
  %v2141 = vld [vmem:[%s2137 + $0x18] sm:$0xff]
  %v2142 = vld [vmem:[%s2137 + $0x20] sm:$0xff]
  %v2143 = vld [vmem:[%s2137 + $0x28] sm:$0xff]
  %v2144 = vld [vmem:[%s2137 + $0x30] sm:$0xff]
  %v2145 = vld [vmem:[%s2137 + $0x38] sm:$0xff]
  %v2146 = vld [vmem:[%s2137 + $0x40] sm:$0xff]
  %v2147 = vld [vmem:[%s2137 + $0x48] sm:$0xff]
  %v2148 = vld [vmem:[%s2137 + $0x50] sm:$0xff]
  %v2149 = vld [vmem:[%s2137 + $0x58] sm:$0xff]
  %v2150 = vld [vmem:[%s2137 + $0x60] sm:$0xff]
  %v2151 = vld [vmem:[%s2137 + $0x68] sm:$0xff]
  %v2152 = vld [vmem:[%s2137 + $0x70] sm:$0xff]
  %v2153 = vld [vmem:[%s2137 + $0x78] sm:$0xff]
  %2154 = vmatprep.subr.mxu0 0.0
  %2155 = vmatpush1.msra.mxu0 %v2138
  %2156 = vmatprep.subr.mxu0 0.0
  %2157 = vmatpush1.msra.mxu0 %v2139
  %2158 = vmatprep.subr.mxu0 0.0
  %2159 = vmatpush1.msra.mxu0 %v2140
  %2160 = vmatprep.subr.mxu0 0.0
  %2161 = vmatpush1.msra.mxu0 %v2141
  %2162 = vmatprep.subr.mxu0 0.0
  %2163 = vmatpush1.msra.mxu0 %v2142
  %2164 = vmatprep.subr.mxu0 0.0
  %2165 = vmatpush1.msra.mxu0 %v2143
  %2166 = vmatprep.subr.mxu0 0.0
  %2167 = vmatpush1.msra.mxu0 %v2144
  %2168 = vmatprep.subr.mxu0 0.0
  %2169 = vmatpush1.msra.mxu0 %v2145
  %2170 = vmatprep.subr.mxu0 0.0
  %2171 = vmatpush1.msra.mxu0 %v2146
  %2172 = vmatprep.subr.mxu0 0.0
  %2173 = vmatpush1.msra.mxu0 %v2147
  %2174 = vmatprep.subr.mxu0 0.0
  %2175 = vmatpush1.msra.mxu0 %v2148
  %2176 = vmatprep.subr.mxu0 0.0
  %2177 = vmatpush1.msra.mxu0 %v2149
  %2178 = vmatprep.subr.mxu0 0.0
  %2179 = vmatpush1.msra.mxu0 %v2150
  %2180 = vmatprep.subr.mxu0 0.0
  %2181 = vmatpush1.msra.mxu0 %v2151
  %2182 = vmatprep.subr.mxu0 0.0
  %2183 = vmatpush1.msra.mxu0 %v2152
  %2184 = vmatprep.subr.mxu0 0.0
  %2185 = vmatpush1.msra.mxu0 %v2153
  %2186 = vmatprep.subr.mxu0 0.0
  %2187 = vmatpush1.msra.mxu0 0.0
  %2188 = vmatprep.subr.mxu0 0.0
  %2189 = vmatpush1.msra.mxu0 0.0
  %2190 = vmatprep.subr.mxu0 0.0
  %2191 = vmatpush1.msra.mxu0 0.0
  %2192 = vmatprep.subr.mxu0 0.0
  %2193 = vmatpush1.msra.mxu0 0.0
  %2194 = vmatprep.subr.mxu0 0.0
  %2195 = vmatpush1.msra.mxu0 0.0
  %2196 = vmatprep.subr.mxu0 0.0
  %2197 = vmatpush1.msra.mxu0 0.0
  %2198 = vmatprep.subr.mxu0 0.0
  %2199 = vmatpush1.msra.mxu0 0.0
  %2200 = vmatprep.subr.mxu0 0.0
  %2201 = vmatpush1.msra.mxu0 0.0
  %2202 = vmatprep.subr.mxu0 0.0
  %2203 = vmatpush1.msra.mxu0 0.0
  %2204 = vmatprep.subr.mxu0 0.0
  %2205 = vmatpush1.msra.mxu0 0.0
  %2206 = vmatprep.subr.mxu0 0.0
  %2207 = vmatpush1.msra.mxu0 0.0
  %2208 = vmatprep.subr.mxu0 0.0
  %2209 = vmatpush1.msra.mxu0 0.0
  %2210 = vmatprep.subr.mxu0 0.0
  %2211 = vmatpush1.msra.mxu0 0.0
  %2212 = vmatprep.subr.mxu0 0.0
  %2213 = vmatpush1.msra.mxu0 0.0
  %2214 = vmatprep.subr.mxu0 0.0
  %2215 = vmatpush1.msra.mxu0 0.0
  %2216 = vmatprep.subr.mxu0 0.0
  %2217 = vmatpush1.msra.mxu0 0.0
  %2218 = vmatprep.mubr.f32.mxu0 0.0
  %2219 = vmatmul.mubr.f32.gmra.mrb[0].mxu0 %v2121
  %v2220 = vpop.f32.mrb[0].mxu0
  %v2221 = vadd.f32 0.0, %v2220
  %v2222 = vpop.f32.mrb[0].mxu0
  %2223 = vmatprep.mubr.f32.mxu0 0.0
  %2224 = vmatmul.mubr.f32.gmra.mrb[0].mxu0 %v2122
  %v2225 = vpop.f32.mrb[0].mxu0
  %v2226 = vadd.f32 0.0, %v2225
  %v2227 = vpop.f32.mrb[0].mxu0
  %2228 = vmatprep.mubr.f32.mxu0 0.0
  %2229 = vmatmul.mubr.f32.gmra.mrb[0].mxu0 %v2123
  %v2230 = vpop.f32.mrb[0].mxu0
  %v2231 = vadd.f32 0.0, %v2230
  %v2232 = vpop.f32.mrb[0].mxu0
  %2233 = vmatprep.mubr.f32.mxu0 0.0
  %2234 = vmatmul.mubr.f32.gmra.mrb[0].mxu0 %v2124
  %v2235 = vpop.f32.mrb[0].mxu0
  %v2236 = vadd.f32 0.0, %v2235
  %v2237 = vpop.f32.mrb[0].mxu0
  %2238 = vmatprep.mubr.f32.mxu0 0.0
  %2239 = vmatmul.mubr.f32.gmra.mrb[0].mxu0 %v2125
  %v2240 = vpop.f32.mrb[0].mxu0
  %v2241 = vadd.f32 0.0, %v2240
  %v2242 = vpop.f32.mrb[0].mxu0
  %2243 = vmatprep.mubr.f32.mxu0 0.0
  %2244 = vmatmul.mubr.f32.gmra.mrb[0].mxu0 %v2126
  %v2245 = vpop.f32.mrb[0].mxu0
  %v2246 = vadd.f32 0.0, %v2245
  %v2247 = vpop.f32.mrb[0].mxu0
  %2248 = vmatprep.mubr.f32.mxu0 0.0
  %2249 = vmatmul.mubr.f32.gmra.mrb[0].mxu0 %v2127
  %v2250 = vpop.f32.mrb[0].mxu0
  %v2251 = vadd.f32 0.0, %v2250
  %v2252 = vpop.f32.mrb[0].mxu0
  %2253 = vmatprep.mubr.f32.mxu0 0.0
  %2254 = vmatmul.mubr.f32.gmra.mrb[0].mxu0 %v2128
  %v2255 = vpop.f32.mrb[0].mxu0
  %v2256 = vadd.f32 0.0, %v2255
  %v2257 = vpop.f32.mrb[0].mxu0
  %2258 = vmatprep.mubr.f32.mxu0 0.0
  %2259 = vmatmul.mubr.f32.gmra.mrb[0].mxu0 %v2129
  %v2260 = vpop.f32.mrb[0].mxu0
  %v2261 = vadd.f32 0.0, %v2260
  %v2262 = vpop.f32.mrb[0].mxu0
  %2263 = vmatprep.mubr.f32.mxu0 0.0
  %2264 = vmatmul.mubr.f32.gmra.mrb[0].mxu0 %v2130
  %v2265 = vpop.f32.mrb[0].mxu0
  %v2266 = vadd.f32 0.0, %v2265
  %v2267 = vpop.f32.mrb[0].mxu0
  %2268 = vmatprep.mubr.f32.mxu0 0.0
  %2269 = vmatmul.mubr.f32.gmra.mrb[0].mxu0 %v2131
  %v2270 = vpop.f32.mrb[0].mxu0
  %v2271 = vadd.f32 0.0, %v2270
  %v2272 = vpop.f32.mrb[0].mxu0
  %2273 = vmatprep.mubr.f32.mxu0 0.0
  %2274 = vmatmul.mubr.f32.gmra.mrb[0].mxu0 %v2132
  %v2275 = vpop.f32.mrb[0].mxu0
  %v2276 = vadd.f32 0.0, %v2275
  %v2277 = vpop.f32.mrb[0].mxu0
  %2278 = vmatprep.mubr.f32.mxu0 0.0
  %2279 = vmatmul.mubr.f32.gmra.mrb[0].mxu0 %v2133
  %v2280 = vpop.f32.mrb[0].mxu0
  %v2281 = vadd.f32 0.0, %v2280
  %v2282 = vpop.f32.mrb[0].mxu0
  %2283 = vmatprep.mubr.f32.mxu0 0.0
  %2284 = vmatmul.mubr.f32.gmra.mrb[0].mxu0 %v2134
  %v2285 = vpop.f32.mrb[0].mxu0
  %v2286 = vadd.f32 0.0, %v2285
  %v2287 = vpop.f32.mrb[0].mxu0
  %2288 = vmatprep.mubr.f32.mxu0 0.0
  %2289 = vmatmul.mubr.f32.gmra.mrb[0].mxu0 %v2135
  %v2290 = vpop.f32.mrb[0].mxu0
  %v2291 = vadd.f32 0.0, %v2290
  %v2292 = vpop.f32.mrb[0].mxu0
  %2293 = vmatprep.mubr.f32.mxu0 0.0
  %2294 = vmatmul.mubr.f32.gmra.mrb[0].mxu0 %v2136
  %v2295 = vpop.f32.mrb[0].mxu0
  %v2296 = vadd.f32 0.0, %v2295
  %v2297 = vpop.f32.mrb[0].mxu0
  %2298 = vdwg.mxu0
  %2299 = vmatprep.subr.mxu0 0.0
  %2300 = vmatpush1.msra.mxu0 %v2105
  %2301 = vmatprep.subr.mxu0 0.0
  %2302 = vmatpush1.msra.mxu0 %v2106
  %2303 = vmatprep.subr.mxu0 0.0
  %2304 = vmatpush1.msra.mxu0 %v2107
  %2305 = vmatprep.subr.mxu0 0.0
  %2306 = vmatpush1.msra.mxu0 %v2108
  %2307 = vmatprep.subr.mxu0 0.0
  %2308 = vmatpush1.msra.mxu0 %v2109
  %2309 = vmatprep.subr.mxu0 0.0
  %2310 = vmatpush1.msra.mxu0 %v2110
  %2311 = vmatprep.subr.mxu0 0.0
  %2312 = vmatpush1.msra.mxu0 %v2111
  %2313 = vmatprep.subr.mxu0 0.0
  %2314 = vmatpush1.msra.mxu0 %v2112
  %2315 = vmatprep.subr.mxu0 0.0
  %2316 = vmatpush1.msra.mxu0 %v2113
  %2317 = vmatprep.subr.mxu0 0.0
  %2318 = vmatpush1.msra.mxu0 %v2114
  %2319 = vmatprep.subr.mxu0 0.0
  %2320 = vmatpush1.msra.mxu0 %v2115
  %2321 = vmatprep.subr.mxu0 0.0
  %2322 = vmatpush1.msra.mxu0 %v2116
  %2323 = vmatprep.subr.mxu0 0.0
  %2324 = vmatpush1.msra.mxu0 %v2117
  %2325 = vmatprep.subr.mxu0 0.0
  %2326 = vmatpush1.msra.mxu0 %v2118
  %2327 = vmatprep.subr.mxu0 0.0
  %2328 = vmatpush1.msra.mxu0 %v2119
  %2329 = vmatprep.subr.mxu0 0.0
  %2330 = vmatpush1.msra.mxu0 %v2120
  %2331 = vmatprep.subr.mxu0 0.0
  %2332 = vmatpush1.msra.mxu0 0.0
  %2333 = vmatprep.subr.mxu0 0.0
  %2334 = vmatpush1.msra.mxu0 0.0
  %2335 = vmatprep.subr.mxu0 0.0
  %2336 = vmatpush1.msra.mxu0 0.0
  %2337 = vmatprep.subr.mxu0 0.0
  %2338 = vmatpush1.msra.mxu0 0.0
  %2339 = vmatprep.subr.mxu0 0.0
  %2340 = vmatpush1.msra.mxu0 0.0
  %2341 = vmatprep.subr.mxu0 0.0
  %2342 = vmatpush1.msra.mxu0 0.0
  %2343 = vmatprep.subr.mxu0 0.0
  %2344 = vmatpush1.msra.mxu0 0.0
  %2345 = vmatprep.subr.mxu0 0.0
  %2346 = vmatpush1.msra.mxu0 0.0
  %2347 = vmatprep.subr.mxu0 0.0
  %2348 = vmatpush1.msra.mxu0 0.0
  %2349 = vmatprep.subr.mxu0 0.0
  %2350 = vmatpush1.msra.mxu0 0.0
  %2351 = vmatprep.subr.mxu0 0.0
  %2352 = vmatpush1.msra.mxu0 0.0
  %2353 = vmatprep.subr.mxu0 0.0
  %2354 = vmatpush1.msra.mxu0 0.0
  %2355 = vmatprep.subr.mxu0 0.0
  %2356 = vmatpush1.msra.mxu0 0.0
  %2357 = vmatprep.subr.mxu0 0.0
  %2358 = vmatpush1.msra.mxu0 0.0
  %2359 = vmatprep.subr.mxu0 0.0
  %2360 = vmatpush1.msra.mxu0 0.0
  %2361 = vmatprep.subr.mxu0 0.0
  %2362 = vmatpush1.msra.mxu0 0.0
  %2363 = vmatprep.mubr.f32.mxu0 0.0
  %2364 = vmatmul.mubr.f32.gmra.mrb[0].mxu0 %v2088
  %v2365 = vpop.f32.mrb[0].mxu0
  %v2366 = vadd.f32 %v2221, %v2365
  %v2367 = vpop.f32.mrb[0].mxu0
  %2368 = vmatprep.mubr.f32.mxu0 0.0
  %2369 = vmatmul.mubr.f32.gmra.mrb[0].mxu0 %v2089
  %v2370 = vpop.f32.mrb[0].mxu0
  %v2371 = vadd.f32 %v2226, %v2370
  %v2372 = vpop.f32.mrb[0].mxu0
  %2373 = vmatprep.mubr.f32.mxu0 0.0
  %2374 = vmatmul.mubr.f32.gmra.mrb[0].mxu0 %v2090
  %v2375 = vpop.f32.mrb[0].mxu0
  %v2376 = vadd.f32 %v2231, %v2375
  %v2377 = vpop.f32.mrb[0].mxu0
  %2378 = vmatprep.mubr.f32.mxu0 0.0
  %2379 = vmatmul.mubr.f32.gmra.mrb[0].mxu0 %v2091
  %v2380 = vpop.f32.mrb[0].mxu0
  %v2381 = vadd.f32 %v2236, %v2380
  %v2382 = vpop.f32.mrb[0].mxu0
  %2383 = vmatprep.mubr.f32.mxu0 0.0
  %2384 = vmatmul.mubr.f32.gmra.mrb[0].mxu0 %v2092
  %v2385 = vpop.f32.mrb[0].mxu0
  %v2386 = vadd.f32 %v2241, %v2385
  %v2387 = vpop.f32.mrb[0].mxu0
  %2388 = vmatprep.mubr.f32.mxu0 0.0
  %2389 = vmatmul.mubr.f32.gmra.mrb[0].mxu0 %v2093
  %v2390 = vpop.f32.mrb[0].mxu0
  %v2391 = vadd.f32 %v2246, %v2390
  %v2392 = vpop.f32.mrb[0].mxu0
  %2393 = vmatprep.mubr.f32.mxu0 0.0
  %2394 = vmatmul.mubr.f32.gmra.mrb[0].mxu0 %v2094
  %v2395 = vpop.f32.mrb[0].mxu0
  %v2396 = vadd.f32 %v2251, %v2395
  %v2397 = vpop.f32.mrb[0].mxu0
  %2398 = vmatprep.mubr.f32.mxu0 0.0
  %2399 = vmatmul.mubr.f32.gmra.mrb[0].mxu0 %v2095
  %v2400 = vpop.f32.mrb[0].mxu0
  %v2401 = vadd.f32 %v2256, %v2400
  %v2402 = vpop.f32.mrb[0].mxu0
  %2403 = vmatprep.mubr.f32.mxu0 0.0
  %2404 = vmatmul.mubr.f32.gmra.mrb[0].mxu0 %v2096
  %v2405 = vpop.f32.mrb[0].mxu0
  %v2406 = vadd.f32 %v2261, %v2405
  %v2407 = vpop.f32.mrb[0].mxu0
  %2408 = vmatprep.mubr.f32.mxu0 0.0
  %2409 = vmatmul.mubr.f32.gmra.mrb[0].mxu0 %v2097
  %v2410 = vpop.f32.mrb[0].mxu0
  %v2411 = vadd.f32 %v2266, %v2410
  %v2412 = vpop.f32.mrb[0].mxu0
  %2413 = vmatprep.mubr.f32.mxu0 0.0
  %2414 = vmatmul.mubr.f32.gmra.mrb[0].mxu0 %v2098
  %v2415 = vpop.f32.mrb[0].mxu0
  %v2416 = vadd.f32 %v2271, %v2415
  %v2417 = vpop.f32.mrb[0].mxu0
  %2418 = vmatprep.mubr.f32.mxu0 0.0
  %2419 = vmatmul.mubr.f32.gmra.mrb[0].mxu0 %v2099
  %v2420 = vpop.f32.mrb[0].mxu0
  %v2421 = vadd.f32 %v2276, %v2420
  %v2422 = vpop.f32.mrb[0].mxu0
  %2423 = vmatprep.mubr.f32.mxu0 0.0
  %2424 = vmatmul.mubr.f32.gmra.mrb[0].mxu0 %v2100
  %v2425 = vpop.f32.mrb[0].mxu0
  %v2426 = vadd.f32 %v2281, %v2425
  %v2427 = vpop.f32.mrb[0].mxu0
  %2428 = vmatprep.mubr.f32.mxu0 0.0
  %2429 = vmatmul.mubr.f32.gmra.mrb[0].mxu0 %v2101
  %v2430 = vpop.f32.mrb[0].mxu0
  %v2431 = vadd.f32 %v2286, %v2430
  %v2432 = vpop.f32.mrb[0].mxu0
  %2433 = vmatprep.mubr.f32.mxu0 0.0
  %2434 = vmatmul.mubr.f32.gmra.mrb[0].mxu0 %v2102
  %v2435 = vpop.f32.mrb[0].mxu0
  %v2436 = vadd.f32 %v2291, %v2435
  %v2437 = vpop.f32.mrb[0].mxu0
  %2438 = vmatprep.mubr.f32.mxu0 0.0
  %2439 = vmatmul.mubr.f32.gmra.mrb[0].mxu0 %v2103
  %v2440 = vpop.f32.mrb[0].mxu0
  %v2441 = vadd.f32 %v2296, %v2440
  %v2442 = vpop.f32.mrb[0].mxu0
  %2443 = vdwg.mxu0
  %v2444 = vld [vmem:[#allocation2 + $0x2] sm:$0xff]
  %v2445 = vld [vmem:[#allocation2 + $0x12] sm:$0xff]
  %v2446 = vld [vmem:[#allocation2 + $0x22] sm:$0xff]
  %v2447 = vld [vmem:[#allocation2 + $0x32] sm:$0xff]
  %v2448 = vld [vmem:[#allocation2 + $0x42] sm:$0xff]
  %v2449 = vld [vmem:[#allocation2 + $0x52] sm:$0xff]
  %v2450 = vld [vmem:[#allocation2 + $0x62] sm:$0xff]
  %v2451 = vld [vmem:[#allocation2 + $0x72] sm:$0xff]
  %v2452 = vld [vmem:[#allocation2 + $0xa2] sm:$0xff]
  %v2453 = vld [vmem:[#allocation2 + $0xb2] sm:$0xff]
  %v2454 = vld [vmem:[#allocation2 + $0xc2] sm:$0xff]
  %v2455 = vld [vmem:[#allocation2 + $0xd2] sm:$0xff]
  %v2456 = vld [vmem:[#allocation2 + $0xe2] sm:$0xff]
  %v2457 = vld [vmem:[#allocation2 + $0xf2] sm:$0xff]
  %v2458 = vld [vmem:[#allocation2 + $0x102] sm:$0xff]
  %v2459 = vld [vmem:[#allocation2 + $0x112] sm:$0xff]
  %s2460 = scalar_lea.vmem %s1, 1408
  %v2461 = vld [vmem:[%s2460] sm:$0xff]
  %v2462 = vld [vmem:[%s2460 + $0x8] sm:$0xff]
  %v2463 = vld [vmem:[%s2460 + $0x10] sm:$0xff]
  %v2464 = vld [vmem:[%s2460 + $0x18] sm:$0xff]
  %v2465 = vld [vmem:[%s2460 + $0x20] sm:$0xff]
  %v2466 = vld [vmem:[%s2460 + $0x28] sm:$0xff]
  %v2467 = vld [vmem:[%s2460 + $0x30] sm:$0xff]
  %v2468 = vld [vmem:[%s2460 + $0x38] sm:$0xff]
  %v2469 = vld [vmem:[%s2460 + $0x40] sm:$0xff]
  %v2470 = vld [vmem:[%s2460 + $0x48] sm:$0xff]
  %v2471 = vld [vmem:[%s2460 + $0x50] sm:$0xff]
  %v2472 = vld [vmem:[%s2460 + $0x58] sm:$0xff]
  %v2473 = vld [vmem:[%s2460 + $0x60] sm:$0xff]
  %v2474 = vld [vmem:[%s2460 + $0x68] sm:$0xff]
  %v2475 = vld [vmem:[%s2460 + $0x70] sm:$0xff]
  %v2476 = vld [vmem:[%s2460 + $0x78] sm:$0xff]
  %2477 = vmatprep.subr.mxu0 0.0
  %2478 = vmatpush1.msra.mxu0 %v2461
  %2479 = vmatprep.subr.mxu0 0.0
  %2480 = vmatpush1.msra.mxu0 %v2462
  %2481 = vmatprep.subr.mxu0 0.0
  %2482 = vmatpush1.msra.mxu0 %v2463
  %2483 = vmatprep.subr.mxu0 0.0
  %2484 = vmatpush1.msra.mxu0 %v2464
  %2485 = vmatprep.subr.mxu0 0.0
  %2486 = vmatpush1.msra.mxu0 %v2465
  %2487 = vmatprep.subr.mxu0 0.0
  %2488 = vmatpush1.msra.mxu0 %v2466
  %2489 = vmatprep.subr.mxu0 0.0
  %2490 = vmatpush1.msra.mxu0 %v2467
  %2491 = vmatprep.subr.mxu0 0.0
  %2492 = vmatpush1.msra.mxu0 %v2468
  %2493 = vmatprep.subr.mxu0 0.0
  %2494 = vmatpush1.msra.mxu0 %v2469
  %2495 = vmatprep.subr.mxu0 0.0
  %2496 = vmatpush1.msra.mxu0 %v2470
  %2497 = vmatprep.subr.mxu0 0.0
  %2498 = vmatpush1.msra.mxu0 %v2471
  %2499 = vmatprep.subr.mxu0 0.0
  %2500 = vmatpush1.msra.mxu0 %v2472
  %2501 = vmatprep.subr.mxu0 0.0
  %2502 = vmatpush1.msra.mxu0 %v2473
  %2503 = vmatprep.subr.mxu0 0.0
  %2504 = vmatpush1.msra.mxu0 %v2474
  %2505 = vmatprep.subr.mxu0 0.0
  %2506 = vmatpush1.msra.mxu0 %v2475
  %2507 = vmatprep.subr.mxu0 0.0
  %2508 = vmatpush1.msra.mxu0 %v2476
  %2509 = vmatprep.subr.mxu0 0.0
  %2510 = vmatpush1.msra.mxu0 0.0
  %2511 = vmatprep.subr.mxu0 0.0
  %2512 = vmatpush1.msra.mxu0 0.0
  %2513 = vmatprep.subr.mxu0 0.0
  %2514 = vmatpush1.msra.mxu0 0.0
  %2515 = vmatprep.subr.mxu0 0.0
  %2516 = vmatpush1.msra.mxu0 0.0
  %2517 = vmatprep.subr.mxu0 0.0
  %2518 = vmatpush1.msra.mxu0 0.0
  %2519 = vmatprep.subr.mxu0 0.0
  %2520 = vmatpush1.msra.mxu0 0.0
  %2521 = vmatprep.subr.mxu0 0.0
  %2522 = vmatpush1.msra.mxu0 0.0
  %2523 = vmatprep.subr.mxu0 0.0
  %2524 = vmatpush1.msra.mxu0 0.0
  %2525 = vmatprep.subr.mxu0 0.0
  %2526 = vmatpush1.msra.mxu0 0.0
  %2527 = vmatprep.subr.mxu0 0.0
  %2528 = vmatpush1.msra.mxu0 0.0
  %2529 = vmatprep.subr.mxu0 0.0
  %2530 = vmatpush1.msra.mxu0 0.0
  %2531 = vmatprep.subr.mxu0 0.0
  %2532 = vmatpush1.msra.mxu0 0.0
  %2533 = vmatprep.subr.mxu0 0.0
  %2534 = vmatpush1.msra.mxu0 0.0
  %2535 = vmatprep.subr.mxu0 0.0
  %2536 = vmatpush1.msra.mxu0 0.0
  %2537 = vmatprep.subr.mxu0 0.0
  %2538 = vmatpush1.msra.mxu0 0.0
  %2539 = vmatprep.subr.mxu0 0.0
  %2540 = vmatpush1.msra.mxu0 0.0
  %2541 = vmatprep.mubr.f32.mxu0 0.0
  %2542 = vmatmul.mubr.f32.gmra.mrb[0].mxu0 %v2444
  %v2543 = vpop.f32.mrb[0].mxu0
  %v2544 = vadd.f32 0.0, %v2543
  %v2545 = vpop.f32.mrb[0].mxu0
  %2546 = vmatprep.mubr.f32.mxu0 0.0
  %2547 = vmatmul.mubr.f32.gmra.mrb[0].mxu0 %v2445
  %v2548 = vpop.f32.mrb[0].mxu0
  %v2549 = vadd.f32 0.0, %v2548
  %v2550 = vpop.f32.mrb[0].mxu0
  %2551 = vmatprep.mubr.f32.mxu0 0.0
  %2552 = vmatmul.mubr.f32.gmra.mrb[0].mxu0 %v2446
  %v2553 = vpop.f32.mrb[0].mxu0
  %v2554 = vadd.f32 0.0, %v2553
  %v2555 = vpop.f32.mrb[0].mxu0
  %2556 = vmatprep.mubr.f32.mxu0 0.0
  %2557 = vmatmul.mubr.f32.gmra.mrb[0].mxu0 %v2447
  %v2558 = vpop.f32.mrb[0].mxu0
  %v2559 = vadd.f32 0.0, %v2558
  %v2560 = vpop.f32.mrb[0].mxu0
  %2561 = vmatprep.mubr.f32.mxu0 0.0
  %2562 = vmatmul.mubr.f32.gmra.mrb[0].mxu0 %v2448
  %v2563 = vpop.f32.mrb[0].mxu0
  %v2564 = vadd.f32 0.0, %v2563
  %v2565 = vpop.f32.mrb[0].mxu0
  %2566 = vmatprep.mubr.f32.mxu0 0.0
  %2567 = vmatmul.mubr.f32.gmra.mrb[0].mxu0 %v2449
  %v2568 = vpop.f32.mrb[0].mxu0
  %v2569 = vadd.f32 0.0, %v2568
  %v2570 = vpop.f32.mrb[0].mxu0
  %2571 = vmatprep.mubr.f32.mxu0 0.0
  %2572 = vmatmul.mubr.f32.gmra.mrb[0].mxu0 %v2450
  %v2573 = vpop.f32.mrb[0].mxu0
  %v2574 = vadd.f32 0.0, %v2573
  %v2575 = vpop.f32.mrb[0].mxu0
  %2576 = vmatprep.mubr.f32.mxu0 0.0
  %2577 = vmatmul.mubr.f32.gmra.mrb[0].mxu0 %v2451
  %v2578 = vpop.f32.mrb[0].mxu0
  %v2579 = vadd.f32 0.0, %v2578
  %v2580 = vpop.f32.mrb[0].mxu0
  %2581 = vmatprep.mubr.f32.mxu0 0.0
  %2582 = vmatmul.mubr.f32.gmra.mrb[0].mxu0 %v2452
  %v2583 = vpop.f32.mrb[0].mxu0
  %v2584 = vadd.f32 0.0, %v2583
  %v2585 = vpop.f32.mrb[0].mxu0
  %2586 = vmatprep.mubr.f32.mxu0 0.0
  %2587 = vmatmul.mubr.f32.gmra.mrb[0].mxu0 %v2453
  %v2588 = vpop.f32.mrb[0].mxu0
  %v2589 = vadd.f32 0.0, %v2588
  %v2590 = vpop.f32.mrb[0].mxu0
  %2591 = vmatprep.mubr.f32.mxu0 0.0
  %2592 = vmatmul.mubr.f32.gmra.mrb[0].mxu0 %v2454
  %v2593 = vpop.f32.mrb[0].mxu0
  %v2594 = vadd.f32 0.0, %v2593
  %v2595 = vpop.f32.mrb[0].mxu0
  %2596 = vmatprep.mubr.f32.mxu0 0.0
  %2597 = vmatmul.mubr.f32.gmra.mrb[0].mxu0 %v2455
  %v2598 = vpop.f32.mrb[0].mxu0
  %v2599 = vadd.f32 0.0, %v2598
  %v2600 = vpop.f32.mrb[0].mxu0
  %2601 = vmatprep.mubr.f32.mxu0 0.0
  %2602 = vmatmul.mubr.f32.gmra.mrb[0].mxu0 %v2456
  %v2603 = vpop.f32.mrb[0].mxu0
  %v2604 = vadd.f32 0.0, %v2603
  %v2605 = vpop.f32.mrb[0].mxu0
  %2606 = vmatprep.mubr.f32.mxu0 0.0
  %2607 = vmatmul.mubr.f32.gmra.mrb[0].mxu0 %v2457
  %v2608 = vpop.f32.mrb[0].mxu0
  %v2609 = vadd.f32 0.0, %v2608
  %v2610 = vpop.f32.mrb[0].mxu0
  %2611 = vmatprep.mubr.f32.mxu0 0.0
  %2612 = vmatmul.mubr.f32.gmra.mrb[0].mxu0 %v2458
  %v2613 = vpop.f32.mrb[0].mxu0
  %v2614 = vadd.f32 0.0, %v2613
  %v2615 = vpop.f32.mrb[0].mxu0
  %2616 = vmatprep.mubr.f32.mxu0 0.0
  %2617 = vmatmul.mubr.f32.gmra.mrb[0].mxu0 %v2459
  %v2618 = vpop.f32.mrb[0].mxu0
  %v2619 = vadd.f32 0.0, %v2618
  %v2620 = vpop.f32.mrb[0].mxu0
  %2621 = vdwg.mxu0
  %v2622 = vadd.f32 %v2366, %v2544
  %v2623 = vadd.f32 %v2371, %v2549
  %v2624 = vadd.f32 %v2376, %v2554
  %v2625 = vadd.f32 %v2381, %v2559
  %v2626 = vadd.f32 %v2386, %v2564
  %v2627 = vadd.f32 %v2391, %v2569
  %v2628 = vadd.f32 %v2396, %v2574
  %v2629 = vadd.f32 %v2401, %v2579
  %v2630 = vadd.f32 %v2406, %v2584
  %v2631 = vadd.f32 %v2411, %v2589
  %v2632 = vadd.f32 %v2416, %v2594
  %v2633 = vadd.f32 %v2421, %v2599
  %v2634 = vadd.f32 %v2426, %v2604
  %v2635 = vadd.f32 %v2431, %v2609
  %v2636 = vadd.f32 %v2436, %v2614
  %v2637 = vadd.f32 %v2441, %v2619
  %v2638 = vld [vmem:[%s2071] sm:$0xff]
  %v2639 = vld [vmem:[%s2071 + $0x10] sm:$0xff]
  %v2640 = vld [vmem:[%s2071 + $0x20] sm:$0xff]
  %v2641 = vld [vmem:[%s2071 + $0x30] sm:$0xff]
  %v2642 = vld [vmem:[%s2071 + $0x40] sm:$0xff]
  %v2643 = vld [vmem:[%s2071 + $0x50] sm:$0xff]
  %v2644 = vld [vmem:[%s2071 + $0x60] sm:$0xff]
  %v2645 = vld [vmem:[%s2071 + $0x70] sm:$0xff]
  %v2646 = vld [vmem:[%s2071 + $0xa0] sm:$0xff]
  %v2647 = vld [vmem:[%s2071 + $0xb0] sm:$0xff]
  %v2648 = vld [vmem:[%s2071 + $0xc0] sm:$0xff]
  %v2649 = vld [vmem:[%s2071 + $0xd0] sm:$0xff]
  %v2650 = vld [vmem:[%s2071 + $0xe0] sm:$0xff]
  %v2651 = vld [vmem:[%s2071 + $0xf0] sm:$0xff]
  %v2652 = vld [vmem:[%s2071 + $0x100] sm:$0xff]
  %v2653 = vld [vmem:[%s2071 + $0x110] sm:$0xff]
  %s2654 = scalar_lea.vmem %s1, 1536
  %v2655 = vld [vmem:[%s2654] sm:$0xff]
  %v2656 = vld [vmem:[%s2654 + $0x8] sm:$0xff]
  %v2657 = vld [vmem:[%s2654 + $0x10] sm:$0xff]
  %v2658 = vld [vmem:[%s2654 + $0x18] sm:$0xff]
  %v2659 = vld [vmem:[%s2654 + $0x20] sm:$0xff]
  %v2660 = vld [vmem:[%s2654 + $0x28] sm:$0xff]
  %v2661 = vld [vmem:[%s2654 + $0x30] sm:$0xff]
  %v2662 = vld [vmem:[%s2654 + $0x38] sm:$0xff]
  %v2663 = vld [vmem:[%s2654 + $0x40] sm:$0xff]
  %v2664 = vld [vmem:[%s2654 + $0x48] sm:$0xff]
  %v2665 = vld [vmem:[%s2654 + $0x50] sm:$0xff]
  %v2666 = vld [vmem:[%s2654 + $0x58] sm:$0xff]
  %v2667 = vld [vmem:[%s2654 + $0x60] sm:$0xff]
  %v2668 = vld [vmem:[%s2654 + $0x68] sm:$0xff]
  %v2669 = vld [vmem:[%s2654 + $0x70] sm:$0xff]
  %v2670 = vld [vmem:[%s2654 + $0x78] sm:$0xff]
  %2671 = vmatprep.subr.mxu0 0.0
  %2672 = vmatpush1.msra.mxu0 %v2655
  %2673 = vmatprep.subr.mxu0 0.0
  %2674 = vmatpush1.msra.mxu0 %v2656
  %2675 = vmatprep.subr.mxu0 0.0
  %2676 = vmatpush1.msra.mxu0 %v2657
  %2677 = vmatprep.subr.mxu0 0.0
  %2678 = vmatpush1.msra.mxu0 %v2658
  %2679 = vmatprep.subr.mxu0 0.0
  %2680 = vmatpush1.msra.mxu0 %v2659
  %2681 = vmatprep.subr.mxu0 0.0
  %2682 = vmatpush1.msra.mxu0 %v2660
  %2683 = vmatprep.subr.mxu0 0.0
  %2684 = vmatpush1.msra.mxu0 %v2661
  %2685 = vmatprep.subr.mxu0 0.0
  %2686 = vmatpush1.msra.mxu0 %v2662
  %2687 = vmatprep.subr.mxu0 0.0
  %2688 = vmatpush1.msra.mxu0 %v2663
  %2689 = vmatprep.subr.mxu0 0.0
  %2690 = vmatpush1.msra.mxu0 %v2664
  %2691 = vmatprep.subr.mxu0 0.0
  %2692 = vmatpush1.msra.mxu0 %v2665
  %2693 = vmatprep.subr.mxu0 0.0
  %2694 = vmatpush1.msra.mxu0 %v2666
  %2695 = vmatprep.subr.mxu0 0.0
  %2696 = vmatpush1.msra.mxu0 %v2667
  %2697 = vmatprep.subr.mxu0 0.0
  %2698 = vmatpush1.msra.mxu0 %v2668
  %2699 = vmatprep.subr.mxu0 0.0
  %2700 = vmatpush1.msra.mxu0 %v2669
  %2701 = vmatprep.subr.mxu0 0.0
  %2702 = vmatpush1.msra.mxu0 %v2670
  %2703 = vmatprep.subr.mxu0 0.0
  %2704 = vmatpush1.msra.mxu0 0.0
  %2705 = vmatprep.subr.mxu0 0.0
  %2706 = vmatpush1.msra.mxu0 0.0
  %2707 = vmatprep.subr.mxu0 0.0
  %2708 = vmatpush1.msra.mxu0 0.0
  %2709 = vmatprep.subr.mxu0 0.0
  %2710 = vmatpush1.msra.mxu0 0.0
  %2711 = vmatprep.subr.mxu0 0.0
  %2712 = vmatpush1.msra.mxu0 0.0
  %2713 = vmatprep.subr.mxu0 0.0
  %2714 = vmatpush1.msra.mxu0 0.0
  %2715 = vmatprep.subr.mxu0 0.0
  %2716 = vmatpush1.msra.mxu0 0.0
  %2717 = vmatprep.subr.mxu0 0.0
  %2718 = vmatpush1.msra.mxu0 0.0
  %2719 = vmatprep.subr.mxu0 0.0
  %2720 = vmatpush1.msra.mxu0 0.0
  %2721 = vmatprep.subr.mxu0 0.0
  %2722 = vmatpush1.msra.mxu0 0.0
  %2723 = vmatprep.subr.mxu0 0.0
  %2724 = vmatpush1.msra.mxu0 0.0
  %2725 = vmatprep.subr.mxu0 0.0
  %2726 = vmatpush1.msra.mxu0 0.0
  %2727 = vmatprep.subr.mxu0 0.0
  %2728 = vmatpush1.msra.mxu0 0.0
  %2729 = vmatprep.subr.mxu0 0.0
  %2730 = vmatpush1.msra.mxu0 0.0
  %2731 = vmatprep.subr.mxu0 0.0
  %2732 = vmatpush1.msra.mxu0 0.0
  %2733 = vmatprep.subr.mxu0 0.0
  %2734 = vmatpush1.msra.mxu0 0.0
  %2735 = vmatprep.mubr.f32.mxu0 0.0
  %2736 = vmatmul.mubr.f32.gmra.mrb[0].mxu0 %v2638
  %v2737 = vpop.f32.mrb[0].mxu0
  %v2738 = vadd.f32 0.0, %v2737
  %v2739 = vpop.f32.mrb[0].mxu0
  %2740 = vmatprep.mubr.f32.mxu0 0.0
  %2741 = vmatmul.mubr.f32.gmra.mrb[0].mxu0 %v2639
  %v2742 = vpop.f32.mrb[0].mxu0
  %v2743 = vadd.f32 0.0, %v2742
  %v2744 = vpop.f32.mrb[0].mxu0
  %2745 = vmatprep.mubr.f32.mxu0 0.0
  %2746 = vmatmul.mubr.f32.gmra.mrb[0].mxu0 %v2640
  %v2747 = vpop.f32.mrb[0].mxu0
  %v2748 = vadd.f32 0.0, %v2747
  %v2749 = vpop.f32.mrb[0].mxu0
  %2750 = vmatprep.mubr.f32.mxu0 0.0
  %2751 = vmatmul.mubr.f32.gmra.mrb[0].mxu0 %v2641
  %v2752 = vpop.f32.mrb[0].mxu0
  %v2753 = vadd.f32 0.0, %v2752
  %v2754 = vpop.f32.mrb[0].mxu0
  %2755 = vmatprep.mubr.f32.mxu0 0.0
  %2756 = vmatmul.mubr.f32.gmra.mrb[0].mxu0 %v2642
  %v2757 = vpop.f32.mrb[0].mxu0
  %v2758 = vadd.f32 0.0, %v2757
  %v2759 = vpop.f32.mrb[0].mxu0
  %2760 = vmatprep.mubr.f32.mxu0 0.0
  %2761 = vmatmul.mubr.f32.gmra.mrb[0].mxu0 %v2643
  %v2762 = vpop.f32.mrb[0].mxu0
  %v2763 = vadd.f32 0.0, %v2762
  %v2764 = vpop.f32.mrb[0].mxu0
  %2765 = vmatprep.mubr.f32.mxu0 0.0
  %2766 = vmatmul.mubr.f32.gmra.mrb[0].mxu0 %v2644
  %v2767 = vpop.f32.mrb[0].mxu0
  %v2768 = vadd.f32 0.0, %v2767
  %v2769 = vpop.f32.mrb[0].mxu0
  %2770 = vmatprep.mubr.f32.mxu0 0.0
  %2771 = vmatmul.mubr.f32.gmra.mrb[0].mxu0 %v2645
  %v2772 = vpop.f32.mrb[0].mxu0
  %v2773 = vadd.f32 0.0, %v2772
  %v2774 = vpop.f32.mrb[0].mxu0
  %2775 = vmatprep.mubr.f32.mxu0 0.0
  %2776 = vmatmul.mubr.f32.gmra.mrb[0].mxu0 %v2646
  %v2777 = vpop.f32.mrb[0].mxu0
  %v2778 = vadd.f32 0.0, %v2777
  %v2779 = vpop.f32.mrb[0].mxu0
  %2780 = vmatprep.mubr.f32.mxu0 0.0
  %2781 = vmatmul.mubr.f32.gmra.mrb[0].mxu0 %v2647
  %v2782 = vpop.f32.mrb[0].mxu0
  %v2783 = vadd.f32 0.0, %v2782
  %v2784 = vpop.f32.mrb[0].mxu0
  %2785 = vmatprep.mubr.f32.mxu0 0.0
  %2786 = vmatmul.mubr.f32.gmra.mrb[0].mxu0 %v2648
  %v2787 = vpop.f32.mrb[0].mxu0
  %v2788 = vadd.f32 0.0, %v2787
  %v2789 = vpop.f32.mrb[0].mxu0
  %2790 = vmatprep.mubr.f32.mxu0 0.0
  %2791 = vmatmul.mubr.f32.gmra.mrb[0].mxu0 %v2649
  %v2792 = vpop.f32.mrb[0].mxu0
  %v2793 = vadd.f32 0.0, %v2792
  %v2794 = vpop.f32.mrb[0].mxu0
  %2795 = vmatprep.mubr.f32.mxu0 0.0
  %2796 = vmatmul.mubr.f32.gmra.mrb[0].mxu0 %v2650
  %v2797 = vpop.f32.mrb[0].mxu0
  %v2798 = vadd.f32 0.0, %v2797
  %v2799 = vpop.f32.mrb[0].mxu0
  %2800 = vmatprep.mubr.f32.mxu0 0.0
  %2801 = vmatmul.mubr.f32.gmra.mrb[0].mxu0 %v2651
  %v2802 = vpop.f32.mrb[0].mxu0
  %v2803 = vadd.f32 0.0, %v2802
  %v2804 = vpop.f32.mrb[0].mxu0
  %2805 = vmatprep.mubr.f32.mxu0 0.0
  %2806 = vmatmul.mubr.f32.gmra.mrb[0].mxu0 %v2652
  %v2807 = vpop.f32.mrb[0].mxu0
  %v2808 = vadd.f32 0.0, %v2807
  %v2809 = vpop.f32.mrb[0].mxu0
  %2810 = vmatprep.mubr.f32.mxu0 0.0
  %2811 = vmatmul.mubr.f32.gmra.mrb[0].mxu0 %v2653
  %v2812 = vpop.f32.mrb[0].mxu0
  %v2813 = vadd.f32 0.0, %v2812
  %v2814 = vpop.f32.mrb[0].mxu0
  %2815 = vdwg.mxu0
  %v2816 = vadd.f32 %v2622, %v2738
  %v2817 = vadd.f32 %v2623, %v2743
  %v2818 = vadd.f32 %v2624, %v2748
  %v2819 = vadd.f32 %v2625, %v2753
  %v2820 = vadd.f32 %v2626, %v2758
  %v2821 = vadd.f32 %v2627, %v2763
  %v2822 = vadd.f32 %v2628, %v2768
  %v2823 = vadd.f32 %v2629, %v2773
  %v2824 = vadd.f32 %v2630, %v2778
  %v2825 = vadd.f32 %v2631, %v2783
  %v2826 = vadd.f32 %v2632, %v2788
  %v2827 = vadd.f32 %v2633, %v2793
  %v2828 = vadd.f32 %v2634, %v2798
  %v2829 = vadd.f32 %v2635, %v2803
  %v2830 = vadd.f32 %v2636, %v2808
  %v2831 = vadd.f32 %v2637, %v2813
  %v2832 = vld [vmem:[%s2071 + $0x1] sm:$0xff]
  %v2833 = vld [vmem:[%s2071 + $0x11] sm:$0xff]
  %v2834 = vld [vmem:[%s2071 + $0x21] sm:$0xff]
  %v2835 = vld [vmem:[%s2071 + $0x31] sm:$0xff]
  %v2836 = vld [vmem:[%s2071 + $0x41] sm:$0xff]
  %v2837 = vld [vmem:[%s2071 + $0x51] sm:$0xff]
  %v2838 = vld [vmem:[%s2071 + $0x61] sm:$0xff]
  %v2839 = vld [vmem:[%s2071 + $0x71] sm:$0xff]
  %v2840 = vld [vmem:[%s2071 + $0xa1] sm:$0xff]
  %v2841 = vld [vmem:[%s2071 + $0xb1] sm:$0xff]
  %v2842 = vld [vmem:[%s2071 + $0xc1] sm:$0xff]
  %v2843 = vld [vmem:[%s2071 + $0xd1] sm:$0xff]
  %v2844 = vld [vmem:[%s2071 + $0xe1] sm:$0xff]
  %v2845 = vld [vmem:[%s2071 + $0xf1] sm:$0xff]
  %v2846 = vld [vmem:[%s2071 + $0x101] sm:$0xff]
  %v2847 = vld [vmem:[%s2071 + $0x111] sm:$0xff]
  %s2848 = scalar_lea.vmem %s1, 1664
  %v2849 = vld [vmem:[%s2848] sm:$0xff]
  %v2850 = vld [vmem:[%s2848 + $0x8] sm:$0xff]
  %v2851 = vld [vmem:[%s2848 + $0x10] sm:$0xff]
  %v2852 = vld [vmem:[%s2848 + $0x18] sm:$0xff]
  %v2853 = vld [vmem:[%s2848 + $0x20] sm:$0xff]
  %v2854 = vld [vmem:[%s2848 + $0x28] sm:$0xff]
  %v2855 = vld [vmem:[%s2848 + $0x30] sm:$0xff]
  %v2856 = vld [vmem:[%s2848 + $0x38] sm:$0xff]
  %v2857 = vld [vmem:[%s2848 + $0x40] sm:$0xff]
  %v2858 = vld [vmem:[%s2848 + $0x48] sm:$0xff]
  %v2859 = vld [vmem:[%s2848 + $0x50] sm:$0xff]
  %v2860 = vld [vmem:[%s2848 + $0x58] sm:$0xff]
  %v2861 = vld [vmem:[%s2848 + $0x60] sm:$0xff]
  %v2862 = vld [vmem:[%s2848 + $0x68] sm:$0xff]
  %v2863 = vld [vmem:[%s2848 + $0x70] sm:$0xff]
  %v2864 = vld [vmem:[%s2848 + $0x78] sm:$0xff]
  %2865 = vmatprep.subr.mxu0 0.0
  %2866 = vmatpush1.msra.mxu0 %v2849
  %2867 = vmatprep.subr.mxu0 0.0
  %2868 = vmatpush1.msra.mxu0 %v2850
  %2869 = vmatprep.subr.mxu0 0.0
  %2870 = vmatpush1.msra.mxu0 %v2851
  %2871 = vmatprep.subr.mxu0 0.0
  %2872 = vmatpush1.msra.mxu0 %v2852
  %2873 = vmatprep.subr.mxu0 0.0
  %2874 = vmatpush1.msra.mxu0 %v2853
  %2875 = vmatprep.subr.mxu0 0.0
  %2876 = vmatpush1.msra.mxu0 %v2854
  %2877 = vmatprep.subr.mxu0 0.0
  %2878 = vmatpush1.msra.mxu0 %v2855
  %2879 = vmatprep.subr.mxu0 0.0
  %2880 = vmatpush1.msra.mxu0 %v2856
  %2881 = vmatprep.subr.mxu0 0.0
  %2882 = vmatpush1.msra.mxu0 %v2857
  %2883 = vmatprep.subr.mxu0 0.0
  %2884 = vmatpush1.msra.mxu0 %v2858
  %2885 = vmatprep.subr.mxu0 0.0
  %2886 = vmatpush1.msra.mxu0 %v2859
  %2887 = vmatprep.subr.mxu0 0.0
  %2888 = vmatpush1.msra.mxu0 %v2860
  %2889 = vmatprep.subr.mxu0 0.0
  %2890 = vmatpush1.msra.mxu0 %v2861
  %2891 = vmatprep.subr.mxu0 0.0
  %2892 = vmatpush1.msra.mxu0 %v2862
  %2893 = vmatprep.subr.mxu0 0.0
  %2894 = vmatpush1.msra.mxu0 %v2863
  %2895 = vmatprep.subr.mxu0 0.0
  %2896 = vmatpush1.msra.mxu0 %v2864
  %2897 = vmatprep.subr.mxu0 0.0
  %2898 = vmatpush1.msra.mxu0 0.0
  %2899 = vmatprep.subr.mxu0 0.0
  %2900 = vmatpush1.msra.mxu0 0.0
  %2901 = vmatprep.subr.mxu0 0.0
  %2902 = vmatpush1.msra.mxu0 0.0
  %2903 = vmatprep.subr.mxu0 0.0
  %2904 = vmatpush1.msra.mxu0 0.0
  %2905 = vmatprep.subr.mxu0 0.0
  %2906 = vmatpush1.msra.mxu0 0.0
  %2907 = vmatprep.subr.mxu0 0.0
  %2908 = vmatpush1.msra.mxu0 0.0
  %2909 = vmatprep.subr.mxu0 0.0
  %2910 = vmatpush1.msra.mxu0 0.0
  %2911 = vmatprep.subr.mxu0 0.0
  %2912 = vmatpush1.msra.mxu0 0.0
  %2913 = vmatprep.subr.mxu0 0.0
  %2914 = vmatpush1.msra.mxu0 0.0
  %2915 = vmatprep.subr.mxu0 0.0
  %2916 = vmatpush1.msra.mxu0 0.0
  %2917 = vmatprep.subr.mxu0 0.0
  %2918 = vmatpush1.msra.mxu0 0.0
  %2919 = vmatprep.subr.mxu0 0.0
  %2920 = vmatpush1.msra.mxu0 0.0
  %2921 = vmatprep.subr.mxu0 0.0
  %2922 = vmatpush1.msra.mxu0 0.0
  %2923 = vmatprep.subr.mxu0 0.0
  %2924 = vmatpush1.msra.mxu0 0.0
  %2925 = vmatprep.subr.mxu0 0.0
  %2926 = vmatpush1.msra.mxu0 0.0
  %2927 = vmatprep.subr.mxu0 0.0
  %2928 = vmatpush1.msra.mxu0 0.0
  %2929 = vmatprep.mubr.f32.mxu0 0.0
  %2930 = vmatmul.mubr.f32.gmra.mrb[0].mxu0 %v2832
  %v2931 = vpop.f32.mrb[0].mxu0
  %v2932 = vadd.f32 0.0, %v2931
  %v2933 = vpop.f32.mrb[0].mxu0
  %2934 = vmatprep.mubr.f32.mxu0 0.0
  %2935 = vmatmul.mubr.f32.gmra.mrb[0].mxu0 %v2833
  %v2936 = vpop.f32.mrb[0].mxu0
  %v2937 = vadd.f32 0.0, %v2936
  %v2938 = vpop.f32.mrb[0].mxu0
  %2939 = vmatprep.mubr.f32.mxu0 0.0
  %2940 = vmatmul.mubr.f32.gmra.mrb[0].mxu0 %v2834
  %v2941 = vpop.f32.mrb[0].mxu0
  %v2942 = vadd.f32 0.0, %v2941
  %v2943 = vpop.f32.mrb[0].mxu0
  %2944 = vmatprep.mubr.f32.mxu0 0.0
  %2945 = vmatmul.mubr.f32.gmra.mrb[0].mxu0 %v2835
  %v2946 = vpop.f32.mrb[0].mxu0
  %v2947 = vadd.f32 0.0, %v2946
  %v2948 = vpop.f32.mrb[0].mxu0
  %2949 = vmatprep.mubr.f32.mxu0 0.0
  %2950 = vmatmul.mubr.f32.gmra.mrb[0].mxu0 %v2836
  %v2951 = vpop.f32.mrb[0].mxu0
  %v2952 = vadd.f32 0.0, %v2951
  %v2953 = vpop.f32.mrb[0].mxu0
  %2954 = vmatprep.mubr.f32.mxu0 0.0
  %2955 = vmatmul.mubr.f32.gmra.mrb[0].mxu0 %v2837
  %v2956 = vpop.f32.mrb[0].mxu0
  %v2957 = vadd.f32 0.0, %v2956
  %v2958 = vpop.f32.mrb[0].mxu0
  %2959 = vmatprep.mubr.f32.mxu0 0.0
  %2960 = vmatmul.mubr.f32.gmra.mrb[0].mxu0 %v2838
  %v2961 = vpop.f32.mrb[0].mxu0
  %v2962 = vadd.f32 0.0, %v2961
  %v2963 = vpop.f32.mrb[0].mxu0
  %2964 = vmatprep.mubr.f32.mxu0 0.0
  %2965 = vmatmul.mubr.f32.gmra.mrb[0].mxu0 %v2839
  %v2966 = vpop.f32.mrb[0].mxu0
  %v2967 = vadd.f32 0.0, %v2966
  %v2968 = vpop.f32.mrb[0].mxu0
  %2969 = vmatprep.mubr.f32.mxu0 0.0
  %2970 = vmatmul.mubr.f32.gmra.mrb[0].mxu0 %v2840
  %v2971 = vpop.f32.mrb[0].mxu0
  %v2972 = vadd.f32 0.0, %v2971
  %v2973 = vpop.f32.mrb[0].mxu0
  %2974 = vmatprep.mubr.f32.mxu0 0.0
  %2975 = vmatmul.mubr.f32.gmra.mrb[0].mxu0 %v2841
  %v2976 = vpop.f32.mrb[0].mxu0
  %v2977 = vadd.f32 0.0, %v2976
  %v2978 = vpop.f32.mrb[0].mxu0
  %2979 = vmatprep.mubr.f32.mxu0 0.0
  %2980 = vmatmul.mubr.f32.gmra.mrb[0].mxu0 %v2842
  %v2981 = vpop.f32.mrb[0].mxu0
  %v2982 = vadd.f32 0.0, %v2981
  %v2983 = vpop.f32.mrb[0].mxu0
  %2984 = vmatprep.mubr.f32.mxu0 0.0
  %2985 = vmatmul.mubr.f32.gmra.mrb[0].mxu0 %v2843
  %v2986 = vpop.f32.mrb[0].mxu0
  %v2987 = vadd.f32 0.0, %v2986
  %v2988 = vpop.f32.mrb[0].mxu0
  %2989 = vmatprep.mubr.f32.mxu0 0.0
  %2990 = vmatmul.mubr.f32.gmra.mrb[0].mxu0 %v2844
  %v2991 = vpop.f32.mrb[0].mxu0
  %v2992 = vadd.f32 0.0, %v2991
  %v2993 = vpop.f32.mrb[0].mxu0
  %2994 = vmatprep.mubr.f32.mxu0 0.0
  %2995 = vmatmul.mubr.f32.gmra.mrb[0].mxu0 %v2845
  %v2996 = vpop.f32.mrb[0].mxu0
  %v2997 = vadd.f32 0.0, %v2996
  %v2998 = vpop.f32.mrb[0].mxu0
  %2999 = vmatprep.mubr.f32.mxu0 0.0
  %3000 = vmatmul.mubr.f32.gmra.mrb[0].mxu0 %v2846
  %v3001 = vpop.f32.mrb[0].mxu0
  %v3002 = vadd.f32 0.0, %v3001
  %v3003 = vpop.f32.mrb[0].mxu0
  %3004 = vmatprep.mubr.f32.mxu0 0.0
  %3005 = vmatmul.mubr.f32.gmra.mrb[0].mxu0 %v2847
  %v3006 = vpop.f32.mrb[0].mxu0
  %v3007 = vadd.f32 0.0, %v3006
  %v3008 = vpop.f32.mrb[0].mxu0
  %3009 = vdwg.mxu0
  %v3010 = vadd.f32 %v2816, %v2932
  %v3011 = vadd.f32 %v2817, %v2937
  %v3012 = vadd.f32 %v2818, %v2942
  %v3013 = vadd.f32 %v2819, %v2947
  %v3014 = vadd.f32 %v2820, %v2952
  %v3015 = vadd.f32 %v2821, %v2957
  %v3016 = vadd.f32 %v2822, %v2962
  %v3017 = vadd.f32 %v2823, %v2967
  %v3018 = vadd.f32 %v2824, %v2972
  %v3019 = vadd.f32 %v2825, %v2977
  %v3020 = vadd.f32 %v2826, %v2982
  %v3021 = vadd.f32 %v2827, %v2987
  %v3022 = vadd.f32 %v2828, %v2992
  %v3023 = vadd.f32 %v2829, %v2997
  %v3024 = vadd.f32 %v2830, %v3002
  %v3025 = vadd.f32 %v2831, %v3007
  %v3026 = vld [vmem:[%s2071 + $0x2] sm:$0xff]
  %v3027 = vld [vmem:[%s2071 + $0x12] sm:$0xff]
  %v3028 = vld [vmem:[%s2071 + $0x22] sm:$0xff]
  %v3029 = vld [vmem:[%s2071 + $0x32] sm:$0xff]
  %v3030 = vld [vmem:[%s2071 + $0x42] sm:$0xff]
  %v3031 = vld [vmem:[%s2071 + $0x52] sm:$0xff]
  %v3032 = vld [vmem:[%s2071 + $0x62] sm:$0xff]
  %v3033 = vld [vmem:[%s2071 + $0x72] sm:$0xff]
  %v3034 = vld [vmem:[%s2071 + $0xa2] sm:$0xff]
  %v3035 = vld [vmem:[%s2071 + $0xb2] sm:$0xff]
  %v3036 = vld [vmem:[%s2071 + $0xc2] sm:$0xff]
  %v3037 = vld [vmem:[%s2071 + $0xd2] sm:$0xff]
  %v3038 = vld [vmem:[%s2071 + $0xe2] sm:$0xff]
  %v3039 = vld [vmem:[%s2071 + $0xf2] sm:$0xff]
  %v3040 = vld [vmem:[%s2071 + $0x102] sm:$0xff]
  %v3041 = vld [vmem:[%s2071 + $0x112] sm:$0xff]
  %s3042 = scalar_lea.vmem %s1, 1792
  %v3043 = vld [vmem:[%s3042] sm:$0xff]
  %v3044 = vld [vmem:[%s3042 + $0x8] sm:$0xff]
  %v3045 = vld [vmem:[%s3042 + $0x10] sm:$0xff]
  %v3046 = vld [vmem:[%s3042 + $0x18] sm:$0xff]
  %v3047 = vld [vmem:[%s3042 + $0x20] sm:$0xff]
  %v3048 = vld [vmem:[%s3042 + $0x28] sm:$0xff]
  %v3049 = vld [vmem:[%s3042 + $0x30] sm:$0xff]
  %v3050 = vld [vmem:[%s3042 + $0x38] sm:$0xff]
  %v3051 = vld [vmem:[%s3042 + $0x40] sm:$0xff]
  %v3052 = vld [vmem:[%s3042 + $0x48] sm:$0xff]
  %v3053 = vld [vmem:[%s3042 + $0x50] sm:$0xff]
  %v3054 = vld [vmem:[%s3042 + $0x58] sm:$0xff]
  %v3055 = vld [vmem:[%s3042 + $0x60] sm:$0xff]
  %v3056 = vld [vmem:[%s3042 + $0x68] sm:$0xff]
  %v3057 = vld [vmem:[%s3042 + $0x70] sm:$0xff]
  %v3058 = vld [vmem:[%s3042 + $0x78] sm:$0xff]
  %3059 = vmatprep.subr.mxu0 0.0
  %3060 = vmatpush1.msra.mxu0 %v3043
  %3061 = vmatprep.subr.mxu0 0.0
  %3062 = vmatpush1.msra.mxu0 %v3044
  %3063 = vmatprep.subr.mxu0 0.0
  %3064 = vmatpush1.msra.mxu0 %v3045
  %3065 = vmatprep.subr.mxu0 0.0
  %3066 = vmatpush1.msra.mxu0 %v3046
  %3067 = vmatprep.subr.mxu0 0.0
  %3068 = vmatpush1.msra.mxu0 %v3047
  %3069 = vmatprep.subr.mxu0 0.0
  %3070 = vmatpush1.msra.mxu0 %v3048
  %3071 = vmatprep.subr.mxu0 0.0
  %3072 = vmatpush1.msra.mxu0 %v3049
  %3073 = vmatprep.subr.mxu0 0.0
  %3074 = vmatpush1.msra.mxu0 %v3050
  %3075 = vmatprep.subr.mxu0 0.0
  %3076 = vmatpush1.msra.mxu0 %v3051
  %3077 = vmatprep.subr.mxu0 0.0
  %3078 = vmatpush1.msra.mxu0 %v3052
  %3079 = vmatprep.subr.mxu0 0.0
  %3080 = vmatpush1.msra.mxu0 %v3053
  %3081 = vmatprep.subr.mxu0 0.0
  %3082 = vmatpush1.msra.mxu0 %v3054
  %3083 = vmatprep.subr.mxu0 0.0
  %3084 = vmatpush1.msra.mxu0 %v3055
  %3085 = vmatprep.subr.mxu0 0.0
  %3086 = vmatpush1.msra.mxu0 %v3056
  %3087 = vmatprep.subr.mxu0 0.0
  %3088 = vmatpush1.msra.mxu0 %v3057
  %3089 = vmatprep.subr.mxu0 0.0
  %3090 = vmatpush1.msra.mxu0 %v3058
  %3091 = vmatprep.subr.mxu0 0.0
  %3092 = vmatpush1.msra.mxu0 0.0
  %3093 = vmatprep.subr.mxu0 0.0
  %3094 = vmatpush1.msra.mxu0 0.0
  %3095 = vmatprep.subr.mxu0 0.0
  %3096 = vmatpush1.msra.mxu0 0.0
  %3097 = vmatprep.subr.mxu0 0.0
  %3098 = vmatpush1.msra.mxu0 0.0
  %3099 = vmatprep.subr.mxu0 0.0
  %3100 = vmatpush1.msra.mxu0 0.0
  %3101 = vmatprep.subr.mxu0 0.0
  %3102 = vmatpush1.msra.mxu0 0.0
  %3103 = vmatprep.subr.mxu0 0.0
  %3104 = vmatpush1.msra.mxu0 0.0
  %3105 = vmatprep.subr.mxu0 0.0
  %3106 = vmatpush1.msra.mxu0 0.0
  %3107 = vmatprep.subr.mxu0 0.0
  %3108 = vmatpush1.msra.mxu0 0.0
  %3109 = vmatprep.subr.mxu0 0.0
  %3110 = vmatpush1.msra.mxu0 0.0
  %3111 = vmatprep.subr.mxu0 0.0
  %3112 = vmatpush1.msra.mxu0 0.0
  %3113 = vmatprep.subr.mxu0 0.0
  %3114 = vmatpush1.msra.mxu0 0.0
  %3115 = vmatprep.subr.mxu0 0.0
  %3116 = vmatpush1.msra.mxu0 0.0
  %3117 = vmatprep.subr.mxu0 0.0
  %3118 = vmatpush1.msra.mxu0 0.0
  %3119 = vmatprep.subr.mxu0 0.0
  %3120 = vmatpush1.msra.mxu0 0.0
  %3121 = vmatprep.subr.mxu0 0.0
  %3122 = vmatpush1.msra.mxu0 0.0
  %3123 = vmatprep.mubr.f32.mxu0 0.0
  %3124 = vmatmul.mubr.f32.gmra.mrb[0].mxu0 %v3026
  %v3125 = vpop.f32.mrb[0].mxu0
  %v3126 = vadd.f32 0.0, %v3125
  %v3127 = vpop.f32.mrb[0].mxu0
  %3128 = vmatprep.mubr.f32.mxu0 0.0
  %3129 = vmatmul.mubr.f32.gmra.mrb[0].mxu0 %v3027
  %v3130 = vpop.f32.mrb[0].mxu0
  %v3131 = vadd.f32 0.0, %v3130
  %v3132 = vpop.f32.mrb[0].mxu0
  %3133 = vmatprep.mubr.f32.mxu0 0.0
  %3134 = vmatmul.mubr.f32.gmra.mrb[0].mxu0 %v3028
  %v3135 = vpop.f32.mrb[0].mxu0
  %v3136 = vadd.f32 0.0, %v3135
  %v3137 = vpop.f32.mrb[0].mxu0
  %3138 = vmatprep.mubr.f32.mxu0 0.0
  %3139 = vmatmul.mubr.f32.gmra.mrb[0].mxu0 %v3029
  %v3140 = vpop.f32.mrb[0].mxu0
  %v3141 = vadd.f32 0.0, %v3140
  %v3142 = vpop.f32.mrb[0].mxu0
  %3143 = vmatprep.mubr.f32.mxu0 0.0
  %3144 = vmatmul.mubr.f32.gmra.mrb[0].mxu0 %v3030
  %v3145 = vpop.f32.mrb[0].mxu0
  %v3146 = vadd.f32 0.0, %v3145
  %v3147 = vpop.f32.mrb[0].mxu0
  %3148 = vmatprep.mubr.f32.mxu0 0.0
  %3149 = vmatmul.mubr.f32.gmra.mrb[0].mxu0 %v3031
  %v3150 = vpop.f32.mrb[0].mxu0
  %v3151 = vadd.f32 0.0, %v3150
  %v3152 = vpop.f32.mrb[0].mxu0
  %3153 = vmatprep.mubr.f32.mxu0 0.0
  %3154 = vmatmul.mubr.f32.gmra.mrb[0].mxu0 %v3032
  %v3155 = vpop.f32.mrb[0].mxu0
  %v3156 = vadd.f32 0.0, %v3155
  %v3157 = vpop.f32.mrb[0].mxu0
  %3158 = vmatprep.mubr.f32.mxu0 0.0
  %3159 = vmatmul.mubr.f32.gmra.mrb[0].mxu0 %v3033
  %v3160 = vpop.f32.mrb[0].mxu0
  %v3161 = vadd.f32 0.0, %v3160
  %v3162 = vpop.f32.mrb[0].mxu0
  %3163 = vmatprep.mubr.f32.mxu0 0.0
  %3164 = vmatmul.mubr.f32.gmra.mrb[0].mxu0 %v3034
  %v3165 = vpop.f32.mrb[0].mxu0
  %v3166 = vadd.f32 0.0, %v3165
  %v3167 = vpop.f32.mrb[0].mxu0
  %3168 = vmatprep.mubr.f32.mxu0 0.0
  %3169 = vmatmul.mubr.f32.gmra.mrb[0].mxu0 %v3035
  %v3170 = vpop.f32.mrb[0].mxu0
  %v3171 = vadd.f32 0.0, %v3170
  %v3172 = vpop.f32.mrb[0].mxu0
  %3173 = vmatprep.mubr.f32.mxu0 0.0
  %3174 = vmatmul.mubr.f32.gmra.mrb[0].mxu0 %v3036
  %v3175 = vpop.f32.mrb[0].mxu0
  %v3176 = vadd.f32 0.0, %v3175
  %v3177 = vpop.f32.mrb[0].mxu0
  %3178 = vmatprep.mubr.f32.mxu0 0.0
  %3179 = vmatmul.mubr.f32.gmra.mrb[0].mxu0 %v3037
  %v3180 = vpop.f32.mrb[0].mxu0
  %v3181 = vadd.f32 0.0, %v3180
  %v3182 = vpop.f32.mrb[0].mxu0
  %3183 = vmatprep.mubr.f32.mxu0 0.0
  %3184 = vmatmul.mubr.f32.gmra.mrb[0].mxu0 %v3038
  %v3185 = vpop.f32.mrb[0].mxu0
  %v3186 = vadd.f32 0.0, %v3185
  %v3187 = vpop.f32.mrb[0].mxu0
  %3188 = vmatprep.mubr.f32.mxu0 0.0
  %3189 = vmatmul.mubr.f32.gmra.mrb[0].mxu0 %v3039
  %v3190 = vpop.f32.mrb[0].mxu0
  %v3191 = vadd.f32 0.0, %v3190
  %v3192 = vpop.f32.mrb[0].mxu0
  %3193 = vmatprep.mubr.f32.mxu0 0.0
  %3194 = vmatmul.mubr.f32.gmra.mrb[0].mxu0 %v3040
  %v3195 = vpop.f32.mrb[0].mxu0
  %v3196 = vadd.f32 0.0, %v3195
  %v3197 = vpop.f32.mrb[0].mxu0
  %3198 = vmatprep.mubr.f32.mxu0 0.0
  %3199 = vmatmul.mubr.f32.gmra.mrb[0].mxu0 %v3041
  %v3200 = vpop.f32.mrb[0].mxu0
  %v3201 = vadd.f32 0.0, %v3200
  %v3202 = vpop.f32.mrb[0].mxu0
  %3203 = vdwg.mxu0
  %v3204 = vadd.f32 %v3010, %v3126
  %v3205 = vadd.f32 %v3011, %v3131
  %v3206 = vadd.f32 %v3012, %v3136
  %v3207 = vadd.f32 %v3013, %v3141
  %v3208 = vadd.f32 %v3014, %v3146
  %v3209 = vadd.f32 %v3015, %v3151
  %v3210 = vadd.f32 %v3016, %v3156
  %v3211 = vadd.f32 %v3017, %v3161
  %v3212 = vadd.f32 %v3018, %v3166
  %v3213 = vadd.f32 %v3019, %v3171
  %v3214 = vadd.f32 %v3020, %v3176
  %v3215 = vadd.f32 %v3021, %v3181
  %v3216 = vadd.f32 %v3022, %v3186
  %v3217 = vadd.f32 %v3023, %v3191
  %v3218 = vadd.f32 %v3024, %v3196
  %v3219 = vadd.f32 %v3025, %v3201
  %s3220 = scalar_lea.vmem [#allocation2], 32
  %v3221 = vld [vmem:[%s3220] sm:$0xff]
  %v3222 = vld [vmem:[%s3220 + $0x10] sm:$0xff]
  %v3223 = vld [vmem:[%s3220 + $0x20] sm:$0xff]
  %v3224 = vld [vmem:[%s3220 + $0x30] sm:$0xff]
  %v3225 = vld [vmem:[%s3220 + $0x40] sm:$0xff]
  %v3226 = vld [vmem:[%s3220 + $0x50] sm:$0xff]
  %v3227 = vld [vmem:[%s3220 + $0x60] sm:$0xff]
  %v3228 = vld [vmem:[%s3220 + $0x70] sm:$0xff]
  %v3229 = vld [vmem:[%s3220 + $0xa0] sm:$0xff]
  %v3230 = vld [vmem:[%s3220 + $0xb0] sm:$0xff]
  %v3231 = vld [vmem:[%s3220 + $0xc0] sm:$0xff]
  %v3232 = vld [vmem:[%s3220 + $0xd0] sm:$0xff]
  %v3233 = vld [vmem:[%s3220 + $0xe0] sm:$0xff]
  %v3234 = vld [vmem:[%s3220 + $0xf0] sm:$0xff]
  %v3235 = vld [vmem:[%s3220 + $0x100] sm:$0xff]
  %v3236 = vld [vmem:[%s3220 + $0x110] sm:$0xff]
  %s3237 = scalar_lea.vmem %s1, 1920
  %v3238 = vld [vmem:[%s3237] sm:$0xff]
  %v3239 = vld [vmem:[%s3237 + $0x8] sm:$0xff]
  %v3240 = vld [vmem:[%s3237 + $0x10] sm:$0xff]
  %v3241 = vld [vmem:[%s3237 + $0x18] sm:$0xff]
  %v3242 = vld [vmem:[%s3237 + $0x20] sm:$0xff]
  %v3243 = vld [vmem:[%s3237 + $0x28] sm:$0xff]
  %v3244 = vld [vmem:[%s3237 + $0x30] sm:$0xff]
  %v3245 = vld [vmem:[%s3237 + $0x38] sm:$0xff]
  %v3246 = vld [vmem:[%s3237 + $0x40] sm:$0xff]
  %v3247 = vld [vmem:[%s3237 + $0x48] sm:$0xff]
  %v3248 = vld [vmem:[%s3237 + $0x50] sm:$0xff]
  %v3249 = vld [vmem:[%s3237 + $0x58] sm:$0xff]
  %v3250 = vld [vmem:[%s3237 + $0x60] sm:$0xff]
  %v3251 = vld [vmem:[%s3237 + $0x68] sm:$0xff]
  %v3252 = vld [vmem:[%s3237 + $0x70] sm:$0xff]
  %v3253 = vld [vmem:[%s3237 + $0x78] sm:$0xff]
  %3254 = vmatprep.subr.mxu0 0.0
  %3255 = vmatpush1.msra.mxu0 %v3238
  %3256 = vmatprep.subr.mxu0 0.0
  %3257 = vmatpush1.msra.mxu0 %v3239
  %3258 = vmatprep.subr.mxu0 0.0
  %3259 = vmatpush1.msra.mxu0 %v3240
  %3260 = vmatprep.subr.mxu0 0.0
  %3261 = vmatpush1.msra.mxu0 %v3241
  %3262 = vmatprep.subr.mxu0 0.0
  %3263 = vmatpush1.msra.mxu0 %v3242
  %3264 = vmatprep.subr.mxu0 0.0
  %3265 = vmatpush1.msra.mxu0 %v3243
  %3266 = vmatprep.subr.mxu0 0.0
  %3267 = vmatpush1.msra.mxu0 %v3244
  %3268 = vmatprep.subr.mxu0 0.0
  %3269 = vmatpush1.msra.mxu0 %v3245
  %3270 = vmatprep.subr.mxu0 0.0
  %3271 = vmatpush1.msra.mxu0 %v3246
  %3272 = vmatprep.subr.mxu0 0.0
  %3273 = vmatpush1.msra.mxu0 %v3247
  %3274 = vmatprep.subr.mxu0 0.0
  %3275 = vmatpush1.msra.mxu0 %v3248
  %3276 = vmatprep.subr.mxu0 0.0
  %3277 = vmatpush1.msra.mxu0 %v3249
  %3278 = vmatprep.subr.mxu0 0.0
  %3279 = vmatpush1.msra.mxu0 %v3250
  %3280 = vmatprep.subr.mxu0 0.0
  %3281 = vmatpush1.msra.mxu0 %v3251
  %3282 = vmatprep.subr.mxu0 0.0
  %3283 = vmatpush1.msra.mxu0 %v3252
  %3284 = vmatprep.subr.mxu0 0.0
  %3285 = vmatpush1.msra.mxu0 %v3253
  %3286 = vmatprep.subr.mxu0 0.0
  %3287 = vmatpush1.msra.mxu0 0.0
  %3288 = vmatprep.subr.mxu0 0.0
  %3289 = vmatpush1.msra.mxu0 0.0
  %3290 = vmatprep.subr.mxu0 0.0
  %3291 = vmatpush1.msra.mxu0 0.0
  %3292 = vmatprep.subr.mxu0 0.0
  %3293 = vmatpush1.msra.mxu0 0.0
  %3294 = vmatprep.subr.mxu0 0.0
  %3295 = vmatpush1.msra.mxu0 0.0
  %3296 = vmatprep.subr.mxu0 0.0
  %3297 = vmatpush1.msra.mxu0 0.0
  %3298 = vmatprep.subr.mxu0 0.0
  %3299 = vmatpush1.msra.mxu0 0.0
  %3300 = vmatprep.subr.mxu0 0.0
  %3301 = vmatpush1.msra.mxu0 0.0
  %3302 = vmatprep.subr.mxu0 0.0
  %3303 = vmatpush1.msra.mxu0 0.0
  %3304 = vmatprep.subr.mxu0 0.0
  %3305 = vmatpush1.msra.mxu0 0.0
  %3306 = vmatprep.subr.mxu0 0.0
  %3307 = vmatpush1.msra.mxu0 0.0
  %3308 = vmatprep.subr.mxu0 0.0
  %3309 = vmatpush1.msra.mxu0 0.0
  %3310 = vmatprep.subr.mxu0 0.0
  %3311 = vmatpush1.msra.mxu0 0.0
  %3312 = vmatprep.subr.mxu0 0.0
  %3313 = vmatpush1.msra.mxu0 0.0
  %3314 = vmatprep.subr.mxu0 0.0
  %3315 = vmatpush1.msra.mxu0 0.0
  %3316 = vmatprep.subr.mxu0 0.0
  %3317 = vmatpush1.msra.mxu0 0.0
  %3318 = vmatprep.mubr.f32.mxu0 0.0
  %3319 = vmatmul.mubr.f32.gmra.mrb[0].mxu0 %v3221
  %v3320 = vpop.f32.mrb[0].mxu0
  %v3321 = vadd.f32 0.0, %v3320
  %v3322 = vpop.f32.mrb[0].mxu0
  %3323 = vmatprep.mubr.f32.mxu0 0.0
  %3324 = vmatmul.mubr.f32.gmra.mrb[0].mxu0 %v3222
  %v3325 = vpop.f32.mrb[0].mxu0
  %v3326 = vadd.f32 0.0, %v3325
  %v3327 = vpop.f32.mrb[0].mxu0
  %3328 = vmatprep.mubr.f32.mxu0 0.0
  %3329 = vmatmul.mubr.f32.gmra.mrb[0].mxu0 %v3223
  %v3330 = vpop.f32.mrb[0].mxu0
  %v3331 = vadd.f32 0.0, %v3330
  %v3332 = vpop.f32.mrb[0].mxu0
  %3333 = vmatprep.mubr.f32.mxu0 0.0
  %3334 = vmatmul.mubr.f32.gmra.mrb[0].mxu0 %v3224
  %v3335 = vpop.f32.mrb[0].mxu0
  %v3336 = vadd.f32 0.0, %v3335
  %v3337 = vpop.f32.mrb[0].mxu0
  %3338 = vmatprep.mubr.f32.mxu0 0.0
  %3339 = vmatmul.mubr.f32.gmra.mrb[0].mxu0 %v3225
  %v3340 = vpop.f32.mrb[0].mxu0
  %v3341 = vadd.f32 0.0, %v3340
  %v3342 = vpop.f32.mrb[0].mxu0
  %3343 = vmatprep.mubr.f32.mxu0 0.0
  %3344 = vmatmul.mubr.f32.gmra.mrb[0].mxu0 %v3226
  %v3345 = vpop.f32.mrb[0].mxu0
  %v3346 = vadd.f32 0.0, %v3345
  %v3347 = vpop.f32.mrb[0].mxu0
  %3348 = vmatprep.mubr.f32.mxu0 0.0
  %3349 = vmatmul.mubr.f32.gmra.mrb[0].mxu0 %v3227
  %v3350 = vpop.f32.mrb[0].mxu0
  %v3351 = vadd.f32 0.0, %v3350
  %v3352 = vpop.f32.mrb[0].mxu0
  %3353 = vmatprep.mubr.f32.mxu0 0.0
  %3354 = vmatmul.mubr.f32.gmra.mrb[0].mxu0 %v3228
  %v3355 = vpop.f32.mrb[0].mxu0
  %v3356 = vadd.f32 0.0, %v3355
  %v3357 = vpop.f32.mrb[0].mxu0
  %3358 = vmatprep.mubr.f32.mxu0 0.0
  %3359 = vmatmul.mubr.f32.gmra.mrb[0].mxu0 %v3229
  %v3360 = vpop.f32.mrb[0].mxu0
  %v3361 = vadd.f32 0.0, %v3360
  %v3362 = vpop.f32.mrb[0].mxu0
  %3363 = vmatprep.mubr.f32.mxu0 0.0
  %3364 = vmatmul.mubr.f32.gmra.mrb[0].mxu0 %v3230
  %v3365 = vpop.f32.mrb[0].mxu0
  %v3366 = vadd.f32 0.0, %v3365
  %v3367 = vpop.f32.mrb[0].mxu0
  %3368 = vmatprep.mubr.f32.mxu0 0.0
  %3369 = vmatmul.mubr.f32.gmra.mrb[0].mxu0 %v3231
  %v3370 = vpop.f32.mrb[0].mxu0
  %v3371 = vadd.f32 0.0, %v3370
  %v3372 = vpop.f32.mrb[0].mxu0
  %3373 = vmatprep.mubr.f32.mxu0 0.0
  %3374 = vmatmul.mubr.f32.gmra.mrb[0].mxu0 %v3232
  %v3375 = vpop.f32.mrb[0].mxu0
  %v3376 = vadd.f32 0.0, %v3375
  %v3377 = vpop.f32.mrb[0].mxu0
  %3378 = vmatprep.mubr.f32.mxu0 0.0
  %3379 = vmatmul.mubr.f32.gmra.mrb[0].mxu0 %v3233
  %v3380 = vpop.f32.mrb[0].mxu0
  %v3381 = vadd.f32 0.0, %v3380
  %v3382 = vpop.f32.mrb[0].mxu0
  %3383 = vmatprep.mubr.f32.mxu0 0.0
  %3384 = vmatmul.mubr.f32.gmra.mrb[0].mxu0 %v3234
  %v3385 = vpop.f32.mrb[0].mxu0
  %v3386 = vadd.f32 0.0, %v3385
  %v3387 = vpop.f32.mrb[0].mxu0
  %3388 = vmatprep.mubr.f32.mxu0 0.0
  %3389 = vmatmul.mubr.f32.gmra.mrb[0].mxu0 %v3235
  %v3390 = vpop.f32.mrb[0].mxu0
  %v3391 = vadd.f32 0.0, %v3390
  %v3392 = vpop.f32.mrb[0].mxu0
  %3393 = vmatprep.mubr.f32.mxu0 0.0
  %3394 = vmatmul.mubr.f32.gmra.mrb[0].mxu0 %v3236
  %v3395 = vpop.f32.mrb[0].mxu0
  %v3396 = vadd.f32 0.0, %v3395
  %v3397 = vpop.f32.mrb[0].mxu0
  %3398 = vdwg.mxu0
  %v3399 = vadd.f32 %v3204, %v3321
  %v3400 = vadd.f32 %v3205, %v3326
  %v3401 = vadd.f32 %v3206, %v3331
  %v3402 = vadd.f32 %v3207, %v3336
  %v3403 = vadd.f32 %v3208, %v3341
  %v3404 = vadd.f32 %v3209, %v3346
  %v3405 = vadd.f32 %v3210, %v3351
  %v3406 = vadd.f32 %v3211, %v3356
  %v3407 = vadd.f32 %v3212, %v3361
  %v3408 = vadd.f32 %v3213, %v3366
  %v3409 = vadd.f32 %v3214, %v3371
  %v3410 = vadd.f32 %v3215, %v3376
  %v3411 = vadd.f32 %v3216, %v3381
  %v3412 = vadd.f32 %v3217, %v3386
  %v3413 = vadd.f32 %v3218, %v3391
  %v3414 = vadd.f32 %v3219, %v3396
  %v3415 = vld [vmem:[%s3220 + $0x1] sm:$0xff]
  %v3416 = vld [vmem:[%s3220 + $0x11] sm:$0xff]
  %v3417 = vld [vmem:[%s3220 + $0x21] sm:$0xff]
  %v3418 = vld [vmem:[%s3220 + $0x31] sm:$0xff]
  %v3419 = vld [vmem:[%s3220 + $0x41] sm:$0xff]
  %v3420 = vld [vmem:[%s3220 + $0x51] sm:$0xff]
  %v3421 = vld [vmem:[%s3220 + $0x61] sm:$0xff]
  %v3422 = vld [vmem:[%s3220 + $0x71] sm:$0xff]
  %v3423 = vld [vmem:[%s3220 + $0xa1] sm:$0xff]
  %v3424 = vld [vmem:[%s3220 + $0xb1] sm:$0xff]
  %v3425 = vld [vmem:[%s3220 + $0xc1] sm:$0xff]
  %v3426 = vld [vmem:[%s3220 + $0xd1] sm:$0xff]
  %v3427 = vld [vmem:[%s3220 + $0xe1] sm:$0xff]
  %v3428 = vld [vmem:[%s3220 + $0xf1] sm:$0xff]
  %v3429 = vld [vmem:[%s3220 + $0x101] sm:$0xff]
  %v3430 = vld [vmem:[%s3220 + $0x111] sm:$0xff]
  %s3431 = scalar_lea.vmem %s1, 2048
  %v3432 = vld [vmem:[%s3431] sm:$0xff]
  %v3433 = vld [vmem:[%s3431 + $0x8] sm:$0xff]
  %v3434 = vld [vmem:[%s3431 + $0x10] sm:$0xff]
  %v3435 = vld [vmem:[%s3431 + $0x18] sm:$0xff]
  %v3436 = vld [vmem:[%s3431 + $0x20] sm:$0xff]
  %v3437 = vld [vmem:[%s3431 + $0x28] sm:$0xff]
  %v3438 = vld [vmem:[%s3431 + $0x30] sm:$0xff]
  %v3439 = vld [vmem:[%s3431 + $0x38] sm:$0xff]
  %v3440 = vld [vmem:[%s3431 + $0x40] sm:$0xff]
  %v3441 = vld [vmem:[%s3431 + $0x48] sm:$0xff]
  %v3442 = vld [vmem:[%s3431 + $0x50] sm:$0xff]
  %v3443 = vld [vmem:[%s3431 + $0x58] sm:$0xff]
  %v3444 = vld [vmem:[%s3431 + $0x60] sm:$0xff]
  %v3445 = vld [vmem:[%s3431 + $0x68] sm:$0xff]
  %v3446 = vld [vmem:[%s3431 + $0x70] sm:$0xff]
  %v3447 = vld [vmem:[%s3431 + $0x78] sm:$0xff]
  %3448 = vmatprep.subr.mxu0 0.0
  %3449 = vmatpush1.msra.mxu0 %v3432
  %3450 = vmatprep.subr.mxu0 0.0
  %3451 = vmatpush1.msra.mxu0 %v3433
  %3452 = vmatprep.subr.mxu0 0.0
  %3453 = vmatpush1.msra.mxu0 %v3434
  %3454 = vmatprep.subr.mxu0 0.0
  %3455 = vmatpush1.msra.mxu0 %v3435
  %3456 = vmatprep.subr.mxu0 0.0
  %3457 = vmatpush1.msra.mxu0 %v3436
  %3458 = vmatprep.subr.mxu0 0.0
  %3459 = vmatpush1.msra.mxu0 %v3437
  %3460 = vmatprep.subr.mxu0 0.0
  %3461 = vmatpush1.msra.mxu0 %v3438
  %3462 = vmatprep.subr.mxu0 0.0
  %3463 = vmatpush1.msra.mxu0 %v3439
  %3464 = vmatprep.subr.mxu0 0.0
  %3465 = vmatpush1.msra.mxu0 %v3440
  %3466 = vmatprep.subr.mxu0 0.0
  %3467 = vmatpush1.msra.mxu0 %v3441
  %3468 = vmatprep.subr.mxu0 0.0
  %3469 = vmatpush1.msra.mxu0 %v3442
  %3470 = vmatprep.subr.mxu0 0.0
  %3471 = vmatpush1.msra.mxu0 %v3443
  %3472 = vmatprep.subr.mxu0 0.0
  %3473 = vmatpush1.msra.mxu0 %v3444
  %3474 = vmatprep.subr.mxu0 0.0
  %3475 = vmatpush1.msra.mxu0 %v3445
  %3476 = vmatprep.subr.mxu0 0.0
  %3477 = vmatpush1.msra.mxu0 %v3446
  %3478 = vmatprep.subr.mxu0 0.0
  %3479 = vmatpush1.msra.mxu0 %v3447
  %3480 = vmatprep.subr.mxu0 0.0
  %3481 = vmatpush1.msra.mxu0 0.0
  %3482 = vmatprep.subr.mxu0 0.0
  %3483 = vmatpush1.msra.mxu0 0.0
  %3484 = vmatprep.subr.mxu0 0.0
  %3485 = vmatpush1.msra.mxu0 0.0
  %3486 = vmatprep.subr.mxu0 0.0
  %3487 = vmatpush1.msra.mxu0 0.0
  %3488 = vmatprep.subr.mxu0 0.0
  %3489 = vmatpush1.msra.mxu0 0.0
  %3490 = vmatprep.subr.mxu0 0.0
  %3491 = vmatpush1.msra.mxu0 0.0
  %3492 = vmatprep.subr.mxu0 0.0
  %3493 = vmatpush1.msra.mxu0 0.0
  %3494 = vmatprep.subr.mxu0 0.0
  %3495 = vmatpush1.msra.mxu0 0.0
  %3496 = vmatprep.subr.mxu0 0.0
  %3497 = vmatpush1.msra.mxu0 0.0
  %3498 = vmatprep.subr.mxu0 0.0
  %3499 = vmatpush1.msra.mxu0 0.0
  %3500 = vmatprep.subr.mxu0 0.0
  %3501 = vmatpush1.msra.mxu0 0.0
  %3502 = vmatprep.subr.mxu0 0.0
  %3503 = vmatpush1.msra.mxu0 0.0
  %3504 = vmatprep.subr.mxu0 0.0
  %3505 = vmatpush1.msra.mxu0 0.0
  %3506 = vmatprep.subr.mxu0 0.0
  %3507 = vmatpush1.msra.mxu0 0.0
  %3508 = vmatprep.subr.mxu0 0.0
  %3509 = vmatpush1.msra.mxu0 0.0
  %3510 = vmatprep.subr.mxu0 0.0
  %3511 = vmatpush1.msra.mxu0 0.0
  %3512 = vmatprep.mubr.f32.mxu0 0.0
  %3513 = vmatmul.mubr.f32.gmra.mrb[0].mxu0 %v3415
  %v3514 = vpop.f32.mrb[0].mxu0
  %v3515 = vadd.f32 0.0, %v3514
  %v3516 = vpop.f32.mrb[0].mxu0
  %3517 = vmatprep.mubr.f32.mxu0 0.0
  %3518 = vmatmul.mubr.f32.gmra.mrb[0].mxu0 %v3416
  %v3519 = vpop.f32.mrb[0].mxu0
  %v3520 = vadd.f32 0.0, %v3519
  %v3521 = vpop.f32.mrb[0].mxu0
  %3522 = vmatprep.mubr.f32.mxu0 0.0
  %3523 = vmatmul.mubr.f32.gmra.mrb[0].mxu0 %v3417
  %v3524 = vpop.f32.mrb[0].mxu0
  %v3525 = vadd.f32 0.0, %v3524
  %v3526 = vpop.f32.mrb[0].mxu0
  %3527 = vmatprep.mubr.f32.mxu0 0.0
  %3528 = vmatmul.mubr.f32.gmra.mrb[0].mxu0 %v3418
  %v3529 = vpop.f32.mrb[0].mxu0
  %v3530 = vadd.f32 0.0, %v3529
  %v3531 = vpop.f32.mrb[0].mxu0
  %3532 = vmatprep.mubr.f32.mxu0 0.0
  %3533 = vmatmul.mubr.f32.gmra.mrb[0].mxu0 %v3419
  %v3534 = vpop.f32.mrb[0].mxu0
  %v3535 = vadd.f32 0.0, %v3534
  %v3536 = vpop.f32.mrb[0].mxu0
  %3537 = vmatprep.mubr.f32.mxu0 0.0
  %3538 = vmatmul.mubr.f32.gmra.mrb[0].mxu0 %v3420
  %v3539 = vpop.f32.mrb[0].mxu0
  %v3540 = vadd.f32 0.0, %v3539
  %v3541 = vpop.f32.mrb[0].mxu0
  %3542 = vmatprep.mubr.f32.mxu0 0.0
  %3543 = vmatmul.mubr.f32.gmra.mrb[0].mxu0 %v3421
  %v3544 = vpop.f32.mrb[0].mxu0
  %v3545 = vadd.f32 0.0, %v3544
  %v3546 = vpop.f32.mrb[0].mxu0
  %3547 = vmatprep.mubr.f32.mxu0 0.0
  %3548 = vmatmul.mubr.f32.gmra.mrb[0].mxu0 %v3422
  %v3549 = vpop.f32.mrb[0].mxu0
  %v3550 = vadd.f32 0.0, %v3549
  %v3551 = vpop.f32.mrb[0].mxu0
  %3552 = vmatprep.mubr.f32.mxu0 0.0
  %3553 = vmatmul.mubr.f32.gmra.mrb[0].mxu0 %v3423
  %v3554 = vpop.f32.mrb[0].mxu0
  %v3555 = vadd.f32 0.0, %v3554
  %v3556 = vpop.f32.mrb[0].mxu0
  %3557 = vmatprep.mubr.f32.mxu0 0.0
  %3558 = vmatmul.mubr.f32.gmra.mrb[0].mxu0 %v3424
  %v3559 = vpop.f32.mrb[0].mxu0
  %v3560 = vadd.f32 0.0, %v3559
  %v3561 = vpop.f32.mrb[0].mxu0
  %3562 = vmatprep.mubr.f32.mxu0 0.0
  %3563 = vmatmul.mubr.f32.gmra.mrb[0].mxu0 %v3425
  %v3564 = vpop.f32.mrb[0].mxu0
  %v3565 = vadd.f32 0.0, %v3564
  %v3566 = vpop.f32.mrb[0].mxu0
  %3567 = vmatprep.mubr.f32.mxu0 0.0
  %3568 = vmatmul.mubr.f32.gmra.mrb[0].mxu0 %v3426
  %v3569 = vpop.f32.mrb[0].mxu0
  %v3570 = vadd.f32 0.0, %v3569
  %v3571 = vpop.f32.mrb[0].mxu0
  %3572 = vmatprep.mubr.f32.mxu0 0.0
  %3573 = vmatmul.mubr.f32.gmra.mrb[0].mxu0 %v3427
  %v3574 = vpop.f32.mrb[0].mxu0
  %v3575 = vadd.f32 0.0, %v3574
  %v3576 = vpop.f32.mrb[0].mxu0
  %3577 = vmatprep.mubr.f32.mxu0 0.0
  %3578 = vmatmul.mubr.f32.gmra.mrb[0].mxu0 %v3428
  %v3579 = vpop.f32.mrb[0].mxu0
  %v3580 = vadd.f32 0.0, %v3579
  %v3581 = vpop.f32.mrb[0].mxu0
  %3582 = vmatprep.mubr.f32.mxu0 0.0
  %3583 = vmatmul.mubr.f32.gmra.mrb[0].mxu0 %v3429
  %v3584 = vpop.f32.mrb[0].mxu0
  %v3585 = vadd.f32 0.0, %v3584
  %v3586 = vpop.f32.mrb[0].mxu0
  %3587 = vmatprep.mubr.f32.mxu0 0.0
  %3588 = vmatmul.mubr.f32.gmra.mrb[0].mxu0 %v3430
  %v3589 = vpop.f32.mrb[0].mxu0
  %v3590 = vadd.f32 0.0, %v3589
  %v3591 = vpop.f32.mrb[0].mxu0
  %3592 = vdwg.mxu0
  %v3593 = vadd.f32 %v3399, %v3515
  %v3594 = vadd.f32 %v3400, %v3520
  %v3595 = vadd.f32 %v3401, %v3525
  %v3596 = vadd.f32 %v3402, %v3530
  %v3597 = vadd.f32 %v3403, %v3535
  %v3598 = vadd.f32 %v3404, %v3540
  %v3599 = vadd.f32 %v3405, %v3545
  %v3600 = vadd.f32 %v3406, %v3550
  %v3601 = vadd.f32 %v3407, %v3555
  %v3602 = vadd.f32 %v3408, %v3560
  %v3603 = vadd.f32 %v3409, %v3565
  %v3604 = vadd.f32 %v3410, %v3570
  %v3605 = vadd.f32 %v3411, %v3575
  %v3606 = vadd.f32 %v3412, %v3580
  %v3607 = vadd.f32 %v3413, %v3585
  %v3608 = vadd.f32 %v3414, %v3590
  %v3609 = vld [vmem:[%s3220 + $0x2] sm:$0xff]
  %v3610 = vld [vmem:[%s3220 + $0x12] sm:$0xff]
  %v3611 = vld [vmem:[%s3220 + $0x22] sm:$0xff]
  %v3612 = vld [vmem:[%s3220 + $0x32] sm:$0xff]
  %v3613 = vld [vmem:[%s3220 + $0x42] sm:$0xff]
  %v3614 = vld [vmem:[%s3220 + $0x52] sm:$0xff]
  %v3615 = vld [vmem:[%s3220 + $0x62] sm:$0xff]
  %v3616 = vld [vmem:[%s3220 + $0x72] sm:$0xff]
  %v3617 = vld [vmem:[%s3220 + $0xa2] sm:$0xff]
  %v3618 = vld [vmem:[%s3220 + $0xb2] sm:$0xff]
  %v3619 = vld [vmem:[%s3220 + $0xc2] sm:$0xff]
  %v3620 = vld [vmem:[%s3220 + $0xd2] sm:$0xff]
  %v3621 = vld [vmem:[%s3220 + $0xe2] sm:$0xff]
  %v3622 = vld [vmem:[%s3220 + $0xf2] sm:$0xff]
  %v3623 = vld [vmem:[%s3220 + $0x102] sm:$0xff]
  %v3624 = vld [vmem:[%s3220 + $0x112] sm:$0xff]
  %s3625 = scalar_lea.vmem %s1, 2176
  %v3626 = vld [vmem:[%s3625] sm:$0xff]
  %v3627 = vld [vmem:[%s3625 + $0x8] sm:$0xff]
  %v3628 = vld [vmem:[%s3625 + $0x10] sm:$0xff]
  %v3629 = vld [vmem:[%s3625 + $0x18] sm:$0xff]
  %v3630 = vld [vmem:[%s3625 + $0x20] sm:$0xff]
  %v3631 = vld [vmem:[%s3625 + $0x28] sm:$0xff]
  %v3632 = vld [vmem:[%s3625 + $0x30] sm:$0xff]
  %v3633 = vld [vmem:[%s3625 + $0x38] sm:$0xff]
  %v3634 = vld [vmem:[%s3625 + $0x40] sm:$0xff]
  %v3635 = vld [vmem:[%s3625 + $0x48] sm:$0xff]
  %v3636 = vld [vmem:[%s3625 + $0x50] sm:$0xff]
  %v3637 = vld [vmem:[%s3625 + $0x58] sm:$0xff]
  %v3638 = vld [vmem:[%s3625 + $0x60] sm:$0xff]
  %v3639 = vld [vmem:[%s3625 + $0x68] sm:$0xff]
  %v3640 = vld [vmem:[%s3625 + $0x70] sm:$0xff]
  %v3641 = vld [vmem:[%s3625 + $0x78] sm:$0xff]
  %3642 = vmatprep.subr.mxu0 0.0
  %3643 = vmatpush1.msra.mxu0 %v3626
  %3644 = vmatprep.subr.mxu0 0.0
  %3645 = vmatpush1.msra.mxu0 %v3627
  %3646 = vmatprep.subr.mxu0 0.0
  %3647 = vmatpush1.msra.mxu0 %v3628
  %3648 = vmatprep.subr.mxu0 0.0
  %3649 = vmatpush1.msra.mxu0 %v3629
  %3650 = vmatprep.subr.mxu0 0.0
  %3651 = vmatpush1.msra.mxu0 %v3630
  %3652 = vmatprep.subr.mxu0 0.0
  %3653 = vmatpush1.msra.mxu0 %v3631
  %3654 = vmatprep.subr.mxu0 0.0
  %3655 = vmatpush1.msra.mxu0 %v3632
  %3656 = vmatprep.subr.mxu0 0.0
  %3657 = vmatpush1.msra.mxu0 %v3633
  %3658 = vmatprep.subr.mxu0 0.0
  %3659 = vmatpush1.msra.mxu0 %v3634
  %3660 = vmatprep.subr.mxu0 0.0
  %3661 = vmatpush1.msra.mxu0 %v3635
  %3662 = vmatprep.subr.mxu0 0.0
  %3663 = vmatpush1.msra.mxu0 %v3636
  %3664 = vmatprep.subr.mxu0 0.0
  %3665 = vmatpush1.msra.mxu0 %v3637
  %3666 = vmatprep.subr.mxu0 0.0
  %3667 = vmatpush1.msra.mxu0 %v3638
  %3668 = vmatprep.subr.mxu0 0.0
  %3669 = vmatpush1.msra.mxu0 %v3639
  %3670 = vmatprep.subr.mxu0 0.0
  %3671 = vmatpush1.msra.mxu0 %v3640
  %3672 = vmatprep.subr.mxu0 0.0
  %3673 = vmatpush1.msra.mxu0 %v3641
  %3674 = vmatprep.subr.mxu0 0.0
  %3675 = vmatpush1.msra.mxu0 0.0
  %3676 = vmatprep.subr.mxu0 0.0
  %3677 = vmatpush1.msra.mxu0 0.0
  %3678 = vmatprep.subr.mxu0 0.0
  %3679 = vmatpush1.msra.mxu0 0.0
  %3680 = vmatprep.subr.mxu0 0.0
  %3681 = vmatpush1.msra.mxu0 0.0
  %3682 = vmatprep.subr.mxu0 0.0
  %3683 = vmatpush1.msra.mxu0 0.0
  %3684 = vmatprep.subr.mxu0 0.0
  %3685 = vmatpush1.msra.mxu0 0.0
  %3686 = vmatprep.subr.mxu0 0.0
  %3687 = vmatpush1.msra.mxu0 0.0
  %3688 = vmatprep.subr.mxu0 0.0
  %3689 = vmatpush1.msra.mxu0 0.0
  %3690 = vmatprep.subr.mxu0 0.0
  %3691 = vmatpush1.msra.mxu0 0.0
  %3692 = vmatprep.subr.mxu0 0.0
  %3693 = vmatpush1.msra.mxu0 0.0
  %3694 = vmatprep.subr.mxu0 0.0
  %3695 = vmatpush1.msra.mxu0 0.0
  %3696 = vmatprep.subr.mxu0 0.0
  %3697 = vmatpush1.msra.mxu0 0.0
  %3698 = vmatprep.subr.mxu0 0.0
  %3699 = vmatpush1.msra.mxu0 0.0
  %3700 = vmatprep.subr.mxu0 0.0
  %3701 = vmatpush1.msra.mxu0 0.0
  %3702 = vmatprep.subr.mxu0 0.0
  %3703 = vmatpush1.msra.mxu0 0.0
  %3704 = vmatprep.subr.mxu0 0.0
  %3705 = vmatpush1.msra.mxu0 0.0
  %3706 = vmatprep.mubr.f32.mxu0 0.0
  %3707 = vmatmul.mubr.f32.gmra.mrb[0].mxu0 %v3609
  %v3708 = vpop.f32.mrb[0].mxu0
  %v3709 = vadd.f32 0.0, %v3708
  %v3710 = vpop.f32.mrb[0].mxu0
  %3711 = vmatprep.mubr.f32.mxu0 0.0
  %3712 = vmatmul.mubr.f32.gmra.mrb[0].mxu0 %v3610
  %v3713 = vpop.f32.mrb[0].mxu0
  %v3714 = vadd.f32 0.0, %v3713
  %v3715 = vpop.f32.mrb[0].mxu0
  %3716 = vmatprep.mubr.f32.mxu0 0.0
  %3717 = vmatmul.mubr.f32.gmra.mrb[0].mxu0 %v3611
  %v3718 = vpop.f32.mrb[0].mxu0
  %v3719 = vadd.f32 0.0, %v3718
  %v3720 = vpop.f32.mrb[0].mxu0
  %3721 = vmatprep.mubr.f32.mxu0 0.0
  %3722 = vmatmul.mubr.f32.gmra.mrb[0].mxu0 %v3612
  %v3723 = vpop.f32.mrb[0].mxu0
  %v3724 = vadd.f32 0.0, %v3723
  %v3725 = vpop.f32.mrb[0].mxu0
  %3726 = vmatprep.mubr.f32.mxu0 0.0
  %3727 = vmatmul.mubr.f32.gmra.mrb[0].mxu0 %v3613
  %v3728 = vpop.f32.mrb[0].mxu0
  %v3729 = vadd.f32 0.0, %v3728
  %v3730 = vpop.f32.mrb[0].mxu0
  %3731 = vmatprep.mubr.f32.mxu0 0.0
  %3732 = vmatmul.mubr.f32.gmra.mrb[0].mxu0 %v3614
  %v3733 = vpop.f32.mrb[0].mxu0
  %v3734 = vadd.f32 0.0, %v3733
  %v3735 = vpop.f32.mrb[0].mxu0
  %3736 = vmatprep.mubr.f32.mxu0 0.0
  %3737 = vmatmul.mubr.f32.gmra.mrb[0].mxu0 %v3615
  %v3738 = vpop.f32.mrb[0].mxu0
  %v3739 = vadd.f32 0.0, %v3738
  %v3740 = vpop.f32.mrb[0].mxu0
  %3741 = vmatprep.mubr.f32.mxu0 0.0
  %3742 = vmatmul.mubr.f32.gmra.mrb[0].mxu0 %v3616
  %v3743 = vpop.f32.mrb[0].mxu0
  %v3744 = vadd.f32 0.0, %v3743
  %v3745 = vpop.f32.mrb[0].mxu0
  %3746 = vmatprep.mubr.f32.mxu0 0.0
  %3747 = vmatmul.mubr.f32.gmra.mrb[0].mxu0 %v3617
  %v3748 = vpop.f32.mrb[0].mxu0
  %v3749 = vadd.f32 0.0, %v3748
  %v3750 = vpop.f32.mrb[0].mxu0
  %3751 = vmatprep.mubr.f32.mxu0 0.0
  %3752 = vmatmul.mubr.f32.gmra.mrb[0].mxu0 %v3618
  %v3753 = vpop.f32.mrb[0].mxu0
  %v3754 = vadd.f32 0.0, %v3753
  %v3755 = vpop.f32.mrb[0].mxu0
  %3756 = vmatprep.mubr.f32.mxu0 0.0
  %3757 = vmatmul.mubr.f32.gmra.mrb[0].mxu0 %v3619
  %v3758 = vpop.f32.mrb[0].mxu0
  %v3759 = vadd.f32 0.0, %v3758
  %v3760 = vpop.f32.mrb[0].mxu0
  %3761 = vmatprep.mubr.f32.mxu0 0.0
  %3762 = vmatmul.mubr.f32.gmra.mrb[0].mxu0 %v3620
  %v3763 = vpop.f32.mrb[0].mxu0
  %v3764 = vadd.f32 0.0, %v3763
  %v3765 = vpop.f32.mrb[0].mxu0
  %3766 = vmatprep.mubr.f32.mxu0 0.0
  %3767 = vmatmul.mubr.f32.gmra.mrb[0].mxu0 %v3621
  %v3768 = vpop.f32.mrb[0].mxu0
  %v3769 = vadd.f32 0.0, %v3768
  %v3770 = vpop.f32.mrb[0].mxu0
  %3771 = vmatprep.mubr.f32.mxu0 0.0
  %3772 = vmatmul.mubr.f32.gmra.mrb[0].mxu0 %v3622
  %v3773 = vpop.f32.mrb[0].mxu0
  %v3774 = vadd.f32 0.0, %v3773
  %v3775 = vpop.f32.mrb[0].mxu0
  %3776 = vmatprep.mubr.f32.mxu0 0.0
  %3777 = vmatmul.mubr.f32.gmra.mrb[0].mxu0 %v3623
  %v3778 = vpop.f32.mrb[0].mxu0
  %v3779 = vadd.f32 0.0, %v3778
  %v3780 = vpop.f32.mrb[0].mxu0
  %3781 = vmatprep.mubr.f32.mxu0 0.0
  %3782 = vmatmul.mubr.f32.gmra.mrb[0].mxu0 %v3624
  %v3783 = vpop.f32.mrb[0].mxu0
  %v3784 = vadd.f32 0.0, %v3783
  %v3785 = vpop.f32.mrb[0].mxu0
  %3786 = vdwg.mxu0
  %v3787 = vadd.f32 %v3593, %v3709
  %v3788 = vadd.f32 %v3594, %v3714
  %v3789 = vadd.f32 %v3595, %v3719
  %v3790 = vadd.f32 %v3596, %v3724
  %v3791 = vadd.f32 %v3597, %v3729
  %v3792 = vadd.f32 %v3598, %v3734
  %v3793 = vadd.f32 %v3599, %v3739
  %v3794 = vadd.f32 %v3600, %v3744
  %v3795 = vadd.f32 %v3601, %v3749
  %v3796 = vadd.f32 %v3602, %v3754
  %v3797 = vadd.f32 %v3603, %v3759
  %v3798 = vadd.f32 %v3604, %v3764
  %v3799 = vadd.f32 %v3605, %v3769
  %v3800 = vadd.f32 %v3606, %v3774
  %v3801 = vadd.f32 %v3607, %v3779
  %v3802 = vadd.f32 %v3608, %v3784
  %s3803 = scalar_lea.vmem %s3, 2
  %v3804 = vld [vmem:[%s3803] sm:$0x1]
  %v3806 = vlaneseq
  %v3807 = vshrl.u32 %v3806, 7
  %v3808 = vsub.s32 0, %v3807
  %v3809 = vrot.slane %v3804, %v3808
  %v3811 = vadd.f32 %v3787, %v3809
  %v3812 = vadd.f32 %v3788, %v3809
  %v3813 = vadd.f32 %v3789, %v3809
  %v3814 = vadd.f32 %v3790, %v3809
  %v3815 = vadd.f32 %v3791, %v3809
  %v3816 = vadd.f32 %v3792, %v3809
  %v3817 = vadd.f32 %v3793, %v3809
  %v3818 = vadd.f32 %v3794, %v3809
  %v3819 = vadd.f32 %v3795, %v3809
  %v3820 = vadd.f32 %v3796, %v3809
  %v3821 = vadd.f32 %v3797, %v3809
  %v3822 = vadd.f32 %v3798, %v3809
  %v3823 = vadd.f32 %v3799, %v3809
  %v3824 = vadd.f32 %v3800, %v3809
  %v3825 = vadd.f32 %v3801, %v3809
  %v3826 = vadd.f32 %v3802, %v3809
  %v3827 = vadd.f32 %v3811, %v303
  %v3828 = vadd.f32 %v3812, %v308
  %v3829 = vadd.f32 %v3813, %v313
  %v3830 = vadd.f32 %v3814, %v318
  %v3831 = vadd.f32 %v3815, %v323
  %v3832 = vadd.f32 %v3816, %v328
  %v3833 = vadd.f32 %v3817, %v333
  %v3834 = vadd.f32 %v3818, %v338
  %v3835 = vadd.f32 %v3819, %v343
  %v3836 = vadd.f32 %v3820, %v348
  %v3837 = vadd.f32 %v3821, %v353
  %v3838 = vadd.f32 %v3822, %v358
  %v3839 = vadd.f32 %v3823, %v363
  %v3840 = vadd.f32 %v3824, %v368
  %v3841 = vadd.f32 %v3825, %v373
  %v3842 = vadd.f32 %v3826, %v378
  %v3843 = vmax.f32 %v3827, 0.0
  %v3844 = vmax.f32 %v3828, 0.0
  %v3845 = vmax.f32 %v3829, 0.0
  %v3846 = vmax.f32 %v3830, 0.0
  %v3847 = vmax.f32 %v3831, 0.0
  %v3848 = vmax.f32 %v3832, 0.0
  %v3849 = vmax.f32 %v3833, 0.0
  %v3850 = vmax.f32 %v3834, 0.0
  %v3851 = vmax.f32 %v3835, 0.0
  %v3852 = vmax.f32 %v3836, 0.0
  %v3853 = vmax.f32 %v3837, 0.0
  %v3854 = vmax.f32 %v3838, 0.0
  %v3855 = vmax.f32 %v3839, 0.0
  %v3856 = vmax.f32 %v3840, 0.0
  %v3857 = vmax.f32 %v3841, 0.0
  %v3858 = vmax.f32 %v3842, 0.0
  %s3859 = scalar_lea.vmem [#allocation2], 336
  %3860 = vst [vmem:[%s3859 + $0x1] sm:$0xff] %v3843
  %3861 = vst [vmem:[%s3859 + $0x11] sm:$0xff] %v3844
  %3862 = vst [vmem:[%s3859 + $0x21] sm:$0xff] %v3845
  %3863 = vst [vmem:[%s3859 + $0x31] sm:$0xff] %v3846
  %3864 = vst [vmem:[%s3859 + $0x41] sm:$0xff] %v3847
  %3865 = vst [vmem:[%s3859 + $0x51] sm:$0xff] %v3848
  %3866 = vst [vmem:[%s3859 + $0x61] sm:$0xff] %v3849
  %3867 = vst [vmem:[%s3859 + $0x71] sm:$0xff] %v3850
  %3868 = vst [vmem:[%s3859 + $0xa1] sm:$0xff] %v3851
  %3869 = vst [vmem:[%s3859 + $0xb1] sm:$0xff] %v3852
  %3870 = vst [vmem:[%s3859 + $0xc1] sm:$0xff] %v3853
  %3871 = vst [vmem:[%s3859 + $0xd1] sm:$0xff] %v3854
  %3872 = vst [vmem:[%s3859 + $0xe1] sm:$0xff] %v3855
  %3873 = vst [vmem:[%s3859 + $0xf1] sm:$0xff] %v3856
  %3874 = vst [vmem:[%s3859 + $0x101] sm:$0xff] %v3857
  %3875 = vst [vmem:[%s3859 + $0x111] sm:$0xff] %v3858
  %s3876 = scalar_lea.vmem [#allocation2], 320
  %v3877 = vld [vmem:[%s3876] sm:$0xff]
  %v3878 = vld [vmem:[%s3876 + $0x10] sm:$0xff]
  %v3879 = vld [vmem:[%s3876 + $0x20] sm:$0xff]
  %v3880 = vld [vmem:[%s3876 + $0x30] sm:$0xff]
  %v3881 = vld [vmem:[%s3876 + $0x40] sm:$0xff]
  %v3882 = vld [vmem:[%s3876 + $0x50] sm:$0xff]
  %v3883 = vld [vmem:[%s3876 + $0x60] sm:$0xff]
  %v3884 = vld [vmem:[%s3876 + $0x70] sm:$0xff]
  %v3885 = vld [vmem:[%s3876 + $0xa0] sm:$0xff]
  %v3886 = vld [vmem:[%s3876 + $0xb0] sm:$0xff]
  %v3887 = vld [vmem:[%s3876 + $0xc0] sm:$0xff]
  %v3888 = vld [vmem:[%s3876 + $0xd0] sm:$0xff]
  %v3889 = vld [vmem:[%s3876 + $0xe0] sm:$0xff]
  %v3890 = vld [vmem:[%s3876 + $0xf0] sm:$0xff]
  %v3891 = vld [vmem:[%s3876 + $0x100] sm:$0xff]
  %v3892 = vld [vmem:[%s3876 + $0x110] sm:$0xff]
  %s3893 = scalar_lea.vmem %s1, 2304
  %v3894 = vld [vmem:[%s3893] sm:$0xff]
  %v3895 = vld [vmem:[%s3893 + $0x8] sm:$0xff]
  %v3896 = vld [vmem:[%s3893 + $0x10] sm:$0xff]
  %v3897 = vld [vmem:[%s3893 + $0x18] sm:$0xff]
  %v3898 = vld [vmem:[%s3893 + $0x20] sm:$0xff]
  %v3899 = vld [vmem:[%s3893 + $0x28] sm:$0xff]
  %v3900 = vld [vmem:[%s3893 + $0x30] sm:$0xff]
  %v3901 = vld [vmem:[%s3893 + $0x38] sm:$0xff]
  %v3902 = vld [vmem:[%s3893 + $0x40] sm:$0xff]
  %v3903 = vld [vmem:[%s3893 + $0x48] sm:$0xff]
  %v3904 = vld [vmem:[%s3893 + $0x50] sm:$0xff]
  %v3905 = vld [vmem:[%s3893 + $0x58] sm:$0xff]
  %v3906 = vld [vmem:[%s3893 + $0x60] sm:$0xff]
  %v3907 = vld [vmem:[%s3893 + $0x68] sm:$0xff]
  %v3908 = vld [vmem:[%s3893 + $0x70] sm:$0xff]
  %v3909 = vld [vmem:[%s3893 + $0x78] sm:$0xff]
  %v3910 = vld [vmem:[%s3876 + $0x1] sm:$0xff]
  %v3911 = vld [vmem:[%s3876 + $0x11] sm:$0xff]
  %v3912 = vld [vmem:[%s3876 + $0x21] sm:$0xff]
  %v3913 = vld [vmem:[%s3876 + $0x31] sm:$0xff]
  %v3914 = vld [vmem:[%s3876 + $0x41] sm:$0xff]
  %v3915 = vld [vmem:[%s3876 + $0x51] sm:$0xff]
  %v3916 = vld [vmem:[%s3876 + $0x61] sm:$0xff]
  %v3917 = vld [vmem:[%s3876 + $0x71] sm:$0xff]
  %v3918 = vld [vmem:[%s3876 + $0xa1] sm:$0xff]
  %v3919 = vld [vmem:[%s3876 + $0xb1] sm:$0xff]
  %v3920 = vld [vmem:[%s3876 + $0xc1] sm:$0xff]
  %v3921 = vld [vmem:[%s3876 + $0xd1] sm:$0xff]
  %v3922 = vld [vmem:[%s3876 + $0xe1] sm:$0xff]
  %v3923 = vld [vmem:[%s3876 + $0xf1] sm:$0xff]
  %v3924 = vld [vmem:[%s3876 + $0x101] sm:$0xff]
  %v3925 = vld [vmem:[%s3876 + $0x111] sm:$0xff]
  %s3926 = scalar_lea.vmem %s1, 2432
  %v3927 = vld [vmem:[%s3926] sm:$0xff]
  %v3928 = vld [vmem:[%s3926 + $0x8] sm:$0xff]
  %v3929 = vld [vmem:[%s3926 + $0x10] sm:$0xff]
  %v3930 = vld [vmem:[%s3926 + $0x18] sm:$0xff]
  %v3931 = vld [vmem:[%s3926 + $0x20] sm:$0xff]
  %v3932 = vld [vmem:[%s3926 + $0x28] sm:$0xff]
  %v3933 = vld [vmem:[%s3926 + $0x30] sm:$0xff]
  %v3934 = vld [vmem:[%s3926 + $0x38] sm:$0xff]
  %v3935 = vld [vmem:[%s3926 + $0x40] sm:$0xff]
  %v3936 = vld [vmem:[%s3926 + $0x48] sm:$0xff]
  %v3937 = vld [vmem:[%s3926 + $0x50] sm:$0xff]
  %v3938 = vld [vmem:[%s3926 + $0x58] sm:$0xff]
  %v3939 = vld [vmem:[%s3926 + $0x60] sm:$0xff]
  %v3940 = vld [vmem:[%s3926 + $0x68] sm:$0xff]
  %v3941 = vld [vmem:[%s3926 + $0x70] sm:$0xff]
  %v3942 = vld [vmem:[%s3926 + $0x78] sm:$0xff]
  %3943 = vmatprep.subr.mxu0 0.0
  %3944 = vmatpush1.msra.mxu0 %v3927
  %3945 = vmatprep.subr.mxu0 0.0
  %3946 = vmatpush1.msra.mxu0 %v3928
  %3947 = vmatprep.subr.mxu0 0.0
  %3948 = vmatpush1.msra.mxu0 %v3929
  %3949 = vmatprep.subr.mxu0 0.0
  %3950 = vmatpush1.msra.mxu0 %v3930
  %3951 = vmatprep.subr.mxu0 0.0
  %3952 = vmatpush1.msra.mxu0 %v3931
  %3953 = vmatprep.subr.mxu0 0.0
  %3954 = vmatpush1.msra.mxu0 %v3932
  %3955 = vmatprep.subr.mxu0 0.0
  %3956 = vmatpush1.msra.mxu0 %v3933
  %3957 = vmatprep.subr.mxu0 0.0
  %3958 = vmatpush1.msra.mxu0 %v3934
  %3959 = vmatprep.subr.mxu0 0.0
  %3960 = vmatpush1.msra.mxu0 %v3935
  %3961 = vmatprep.subr.mxu0 0.0
  %3962 = vmatpush1.msra.mxu0 %v3936
  %3963 = vmatprep.subr.mxu0 0.0
  %3964 = vmatpush1.msra.mxu0 %v3937
  %3965 = vmatprep.subr.mxu0 0.0
  %3966 = vmatpush1.msra.mxu0 %v3938
  %3967 = vmatprep.subr.mxu0 0.0
  %3968 = vmatpush1.msra.mxu0 %v3939
  %3969 = vmatprep.subr.mxu0 0.0
  %3970 = vmatpush1.msra.mxu0 %v3940
  %3971 = vmatprep.subr.mxu0 0.0
  %3972 = vmatpush1.msra.mxu0 %v3941
  %3973 = vmatprep.subr.mxu0 0.0
  %3974 = vmatpush1.msra.mxu0 %v3942
  %3975 = vmatprep.subr.mxu0 0.0
  %3976 = vmatpush1.msra.mxu0 0.0
  %3977 = vmatprep.subr.mxu0 0.0
  %3978 = vmatpush1.msra.mxu0 0.0
  %3979 = vmatprep.subr.mxu0 0.0
  %3980 = vmatpush1.msra.mxu0 0.0
  %3981 = vmatprep.subr.mxu0 0.0
  %3982 = vmatpush1.msra.mxu0 0.0
  %3983 = vmatprep.subr.mxu0 0.0
  %3984 = vmatpush1.msra.mxu0 0.0
  %3985 = vmatprep.subr.mxu0 0.0
  %3986 = vmatpush1.msra.mxu0 0.0
  %3987 = vmatprep.subr.mxu0 0.0
  %3988 = vmatpush1.msra.mxu0 0.0
  %3989 = vmatprep.subr.mxu0 0.0
  %3990 = vmatpush1.msra.mxu0 0.0
  %3991 = vmatprep.subr.mxu0 0.0
  %3992 = vmatpush1.msra.mxu0 0.0
  %3993 = vmatprep.subr.mxu0 0.0
  %3994 = vmatpush1.msra.mxu0 0.0
  %3995 = vmatprep.subr.mxu0 0.0
  %3996 = vmatpush1.msra.mxu0 0.0
  %3997 = vmatprep.subr.mxu0 0.0
  %3998 = vmatpush1.msra.mxu0 0.0
  %3999 = vmatprep.subr.mxu0 0.0
  %4000 = vmatpush1.msra.mxu0 0.0
  %4001 = vmatprep.subr.mxu0 0.0
  %4002 = vmatpush1.msra.mxu0 0.0
  %4003 = vmatprep.subr.mxu0 0.0
  %4004 = vmatpush1.msra.mxu0 0.0
  %4005 = vmatprep.subr.mxu0 0.0
  %4006 = vmatpush1.msra.mxu0 0.0
  %4007 = vmatprep.mubr.f32.mxu0 0.0
  %4008 = vmatmul.mubr.f32.gmra.mrb[0].mxu0 %v3910
  %v4009 = vpop.f32.mrb[0].mxu0
  %v4010 = vadd.f32 0.0, %v4009
  %v4011 = vpop.f32.mrb[0].mxu0
  %4012 = vmatprep.mubr.f32.mxu0 0.0
  %4013 = vmatmul.mubr.f32.gmra.mrb[0].mxu0 %v3911
  %v4014 = vpop.f32.mrb[0].mxu0
  %v4015 = vadd.f32 0.0, %v4014
  %v4016 = vpop.f32.mrb[0].mxu0
  %4017 = vmatprep.mubr.f32.mxu0 0.0
  %4018 = vmatmul.mubr.f32.gmra.mrb[0].mxu0 %v3912
  %v4019 = vpop.f32.mrb[0].mxu0
  %v4020 = vadd.f32 0.0, %v4019
  %v4021 = vpop.f32.mrb[0].mxu0
  %4022 = vmatprep.mubr.f32.mxu0 0.0
  %4023 = vmatmul.mubr.f32.gmra.mrb[0].mxu0 %v3913
  %v4024 = vpop.f32.mrb[0].mxu0
  %v4025 = vadd.f32 0.0, %v4024
  %v4026 = vpop.f32.mrb[0].mxu0
  %4027 = vmatprep.mubr.f32.mxu0 0.0
  %4028 = vmatmul.mubr.f32.gmra.mrb[0].mxu0 %v3914
  %v4029 = vpop.f32.mrb[0].mxu0
  %v4030 = vadd.f32 0.0, %v4029
  %v4031 = vpop.f32.mrb[0].mxu0
  %4032 = vmatprep.mubr.f32.mxu0 0.0
  %4033 = vmatmul.mubr.f32.gmra.mrb[0].mxu0 %v3915
  %v4034 = vpop.f32.mrb[0].mxu0
  %v4035 = vadd.f32 0.0, %v4034
  %v4036 = vpop.f32.mrb[0].mxu0
  %4037 = vmatprep.mubr.f32.mxu0 0.0
  %4038 = vmatmul.mubr.f32.gmra.mrb[0].mxu0 %v3916
  %v4039 = vpop.f32.mrb[0].mxu0
  %v4040 = vadd.f32 0.0, %v4039
  %v4041 = vpop.f32.mrb[0].mxu0
  %4042 = vmatprep.mubr.f32.mxu0 0.0
  %4043 = vmatmul.mubr.f32.gmra.mrb[0].mxu0 %v3917
  %v4044 = vpop.f32.mrb[0].mxu0
  %v4045 = vadd.f32 0.0, %v4044
  %v4046 = vpop.f32.mrb[0].mxu0
  %4047 = vmatprep.mubr.f32.mxu0 0.0
  %4048 = vmatmul.mubr.f32.gmra.mrb[0].mxu0 %v3918
  %v4049 = vpop.f32.mrb[0].mxu0
  %v4050 = vadd.f32 0.0, %v4049
  %v4051 = vpop.f32.mrb[0].mxu0
  %4052 = vmatprep.mubr.f32.mxu0 0.0
  %4053 = vmatmul.mubr.f32.gmra.mrb[0].mxu0 %v3919
  %v4054 = vpop.f32.mrb[0].mxu0
  %v4055 = vadd.f32 0.0, %v4054
  %v4056 = vpop.f32.mrb[0].mxu0
  %4057 = vmatprep.mubr.f32.mxu0 0.0
  %4058 = vmatmul.mubr.f32.gmra.mrb[0].mxu0 %v3920
  %v4059 = vpop.f32.mrb[0].mxu0
  %v4060 = vadd.f32 0.0, %v4059
  %v4061 = vpop.f32.mrb[0].mxu0
  %4062 = vmatprep.mubr.f32.mxu0 0.0
  %4063 = vmatmul.mubr.f32.gmra.mrb[0].mxu0 %v3921
  %v4064 = vpop.f32.mrb[0].mxu0
  %v4065 = vadd.f32 0.0, %v4064
  %v4066 = vpop.f32.mrb[0].mxu0
  %4067 = vmatprep.mubr.f32.mxu0 0.0
  %4068 = vmatmul.mubr.f32.gmra.mrb[0].mxu0 %v3922
  %v4069 = vpop.f32.mrb[0].mxu0
  %v4070 = vadd.f32 0.0, %v4069
  %v4071 = vpop.f32.mrb[0].mxu0
  %4072 = vmatprep.mubr.f32.mxu0 0.0
  %4073 = vmatmul.mubr.f32.gmra.mrb[0].mxu0 %v3923
  %v4074 = vpop.f32.mrb[0].mxu0
  %v4075 = vadd.f32 0.0, %v4074
  %v4076 = vpop.f32.mrb[0].mxu0
  %4077 = vmatprep.mubr.f32.mxu0 0.0
  %4078 = vmatmul.mubr.f32.gmra.mrb[0].mxu0 %v3924
  %v4079 = vpop.f32.mrb[0].mxu0
  %v4080 = vadd.f32 0.0, %v4079
  %v4081 = vpop.f32.mrb[0].mxu0
  %4082 = vmatprep.mubr.f32.mxu0 0.0
  %4083 = vmatmul.mubr.f32.gmra.mrb[0].mxu0 %v3925
  %v4084 = vpop.f32.mrb[0].mxu0
  %v4085 = vadd.f32 0.0, %v4084
  %v4086 = vpop.f32.mrb[0].mxu0
  %4087 = vdwg.mxu0
  %4088 = vmatprep.subr.mxu0 0.0
  %4089 = vmatpush1.msra.mxu0 %v3894
  %4090 = vmatprep.subr.mxu0 0.0
  %4091 = vmatpush1.msra.mxu0 %v3895
  %4092 = vmatprep.subr.mxu0 0.0
  %4093 = vmatpush1.msra.mxu0 %v3896
  %4094 = vmatprep.subr.mxu0 0.0
  %4095 = vmatpush1.msra.mxu0 %v3897
  %4096 = vmatprep.subr.mxu0 0.0
  %4097 = vmatpush1.msra.mxu0 %v3898
  %4098 = vmatprep.subr.mxu0 0.0
  %4099 = vmatpush1.msra.mxu0 %v3899
  %4100 = vmatprep.subr.mxu0 0.0
  %4101 = vmatpush1.msra.mxu0 %v3900
  %4102 = vmatprep.subr.mxu0 0.0
  %4103 = vmatpush1.msra.mxu0 %v3901
  %4104 = vmatprep.subr.mxu0 0.0
  %4105 = vmatpush1.msra.mxu0 %v3902
  %4106 = vmatprep.subr.mxu0 0.0
  %4107 = vmatpush1.msra.mxu0 %v3903
  %4108 = vmatprep.subr.mxu0 0.0
  %4109 = vmatpush1.msra.mxu0 %v3904
  %4110 = vmatprep.subr.mxu0 0.0
  %4111 = vmatpush1.msra.mxu0 %v3905
  %4112 = vmatprep.subr.mxu0 0.0
  %4113 = vmatpush1.msra.mxu0 %v3906
  %4114 = vmatprep.subr.mxu0 0.0
  %4115 = vmatpush1.msra.mxu0 %v3907
  %4116 = vmatprep.subr.mxu0 0.0
  %4117 = vmatpush1.msra.mxu0 %v3908
  %4118 = vmatprep.subr.mxu0 0.0
  %4119 = vmatpush1.msra.mxu0 %v3909
  %4120 = vmatprep.subr.mxu0 0.0
  %4121 = vmatpush1.msra.mxu0 0.0
  %4122 = vmatprep.subr.mxu0 0.0
  %4123 = vmatpush1.msra.mxu0 0.0
  %4124 = vmatprep.subr.mxu0 0.0
  %4125 = vmatpush1.msra.mxu0 0.0
  %4126 = vmatprep.subr.mxu0 0.0
  %4127 = vmatpush1.msra.mxu0 0.0
  %4128 = vmatprep.subr.mxu0 0.0
  %4129 = vmatpush1.msra.mxu0 0.0
  %4130 = vmatprep.subr.mxu0 0.0
  %4131 = vmatpush1.msra.mxu0 0.0
  %4132 = vmatprep.subr.mxu0 0.0
  %4133 = vmatpush1.msra.mxu0 0.0
  %4134 = vmatprep.subr.mxu0 0.0
  %4135 = vmatpush1.msra.mxu0 0.0
  %4136 = vmatprep.subr.mxu0 0.0
  %4137 = vmatpush1.msra.mxu0 0.0
  %4138 = vmatprep.subr.mxu0 0.0
  %4139 = vmatpush1.msra.mxu0 0.0
  %4140 = vmatprep.subr.mxu0 0.0
  %4141 = vmatpush1.msra.mxu0 0.0
  %4142 = vmatprep.subr.mxu0 0.0
  %4143 = vmatpush1.msra.mxu0 0.0
  %4144 = vmatprep.subr.mxu0 0.0
  %4145 = vmatpush1.msra.mxu0 0.0
  %4146 = vmatprep.subr.mxu0 0.0
  %4147 = vmatpush1.msra.mxu0 0.0
  %4148 = vmatprep.subr.mxu0 0.0
  %4149 = vmatpush1.msra.mxu0 0.0
  %4150 = vmatprep.subr.mxu0 0.0
  %4151 = vmatpush1.msra.mxu0 0.0
  %4152 = vmatprep.mubr.f32.mxu0 0.0
  %4153 = vmatmul.mubr.f32.gmra.mrb[0].mxu0 %v3877
  %v4154 = vpop.f32.mrb[0].mxu0
  %v4155 = vadd.f32 %v4010, %v4154
  %v4156 = vpop.f32.mrb[0].mxu0
  %4157 = vmatprep.mubr.f32.mxu0 0.0
  %4158 = vmatmul.mubr.f32.gmra.mrb[0].mxu0 %v3878
  %v4159 = vpop.f32.mrb[0].mxu0
  %v4160 = vadd.f32 %v4015, %v4159
  %v4161 = vpop.f32.mrb[0].mxu0
  %4162 = vmatprep.mubr.f32.mxu0 0.0
  %4163 = vmatmul.mubr.f32.gmra.mrb[0].mxu0 %v3879
  %v4164 = vpop.f32.mrb[0].mxu0
  %v4165 = vadd.f32 %v4020, %v4164
  %v4166 = vpop.f32.mrb[0].mxu0
  %4167 = vmatprep.mubr.f32.mxu0 0.0
  %4168 = vmatmul.mubr.f32.gmra.mrb[0].mxu0 %v3880
  %v4169 = vpop.f32.mrb[0].mxu0
  %v4170 = vadd.f32 %v4025, %v4169
  %v4171 = vpop.f32.mrb[0].mxu0
  %4172 = vmatprep.mubr.f32.mxu0 0.0
  %4173 = vmatmul.mubr.f32.gmra.mrb[0].mxu0 %v3881
  %v4174 = vpop.f32.mrb[0].mxu0
  %v4175 = vadd.f32 %v4030, %v4174
  %v4176 = vpop.f32.mrb[0].mxu0
  %4177 = vmatprep.mubr.f32.mxu0 0.0
  %4178 = vmatmul.mubr.f32.gmra.mrb[0].mxu0 %v3882
  %v4179 = vpop.f32.mrb[0].mxu0
  %v4180 = vadd.f32 %v4035, %v4179
  %v4181 = vpop.f32.mrb[0].mxu0
  %4182 = vmatprep.mubr.f32.mxu0 0.0
  %4183 = vmatmul.mubr.f32.gmra.mrb[0].mxu0 %v3883
  %v4184 = vpop.f32.mrb[0].mxu0
  %v4185 = vadd.f32 %v4040, %v4184
  %v4186 = vpop.f32.mrb[0].mxu0
  %4187 = vmatprep.mubr.f32.mxu0 0.0
  %4188 = vmatmul.mubr.f32.gmra.mrb[0].mxu0 %v3884
  %v4189 = vpop.f32.mrb[0].mxu0
  %v4190 = vadd.f32 %v4045, %v4189
  %v4191 = vpop.f32.mrb[0].mxu0
  %4192 = vmatprep.mubr.f32.mxu0 0.0
  %4193 = vmatmul.mubr.f32.gmra.mrb[0].mxu0 %v3885
  %v4194 = vpop.f32.mrb[0].mxu0
  %v4195 = vadd.f32 %v4050, %v4194
  %v4196 = vpop.f32.mrb[0].mxu0
  %4197 = vmatprep.mubr.f32.mxu0 0.0
  %4198 = vmatmul.mubr.f32.gmra.mrb[0].mxu0 %v3886
  %v4199 = vpop.f32.mrb[0].mxu0
  %v4200 = vadd.f32 %v4055, %v4199
  %v4201 = vpop.f32.mrb[0].mxu0
  %4202 = vmatprep.mubr.f32.mxu0 0.0
  %4203 = vmatmul.mubr.f32.gmra.mrb[0].mxu0 %v3887
  %v4204 = vpop.f32.mrb[0].mxu0
  %v4205 = vadd.f32 %v4060, %v4204
  %v4206 = vpop.f32.mrb[0].mxu0
  %4207 = vmatprep.mubr.f32.mxu0 0.0
  %4208 = vmatmul.mubr.f32.gmra.mrb[0].mxu0 %v3888
  %v4209 = vpop.f32.mrb[0].mxu0
  %v4210 = vadd.f32 %v4065, %v4209
  %v4211 = vpop.f32.mrb[0].mxu0
  %4212 = vmatprep.mubr.f32.mxu0 0.0
  %4213 = vmatmul.mubr.f32.gmra.mrb[0].mxu0 %v3889
  %v4214 = vpop.f32.mrb[0].mxu0
  %v4215 = vadd.f32 %v4070, %v4214
  %v4216 = vpop.f32.mrb[0].mxu0
  %4217 = vmatprep.mubr.f32.mxu0 0.0
  %4218 = vmatmul.mubr.f32.gmra.mrb[0].mxu0 %v3890
  %v4219 = vpop.f32.mrb[0].mxu0
  %v4220 = vadd.f32 %v4075, %v4219
  %v4221 = vpop.f32.mrb[0].mxu0
  %4222 = vmatprep.mubr.f32.mxu0 0.0
  %4223 = vmatmul.mubr.f32.gmra.mrb[0].mxu0 %v3891
  %v4224 = vpop.f32.mrb[0].mxu0
  %v4225 = vadd.f32 %v4080, %v4224
  %v4226 = vpop.f32.mrb[0].mxu0
  %4227 = vmatprep.mubr.f32.mxu0 0.0
  %4228 = vmatmul.mubr.f32.gmra.mrb[0].mxu0 %v3892
  %v4229 = vpop.f32.mrb[0].mxu0
  %v4230 = vadd.f32 %v4085, %v4229
  %v4231 = vpop.f32.mrb[0].mxu0
  %4232 = vdwg.mxu0
  %v4233 = vld [vmem:[%s3876 + $0x2] sm:$0xff]
  %v4234 = vld [vmem:[%s3876 + $0x12] sm:$0xff]
  %v4235 = vld [vmem:[%s3876 + $0x22] sm:$0xff]
  %v4236 = vld [vmem:[%s3876 + $0x32] sm:$0xff]
  %v4237 = vld [vmem:[%s3876 + $0x42] sm:$0xff]
  %v4238 = vld [vmem:[%s3876 + $0x52] sm:$0xff]
  %v4239 = vld [vmem:[%s3876 + $0x62] sm:$0xff]
  %v4240 = vld [vmem:[%s3876 + $0x72] sm:$0xff]
  %v4241 = vld [vmem:[%s3876 + $0xa2] sm:$0xff]
  %v4242 = vld [vmem:[%s3876 + $0xb2] sm:$0xff]
  %v4243 = vld [vmem:[%s3876 + $0xc2] sm:$0xff]
  %v4244 = vld [vmem:[%s3876 + $0xd2] sm:$0xff]
  %v4245 = vld [vmem:[%s3876 + $0xe2] sm:$0xff]
  %v4246 = vld [vmem:[%s3876 + $0xf2] sm:$0xff]
  %v4247 = vld [vmem:[%s3876 + $0x102] sm:$0xff]
  %v4248 = vld [vmem:[%s3876 + $0x112] sm:$0xff]
  %s4249 = scalar_lea.vmem %s1, 2560
  %v4250 = vld [vmem:[%s4249] sm:$0xff]
  %v4251 = vld [vmem:[%s4249 + $0x8] sm:$0xff]
  %v4252 = vld [vmem:[%s4249 + $0x10] sm:$0xff]
  %v4253 = vld [vmem:[%s4249 + $0x18] sm:$0xff]
  %v4254 = vld [vmem:[%s4249 + $0x20] sm:$0xff]
  %v4255 = vld [vmem:[%s4249 + $0x28] sm:$0xff]
  %v4256 = vld [vmem:[%s4249 + $0x30] sm:$0xff]
  %v4257 = vld [vmem:[%s4249 + $0x38] sm:$0xff]
  %v4258 = vld [vmem:[%s4249 + $0x40] sm:$0xff]
  %v4259 = vld [vmem:[%s4249 + $0x48] sm:$0xff]
  %v4260 = vld [vmem:[%s4249 + $0x50] sm:$0xff]
  %v4261 = vld [vmem:[%s4249 + $0x58] sm:$0xff]
  %v4262 = vld [vmem:[%s4249 + $0x60] sm:$0xff]
  %v4263 = vld [vmem:[%s4249 + $0x68] sm:$0xff]
  %v4264 = vld [vmem:[%s4249 + $0x70] sm:$0xff]
  %v4265 = vld [vmem:[%s4249 + $0x78] sm:$0xff]
  %4266 = vmatprep.subr.mxu0 0.0
  %4267 = vmatpush1.msra.mxu0 %v4250
  %4268 = vmatprep.subr.mxu0 0.0
  %4269 = vmatpush1.msra.mxu0 %v4251
  %4270 = vmatprep.subr.mxu0 0.0
  %4271 = vmatpush1.msra.mxu0 %v4252
  %4272 = vmatprep.subr.mxu0 0.0
  %4273 = vmatpush1.msra.mxu0 %v4253
  %4274 = vmatprep.subr.mxu0 0.0
  %4275 = vmatpush1.msra.mxu0 %v4254
  %4276 = vmatprep.subr.mxu0 0.0
  %4277 = vmatpush1.msra.mxu0 %v4255
  %4278 = vmatprep.subr.mxu0 0.0
  %4279 = vmatpush1.msra.mxu0 %v4256
  %4280 = vmatprep.subr.mxu0 0.0
  %4281 = vmatpush1.msra.mxu0 %v4257
  %4282 = vmatprep.subr.mxu0 0.0
  %4283 = vmatpush1.msra.mxu0 %v4258
  %4284 = vmatprep.subr.mxu0 0.0
  %4285 = vmatpush1.msra.mxu0 %v4259
  %4286 = vmatprep.subr.mxu0 0.0
  %4287 = vmatpush1.msra.mxu0 %v4260
  %4288 = vmatprep.subr.mxu0 0.0
  %4289 = vmatpush1.msra.mxu0 %v4261
  %4290 = vmatprep.subr.mxu0 0.0
  %4291 = vmatpush1.msra.mxu0 %v4262
  %4292 = vmatprep.subr.mxu0 0.0
  %4293 = vmatpush1.msra.mxu0 %v4263
  %4294 = vmatprep.subr.mxu0 0.0
  %4295 = vmatpush1.msra.mxu0 %v4264
  %4296 = vmatprep.subr.mxu0 0.0
  %4297 = vmatpush1.msra.mxu0 %v4265
  %4298 = vmatprep.subr.mxu0 0.0
  %4299 = vmatpush1.msra.mxu0 0.0
  %4300 = vmatprep.subr.mxu0 0.0
  %4301 = vmatpush1.msra.mxu0 0.0
  %4302 = vmatprep.subr.mxu0 0.0
  %4303 = vmatpush1.msra.mxu0 0.0
  %4304 = vmatprep.subr.mxu0 0.0
  %4305 = vmatpush1.msra.mxu0 0.0
  %4306 = vmatprep.subr.mxu0 0.0
  %4307 = vmatpush1.msra.mxu0 0.0
  %4308 = vmatprep.subr.mxu0 0.0
  %4309 = vmatpush1.msra.mxu0 0.0
  %4310 = vmatprep.subr.mxu0 0.0
  %4311 = vmatpush1.msra.mxu0 0.0
  %4312 = vmatprep.subr.mxu0 0.0
  %4313 = vmatpush1.msra.mxu0 0.0
  %4314 = vmatprep.subr.mxu0 0.0
  %4315 = vmatpush1.msra.mxu0 0.0
  %4316 = vmatprep.subr.mxu0 0.0
  %4317 = vmatpush1.msra.mxu0 0.0
  %4318 = vmatprep.subr.mxu0 0.0
  %4319 = vmatpush1.msra.mxu0 0.0
  %4320 = vmatprep.subr.mxu0 0.0
  %4321 = vmatpush1.msra.mxu0 0.0
  %4322 = vmatprep.subr.mxu0 0.0
  %4323 = vmatpush1.msra.mxu0 0.0
  %4324 = vmatprep.subr.mxu0 0.0
  %4325 = vmatpush1.msra.mxu0 0.0
  %4326 = vmatprep.subr.mxu0 0.0
  %4327 = vmatpush1.msra.mxu0 0.0
  %4328 = vmatprep.subr.mxu0 0.0
  %4329 = vmatpush1.msra.mxu0 0.0
  %4330 = vmatprep.mubr.f32.mxu0 0.0
  %4331 = vmatmul.mubr.f32.gmra.mrb[0].mxu0 %v4233
  %v4332 = vpop.f32.mrb[0].mxu0
  %v4333 = vadd.f32 0.0, %v4332
  %v4334 = vpop.f32.mrb[0].mxu0
  %4335 = vmatprep.mubr.f32.mxu0 0.0
  %4336 = vmatmul.mubr.f32.gmra.mrb[0].mxu0 %v4234
  %v4337 = vpop.f32.mrb[0].mxu0
  %v4338 = vadd.f32 0.0, %v4337
  %v4339 = vpop.f32.mrb[0].mxu0
  %4340 = vmatprep.mubr.f32.mxu0 0.0
  %4341 = vmatmul.mubr.f32.gmra.mrb[0].mxu0 %v4235
  %v4342 = vpop.f32.mrb[0].mxu0
  %v4343 = vadd.f32 0.0, %v4342
  %v4344 = vpop.f32.mrb[0].mxu0
  %4345 = vmatprep.mubr.f32.mxu0 0.0
  %4346 = vmatmul.mubr.f32.gmra.mrb[0].mxu0 %v4236
  %v4347 = vpop.f32.mrb[0].mxu0
  %v4348 = vadd.f32 0.0, %v4347
  %v4349 = vpop.f32.mrb[0].mxu0
  %4350 = vmatprep.mubr.f32.mxu0 0.0
  %4351 = vmatmul.mubr.f32.gmra.mrb[0].mxu0 %v4237
  %v4352 = vpop.f32.mrb[0].mxu0
  %v4353 = vadd.f32 0.0, %v4352
  %v4354 = vpop.f32.mrb[0].mxu0
  %4355 = vmatprep.mubr.f32.mxu0 0.0
  %4356 = vmatmul.mubr.f32.gmra.mrb[0].mxu0 %v4238
  %v4357 = vpop.f32.mrb[0].mxu0
  %v4358 = vadd.f32 0.0, %v4357
  %v4359 = vpop.f32.mrb[0].mxu0
  %4360 = vmatprep.mubr.f32.mxu0 0.0
  %4361 = vmatmul.mubr.f32.gmra.mrb[0].mxu0 %v4239
  %v4362 = vpop.f32.mrb[0].mxu0
  %v4363 = vadd.f32 0.0, %v4362
  %v4364 = vpop.f32.mrb[0].mxu0
  %4365 = vmatprep.mubr.f32.mxu0 0.0
  %4366 = vmatmul.mubr.f32.gmra.mrb[0].mxu0 %v4240
  %v4367 = vpop.f32.mrb[0].mxu0
  %v4368 = vadd.f32 0.0, %v4367
  %v4369 = vpop.f32.mrb[0].mxu0
  %4370 = vmatprep.mubr.f32.mxu0 0.0
  %4371 = vmatmul.mubr.f32.gmra.mrb[0].mxu0 %v4241
  %v4372 = vpop.f32.mrb[0].mxu0
  %v4373 = vadd.f32 0.0, %v4372
  %v4374 = vpop.f32.mrb[0].mxu0
  %4375 = vmatprep.mubr.f32.mxu0 0.0
  %4376 = vmatmul.mubr.f32.gmra.mrb[0].mxu0 %v4242
  %v4377 = vpop.f32.mrb[0].mxu0
  %v4378 = vadd.f32 0.0, %v4377
  %v4379 = vpop.f32.mrb[0].mxu0
  %4380 = vmatprep.mubr.f32.mxu0 0.0
  %4381 = vmatmul.mubr.f32.gmra.mrb[0].mxu0 %v4243
  %v4382 = vpop.f32.mrb[0].mxu0
  %v4383 = vadd.f32 0.0, %v4382
  %v4384 = vpop.f32.mrb[0].mxu0
  %4385 = vmatprep.mubr.f32.mxu0 0.0
  %4386 = vmatmul.mubr.f32.gmra.mrb[0].mxu0 %v4244
  %v4387 = vpop.f32.mrb[0].mxu0
  %v4388 = vadd.f32 0.0, %v4387
  %v4389 = vpop.f32.mrb[0].mxu0
  %4390 = vmatprep.mubr.f32.mxu0 0.0
  %4391 = vmatmul.mubr.f32.gmra.mrb[0].mxu0 %v4245
  %v4392 = vpop.f32.mrb[0].mxu0
  %v4393 = vadd.f32 0.0, %v4392
  %v4394 = vpop.f32.mrb[0].mxu0
  %4395 = vmatprep.mubr.f32.mxu0 0.0
  %4396 = vmatmul.mubr.f32.gmra.mrb[0].mxu0 %v4246
  %v4397 = vpop.f32.mrb[0].mxu0
  %v4398 = vadd.f32 0.0, %v4397
  %v4399 = vpop.f32.mrb[0].mxu0
  %4400 = vmatprep.mubr.f32.mxu0 0.0
  %4401 = vmatmul.mubr.f32.gmra.mrb[0].mxu0 %v4247
  %v4402 = vpop.f32.mrb[0].mxu0
  %v4403 = vadd.f32 0.0, %v4402
  %v4404 = vpop.f32.mrb[0].mxu0
  %4405 = vmatprep.mubr.f32.mxu0 0.0
  %4406 = vmatmul.mubr.f32.gmra.mrb[0].mxu0 %v4248
  %v4407 = vpop.f32.mrb[0].mxu0
  %v4408 = vadd.f32 0.0, %v4407
  %v4409 = vpop.f32.mrb[0].mxu0
  %4410 = vdwg.mxu0
  %v4411 = vadd.f32 %v4155, %v4333
  %v4412 = vadd.f32 %v4160, %v4338
  %v4413 = vadd.f32 %v4165, %v4343
  %v4414 = vadd.f32 %v4170, %v4348
  %v4415 = vadd.f32 %v4175, %v4353
  %v4416 = vadd.f32 %v4180, %v4358
  %v4417 = vadd.f32 %v4185, %v4363
  %v4418 = vadd.f32 %v4190, %v4368
  %v4419 = vadd.f32 %v4195, %v4373
  %v4420 = vadd.f32 %v4200, %v4378
  %v4421 = vadd.f32 %v4205, %v4383
  %v4422 = vadd.f32 %v4210, %v4388
  %v4423 = vadd.f32 %v4215, %v4393
  %v4424 = vadd.f32 %v4220, %v4398
  %v4425 = vadd.f32 %v4225, %v4403
  %v4426 = vadd.f32 %v4230, %v4408
  %v4427 = vld [vmem:[%s3859] sm:$0xff]
  %v4428 = vld [vmem:[%s3859 + $0x10] sm:$0xff]
  %v4429 = vld [vmem:[%s3859 + $0x20] sm:$0xff]
  %v4430 = vld [vmem:[%s3859 + $0x30] sm:$0xff]
  %v4431 = vld [vmem:[%s3859 + $0x40] sm:$0xff]
  %v4432 = vld [vmem:[%s3859 + $0x50] sm:$0xff]
  %v4433 = vld [vmem:[%s3859 + $0x60] sm:$0xff]
  %v4434 = vld [vmem:[%s3859 + $0x70] sm:$0xff]
  %v4435 = vld [vmem:[%s3859 + $0xa0] sm:$0xff]
  %v4436 = vld [vmem:[%s3859 + $0xb0] sm:$0xff]
  %v4437 = vld [vmem:[%s3859 + $0xc0] sm:$0xff]
  %v4438 = vld [vmem:[%s3859 + $0xd0] sm:$0xff]
  %v4439 = vld [vmem:[%s3859 + $0xe0] sm:$0xff]
  %v4440 = vld [vmem:[%s3859 + $0xf0] sm:$0xff]
  %v4441 = vld [vmem:[%s3859 + $0x100] sm:$0xff]
  %v4442 = vld [vmem:[%s3859 + $0x110] sm:$0xff]
  %s4443 = scalar_lea.vmem %s1, 2688
  %v4444 = vld [vmem:[%s4443] sm:$0xff]
  %v4445 = vld [vmem:[%s4443 + $0x8] sm:$0xff]
  %v4446 = vld [vmem:[%s4443 + $0x10] sm:$0xff]
  %v4447 = vld [vmem:[%s4443 + $0x18] sm:$0xff]
  %v4448 = vld [vmem:[%s4443 + $0x20] sm:$0xff]
  %v4449 = vld [vmem:[%s4443 + $0x28] sm:$0xff]
  %v4450 = vld [vmem:[%s4443 + $0x30] sm:$0xff]
  %v4451 = vld [vmem:[%s4443 + $0x38] sm:$0xff]
  %v4452 = vld [vmem:[%s4443 + $0x40] sm:$0xff]
  %v4453 = vld [vmem:[%s4443 + $0x48] sm:$0xff]
  %v4454 = vld [vmem:[%s4443 + $0x50] sm:$0xff]
  %v4455 = vld [vmem:[%s4443 + $0x58] sm:$0xff]
  %v4456 = vld [vmem:[%s4443 + $0x60] sm:$0xff]
  %v4457 = vld [vmem:[%s4443 + $0x68] sm:$0xff]
  %v4458 = vld [vmem:[%s4443 + $0x70] sm:$0xff]
  %v4459 = vld [vmem:[%s4443 + $0x78] sm:$0xff]
  %4460 = vmatprep.subr.mxu0 0.0
  %4461 = vmatpush1.msra.mxu0 %v4444
  %4462 = vmatprep.subr.mxu0 0.0
  %4463 = vmatpush1.msra.mxu0 %v4445
  %4464 = vmatprep.subr.mxu0 0.0
  %4465 = vmatpush1.msra.mxu0 %v4446
  %4466 = vmatprep.subr.mxu0 0.0
  %4467 = vmatpush1.msra.mxu0 %v4447
  %4468 = vmatprep.subr.mxu0 0.0
  %4469 = vmatpush1.msra.mxu0 %v4448
  %4470 = vmatprep.subr.mxu0 0.0
  %4471 = vmatpush1.msra.mxu0 %v4449
  %4472 = vmatprep.subr.mxu0 0.0
  %4473 = vmatpush1.msra.mxu0 %v4450
  %4474 = vmatprep.subr.mxu0 0.0
  %4475 = vmatpush1.msra.mxu0 %v4451
  %4476 = vmatprep.subr.mxu0 0.0
  %4477 = vmatpush1.msra.mxu0 %v4452
  %4478 = vmatprep.subr.mxu0 0.0
  %4479 = vmatpush1.msra.mxu0 %v4453
  %4480 = vmatprep.subr.mxu0 0.0
  %4481 = vmatpush1.msra.mxu0 %v4454
  %4482 = vmatprep.subr.mxu0 0.0
  %4483 = vmatpush1.msra.mxu0 %v4455
  %4484 = vmatprep.subr.mxu0 0.0
  %4485 = vmatpush1.msra.mxu0 %v4456
  %4486 = vmatprep.subr.mxu0 0.0
  %4487 = vmatpush1.msra.mxu0 %v4457
  %4488 = vmatprep.subr.mxu0 0.0
  %4489 = vmatpush1.msra.mxu0 %v4458
  %4490 = vmatprep.subr.mxu0 0.0
  %4491 = vmatpush1.msra.mxu0 %v4459
  %4492 = vmatprep.subr.mxu0 0.0
  %4493 = vmatpush1.msra.mxu0 0.0
  %4494 = vmatprep.subr.mxu0 0.0
  %4495 = vmatpush1.msra.mxu0 0.0
  %4496 = vmatprep.subr.mxu0 0.0
  %4497 = vmatpush1.msra.mxu0 0.0
  %4498 = vmatprep.subr.mxu0 0.0
  %4499 = vmatpush1.msra.mxu0 0.0
  %4500 = vmatprep.subr.mxu0 0.0
  %4501 = vmatpush1.msra.mxu0 0.0
  %4502 = vmatprep.subr.mxu0 0.0
  %4503 = vmatpush1.msra.mxu0 0.0
  %4504 = vmatprep.subr.mxu0 0.0
  %4505 = vmatpush1.msra.mxu0 0.0
  %4506 = vmatprep.subr.mxu0 0.0
  %4507 = vmatpush1.msra.mxu0 0.0
  %4508 = vmatprep.subr.mxu0 0.0
  %4509 = vmatpush1.msra.mxu0 0.0
  %4510 = vmatprep.subr.mxu0 0.0
  %4511 = vmatpush1.msra.mxu0 0.0
  %4512 = vmatprep.subr.mxu0 0.0
  %4513 = vmatpush1.msra.mxu0 0.0
  %4514 = vmatprep.subr.mxu0 0.0
  %4515 = vmatpush1.msra.mxu0 0.0
  %4516 = vmatprep.subr.mxu0 0.0
  %4517 = vmatpush1.msra.mxu0 0.0
  %4518 = vmatprep.subr.mxu0 0.0
  %4519 = vmatpush1.msra.mxu0 0.0
  %4520 = vmatprep.subr.mxu0 0.0
  %4521 = vmatpush1.msra.mxu0 0.0
  %4522 = vmatprep.subr.mxu0 0.0
  %4523 = vmatpush1.msra.mxu0 0.0
  %4524 = vmatprep.mubr.f32.mxu0 0.0
  %4525 = vmatmul.mubr.f32.gmra.mrb[0].mxu0 %v4427
  %v4526 = vpop.f32.mrb[0].mxu0
  %v4527 = vadd.f32 0.0, %v4526
  %v4528 = vpop.f32.mrb[0].mxu0
  %4529 = vmatprep.mubr.f32.mxu0 0.0
  %4530 = vmatmul.mubr.f32.gmra.mrb[0].mxu0 %v4428
  %v4531 = vpop.f32.mrb[0].mxu0
  %v4532 = vadd.f32 0.0, %v4531
  %v4533 = vpop.f32.mrb[0].mxu0
  %4534 = vmatprep.mubr.f32.mxu0 0.0
  %4535 = vmatmul.mubr.f32.gmra.mrb[0].mxu0 %v4429
  %v4536 = vpop.f32.mrb[0].mxu0
  %v4537 = vadd.f32 0.0, %v4536
  %v4538 = vpop.f32.mrb[0].mxu0
  %4539 = vmatprep.mubr.f32.mxu0 0.0
  %4540 = vmatmul.mubr.f32.gmra.mrb[0].mxu0 %v4430
  %v4541 = vpop.f32.mrb[0].mxu0
  %v4542 = vadd.f32 0.0, %v4541
  %v4543 = vpop.f32.mrb[0].mxu0
  %4544 = vmatprep.mubr.f32.mxu0 0.0
  %4545 = vmatmul.mubr.f32.gmra.mrb[0].mxu0 %v4431
  %v4546 = vpop.f32.mrb[0].mxu0
  %v4547 = vadd.f32 0.0, %v4546
  %v4548 = vpop.f32.mrb[0].mxu0
  %4549 = vmatprep.mubr.f32.mxu0 0.0
  %4550 = vmatmul.mubr.f32.gmra.mrb[0].mxu0 %v4432
  %v4551 = vpop.f32.mrb[0].mxu0
  %v4552 = vadd.f32 0.0, %v4551
  %v4553 = vpop.f32.mrb[0].mxu0
  %4554 = vmatprep.mubr.f32.mxu0 0.0
  %4555 = vmatmul.mubr.f32.gmra.mrb[0].mxu0 %v4433
  %v4556 = vpop.f32.mrb[0].mxu0
  %v4557 = vadd.f32 0.0, %v4556
  %v4558 = vpop.f32.mrb[0].mxu0
  %4559 = vmatprep.mubr.f32.mxu0 0.0
  %4560 = vmatmul.mubr.f32.gmra.mrb[0].mxu0 %v4434
  %v4561 = vpop.f32.mrb[0].mxu0
  %v4562 = vadd.f32 0.0, %v4561
  %v4563 = vpop.f32.mrb[0].mxu0
  %4564 = vmatprep.mubr.f32.mxu0 0.0
  %4565 = vmatmul.mubr.f32.gmra.mrb[0].mxu0 %v4435
  %v4566 = vpop.f32.mrb[0].mxu0
  %v4567 = vadd.f32 0.0, %v4566
  %v4568 = vpop.f32.mrb[0].mxu0
  %4569 = vmatprep.mubr.f32.mxu0 0.0
  %4570 = vmatmul.mubr.f32.gmra.mrb[0].mxu0 %v4436
  %v4571 = vpop.f32.mrb[0].mxu0
  %v4572 = vadd.f32 0.0, %v4571
  %v4573 = vpop.f32.mrb[0].mxu0
  %4574 = vmatprep.mubr.f32.mxu0 0.0
  %4575 = vmatmul.mubr.f32.gmra.mrb[0].mxu0 %v4437
  %v4576 = vpop.f32.mrb[0].mxu0
  %v4577 = vadd.f32 0.0, %v4576
  %v4578 = vpop.f32.mrb[0].mxu0
  %4579 = vmatprep.mubr.f32.mxu0 0.0
  %4580 = vmatmul.mubr.f32.gmra.mrb[0].mxu0 %v4438
  %v4581 = vpop.f32.mrb[0].mxu0
  %v4582 = vadd.f32 0.0, %v4581
  %v4583 = vpop.f32.mrb[0].mxu0
  %4584 = vmatprep.mubr.f32.mxu0 0.0
  %4585 = vmatmul.mubr.f32.gmra.mrb[0].mxu0 %v4439
  %v4586 = vpop.f32.mrb[0].mxu0
  %v4587 = vadd.f32 0.0, %v4586
  %v4588 = vpop.f32.mrb[0].mxu0
  %4589 = vmatprep.mubr.f32.mxu0 0.0
  %4590 = vmatmul.mubr.f32.gmra.mrb[0].mxu0 %v4440
  %v4591 = vpop.f32.mrb[0].mxu0
  %v4592 = vadd.f32 0.0, %v4591
  %v4593 = vpop.f32.mrb[0].mxu0
  %4594 = vmatprep.mubr.f32.mxu0 0.0
  %4595 = vmatmul.mubr.f32.gmra.mrb[0].mxu0 %v4441
  %v4596 = vpop.f32.mrb[0].mxu0
  %v4597 = vadd.f32 0.0, %v4596
  %v4598 = vpop.f32.mrb[0].mxu0
  %4599 = vmatprep.mubr.f32.mxu0 0.0
  %4600 = vmatmul.mubr.f32.gmra.mrb[0].mxu0 %v4442
  %v4601 = vpop.f32.mrb[0].mxu0
  %v4602 = vadd.f32 0.0, %v4601
  %v4603 = vpop.f32.mrb[0].mxu0
  %4604 = vdwg.mxu0
  %v4605 = vadd.f32 %v4411, %v4527
  %v4606 = vadd.f32 %v4412, %v4532
  %v4607 = vadd.f32 %v4413, %v4537
  %v4608 = vadd.f32 %v4414, %v4542
  %v4609 = vadd.f32 %v4415, %v4547
  %v4610 = vadd.f32 %v4416, %v4552
  %v4611 = vadd.f32 %v4417, %v4557
  %v4612 = vadd.f32 %v4418, %v4562
  %v4613 = vadd.f32 %v4419, %v4567
  %v4614 = vadd.f32 %v4420, %v4572
  %v4615 = vadd.f32 %v4421, %v4577
  %v4616 = vadd.f32 %v4422, %v4582
  %v4617 = vadd.f32 %v4423, %v4587
  %v4618 = vadd.f32 %v4424, %v4592
  %v4619 = vadd.f32 %v4425, %v4597
  %v4620 = vadd.f32 %v4426, %v4602
  %v4621 = vld [vmem:[%s3859 + $0x1] sm:$0xff]
  %v4622 = vld [vmem:[%s3859 + $0x11] sm:$0xff]
  %v4623 = vld [vmem:[%s3859 + $0x21] sm:$0xff]
  %v4624 = vld [vmem:[%s3859 + $0x31] sm:$0xff]
  %v4625 = vld [vmem:[%s3859 + $0x41] sm:$0xff]
  %v4626 = vld [vmem:[%s3859 + $0x51] sm:$0xff]
  %v4627 = vld [vmem:[%s3859 + $0x61] sm:$0xff]
  %v4628 = vld [vmem:[%s3859 + $0x71] sm:$0xff]
  %v4629 = vld [vmem:[%s3859 + $0xa1] sm:$0xff]
  %v4630 = vld [vmem:[%s3859 + $0xb1] sm:$0xff]
  %v4631 = vld [vmem:[%s3859 + $0xc1] sm:$0xff]
  %v4632 = vld [vmem:[%s3859 + $0xd1] sm:$0xff]
  %v4633 = vld [vmem:[%s3859 + $0xe1] sm:$0xff]
  %v4634 = vld [vmem:[%s3859 + $0xf1] sm:$0xff]
  %v4635 = vld [vmem:[%s3859 + $0x101] sm:$0xff]
  %v4636 = vld [vmem:[%s3859 + $0x111] sm:$0xff]
  %s4637 = scalar_lea.vmem %s1, 2816
  %v4638 = vld [vmem:[%s4637] sm:$0xff]
  %v4639 = vld [vmem:[%s4637 + $0x8] sm:$0xff]
  %v4640 = vld [vmem:[%s4637 + $0x10] sm:$0xff]
  %v4641 = vld [vmem:[%s4637 + $0x18] sm:$0xff]
  %v4642 = vld [vmem:[%s4637 + $0x20] sm:$0xff]
  %v4643 = vld [vmem:[%s4637 + $0x28] sm:$0xff]
  %v4644 = vld [vmem:[%s4637 + $0x30] sm:$0xff]
  %v4645 = vld [vmem:[%s4637 + $0x38] sm:$0xff]
  %v4646 = vld [vmem:[%s4637 + $0x40] sm:$0xff]
  %v4647 = vld [vmem:[%s4637 + $0x48] sm:$0xff]
  %v4648 = vld [vmem:[%s4637 + $0x50] sm:$0xff]
  %v4649 = vld [vmem:[%s4637 + $0x58] sm:$0xff]
  %v4650 = vld [vmem:[%s4637 + $0x60] sm:$0xff]
  %v4651 = vld [vmem:[%s4637 + $0x68] sm:$0xff]
  %v4652 = vld [vmem:[%s4637 + $0x70] sm:$0xff]
  %v4653 = vld [vmem:[%s4637 + $0x78] sm:$0xff]
  %4654 = vmatprep.subr.mxu0 0.0
  %4655 = vmatpush1.msra.mxu0 %v4638
  %4656 = vmatprep.subr.mxu0 0.0
  %4657 = vmatpush1.msra.mxu0 %v4639
  %4658 = vmatprep.subr.mxu0 0.0
  %4659 = vmatpush1.msra.mxu0 %v4640
  %4660 = vmatprep.subr.mxu0 0.0
  %4661 = vmatpush1.msra.mxu0 %v4641
  %4662 = vmatprep.subr.mxu0 0.0
  %4663 = vmatpush1.msra.mxu0 %v4642
  %4664 = vmatprep.subr.mxu0 0.0
  %4665 = vmatpush1.msra.mxu0 %v4643
  %4666 = vmatprep.subr.mxu0 0.0
  %4667 = vmatpush1.msra.mxu0 %v4644
  %4668 = vmatprep.subr.mxu0 0.0
  %4669 = vmatpush1.msra.mxu0 %v4645
  %4670 = vmatprep.subr.mxu0 0.0
  %4671 = vmatpush1.msra.mxu0 %v4646
  %4672 = vmatprep.subr.mxu0 0.0
  %4673 = vmatpush1.msra.mxu0 %v4647
  %4674 = vmatprep.subr.mxu0 0.0
  %4675 = vmatpush1.msra.mxu0 %v4648
  %4676 = vmatprep.subr.mxu0 0.0
  %4677 = vmatpush1.msra.mxu0 %v4649
  %4678 = vmatprep.subr.mxu0 0.0
  %4679 = vmatpush1.msra.mxu0 %v4650
  %4680 = vmatprep.subr.mxu0 0.0
  %4681 = vmatpush1.msra.mxu0 %v4651
  %4682 = vmatprep.subr.mxu0 0.0
  %4683 = vmatpush1.msra.mxu0 %v4652
  %4684 = vmatprep.subr.mxu0 0.0
  %4685 = vmatpush1.msra.mxu0 %v4653
  %4686 = vmatprep.subr.mxu0 0.0
  %4687 = vmatpush1.msra.mxu0 0.0
  %4688 = vmatprep.subr.mxu0 0.0
  %4689 = vmatpush1.msra.mxu0 0.0
  %4690 = vmatprep.subr.mxu0 0.0
  %4691 = vmatpush1.msra.mxu0 0.0
  %4692 = vmatprep.subr.mxu0 0.0
  %4693 = vmatpush1.msra.mxu0 0.0
  %4694 = vmatprep.subr.mxu0 0.0
  %4695 = vmatpush1.msra.mxu0 0.0
  %4696 = vmatprep.subr.mxu0 0.0
  %4697 = vmatpush1.msra.mxu0 0.0
  %4698 = vmatprep.subr.mxu0 0.0
  %4699 = vmatpush1.msra.mxu0 0.0
  %4700 = vmatprep.subr.mxu0 0.0
  %4701 = vmatpush1.msra.mxu0 0.0
  %4702 = vmatprep.subr.mxu0 0.0
  %4703 = vmatpush1.msra.mxu0 0.0
  %4704 = vmatprep.subr.mxu0 0.0
  %4705 = vmatpush1.msra.mxu0 0.0
  %4706 = vmatprep.subr.mxu0 0.0
  %4707 = vmatpush1.msra.mxu0 0.0
  %4708 = vmatprep.subr.mxu0 0.0
  %4709 = vmatpush1.msra.mxu0 0.0
  %4710 = vmatprep.subr.mxu0 0.0
  %4711 = vmatpush1.msra.mxu0 0.0
  %4712 = vmatprep.subr.mxu0 0.0
  %4713 = vmatpush1.msra.mxu0 0.0
  %4714 = vmatprep.subr.mxu0 0.0
  %4715 = vmatpush1.msra.mxu0 0.0
  %4716 = vmatprep.subr.mxu0 0.0
  %4717 = vmatpush1.msra.mxu0 0.0
  %4718 = vmatprep.mubr.f32.mxu0 0.0
  %4719 = vmatmul.mubr.f32.gmra.mrb[0].mxu0 %v4621
  %v4720 = vpop.f32.mrb[0].mxu0
  %v4721 = vadd.f32 0.0, %v4720
  %v4722 = vpop.f32.mrb[0].mxu0
  %4723 = vmatprep.mubr.f32.mxu0 0.0
  %4724 = vmatmul.mubr.f32.gmra.mrb[0].mxu0 %v4622
  %v4725 = vpop.f32.mrb[0].mxu0
  %v4726 = vadd.f32 0.0, %v4725
  %v4727 = vpop.f32.mrb[0].mxu0
  %4728 = vmatprep.mubr.f32.mxu0 0.0
  %4729 = vmatmul.mubr.f32.gmra.mrb[0].mxu0 %v4623
  %v4730 = vpop.f32.mrb[0].mxu0
  %v4731 = vadd.f32 0.0, %v4730
  %v4732 = vpop.f32.mrb[0].mxu0
  %4733 = vmatprep.mubr.f32.mxu0 0.0
  %4734 = vmatmul.mubr.f32.gmra.mrb[0].mxu0 %v4624
  %v4735 = vpop.f32.mrb[0].mxu0
  %v4736 = vadd.f32 0.0, %v4735
  %v4737 = vpop.f32.mrb[0].mxu0
  %4738 = vmatprep.mubr.f32.mxu0 0.0
  %4739 = vmatmul.mubr.f32.gmra.mrb[0].mxu0 %v4625
  %v4740 = vpop.f32.mrb[0].mxu0
  %v4741 = vadd.f32 0.0, %v4740
  %v4742 = vpop.f32.mrb[0].mxu0
  %4743 = vmatprep.mubr.f32.mxu0 0.0
  %4744 = vmatmul.mubr.f32.gmra.mrb[0].mxu0 %v4626
  %v4745 = vpop.f32.mrb[0].mxu0
  %v4746 = vadd.f32 0.0, %v4745
  %v4747 = vpop.f32.mrb[0].mxu0
  %4748 = vmatprep.mubr.f32.mxu0 0.0
  %4749 = vmatmul.mubr.f32.gmra.mrb[0].mxu0 %v4627
  %v4750 = vpop.f32.mrb[0].mxu0
  %v4751 = vadd.f32 0.0, %v4750
  %v4752 = vpop.f32.mrb[0].mxu0
  %4753 = vmatprep.mubr.f32.mxu0 0.0
  %4754 = vmatmul.mubr.f32.gmra.mrb[0].mxu0 %v4628
  %v4755 = vpop.f32.mrb[0].mxu0
  %v4756 = vadd.f32 0.0, %v4755
  %v4757 = vpop.f32.mrb[0].mxu0
  %4758 = vmatprep.mubr.f32.mxu0 0.0
  %4759 = vmatmul.mubr.f32.gmra.mrb[0].mxu0 %v4629
  %v4760 = vpop.f32.mrb[0].mxu0
  %v4761 = vadd.f32 0.0, %v4760
  %v4762 = vpop.f32.mrb[0].mxu0
  %4763 = vmatprep.mubr.f32.mxu0 0.0
  %4764 = vmatmul.mubr.f32.gmra.mrb[0].mxu0 %v4630
  %v4765 = vpop.f32.mrb[0].mxu0
  %v4766 = vadd.f32 0.0, %v4765
  %v4767 = vpop.f32.mrb[0].mxu0
  %4768 = vmatprep.mubr.f32.mxu0 0.0
  %4769 = vmatmul.mubr.f32.gmra.mrb[0].mxu0 %v4631
  %v4770 = vpop.f32.mrb[0].mxu0
  %v4771 = vadd.f32 0.0, %v4770
  %v4772 = vpop.f32.mrb[0].mxu0
  %4773 = vmatprep.mubr.f32.mxu0 0.0
  %4774 = vmatmul.mubr.f32.gmra.mrb[0].mxu0 %v4632
  %v4775 = vpop.f32.mrb[0].mxu0
  %v4776 = vadd.f32 0.0, %v4775
  %v4777 = vpop.f32.mrb[0].mxu0
  %4778 = vmatprep.mubr.f32.mxu0 0.0
  %4779 = vmatmul.mubr.f32.gmra.mrb[0].mxu0 %v4633
  %v4780 = vpop.f32.mrb[0].mxu0
  %v4781 = vadd.f32 0.0, %v4780
  %v4782 = vpop.f32.mrb[0].mxu0
  %4783 = vmatprep.mubr.f32.mxu0 0.0
  %4784 = vmatmul.mubr.f32.gmra.mrb[0].mxu0 %v4634
  %v4785 = vpop.f32.mrb[0].mxu0
  %v4786 = vadd.f32 0.0, %v4785
  %v4787 = vpop.f32.mrb[0].mxu0
  %4788 = vmatprep.mubr.f32.mxu0 0.0
  %4789 = vmatmul.mubr.f32.gmra.mrb[0].mxu0 %v4635
  %v4790 = vpop.f32.mrb[0].mxu0
  %v4791 = vadd.f32 0.0, %v4790
  %v4792 = vpop.f32.mrb[0].mxu0
  %4793 = vmatprep.mubr.f32.mxu0 0.0
  %4794 = vmatmul.mubr.f32.gmra.mrb[0].mxu0 %v4636
  %v4795 = vpop.f32.mrb[0].mxu0
  %v4796 = vadd.f32 0.0, %v4795
  %v4797 = vpop.f32.mrb[0].mxu0
  %4798 = vdwg.mxu0
  %v4799 = vadd.f32 %v4605, %v4721
  %v4800 = vadd.f32 %v4606, %v4726
  %v4801 = vadd.f32 %v4607, %v4731
  %v4802 = vadd.f32 %v4608, %v4736
  %v4803 = vadd.f32 %v4609, %v4741
  %v4804 = vadd.f32 %v4610, %v4746
  %v4805 = vadd.f32 %v4611, %v4751
  %v4806 = vadd.f32 %v4612, %v4756
  %v4807 = vadd.f32 %v4613, %v4761
  %v4808 = vadd.f32 %v4614, %v4766
  %v4809 = vadd.f32 %v4615, %v4771
  %v4810 = vadd.f32 %v4616, %v4776
  %v4811 = vadd.f32 %v4617, %v4781
  %v4812 = vadd.f32 %v4618, %v4786
  %v4813 = vadd.f32 %v4619, %v4791
  %v4814 = vadd.f32 %v4620, %v4796
  %v4815 = vld [vmem:[%s3859 + $0x2] sm:$0xff]
  %v4816 = vld [vmem:[%s3859 + $0x12] sm:$0xff]
  %v4817 = vld [vmem:[%s3859 + $0x22] sm:$0xff]
  %v4818 = vld [vmem:[%s3859 + $0x32] sm:$0xff]
  %v4819 = vld [vmem:[%s3859 + $0x42] sm:$0xff]
  %v4820 = vld [vmem:[%s3859 + $0x52] sm:$0xff]
  %v4821 = vld [vmem:[%s3859 + $0x62] sm:$0xff]
  %v4822 = vld [vmem:[%s3859 + $0x72] sm:$0xff]
  %v4823 = vld [vmem:[%s3859 + $0xa2] sm:$0xff]
  %v4824 = vld [vmem:[%s3859 + $0xb2] sm:$0xff]
  %v4825 = vld [vmem:[%s3859 + $0xc2] sm:$0xff]
  %v4826 = vld [vmem:[%s3859 + $0xd2] sm:$0xff]
  %v4827 = vld [vmem:[%s3859 + $0xe2] sm:$0xff]
  %v4828 = vld [vmem:[%s3859 + $0xf2] sm:$0xff]
  %v4829 = vld [vmem:[%s3859 + $0x102] sm:$0xff]
  %v4830 = vld [vmem:[%s3859 + $0x112] sm:$0xff]
  %s4831 = scalar_lea.vmem %s1, 2944
  %v4832 = vld [vmem:[%s4831] sm:$0xff]
  %v4833 = vld [vmem:[%s4831 + $0x8] sm:$0xff]
  %v4834 = vld [vmem:[%s4831 + $0x10] sm:$0xff]
  %v4835 = vld [vmem:[%s4831 + $0x18] sm:$0xff]
  %v4836 = vld [vmem:[%s4831 + $0x20] sm:$0xff]
  %v4837 = vld [vmem:[%s4831 + $0x28] sm:$0xff]
  %v4838 = vld [vmem:[%s4831 + $0x30] sm:$0xff]
  %v4839 = vld [vmem:[%s4831 + $0x38] sm:$0xff]
  %v4840 = vld [vmem:[%s4831 + $0x40] sm:$0xff]
  %v4841 = vld [vmem:[%s4831 + $0x48] sm:$0xff]
  %v4842 = vld [vmem:[%s4831 + $0x50] sm:$0xff]
  %v4843 = vld [vmem:[%s4831 + $0x58] sm:$0xff]
  %v4844 = vld [vmem:[%s4831 + $0x60] sm:$0xff]
  %v4845 = vld [vmem:[%s4831 + $0x68] sm:$0xff]
  %v4846 = vld [vmem:[%s4831 + $0x70] sm:$0xff]
  %v4847 = vld [vmem:[%s4831 + $0x78] sm:$0xff]
  %4848 = vmatprep.subr.mxu0 0.0
  %4849 = vmatpush1.msra.mxu0 %v4832
  %4850 = vmatprep.subr.mxu0 0.0
  %4851 = vmatpush1.msra.mxu0 %v4833
  %4852 = vmatprep.subr.mxu0 0.0
  %4853 = vmatpush1.msra.mxu0 %v4834
  %4854 = vmatprep.subr.mxu0 0.0
  %4855 = vmatpush1.msra.mxu0 %v4835
  %4856 = vmatprep.subr.mxu0 0.0
  %4857 = vmatpush1.msra.mxu0 %v4836
  %4858 = vmatprep.subr.mxu0 0.0
  %4859 = vmatpush1.msra.mxu0 %v4837
  %4860 = vmatprep.subr.mxu0 0.0
  %4861 = vmatpush1.msra.mxu0 %v4838
  %4862 = vmatprep.subr.mxu0 0.0
  %4863 = vmatpush1.msra.mxu0 %v4839
  %4864 = vmatprep.subr.mxu0 0.0
  %4865 = vmatpush1.msra.mxu0 %v4840
  %4866 = vmatprep.subr.mxu0 0.0
  %4867 = vmatpush1.msra.mxu0 %v4841
  %4868 = vmatprep.subr.mxu0 0.0
  %4869 = vmatpush1.msra.mxu0 %v4842
  %4870 = vmatprep.subr.mxu0 0.0
  %4871 = vmatpush1.msra.mxu0 %v4843
  %4872 = vmatprep.subr.mxu0 0.0
  %4873 = vmatpush1.msra.mxu0 %v4844
  %4874 = vmatprep.subr.mxu0 0.0
  %4875 = vmatpush1.msra.mxu0 %v4845
  %4876 = vmatprep.subr.mxu0 0.0
  %4877 = vmatpush1.msra.mxu0 %v4846
  %4878 = vmatprep.subr.mxu0 0.0
  %4879 = vmatpush1.msra.mxu0 %v4847
  %4880 = vmatprep.subr.mxu0 0.0
  %4881 = vmatpush1.msra.mxu0 0.0
  %4882 = vmatprep.subr.mxu0 0.0
  %4883 = vmatpush1.msra.mxu0 0.0
  %4884 = vmatprep.subr.mxu0 0.0
  %4885 = vmatpush1.msra.mxu0 0.0
  %4886 = vmatprep.subr.mxu0 0.0
  %4887 = vmatpush1.msra.mxu0 0.0
  %4888 = vmatprep.subr.mxu0 0.0
  %4889 = vmatpush1.msra.mxu0 0.0
  %4890 = vmatprep.subr.mxu0 0.0
  %4891 = vmatpush1.msra.mxu0 0.0
  %4892 = vmatprep.subr.mxu0 0.0
  %4893 = vmatpush1.msra.mxu0 0.0
  %4894 = vmatprep.subr.mxu0 0.0
  %4895 = vmatpush1.msra.mxu0 0.0
  %4896 = vmatprep.subr.mxu0 0.0
  %4897 = vmatpush1.msra.mxu0 0.0
  %4898 = vmatprep.subr.mxu0 0.0
  %4899 = vmatpush1.msra.mxu0 0.0
  %4900 = vmatprep.subr.mxu0 0.0
  %4901 = vmatpush1.msra.mxu0 0.0
  %4902 = vmatprep.subr.mxu0 0.0
  %4903 = vmatpush1.msra.mxu0 0.0
  %4904 = vmatprep.subr.mxu0 0.0
  %4905 = vmatpush1.msra.mxu0 0.0
  %4906 = vmatprep.subr.mxu0 0.0
  %4907 = vmatpush1.msra.mxu0 0.0
  %4908 = vmatprep.subr.mxu0 0.0
  %4909 = vmatpush1.msra.mxu0 0.0
  %4910 = vmatprep.subr.mxu0 0.0
  %4911 = vmatpush1.msra.mxu0 0.0
  %4912 = vmatprep.mubr.f32.mxu0 0.0
  %4913 = vmatmul.mubr.f32.gmra.mrb[0].mxu0 %v4815
  %v4914 = vpop.f32.mrb[0].mxu0
  %v4915 = vadd.f32 0.0, %v4914
  %v4916 = vpop.f32.mrb[0].mxu0
  %4917 = vmatprep.mubr.f32.mxu0 0.0
  %4918 = vmatmul.mubr.f32.gmra.mrb[0].mxu0 %v4816
  %v4919 = vpop.f32.mrb[0].mxu0
  %v4920 = vadd.f32 0.0, %v4919
  %v4921 = vpop.f32.mrb[0].mxu0
  %4922 = vmatprep.mubr.f32.mxu0 0.0
  %4923 = vmatmul.mubr.f32.gmra.mrb[0].mxu0 %v4817
  %v4924 = vpop.f32.mrb[0].mxu0
  %v4925 = vadd.f32 0.0, %v4924
  %v4926 = vpop.f32.mrb[0].mxu0
  %4927 = vmatprep.mubr.f32.mxu0 0.0
  %4928 = vmatmul.mubr.f32.gmra.mrb[0].mxu0 %v4818
  %v4929 = vpop.f32.mrb[0].mxu0
  %v4930 = vadd.f32 0.0, %v4929
  %v4931 = vpop.f32.mrb[0].mxu0
  %4932 = vmatprep.mubr.f32.mxu0 0.0
  %4933 = vmatmul.mubr.f32.gmra.mrb[0].mxu0 %v4819
  %v4934 = vpop.f32.mrb[0].mxu0
  %v4935 = vadd.f32 0.0, %v4934
  %v4936 = vpop.f32.mrb[0].mxu0
  %4937 = vmatprep.mubr.f32.mxu0 0.0
  %4938 = vmatmul.mubr.f32.gmra.mrb[0].mxu0 %v4820
  %v4939 = vpop.f32.mrb[0].mxu0
  %v4940 = vadd.f32 0.0, %v4939
  %v4941 = vpop.f32.mrb[0].mxu0
  %4942 = vmatprep.mubr.f32.mxu0 0.0
  %4943 = vmatmul.mubr.f32.gmra.mrb[0].mxu0 %v4821
  %v4944 = vpop.f32.mrb[0].mxu0
  %v4945 = vadd.f32 0.0, %v4944
  %v4946 = vpop.f32.mrb[0].mxu0
  %4947 = vmatprep.mubr.f32.mxu0 0.0
  %4948 = vmatmul.mubr.f32.gmra.mrb[0].mxu0 %v4822
  %v4949 = vpop.f32.mrb[0].mxu0
  %v4950 = vadd.f32 0.0, %v4949
  %v4951 = vpop.f32.mrb[0].mxu0
  %4952 = vmatprep.mubr.f32.mxu0 0.0
  %4953 = vmatmul.mubr.f32.gmra.mrb[0].mxu0 %v4823
  %v4954 = vpop.f32.mrb[0].mxu0
  %v4955 = vadd.f32 0.0, %v4954
  %v4956 = vpop.f32.mrb[0].mxu0
  %4957 = vmatprep.mubr.f32.mxu0 0.0
  %4958 = vmatmul.mubr.f32.gmra.mrb[0].mxu0 %v4824
  %v4959 = vpop.f32.mrb[0].mxu0
  %v4960 = vadd.f32 0.0, %v4959
  %v4961 = vpop.f32.mrb[0].mxu0
  %4962 = vmatprep.mubr.f32.mxu0 0.0
  %4963 = vmatmul.mubr.f32.gmra.mrb[0].mxu0 %v4825
  %v4964 = vpop.f32.mrb[0].mxu0
  %v4965 = vadd.f32 0.0, %v4964
  %v4966 = vpop.f32.mrb[0].mxu0
  %4967 = vmatprep.mubr.f32.mxu0 0.0
  %4968 = vmatmul.mubr.f32.gmra.mrb[0].mxu0 %v4826
  %v4969 = vpop.f32.mrb[0].mxu0
  %v4970 = vadd.f32 0.0, %v4969
  %v4971 = vpop.f32.mrb[0].mxu0
  %4972 = vmatprep.mubr.f32.mxu0 0.0
  %4973 = vmatmul.mubr.f32.gmra.mrb[0].mxu0 %v4827
  %v4974 = vpop.f32.mrb[0].mxu0
  %v4975 = vadd.f32 0.0, %v4974
  %v4976 = vpop.f32.mrb[0].mxu0
  %4977 = vmatprep.mubr.f32.mxu0 0.0
  %4978 = vmatmul.mubr.f32.gmra.mrb[0].mxu0 %v4828
  %v4979 = vpop.f32.mrb[0].mxu0
  %v4980 = vadd.f32 0.0, %v4979
  %v4981 = vpop.f32.mrb[0].mxu0
  %4982 = vmatprep.mubr.f32.mxu0 0.0
  %4983 = vmatmul.mubr.f32.gmra.mrb[0].mxu0 %v4829
  %v4984 = vpop.f32.mrb[0].mxu0
  %v4985 = vadd.f32 0.0, %v4984
  %v4986 = vpop.f32.mrb[0].mxu0
  %4987 = vmatprep.mubr.f32.mxu0 0.0
  %4988 = vmatmul.mubr.f32.gmra.mrb[0].mxu0 %v4830
  %v4989 = vpop.f32.mrb[0].mxu0
  %v4990 = vadd.f32 0.0, %v4989
  %v4991 = vpop.f32.mrb[0].mxu0
  %4992 = vdwg.mxu0
  %v4993 = vadd.f32 %v4799, %v4915
  %v4994 = vadd.f32 %v4800, %v4920
  %v4995 = vadd.f32 %v4801, %v4925
  %v4996 = vadd.f32 %v4802, %v4930
  %v4997 = vadd.f32 %v4803, %v4935
  %v4998 = vadd.f32 %v4804, %v4940
  %v4999 = vadd.f32 %v4805, %v4945
  %v5000 = vadd.f32 %v4806, %v4950
  %v5001 = vadd.f32 %v4807, %v4955
  %v5002 = vadd.f32 %v4808, %v4960
  %v5003 = vadd.f32 %v4809, %v4965
  %v5004 = vadd.f32 %v4810, %v4970
  %v5005 = vadd.f32 %v4811, %v4975
  %v5006 = vadd.f32 %v4812, %v4980
  %v5007 = vadd.f32 %v4813, %v4985
  %v5008 = vadd.f32 %v4814, %v4990
  %s5009 = scalar_lea.vmem [#allocation2], 352
  %v5010 = vld [vmem:[%s5009] sm:$0xff]
  %v5011 = vld [vmem:[%s5009 + $0x10] sm:$0xff]
  %v5012 = vld [vmem:[%s5009 + $0x20] sm:$0xff]
  %v5013 = vld [vmem:[%s5009 + $0x30] sm:$0xff]
  %v5014 = vld [vmem:[%s5009 + $0x40] sm:$0xff]
  %v5015 = vld [vmem:[%s5009 + $0x50] sm:$0xff]
  %v5016 = vld [vmem:[%s5009 + $0x60] sm:$0xff]
  %v5017 = vld [vmem:[%s5009 + $0x70] sm:$0xff]
  %v5018 = vld [vmem:[%s5009 + $0xa0] sm:$0xff]
  %v5019 = vld [vmem:[%s5009 + $0xb0] sm:$0xff]
  %v5020 = vld [vmem:[%s5009 + $0xc0] sm:$0xff]
  %v5021 = vld [vmem:[%s5009 + $0xd0] sm:$0xff]
  %v5022 = vld [vmem:[%s5009 + $0xe0] sm:$0xff]
  %v5023 = vld [vmem:[%s5009 + $0xf0] sm:$0xff]
  %v5024 = vld [vmem:[%s5009 + $0x100] sm:$0xff]
  %v5025 = vld [vmem:[%s5009 + $0x110] sm:$0xff]
  %s5026 = scalar_lea.vmem %s1, 3072
  %v5027 = vld [vmem:[%s5026] sm:$0xff]
  %v5028 = vld [vmem:[%s5026 + $0x8] sm:$0xff]
  %v5029 = vld [vmem:[%s5026 + $0x10] sm:$0xff]
  %v5030 = vld [vmem:[%s5026 + $0x18] sm:$0xff]
  %v5031 = vld [vmem:[%s5026 + $0x20] sm:$0xff]
  %v5032 = vld [vmem:[%s5026 + $0x28] sm:$0xff]
  %v5033 = vld [vmem:[%s5026 + $0x30] sm:$0xff]
  %v5034 = vld [vmem:[%s5026 + $0x38] sm:$0xff]
  %v5035 = vld [vmem:[%s5026 + $0x40] sm:$0xff]
  %v5036 = vld [vmem:[%s5026 + $0x48] sm:$0xff]
  %v5037 = vld [vmem:[%s5026 + $0x50] sm:$0xff]
  %v5038 = vld [vmem:[%s5026 + $0x58] sm:$0xff]
  %v5039 = vld [vmem:[%s5026 + $0x60] sm:$0xff]
  %v5040 = vld [vmem:[%s5026 + $0x68] sm:$0xff]
  %v5041 = vld [vmem:[%s5026 + $0x70] sm:$0xff]
  %v5042 = vld [vmem:[%s5026 + $0x78] sm:$0xff]
  %5043 = vmatprep.subr.mxu0 0.0
  %5044 = vmatpush1.msra.mxu0 %v5027
  %5045 = vmatprep.subr.mxu0 0.0
  %5046 = vmatpush1.msra.mxu0 %v5028
  %5047 = vmatprep.subr.mxu0 0.0
  %5048 = vmatpush1.msra.mxu0 %v5029
  %5049 = vmatprep.subr.mxu0 0.0
  %5050 = vmatpush1.msra.mxu0 %v5030
  %5051 = vmatprep.subr.mxu0 0.0
  %5052 = vmatpush1.msra.mxu0 %v5031
  %5053 = vmatprep.subr.mxu0 0.0
  %5054 = vmatpush1.msra.mxu0 %v5032
  %5055 = vmatprep.subr.mxu0 0.0
  %5056 = vmatpush1.msra.mxu0 %v5033
  %5057 = vmatprep.subr.mxu0 0.0
  %5058 = vmatpush1.msra.mxu0 %v5034
  %5059 = vmatprep.subr.mxu0 0.0
  %5060 = vmatpush1.msra.mxu0 %v5035
  %5061 = vmatprep.subr.mxu0 0.0
  %5062 = vmatpush1.msra.mxu0 %v5036
  %5063 = vmatprep.subr.mxu0 0.0
  %5064 = vmatpush1.msra.mxu0 %v5037
  %5065 = vmatprep.subr.mxu0 0.0
  %5066 = vmatpush1.msra.mxu0 %v5038
  %5067 = vmatprep.subr.mxu0 0.0
  %5068 = vmatpush1.msra.mxu0 %v5039
  %5069 = vmatprep.subr.mxu0 0.0
  %5070 = vmatpush1.msra.mxu0 %v5040
  %5071 = vmatprep.subr.mxu0 0.0
  %5072 = vmatpush1.msra.mxu0 %v5041
  %5073 = vmatprep.subr.mxu0 0.0
  %5074 = vmatpush1.msra.mxu0 %v5042
  %5075 = vmatprep.subr.mxu0 0.0
  %5076 = vmatpush1.msra.mxu0 0.0
  %5077 = vmatprep.subr.mxu0 0.0
  %5078 = vmatpush1.msra.mxu0 0.0
  %5079 = vmatprep.subr.mxu0 0.0
  %5080 = vmatpush1.msra.mxu0 0.0
  %5081 = vmatprep.subr.mxu0 0.0
  %5082 = vmatpush1.msra.mxu0 0.0
  %5083 = vmatprep.subr.mxu0 0.0
  %5084 = vmatpush1.msra.mxu0 0.0
  %5085 = vmatprep.subr.mxu0 0.0
  %5086 = vmatpush1.msra.mxu0 0.0
  %5087 = vmatprep.subr.mxu0 0.0
  %5088 = vmatpush1.msra.mxu0 0.0
  %5089 = vmatprep.subr.mxu0 0.0
  %5090 = vmatpush1.msra.mxu0 0.0
  %5091 = vmatprep.subr.mxu0 0.0
  %5092 = vmatpush1.msra.mxu0 0.0
  %5093 = vmatprep.subr.mxu0 0.0
  %5094 = vmatpush1.msra.mxu0 0.0
  %5095 = vmatprep.subr.mxu0 0.0
  %5096 = vmatpush1.msra.mxu0 0.0
  %5097 = vmatprep.subr.mxu0 0.0
  %5098 = vmatpush1.msra.mxu0 0.0
  %5099 = vmatprep.subr.mxu0 0.0
  %5100 = vmatpush1.msra.mxu0 0.0
  %5101 = vmatprep.subr.mxu0 0.0
  %5102 = vmatpush1.msra.mxu0 0.0
  %5103 = vmatprep.subr.mxu0 0.0
  %5104 = vmatpush1.msra.mxu0 0.0
  %5105 = vmatprep.subr.mxu0 0.0
  %5106 = vmatpush1.msra.mxu0 0.0
  %5107 = vmatprep.mubr.f32.mxu0 0.0
  %5108 = vmatmul.mubr.f32.gmra.mrb[0].mxu0 %v5010
  %v5109 = vpop.f32.mrb[0].mxu0
  %v5110 = vadd.f32 0.0, %v5109
  %v5111 = vpop.f32.mrb[0].mxu0
  %5112 = vmatprep.mubr.f32.mxu0 0.0
  %5113 = vmatmul.mubr.f32.gmra.mrb[0].mxu0 %v5011
  %v5114 = vpop.f32.mrb[0].mxu0
  %v5115 = vadd.f32 0.0, %v5114
  %v5116 = vpop.f32.mrb[0].mxu0
  %5117 = vmatprep.mubr.f32.mxu0 0.0
  %5118 = vmatmul.mubr.f32.gmra.mrb[0].mxu0 %v5012
  %v5119 = vpop.f32.mrb[0].mxu0
  %v5120 = vadd.f32 0.0, %v5119
  %v5121 = vpop.f32.mrb[0].mxu0
  %5122 = vmatprep.mubr.f32.mxu0 0.0
  %5123 = vmatmul.mubr.f32.gmra.mrb[0].mxu0 %v5013
  %v5124 = vpop.f32.mrb[0].mxu0
  %v5125 = vadd.f32 0.0, %v5124
  %v5126 = vpop.f32.mrb[0].mxu0
  %5127 = vmatprep.mubr.f32.mxu0 0.0
  %5128 = vmatmul.mubr.f32.gmra.mrb[0].mxu0 %v5014
  %v5129 = vpop.f32.mrb[0].mxu0
  %v5130 = vadd.f32 0.0, %v5129
  %v5131 = vpop.f32.mrb[0].mxu0
  %5132 = vmatprep.mubr.f32.mxu0 0.0
  %5133 = vmatmul.mubr.f32.gmra.mrb[0].mxu0 %v5015
  %v5134 = vpop.f32.mrb[0].mxu0
  %v5135 = vadd.f32 0.0, %v5134
  %v5136 = vpop.f32.mrb[0].mxu0
  %5137 = vmatprep.mubr.f32.mxu0 0.0
  %5138 = vmatmul.mubr.f32.gmra.mrb[0].mxu0 %v5016
  %v5139 = vpop.f32.mrb[0].mxu0
  %v5140 = vadd.f32 0.0, %v5139
  %v5141 = vpop.f32.mrb[0].mxu0
  %5142 = vmatprep.mubr.f32.mxu0 0.0
  %5143 = vmatmul.mubr.f32.gmra.mrb[0].mxu0 %v5017
  %v5144 = vpop.f32.mrb[0].mxu0
  %v5145 = vadd.f32 0.0, %v5144
  %v5146 = vpop.f32.mrb[0].mxu0
  %5147 = vmatprep.mubr.f32.mxu0 0.0
  %5148 = vmatmul.mubr.f32.gmra.mrb[0].mxu0 %v5018
  %v5149 = vpop.f32.mrb[0].mxu0
  %v5150 = vadd.f32 0.0, %v5149
  %v5151 = vpop.f32.mrb[0].mxu0
  %5152 = vmatprep.mubr.f32.mxu0 0.0
  %5153 = vmatmul.mubr.f32.gmra.mrb[0].mxu0 %v5019
  %v5154 = vpop.f32.mrb[0].mxu0
  %v5155 = vadd.f32 0.0, %v5154
  %v5156 = vpop.f32.mrb[0].mxu0
  %5157 = vmatprep.mubr.f32.mxu0 0.0
  %5158 = vmatmul.mubr.f32.gmra.mrb[0].mxu0 %v5020
  %v5159 = vpop.f32.mrb[0].mxu0
  %v5160 = vadd.f32 0.0, %v5159
  %v5161 = vpop.f32.mrb[0].mxu0
  %5162 = vmatprep.mubr.f32.mxu0 0.0
  %5163 = vmatmul.mubr.f32.gmra.mrb[0].mxu0 %v5021
  %v5164 = vpop.f32.mrb[0].mxu0
  %v5165 = vadd.f32 0.0, %v5164
  %v5166 = vpop.f32.mrb[0].mxu0
  %5167 = vmatprep.mubr.f32.mxu0 0.0
  %5168 = vmatmul.mubr.f32.gmra.mrb[0].mxu0 %v5022
  %v5169 = vpop.f32.mrb[0].mxu0
  %v5170 = vadd.f32 0.0, %v5169
  %v5171 = vpop.f32.mrb[0].mxu0
  %5172 = vmatprep.mubr.f32.mxu0 0.0
  %5173 = vmatmul.mubr.f32.gmra.mrb[0].mxu0 %v5023
  %v5174 = vpop.f32.mrb[0].mxu0
  %v5175 = vadd.f32 0.0, %v5174
  %v5176 = vpop.f32.mrb[0].mxu0
  %5177 = vmatprep.mubr.f32.mxu0 0.0
  %5178 = vmatmul.mubr.f32.gmra.mrb[0].mxu0 %v5024
  %v5179 = vpop.f32.mrb[0].mxu0
  %v5180 = vadd.f32 0.0, %v5179
  %v5181 = vpop.f32.mrb[0].mxu0
  %5182 = vmatprep.mubr.f32.mxu0 0.0
  %5183 = vmatmul.mubr.f32.gmra.mrb[0].mxu0 %v5025
  %v5184 = vpop.f32.mrb[0].mxu0
  %v5185 = vadd.f32 0.0, %v5184
  %v5186 = vpop.f32.mrb[0].mxu0
  %5187 = vdwg.mxu0
  %v5188 = vadd.f32 %v4993, %v5110
  %v5189 = vadd.f32 %v4994, %v5115
  %v5190 = vadd.f32 %v4995, %v5120
  %v5191 = vadd.f32 %v4996, %v5125
  %v5192 = vadd.f32 %v4997, %v5130
  %v5193 = vadd.f32 %v4998, %v5135
  %v5194 = vadd.f32 %v4999, %v5140
  %v5195 = vadd.f32 %v5000, %v5145
  %v5196 = vadd.f32 %v5001, %v5150
  %v5197 = vadd.f32 %v5002, %v5155
  %v5198 = vadd.f32 %v5003, %v5160
  %v5199 = vadd.f32 %v5004, %v5165
  %v5200 = vadd.f32 %v5005, %v5170
  %v5201 = vadd.f32 %v5006, %v5175
  %v5202 = vadd.f32 %v5007, %v5180
  %v5203 = vadd.f32 %v5008, %v5185
  %v5204 = vld [vmem:[%s5009 + $0x1] sm:$0xff]
  %v5205 = vld [vmem:[%s5009 + $0x11] sm:$0xff]
  %v5206 = vld [vmem:[%s5009 + $0x21] sm:$0xff]
  %v5207 = vld [vmem:[%s5009 + $0x31] sm:$0xff]
  %v5208 = vld [vmem:[%s5009 + $0x41] sm:$0xff]
  %v5209 = vld [vmem:[%s5009 + $0x51] sm:$0xff]
  %v5210 = vld [vmem:[%s5009 + $0x61] sm:$0xff]
  %v5211 = vld [vmem:[%s5009 + $0x71] sm:$0xff]
  %v5212 = vld [vmem:[%s5009 + $0xa1] sm:$0xff]
  %v5213 = vld [vmem:[%s5009 + $0xb1] sm:$0xff]
  %v5214 = vld [vmem:[%s5009 + $0xc1] sm:$0xff]
  %v5215 = vld [vmem:[%s5009 + $0xd1] sm:$0xff]
  %v5216 = vld [vmem:[%s5009 + $0xe1] sm:$0xff]
  %v5217 = vld [vmem:[%s5009 + $0xf1] sm:$0xff]
  %v5218 = vld [vmem:[%s5009 + $0x101] sm:$0xff]
  %v5219 = vld [vmem:[%s5009 + $0x111] sm:$0xff]
  %s5220 = scalar_lea.vmem %s1, 3200
  %v5221 = vld [vmem:[%s5220] sm:$0xff]
  %v5222 = vld [vmem:[%s5220 + $0x8] sm:$0xff]
  %v5223 = vld [vmem:[%s5220 + $0x10] sm:$0xff]
  %v5224 = vld [vmem:[%s5220 + $0x18] sm:$0xff]
  %v5225 = vld [vmem:[%s5220 + $0x20] sm:$0xff]
  %v5226 = vld [vmem:[%s5220 + $0x28] sm:$0xff]
  %v5227 = vld [vmem:[%s5220 + $0x30] sm:$0xff]
  %v5228 = vld [vmem:[%s5220 + $0x38] sm:$0xff]
  %v5229 = vld [vmem:[%s5220 + $0x40] sm:$0xff]
  %v5230 = vld [vmem:[%s5220 + $0x48] sm:$0xff]
  %v5231 = vld [vmem:[%s5220 + $0x50] sm:$0xff]
  %v5232 = vld [vmem:[%s5220 + $0x58] sm:$0xff]
  %v5233 = vld [vmem:[%s5220 + $0x60] sm:$0xff]
  %v5234 = vld [vmem:[%s5220 + $0x68] sm:$0xff]
  %v5235 = vld [vmem:[%s5220 + $0x70] sm:$0xff]
  %v5236 = vld [vmem:[%s5220 + $0x78] sm:$0xff]
  %5237 = vmatprep.subr.mxu0 0.0
  %5238 = vmatpush1.msra.mxu0 %v5221
  %5239 = vmatprep.subr.mxu0 0.0
  %5240 = vmatpush1.msra.mxu0 %v5222
  %5241 = vmatprep.subr.mxu0 0.0
  %5242 = vmatpush1.msra.mxu0 %v5223
  %5243 = vmatprep.subr.mxu0 0.0
  %5244 = vmatpush1.msra.mxu0 %v5224
  %5245 = vmatprep.subr.mxu0 0.0
  %5246 = vmatpush1.msra.mxu0 %v5225
  %5247 = vmatprep.subr.mxu0 0.0
  %5248 = vmatpush1.msra.mxu0 %v5226
  %5249 = vmatprep.subr.mxu0 0.0
  %5250 = vmatpush1.msra.mxu0 %v5227
  %5251 = vmatprep.subr.mxu0 0.0
  %5252 = vmatpush1.msra.mxu0 %v5228
  %5253 = vmatprep.subr.mxu0 0.0
  %5254 = vmatpush1.msra.mxu0 %v5229
  %5255 = vmatprep.subr.mxu0 0.0
  %5256 = vmatpush1.msra.mxu0 %v5230
  %5257 = vmatprep.subr.mxu0 0.0
  %5258 = vmatpush1.msra.mxu0 %v5231
  %5259 = vmatprep.subr.mxu0 0.0
  %5260 = vmatpush1.msra.mxu0 %v5232
  %5261 = vmatprep.subr.mxu0 0.0
  %5262 = vmatpush1.msra.mxu0 %v5233
  %5263 = vmatprep.subr.mxu0 0.0
  %5264 = vmatpush1.msra.mxu0 %v5234
  %5265 = vmatprep.subr.mxu0 0.0
  %5266 = vmatpush1.msra.mxu0 %v5235
  %5267 = vmatprep.subr.mxu0 0.0
  %5268 = vmatpush1.msra.mxu0 %v5236
  %5269 = vmatprep.subr.mxu0 0.0
  %5270 = vmatpush1.msra.mxu0 0.0
  %5271 = vmatprep.subr.mxu0 0.0
  %5272 = vmatpush1.msra.mxu0 0.0
  %5273 = vmatprep.subr.mxu0 0.0
  %5274 = vmatpush1.msra.mxu0 0.0
  %5275 = vmatprep.subr.mxu0 0.0
  %5276 = vmatpush1.msra.mxu0 0.0
  %5277 = vmatprep.subr.mxu0 0.0
  %5278 = vmatpush1.msra.mxu0 0.0
  %5279 = vmatprep.subr.mxu0 0.0
  %5280 = vmatpush1.msra.mxu0 0.0
  %5281 = vmatprep.subr.mxu0 0.0
  %5282 = vmatpush1.msra.mxu0 0.0
  %5283 = vmatprep.subr.mxu0 0.0
  %5284 = vmatpush1.msra.mxu0 0.0
  %5285 = vmatprep.subr.mxu0 0.0
  %5286 = vmatpush1.msra.mxu0 0.0
  %5287 = vmatprep.subr.mxu0 0.0
  %5288 = vmatpush1.msra.mxu0 0.0
  %5289 = vmatprep.subr.mxu0 0.0
  %5290 = vmatpush1.msra.mxu0 0.0
  %5291 = vmatprep.subr.mxu0 0.0
  %5292 = vmatpush1.msra.mxu0 0.0
  %5293 = vmatprep.subr.mxu0 0.0
  %5294 = vmatpush1.msra.mxu0 0.0
  %5295 = vmatprep.subr.mxu0 0.0
  %5296 = vmatpush1.msra.mxu0 0.0
  %5297 = vmatprep.subr.mxu0 0.0
  %5298 = vmatpush1.msra.mxu0 0.0
  %5299 = vmatprep.subr.mxu0 0.0
  %5300 = vmatpush1.msra.mxu0 0.0
  %5301 = vmatprep.mubr.f32.mxu0 0.0
  %5302 = vmatmul.mubr.f32.gmra.mrb[0].mxu0 %v5204
  %v5303 = vpop.f32.mrb[0].mxu0
  %v5304 = vadd.f32 0.0, %v5303
  %v5305 = vpop.f32.mrb[0].mxu0
  %5306 = vmatprep.mubr.f32.mxu0 0.0
  %5307 = vmatmul.mubr.f32.gmra.mrb[0].mxu0 %v5205
  %v5308 = vpop.f32.mrb[0].mxu0
  %v5309 = vadd.f32 0.0, %v5308
  %v5310 = vpop.f32.mrb[0].mxu0
  %5311 = vmatprep.mubr.f32.mxu0 0.0
  %5312 = vmatmul.mubr.f32.gmra.mrb[0].mxu0 %v5206
  %v5313 = vpop.f32.mrb[0].mxu0
  %v5314 = vadd.f32 0.0, %v5313
  %v5315 = vpop.f32.mrb[0].mxu0
  %5316 = vmatprep.mubr.f32.mxu0 0.0
  %5317 = vmatmul.mubr.f32.gmra.mrb[0].mxu0 %v5207
  %v5318 = vpop.f32.mrb[0].mxu0
  %v5319 = vadd.f32 0.0, %v5318
  %v5320 = vpop.f32.mrb[0].mxu0
  %5321 = vmatprep.mubr.f32.mxu0 0.0
  %5322 = vmatmul.mubr.f32.gmra.mrb[0].mxu0 %v5208
  %v5323 = vpop.f32.mrb[0].mxu0
  %v5324 = vadd.f32 0.0, %v5323
  %v5325 = vpop.f32.mrb[0].mxu0
  %5326 = vmatprep.mubr.f32.mxu0 0.0
  %5327 = vmatmul.mubr.f32.gmra.mrb[0].mxu0 %v5209
  %v5328 = vpop.f32.mrb[0].mxu0
  %v5329 = vadd.f32 0.0, %v5328
  %v5330 = vpop.f32.mrb[0].mxu0
  %5331 = vmatprep.mubr.f32.mxu0 0.0
  %5332 = vmatmul.mubr.f32.gmra.mrb[0].mxu0 %v5210
  %v5333 = vpop.f32.mrb[0].mxu0
  %v5334 = vadd.f32 0.0, %v5333
  %v5335 = vpop.f32.mrb[0].mxu0
  %5336 = vmatprep.mubr.f32.mxu0 0.0
  %5337 = vmatmul.mubr.f32.gmra.mrb[0].mxu0 %v5211
  %v5338 = vpop.f32.mrb[0].mxu0
  %v5339 = vadd.f32 0.0, %v5338
  %v5340 = vpop.f32.mrb[0].mxu0
  %5341 = vmatprep.mubr.f32.mxu0 0.0
  %5342 = vmatmul.mubr.f32.gmra.mrb[0].mxu0 %v5212
  %v5343 = vpop.f32.mrb[0].mxu0
  %v5344 = vadd.f32 0.0, %v5343
  %v5345 = vpop.f32.mrb[0].mxu0
  %5346 = vmatprep.mubr.f32.mxu0 0.0
  %5347 = vmatmul.mubr.f32.gmra.mrb[0].mxu0 %v5213
  %v5348 = vpop.f32.mrb[0].mxu0
  %v5349 = vadd.f32 0.0, %v5348
  %v5350 = vpop.f32.mrb[0].mxu0
  %5351 = vmatprep.mubr.f32.mxu0 0.0
  %5352 = vmatmul.mubr.f32.gmra.mrb[0].mxu0 %v5214
  %v5353 = vpop.f32.mrb[0].mxu0
  %v5354 = vadd.f32 0.0, %v5353
  %v5355 = vpop.f32.mrb[0].mxu0
  %5356 = vmatprep.mubr.f32.mxu0 0.0
  %5357 = vmatmul.mubr.f32.gmra.mrb[0].mxu0 %v5215
  %v5358 = vpop.f32.mrb[0].mxu0
  %v5359 = vadd.f32 0.0, %v5358
  %v5360 = vpop.f32.mrb[0].mxu0
  %5361 = vmatprep.mubr.f32.mxu0 0.0
  %5362 = vmatmul.mubr.f32.gmra.mrb[0].mxu0 %v5216
  %v5363 = vpop.f32.mrb[0].mxu0
  %v5364 = vadd.f32 0.0, %v5363
  %v5365 = vpop.f32.mrb[0].mxu0
  %5366 = vmatprep.mubr.f32.mxu0 0.0
  %5367 = vmatmul.mubr.f32.gmra.mrb[0].mxu0 %v5217
  %v5368 = vpop.f32.mrb[0].mxu0
  %v5369 = vadd.f32 0.0, %v5368
  %v5370 = vpop.f32.mrb[0].mxu0
  %5371 = vmatprep.mubr.f32.mxu0 0.0
  %5372 = vmatmul.mubr.f32.gmra.mrb[0].mxu0 %v5218
  %v5373 = vpop.f32.mrb[0].mxu0
  %v5374 = vadd.f32 0.0, %v5373
  %v5375 = vpop.f32.mrb[0].mxu0
  %5376 = vmatprep.mubr.f32.mxu0 0.0
  %5377 = vmatmul.mubr.f32.gmra.mrb[0].mxu0 %v5219
  %v5378 = vpop.f32.mrb[0].mxu0
  %v5379 = vadd.f32 0.0, %v5378
  %v5380 = vpop.f32.mrb[0].mxu0
  %5381 = vdwg.mxu0
  %v5382 = vadd.f32 %v5188, %v5304
  %v5383 = vadd.f32 %v5189, %v5309
  %v5384 = vadd.f32 %v5190, %v5314
  %v5385 = vadd.f32 %v5191, %v5319
  %v5386 = vadd.f32 %v5192, %v5324
  %v5387 = vadd.f32 %v5193, %v5329
  %v5388 = vadd.f32 %v5194, %v5334
  %v5389 = vadd.f32 %v5195, %v5339
  %v5390 = vadd.f32 %v5196, %v5344
  %v5391 = vadd.f32 %v5197, %v5349
  %v5392 = vadd.f32 %v5198, %v5354
  %v5393 = vadd.f32 %v5199, %v5359
  %v5394 = vadd.f32 %v5200, %v5364
  %v5395 = vadd.f32 %v5201, %v5369
  %v5396 = vadd.f32 %v5202, %v5374
  %v5397 = vadd.f32 %v5203, %v5379
  %v5398 = vld [vmem:[%s5009 + $0x2] sm:$0xff]
  %v5399 = vld [vmem:[%s5009 + $0x12] sm:$0xff]
  %v5400 = vld [vmem:[%s5009 + $0x22] sm:$0xff]
  %v5401 = vld [vmem:[%s5009 + $0x32] sm:$0xff]
  %v5402 = vld [vmem:[%s5009 + $0x42] sm:$0xff]
  %v5403 = vld [vmem:[%s5009 + $0x52] sm:$0xff]
  %v5404 = vld [vmem:[%s5009 + $0x62] sm:$0xff]
  %v5405 = vld [vmem:[%s5009 + $0x72] sm:$0xff]
  %v5406 = vld [vmem:[%s5009 + $0xa2] sm:$0xff]
  %v5407 = vld [vmem:[%s5009 + $0xb2] sm:$0xff]
  %v5408 = vld [vmem:[%s5009 + $0xc2] sm:$0xff]
  %v5409 = vld [vmem:[%s5009 + $0xd2] sm:$0xff]
  %v5410 = vld [vmem:[%s5009 + $0xe2] sm:$0xff]
  %v5411 = vld [vmem:[%s5009 + $0xf2] sm:$0xff]
  %v5412 = vld [vmem:[%s5009 + $0x102] sm:$0xff]
  %v5413 = vld [vmem:[%s5009 + $0x112] sm:$0xff]
  %s5414 = scalar_lea.vmem %s1, 3328
  %v5415 = vld [vmem:[%s5414] sm:$0xff]
  %v5416 = vld [vmem:[%s5414 + $0x8] sm:$0xff]
  %v5417 = vld [vmem:[%s5414 + $0x10] sm:$0xff]
  %v5418 = vld [vmem:[%s5414 + $0x18] sm:$0xff]
  %v5419 = vld [vmem:[%s5414 + $0x20] sm:$0xff]
  %v5420 = vld [vmem:[%s5414 + $0x28] sm:$0xff]
  %v5421 = vld [vmem:[%s5414 + $0x30] sm:$0xff]
  %v5422 = vld [vmem:[%s5414 + $0x38] sm:$0xff]
  %v5423 = vld [vmem:[%s5414 + $0x40] sm:$0xff]
  %v5424 = vld [vmem:[%s5414 + $0x48] sm:$0xff]
  %v5425 = vld [vmem:[%s5414 + $0x50] sm:$0xff]
  %v5426 = vld [vmem:[%s5414 + $0x58] sm:$0xff]
  %v5427 = vld [vmem:[%s5414 + $0x60] sm:$0xff]
  %v5428 = vld [vmem:[%s5414 + $0x68] sm:$0xff]
  %v5429 = vld [vmem:[%s5414 + $0x70] sm:$0xff]
  %v5430 = vld [vmem:[%s5414 + $0x78] sm:$0xff]
  %5431 = vmatprep.subr.mxu0 0.0
  %5432 = vmatpush1.msra.mxu0 %v5415
  %5433 = vmatprep.subr.mxu0 0.0
  %5434 = vmatpush1.msra.mxu0 %v5416
  %5435 = vmatprep.subr.mxu0 0.0
  %5436 = vmatpush1.msra.mxu0 %v5417
  %5437 = vmatprep.subr.mxu0 0.0
  %5438 = vmatpush1.msra.mxu0 %v5418
  %5439 = vmatprep.subr.mxu0 0.0
  %5440 = vmatpush1.msra.mxu0 %v5419
  %5441 = vmatprep.subr.mxu0 0.0
  %5442 = vmatpush1.msra.mxu0 %v5420
  %5443 = vmatprep.subr.mxu0 0.0
  %5444 = vmatpush1.msra.mxu0 %v5421
  %5445 = vmatprep.subr.mxu0 0.0
  %5446 = vmatpush1.msra.mxu0 %v5422
  %5447 = vmatprep.subr.mxu0 0.0
  %5448 = vmatpush1.msra.mxu0 %v5423
  %5449 = vmatprep.subr.mxu0 0.0
  %5450 = vmatpush1.msra.mxu0 %v5424
  %5451 = vmatprep.subr.mxu0 0.0
  %5452 = vmatpush1.msra.mxu0 %v5425
  %5453 = vmatprep.subr.mxu0 0.0
  %5454 = vmatpush1.msra.mxu0 %v5426
  %5455 = vmatprep.subr.mxu0 0.0
  %5456 = vmatpush1.msra.mxu0 %v5427
  %5457 = vmatprep.subr.mxu0 0.0
  %5458 = vmatpush1.msra.mxu0 %v5428
  %5459 = vmatprep.subr.mxu0 0.0
  %5460 = vmatpush1.msra.mxu0 %v5429
  %5461 = vmatprep.subr.mxu0 0.0
  %5462 = vmatpush1.msra.mxu0 %v5430
  %5463 = vmatprep.subr.mxu0 0.0
  %5464 = vmatpush1.msra.mxu0 0.0
  %5465 = vmatprep.subr.mxu0 0.0
  %5466 = vmatpush1.msra.mxu0 0.0
  %5467 = vmatprep.subr.mxu0 0.0
  %5468 = vmatpush1.msra.mxu0 0.0
  %5469 = vmatprep.subr.mxu0 0.0
  %5470 = vmatpush1.msra.mxu0 0.0
  %5471 = vmatprep.subr.mxu0 0.0
  %5472 = vmatpush1.msra.mxu0 0.0
  %5473 = vmatprep.subr.mxu0 0.0
  %5474 = vmatpush1.msra.mxu0 0.0
  %5475 = vmatprep.subr.mxu0 0.0
  %5476 = vmatpush1.msra.mxu0 0.0
  %5477 = vmatprep.subr.mxu0 0.0
  %5478 = vmatpush1.msra.mxu0 0.0
  %5479 = vmatprep.subr.mxu0 0.0
  %5480 = vmatpush1.msra.mxu0 0.0
  %5481 = vmatprep.subr.mxu0 0.0
  %5482 = vmatpush1.msra.mxu0 0.0
  %5483 = vmatprep.subr.mxu0 0.0
  %5484 = vmatpush1.msra.mxu0 0.0
  %5485 = vmatprep.subr.mxu0 0.0
  %5486 = vmatpush1.msra.mxu0 0.0
  %5487 = vmatprep.subr.mxu0 0.0
  %5488 = vmatpush1.msra.mxu0 0.0
  %5489 = vmatprep.subr.mxu0 0.0
  %5490 = vmatpush1.msra.mxu0 0.0
  %5491 = vmatprep.subr.mxu0 0.0
  %5492 = vmatpush1.msra.mxu0 0.0
  %5493 = vmatprep.subr.mxu0 0.0
  %5494 = vmatpush1.msra.mxu0 0.0
  %5495 = vmatprep.mubr.f32.mxu0 0.0
  %5496 = vmatmul.mubr.f32.gmra.mrb[0].mxu0 %v5398
  %v5497 = vpop.f32.mrb[0].mxu0
  %v5498 = vadd.f32 0.0, %v5497
  %v5499 = vpop.f32.mrb[0].mxu0
  %5500 = vmatprep.mubr.f32.mxu0 0.0
  %5501 = vmatmul.mubr.f32.gmra.mrb[0].mxu0 %v5399
  %v5502 = vpop.f32.mrb[0].mxu0
  %v5503 = vadd.f32 0.0, %v5502
  %v5504 = vpop.f32.mrb[0].mxu0
  %5505 = vmatprep.mubr.f32.mxu0 0.0
  %5506 = vmatmul.mubr.f32.gmra.mrb[0].mxu0 %v5400
  %v5507 = vpop.f32.mrb[0].mxu0
  %v5508 = vadd.f32 0.0, %v5507
  %v5509 = vpop.f32.mrb[0].mxu0
  %5510 = vmatprep.mubr.f32.mxu0 0.0
  %5511 = vmatmul.mubr.f32.gmra.mrb[0].mxu0 %v5401
  %v5512 = vpop.f32.mrb[0].mxu0
  %v5513 = vadd.f32 0.0, %v5512
  %v5514 = vpop.f32.mrb[0].mxu0
  %5515 = vmatprep.mubr.f32.mxu0 0.0
  %5516 = vmatmul.mubr.f32.gmra.mrb[0].mxu0 %v5402
  %v5517 = vpop.f32.mrb[0].mxu0
  %v5518 = vadd.f32 0.0, %v5517
  %v5519 = vpop.f32.mrb[0].mxu0
  %5520 = vmatprep.mubr.f32.mxu0 0.0
  %5521 = vmatmul.mubr.f32.gmra.mrb[0].mxu0 %v5403
  %v5522 = vpop.f32.mrb[0].mxu0
  %v5523 = vadd.f32 0.0, %v5522
  %v5524 = vpop.f32.mrb[0].mxu0
  %5525 = vmatprep.mubr.f32.mxu0 0.0
  %5526 = vmatmul.mubr.f32.gmra.mrb[0].mxu0 %v5404
  %v5527 = vpop.f32.mrb[0].mxu0
  %v5528 = vadd.f32 0.0, %v5527
  %v5529 = vpop.f32.mrb[0].mxu0
  %5530 = vmatprep.mubr.f32.mxu0 0.0
  %5531 = vmatmul.mubr.f32.gmra.mrb[0].mxu0 %v5405
  %v5532 = vpop.f32.mrb[0].mxu0
  %v5533 = vadd.f32 0.0, %v5532
  %v5534 = vpop.f32.mrb[0].mxu0
  %5535 = vmatprep.mubr.f32.mxu0 0.0
  %5536 = vmatmul.mubr.f32.gmra.mrb[0].mxu0 %v5406
  %v5537 = vpop.f32.mrb[0].mxu0
  %v5538 = vadd.f32 0.0, %v5537
  %v5539 = vpop.f32.mrb[0].mxu0
  %5540 = vmatprep.mubr.f32.mxu0 0.0
  %5541 = vmatmul.mubr.f32.gmra.mrb[0].mxu0 %v5407
  %v5542 = vpop.f32.mrb[0].mxu0
  %v5543 = vadd.f32 0.0, %v5542
  %v5544 = vpop.f32.mrb[0].mxu0
  %5545 = vmatprep.mubr.f32.mxu0 0.0
  %5546 = vmatmul.mubr.f32.gmra.mrb[0].mxu0 %v5408
  %v5547 = vpop.f32.mrb[0].mxu0
  %v5548 = vadd.f32 0.0, %v5547
  %v5549 = vpop.f32.mrb[0].mxu0
  %5550 = vmatprep.mubr.f32.mxu0 0.0
  %5551 = vmatmul.mubr.f32.gmra.mrb[0].mxu0 %v5409
  %v5552 = vpop.f32.mrb[0].mxu0
  %v5553 = vadd.f32 0.0, %v5552
  %v5554 = vpop.f32.mrb[0].mxu0
  %5555 = vmatprep.mubr.f32.mxu0 0.0
  %5556 = vmatmul.mubr.f32.gmra.mrb[0].mxu0 %v5410
  %v5557 = vpop.f32.mrb[0].mxu0
  %v5558 = vadd.f32 0.0, %v5557
  %v5559 = vpop.f32.mrb[0].mxu0
  %5560 = vmatprep.mubr.f32.mxu0 0.0
  %5561 = vmatmul.mubr.f32.gmra.mrb[0].mxu0 %v5411
  %v5562 = vpop.f32.mrb[0].mxu0
  %v5563 = vadd.f32 0.0, %v5562
  %v5564 = vpop.f32.mrb[0].mxu0
  %5565 = vmatprep.mubr.f32.mxu0 0.0
  %5566 = vmatmul.mubr.f32.gmra.mrb[0].mxu0 %v5412
  %v5567 = vpop.f32.mrb[0].mxu0
  %v5568 = vadd.f32 0.0, %v5567
  %v5569 = vpop.f32.mrb[0].mxu0
  %5570 = vmatprep.mubr.f32.mxu0 0.0
  %5571 = vmatmul.mubr.f32.gmra.mrb[0].mxu0 %v5413
  %v5572 = vpop.f32.mrb[0].mxu0
  %v5573 = vadd.f32 0.0, %v5572
  %v5574 = vpop.f32.mrb[0].mxu0
  %5575 = vdwg.mxu0
  %v5576 = vadd.f32 %v5382, %v5498
  %v5577 = vadd.f32 %v5383, %v5503
  %v5578 = vadd.f32 %v5384, %v5508
  %v5579 = vadd.f32 %v5385, %v5513
  %v5580 = vadd.f32 %v5386, %v5518
  %v5581 = vadd.f32 %v5387, %v5523
  %v5582 = vadd.f32 %v5388, %v5528
  %v5583 = vadd.f32 %v5389, %v5533
  %v5584 = vadd.f32 %v5390, %v5538
  %v5585 = vadd.f32 %v5391, %v5543
  %v5586 = vadd.f32 %v5392, %v5548
  %v5587 = vadd.f32 %v5393, %v5553
  %v5588 = vadd.f32 %v5394, %v5558
  %v5589 = vadd.f32 %v5395, %v5563
  %v5590 = vadd.f32 %v5396, %v5568
  %v5591 = vadd.f32 %v5397, %v5573
  %s5592 = scalar_lea.vmem %s3, 3
  %v5593 = vld [vmem:[%s5592] sm:$0x1]
  %v5595 = vlaneseq
  %v5596 = vshrl.u32 %v5595, 7
  %v5597 = vsub.s32 0, %v5596
  %v5598 = vrot.slane %v5593, %v5597
  %v5600 = vadd.f32 %v5576, %v5598
  %v5601 = vadd.f32 %v5577, %v5598
  %v5602 = vadd.f32 %v5578, %v5598
  %v5603 = vadd.f32 %v5579, %v5598
  %v5604 = vadd.f32 %v5580, %v5598
  %v5605 = vadd.f32 %v5581, %v5598
  %v5606 = vadd.f32 %v5582, %v5598
  %v5607 = vadd.f32 %v5583, %v5598
  %v5608 = vadd.f32 %v5584, %v5598
  %v5609 = vadd.f32 %v5585, %v5598
  %v5610 = vadd.f32 %v5586, %v5598
  %v5611 = vadd.f32 %v5587, %v5598
  %v5612 = vadd.f32 %v5588, %v5598
  %v5613 = vadd.f32 %v5589, %v5598
  %v5614 = vadd.f32 %v5590, %v5598
  %v5615 = vadd.f32 %v5591, %v5598
  %v5616 = vmax.f32 %v5600, 0.0
  %v5617 = vmax.f32 %v5601, 0.0
  %v5618 = vmax.f32 %v5602, 0.0
  %v5619 = vmax.f32 %v5603, 0.0
  %v5620 = vmax.f32 %v5604, 0.0
  %v5621 = vmax.f32 %v5605, 0.0
  %v5622 = vmax.f32 %v5606, 0.0
  %v5623 = vmax.f32 %v5607, 0.0
  %v5624 = vmax.f32 %v5608, 0.0
  %v5625 = vmax.f32 %v5609, 0.0
  %v5626 = vmax.f32 %v5610, 0.0
  %v5627 = vmax.f32 %v5611, 0.0
  %v5628 = vmax.f32 %v5612, 0.0
  %v5629 = vmax.f32 %v5613, 0.0
  %v5630 = vmax.f32 %v5614, 0.0
  %v5631 = vmax.f32 %v5615, 0.0
  %5632 = vst [vmem:[%s2071 + $0x1] sm:$0xff] %v5616
  %5633 = vst [vmem:[%s2071 + $0x11] sm:$0xff] %v5617
  %5634 = vst [vmem:[%s2071 + $0x21] sm:$0xff] %v5618
  %5635 = vst [vmem:[%s2071 + $0x31] sm:$0xff] %v5619
  %5636 = vst [vmem:[%s2071 + $0x41] sm:$0xff] %v5620
  %5637 = vst [vmem:[%s2071 + $0x51] sm:$0xff] %v5621
  %5638 = vst [vmem:[%s2071 + $0x61] sm:$0xff] %v5622
  %5639 = vst [vmem:[%s2071 + $0x71] sm:$0xff] %v5623
  %5640 = vst [vmem:[%s2071 + $0xa1] sm:$0xff] %v5624
  %5641 = vst [vmem:[%s2071 + $0xb1] sm:$0xff] %v5625
  %5642 = vst [vmem:[%s2071 + $0xc1] sm:$0xff] %v5626
  %5643 = vst [vmem:[%s2071 + $0xd1] sm:$0xff] %v5627
  %5644 = vst [vmem:[%s2071 + $0xe1] sm:$0xff] %v5628
  %5645 = vst [vmem:[%s2071 + $0xf1] sm:$0xff] %v5629
  %5646 = vst [vmem:[%s2071 + $0x101] sm:$0xff] %v5630
  %5647 = vst [vmem:[%s2071 + $0x111] sm:$0xff] %v5631
  %v5648 = vld [vmem:[#allocation2] sm:$0xff]
  %v5649 = vld [vmem:[#allocation2 + $0x10] sm:$0xff]
  %v5650 = vld [vmem:[#allocation2 + $0x20] sm:$0xff]
  %v5651 = vld [vmem:[#allocation2 + $0x30] sm:$0xff]
  %v5652 = vld [vmem:[#allocation2 + $0x40] sm:$0xff]
  %v5653 = vld [vmem:[#allocation2 + $0x50] sm:$0xff]
  %v5654 = vld [vmem:[#allocation2 + $0x60] sm:$0xff]
  %v5655 = vld [vmem:[#allocation2 + $0x70] sm:$0xff]
  %v5656 = vld [vmem:[#allocation2 + $0xa0] sm:$0xff]
  %v5657 = vld [vmem:[#allocation2 + $0xb0] sm:$0xff]
  %v5658 = vld [vmem:[#allocation2 + $0xc0] sm:$0xff]
  %v5659 = vld [vmem:[#allocation2 + $0xd0] sm:$0xff]
  %v5660 = vld [vmem:[#allocation2 + $0xe0] sm:$0xff]
  %v5661 = vld [vmem:[#allocation2 + $0xf0] sm:$0xff]
  %v5662 = vld [vmem:[#allocation2 + $0x100] sm:$0xff]
  %v5663 = vld [vmem:[#allocation2 + $0x110] sm:$0xff]
  %s5664 = scalar_lea.vmem %s1, 3456
  %v5665 = vld [vmem:[%s5664] sm:$0xff]
  %v5666 = vld [vmem:[%s5664 + $0x8] sm:$0xff]
  %v5667 = vld [vmem:[%s5664 + $0x10] sm:$0xff]
  %v5668 = vld [vmem:[%s5664 + $0x18] sm:$0xff]
  %v5669 = vld [vmem:[%s5664 + $0x20] sm:$0xff]
  %v5670 = vld [vmem:[%s5664 + $0x28] sm:$0xff]
  %v5671 = vld [vmem:[%s5664 + $0x30] sm:$0xff]
  %v5672 = vld [vmem:[%s5664 + $0x38] sm:$0xff]
  %v5673 = vld [vmem:[%s5664 + $0x40] sm:$0xff]
  %v5674 = vld [vmem:[%s5664 + $0x48] sm:$0xff]
  %v5675 = vld [vmem:[%s5664 + $0x50] sm:$0xff]
  %v5676 = vld [vmem:[%s5664 + $0x58] sm:$0xff]
  %v5677 = vld [vmem:[%s5664 + $0x60] sm:$0xff]
  %v5678 = vld [vmem:[%s5664 + $0x68] sm:$0xff]
  %v5679 = vld [vmem:[%s5664 + $0x70] sm:$0xff]
  %v5680 = vld [vmem:[%s5664 + $0x78] sm:$0xff]
  %v5681 = vld [vmem:[#allocation2 + $0x1] sm:$0xff]
  %v5682 = vld [vmem:[#allocation2 + $0x11] sm:$0xff]
  %v5683 = vld [vmem:[#allocation2 + $0x21] sm:$0xff]
  %v5684 = vld [vmem:[#allocation2 + $0x31] sm:$0xff]
  %v5685 = vld [vmem:[#allocation2 + $0x41] sm:$0xff]
  %v5686 = vld [vmem:[#allocation2 + $0x51] sm:$0xff]
  %v5687 = vld [vmem:[#allocation2 + $0x61] sm:$0xff]
  %v5688 = vld [vmem:[#allocation2 + $0x71] sm:$0xff]
  %v5689 = vld [vmem:[#allocation2 + $0xa1] sm:$0xff]
  %v5690 = vld [vmem:[#allocation2 + $0xb1] sm:$0xff]
  %v5691 = vld [vmem:[#allocation2 + $0xc1] sm:$0xff]
  %v5692 = vld [vmem:[#allocation2 + $0xd1] sm:$0xff]
  %v5693 = vld [vmem:[#allocation2 + $0xe1] sm:$0xff]
  %v5694 = vld [vmem:[#allocation2 + $0xf1] sm:$0xff]
  %v5695 = vld [vmem:[#allocation2 + $0x101] sm:$0xff]
  %v5696 = vld [vmem:[#allocation2 + $0x111] sm:$0xff]
  %s5697 = scalar_lea.vmem %s1, 3584
  %v5698 = vld [vmem:[%s5697] sm:$0xff]
  %v5699 = vld [vmem:[%s5697 + $0x8] sm:$0xff]
  %v5700 = vld [vmem:[%s5697 + $0x10] sm:$0xff]
  %v5701 = vld [vmem:[%s5697 + $0x18] sm:$0xff]
  %v5702 = vld [vmem:[%s5697 + $0x20] sm:$0xff]
  %v5703 = vld [vmem:[%s5697 + $0x28] sm:$0xff]
  %v5704 = vld [vmem:[%s5697 + $0x30] sm:$0xff]
  %v5705 = vld [vmem:[%s5697 + $0x38] sm:$0xff]
  %v5706 = vld [vmem:[%s5697 + $0x40] sm:$0xff]
  %v5707 = vld [vmem:[%s5697 + $0x48] sm:$0xff]
  %v5708 = vld [vmem:[%s5697 + $0x50] sm:$0xff]
  %v5709 = vld [vmem:[%s5697 + $0x58] sm:$0xff]
  %v5710 = vld [vmem:[%s5697 + $0x60] sm:$0xff]
  %v5711 = vld [vmem:[%s5697 + $0x68] sm:$0xff]
  %v5712 = vld [vmem:[%s5697 + $0x70] sm:$0xff]
  %v5713 = vld [vmem:[%s5697 + $0x78] sm:$0xff]
  %5714 = vmatprep.subr.mxu0 0.0
  %5715 = vmatpush1.msra.mxu0 %v5698
  %5716 = vmatprep.subr.mxu0 0.0
  %5717 = vmatpush1.msra.mxu0 %v5699
  %5718 = vmatprep.subr.mxu0 0.0
  %5719 = vmatpush1.msra.mxu0 %v5700
  %5720 = vmatprep.subr.mxu0 0.0
  %5721 = vmatpush1.msra.mxu0 %v5701
  %5722 = vmatprep.subr.mxu0 0.0
  %5723 = vmatpush1.msra.mxu0 %v5702
  %5724 = vmatprep.subr.mxu0 0.0
  %5725 = vmatpush1.msra.mxu0 %v5703
  %5726 = vmatprep.subr.mxu0 0.0
  %5727 = vmatpush1.msra.mxu0 %v5704
  %5728 = vmatprep.subr.mxu0 0.0
  %5729 = vmatpush1.msra.mxu0 %v5705
  %5730 = vmatprep.subr.mxu0 0.0
  %5731 = vmatpush1.msra.mxu0 %v5706
  %5732 = vmatprep.subr.mxu0 0.0
  %5733 = vmatpush1.msra.mxu0 %v5707
  %5734 = vmatprep.subr.mxu0 0.0
  %5735 = vmatpush1.msra.mxu0 %v5708
  %5736 = vmatprep.subr.mxu0 0.0
  %5737 = vmatpush1.msra.mxu0 %v5709
  %5738 = vmatprep.subr.mxu0 0.0
  %5739 = vmatpush1.msra.mxu0 %v5710
  %5740 = vmatprep.subr.mxu0 0.0
  %5741 = vmatpush1.msra.mxu0 %v5711
  %5742 = vmatprep.subr.mxu0 0.0
  %5743 = vmatpush1.msra.mxu0 %v5712
  %5744 = vmatprep.subr.mxu0 0.0
  %5745 = vmatpush1.msra.mxu0 %v5713
  %5746 = vmatprep.subr.mxu0 0.0
  %5747 = vmatpush1.msra.mxu0 0.0
  %5748 = vmatprep.subr.mxu0 0.0
  %5749 = vmatpush1.msra.mxu0 0.0
  %5750 = vmatprep.subr.mxu0 0.0
  %5751 = vmatpush1.msra.mxu0 0.0
  %5752 = vmatprep.subr.mxu0 0.0
  %5753 = vmatpush1.msra.mxu0 0.0
  %5754 = vmatprep.subr.mxu0 0.0
  %5755 = vmatpush1.msra.mxu0 0.0
  %5756 = vmatprep.subr.mxu0 0.0
  %5757 = vmatpush1.msra.mxu0 0.0
  %5758 = vmatprep.subr.mxu0 0.0
  %5759 = vmatpush1.msra.mxu0 0.0
  %5760 = vmatprep.subr.mxu0 0.0
  %5761 = vmatpush1.msra.mxu0 0.0
  %5762 = vmatprep.subr.mxu0 0.0
  %5763 = vmatpush1.msra.mxu0 0.0
  %5764 = vmatprep.subr.mxu0 0.0
  %5765 = vmatpush1.msra.mxu0 0.0
  %5766 = vmatprep.subr.mxu0 0.0
  %5767 = vmatpush1.msra.mxu0 0.0
  %5768 = vmatprep.subr.mxu0 0.0
  %5769 = vmatpush1.msra.mxu0 0.0
  %5770 = vmatprep.subr.mxu0 0.0
  %5771 = vmatpush1.msra.mxu0 0.0
  %5772 = vmatprep.subr.mxu0 0.0
  %5773 = vmatpush1.msra.mxu0 0.0
  %5774 = vmatprep.subr.mxu0 0.0
  %5775 = vmatpush1.msra.mxu0 0.0
  %5776 = vmatprep.subr.mxu0 0.0
  %5777 = vmatpush1.msra.mxu0 0.0
  %5778 = vmatprep.mubr.f32.mxu0 0.0
  %5779 = vmatmul.mubr.f32.gmra.mrb[0].mxu0 %v5681
  %v5780 = vpop.f32.mrb[0].mxu0
  %v5781 = vadd.f32 0.0, %v5780
  %v5782 = vpop.f32.mrb[0].mxu0
  %5783 = vmatprep.mubr.f32.mxu0 0.0
  %5784 = vmatmul.mubr.f32.gmra.mrb[0].mxu0 %v5682
  %v5785 = vpop.f32.mrb[0].mxu0
  %v5786 = vadd.f32 0.0, %v5785
  %v5787 = vpop.f32.mrb[0].mxu0
  %5788 = vmatprep.mubr.f32.mxu0 0.0
  %5789 = vmatmul.mubr.f32.gmra.mrb[0].mxu0 %v5683
  %v5790 = vpop.f32.mrb[0].mxu0
  %v5791 = vadd.f32 0.0, %v5790
  %v5792 = vpop.f32.mrb[0].mxu0
  %5793 = vmatprep.mubr.f32.mxu0 0.0
  %5794 = vmatmul.mubr.f32.gmra.mrb[0].mxu0 %v5684
  %v5795 = vpop.f32.mrb[0].mxu0
  %v5796 = vadd.f32 0.0, %v5795
  %v5797 = vpop.f32.mrb[0].mxu0
  %5798 = vmatprep.mubr.f32.mxu0 0.0
  %5799 = vmatmul.mubr.f32.gmra.mrb[0].mxu0 %v5685
  %v5800 = vpop.f32.mrb[0].mxu0
  %v5801 = vadd.f32 0.0, %v5800
  %v5802 = vpop.f32.mrb[0].mxu0
  %5803 = vmatprep.mubr.f32.mxu0 0.0
  %5804 = vmatmul.mubr.f32.gmra.mrb[0].mxu0 %v5686
  %v5805 = vpop.f32.mrb[0].mxu0
  %v5806 = vadd.f32 0.0, %v5805
  %v5807 = vpop.f32.mrb[0].mxu0
  %5808 = vmatprep.mubr.f32.mxu0 0.0
  %5809 = vmatmul.mubr.f32.gmra.mrb[0].mxu0 %v5687
  %v5810 = vpop.f32.mrb[0].mxu0
  %v5811 = vadd.f32 0.0, %v5810
  %v5812 = vpop.f32.mrb[0].mxu0
  %5813 = vmatprep.mubr.f32.mxu0 0.0
  %5814 = vmatmul.mubr.f32.gmra.mrb[0].mxu0 %v5688
  %v5815 = vpop.f32.mrb[0].mxu0
  %v5816 = vadd.f32 0.0, %v5815
  %v5817 = vpop.f32.mrb[0].mxu0
  %5818 = vmatprep.mubr.f32.mxu0 0.0
  %5819 = vmatmul.mubr.f32.gmra.mrb[0].mxu0 %v5689
  %v5820 = vpop.f32.mrb[0].mxu0
  %v5821 = vadd.f32 0.0, %v5820
  %v5822 = vpop.f32.mrb[0].mxu0
  %5823 = vmatprep.mubr.f32.mxu0 0.0
  %5824 = vmatmul.mubr.f32.gmra.mrb[0].mxu0 %v5690
  %v5825 = vpop.f32.mrb[0].mxu0
  %v5826 = vadd.f32 0.0, %v5825
  %v5827 = vpop.f32.mrb[0].mxu0
  %5828 = vmatprep.mubr.f32.mxu0 0.0
  %5829 = vmatmul.mubr.f32.gmra.mrb[0].mxu0 %v5691
  %v5830 = vpop.f32.mrb[0].mxu0
  %v5831 = vadd.f32 0.0, %v5830
  %v5832 = vpop.f32.mrb[0].mxu0
  %5833 = vmatprep.mubr.f32.mxu0 0.0
  %5834 = vmatmul.mubr.f32.gmra.mrb[0].mxu0 %v5692
  %v5835 = vpop.f32.mrb[0].mxu0
  %v5836 = vadd.f32 0.0, %v5835
  %v5837 = vpop.f32.mrb[0].mxu0
  %5838 = vmatprep.mubr.f32.mxu0 0.0
  %5839 = vmatmul.mubr.f32.gmra.mrb[0].mxu0 %v5693
  %v5840 = vpop.f32.mrb[0].mxu0
  %v5841 = vadd.f32 0.0, %v5840
  %v5842 = vpop.f32.mrb[0].mxu0
  %5843 = vmatprep.mubr.f32.mxu0 0.0
  %5844 = vmatmul.mubr.f32.gmra.mrb[0].mxu0 %v5694
  %v5845 = vpop.f32.mrb[0].mxu0
  %v5846 = vadd.f32 0.0, %v5845
  %v5847 = vpop.f32.mrb[0].mxu0
  %5848 = vmatprep.mubr.f32.mxu0 0.0
  %5849 = vmatmul.mubr.f32.gmra.mrb[0].mxu0 %v5695
  %v5850 = vpop.f32.mrb[0].mxu0
  %v5851 = vadd.f32 0.0, %v5850
  %v5852 = vpop.f32.mrb[0].mxu0
  %5853 = vmatprep.mubr.f32.mxu0 0.0
  %5854 = vmatmul.mubr.f32.gmra.mrb[0].mxu0 %v5696
  %v5855 = vpop.f32.mrb[0].mxu0
  %v5856 = vadd.f32 0.0, %v5855
  %v5857 = vpop.f32.mrb[0].mxu0
  %5858 = vdwg.mxu0
  %5859 = vmatprep.subr.mxu0 0.0
  %5860 = vmatpush1.msra.mxu0 %v5665
  %5861 = vmatprep.subr.mxu0 0.0
  %5862 = vmatpush1.msra.mxu0 %v5666
  %5863 = vmatprep.subr.mxu0 0.0
  %5864 = vmatpush1.msra.mxu0 %v5667
  %5865 = vmatprep.subr.mxu0 0.0
  %5866 = vmatpush1.msra.mxu0 %v5668
  %5867 = vmatprep.subr.mxu0 0.0
  %5868 = vmatpush1.msra.mxu0 %v5669
  %5869 = vmatprep.subr.mxu0 0.0
  %5870 = vmatpush1.msra.mxu0 %v5670
  %5871 = vmatprep.subr.mxu0 0.0
  %5872 = vmatpush1.msra.mxu0 %v5671
  %5873 = vmatprep.subr.mxu0 0.0
  %5874 = vmatpush1.msra.mxu0 %v5672
  %5875 = vmatprep.subr.mxu0 0.0
  %5876 = vmatpush1.msra.mxu0 %v5673
  %5877 = vmatprep.subr.mxu0 0.0
  %5878 = vmatpush1.msra.mxu0 %v5674
  %5879 = vmatprep.subr.mxu0 0.0
  %5880 = vmatpush1.msra.mxu0 %v5675
  %5881 = vmatprep.subr.mxu0 0.0
  %5882 = vmatpush1.msra.mxu0 %v5676
  %5883 = vmatprep.subr.mxu0 0.0
  %5884 = vmatpush1.msra.mxu0 %v5677
  %5885 = vmatprep.subr.mxu0 0.0
  %5886 = vmatpush1.msra.mxu0 %v5678
  %5887 = vmatprep.subr.mxu0 0.0
  %5888 = vmatpush1.msra.mxu0 %v5679
  %5889 = vmatprep.subr.mxu0 0.0
  %5890 = vmatpush1.msra.mxu0 %v5680
  %5891 = vmatprep.subr.mxu0 0.0
  %5892 = vmatpush1.msra.mxu0 0.0
  %5893 = vmatprep.subr.mxu0 0.0
  %5894 = vmatpush1.msra.mxu0 0.0
  %5895 = vmatprep.subr.mxu0 0.0
  %5896 = vmatpush1.msra.mxu0 0.0
  %5897 = vmatprep.subr.mxu0 0.0
  %5898 = vmatpush1.msra.mxu0 0.0
  %5899 = vmatprep.subr.mxu0 0.0
  %5900 = vmatpush1.msra.mxu0 0.0
  %5901 = vmatprep.subr.mxu0 0.0
  %5902 = vmatpush1.msra.mxu0 0.0
  %5903 = vmatprep.subr.mxu0 0.0
  %5904 = vmatpush1.msra.mxu0 0.0
  %5905 = vmatprep.subr.mxu0 0.0
  %5906 = vmatpush1.msra.mxu0 0.0
  %5907 = vmatprep.subr.mxu0 0.0
  %5908 = vmatpush1.msra.mxu0 0.0
  %5909 = vmatprep.subr.mxu0 0.0
  %5910 = vmatpush1.msra.mxu0 0.0
  %5911 = vmatprep.subr.mxu0 0.0
  %5912 = vmatpush1.msra.mxu0 0.0
  %5913 = vmatprep.subr.mxu0 0.0
  %5914 = vmatpush1.msra.mxu0 0.0
  %5915 = vmatprep.subr.mxu0 0.0
  %5916 = vmatpush1.msra.mxu0 0.0
  %5917 = vmatprep.subr.mxu0 0.0
  %5918 = vmatpush1.msra.mxu0 0.0
  %5919 = vmatprep.subr.mxu0 0.0
  %5920 = vmatpush1.msra.mxu0 0.0
  %5921 = vmatprep.subr.mxu0 0.0
  %5922 = vmatpush1.msra.mxu0 0.0
  %5923 = vmatprep.mubr.f32.mxu0 0.0
  %5924 = vmatmul.mubr.f32.gmra.mrb[0].mxu0 %v5648
  %v5925 = vpop.f32.mrb[0].mxu0
  %v5926 = vadd.f32 %v5781, %v5925
  %v5927 = vpop.f32.mrb[0].mxu0
  %5928 = vmatprep.mubr.f32.mxu0 0.0
  %5929 = vmatmul.mubr.f32.gmra.mrb[0].mxu0 %v5649
  %v5930 = vpop.f32.mrb[0].mxu0
  %v5931 = vadd.f32 %v5786, %v5930
  %v5932 = vpop.f32.mrb[0].mxu0
  %5933 = vmatprep.mubr.f32.mxu0 0.0
  %5934 = vmatmul.mubr.f32.gmra.mrb[0].mxu0 %v5650
  %v5935 = vpop.f32.mrb[0].mxu0
  %v5936 = vadd.f32 %v5791, %v5935
  %v5937 = vpop.f32.mrb[0].mxu0
  %5938 = vmatprep.mubr.f32.mxu0 0.0
  %5939 = vmatmul.mubr.f32.gmra.mrb[0].mxu0 %v5651
  %v5940 = vpop.f32.mrb[0].mxu0
  %v5941 = vadd.f32 %v5796, %v5940
  %v5942 = vpop.f32.mrb[0].mxu0
  %5943 = vmatprep.mubr.f32.mxu0 0.0
  %5944 = vmatmul.mubr.f32.gmra.mrb[0].mxu0 %v5652
  %v5945 = vpop.f32.mrb[0].mxu0
  %v5946 = vadd.f32 %v5801, %v5945
  %v5947 = vpop.f32.mrb[0].mxu0
  %5948 = vmatprep.mubr.f32.mxu0 0.0
  %5949 = vmatmul.mubr.f32.gmra.mrb[0].mxu0 %v5653
  %v5950 = vpop.f32.mrb[0].mxu0
  %v5951 = vadd.f32 %v5806, %v5950
  %v5952 = vpop.f32.mrb[0].mxu0
  %5953 = vmatprep.mubr.f32.mxu0 0.0
  %5954 = vmatmul.mubr.f32.gmra.mrb[0].mxu0 %v5654
  %v5955 = vpop.f32.mrb[0].mxu0
  %v5956 = vadd.f32 %v5811, %v5955
  %v5957 = vpop.f32.mrb[0].mxu0
  %5958 = vmatprep.mubr.f32.mxu0 0.0
  %5959 = vmatmul.mubr.f32.gmra.mrb[0].mxu0 %v5655
  %v5960 = vpop.f32.mrb[0].mxu0
  %v5961 = vadd.f32 %v5816, %v5960
  %v5962 = vpop.f32.mrb[0].mxu0
  %5963 = vmatprep.mubr.f32.mxu0 0.0
  %5964 = vmatmul.mubr.f32.gmra.mrb[0].mxu0 %v5656
  %v5965 = vpop.f32.mrb[0].mxu0
  %v5966 = vadd.f32 %v5821, %v5965
  %v5967 = vpop.f32.mrb[0].mxu0
  %5968 = vmatprep.mubr.f32.mxu0 0.0
  %5969 = vmatmul.mubr.f32.gmra.mrb[0].mxu0 %v5657
  %v5970 = vpop.f32.mrb[0].mxu0
  %v5971 = vadd.f32 %v5826, %v5970
  %v5972 = vpop.f32.mrb[0].mxu0
  %5973 = vmatprep.mubr.f32.mxu0 0.0
  %5974 = vmatmul.mubr.f32.gmra.mrb[0].mxu0 %v5658
  %v5975 = vpop.f32.mrb[0].mxu0
  %v5976 = vadd.f32 %v5831, %v5975
  %v5977 = vpop.f32.mrb[0].mxu0
  %5978 = vmatprep.mubr.f32.mxu0 0.0
  %5979 = vmatmul.mubr.f32.gmra.mrb[0].mxu0 %v5659
  %v5980 = vpop.f32.mrb[0].mxu0
  %v5981 = vadd.f32 %v5836, %v5980
  %v5982 = vpop.f32.mrb[0].mxu0
  %5983 = vmatprep.mubr.f32.mxu0 0.0
  %5984 = vmatmul.mubr.f32.gmra.mrb[0].mxu0 %v5660
  %v5985 = vpop.f32.mrb[0].mxu0
  %v5986 = vadd.f32 %v5841, %v5985
  %v5987 = vpop.f32.mrb[0].mxu0
  %5988 = vmatprep.mubr.f32.mxu0 0.0
  %5989 = vmatmul.mubr.f32.gmra.mrb[0].mxu0 %v5661
  %v5990 = vpop.f32.mrb[0].mxu0
  %v5991 = vadd.f32 %v5846, %v5990
  %v5992 = vpop.f32.mrb[0].mxu0
  %5993 = vmatprep.mubr.f32.mxu0 0.0
  %5994 = vmatmul.mubr.f32.gmra.mrb[0].mxu0 %v5662
  %v5995 = vpop.f32.mrb[0].mxu0
  %v5996 = vadd.f32 %v5851, %v5995
  %v5997 = vpop.f32.mrb[0].mxu0
  %5998 = vmatprep.mubr.f32.mxu0 0.0
  %5999 = vmatmul.mubr.f32.gmra.mrb[0].mxu0 %v5663
  %v6000 = vpop.f32.mrb[0].mxu0
  %v6001 = vadd.f32 %v5856, %v6000
  %v6002 = vpop.f32.mrb[0].mxu0
  %6003 = vdwg.mxu0
  %v6004 = vld [vmem:[#allocation2 + $0x2] sm:$0xff]
  %v6005 = vld [vmem:[#allocation2 + $0x12] sm:$0xff]
  %v6006 = vld [vmem:[#allocation2 + $0x22] sm:$0xff]
  %v6007 = vld [vmem:[#allocation2 + $0x32] sm:$0xff]
  %v6008 = vld [vmem:[#allocation2 + $0x42] sm:$0xff]
  %v6009 = vld [vmem:[#allocation2 + $0x52] sm:$0xff]
  %v6010 = vld [vmem:[#allocation2 + $0x62] sm:$0xff]
  %v6011 = vld [vmem:[#allocation2 + $0x72] sm:$0xff]
  %v6012 = vld [vmem:[#allocation2 + $0xa2] sm:$0xff]
  %v6013 = vld [vmem:[#allocation2 + $0xb2] sm:$0xff]
  %v6014 = vld [vmem:[#allocation2 + $0xc2] sm:$0xff]
  %v6015 = vld [vmem:[#allocation2 + $0xd2] sm:$0xff]
  %v6016 = vld [vmem:[#allocation2 + $0xe2] sm:$0xff]
  %v6017 = vld [vmem:[#allocation2 + $0xf2] sm:$0xff]
  %v6018 = vld [vmem:[#allocation2 + $0x102] sm:$0xff]
  %v6019 = vld [vmem:[#allocation2 + $0x112] sm:$0xff]
  %s6020 = scalar_lea.vmem %s1, 3712
  %v6021 = vld [vmem:[%s6020] sm:$0xff]
  %v6022 = vld [vmem:[%s6020 + $0x8] sm:$0xff]
  %v6023 = vld [vmem:[%s6020 + $0x10] sm:$0xff]
  %v6024 = vld [vmem:[%s6020 + $0x18] sm:$0xff]
  %v6025 = vld [vmem:[%s6020 + $0x20] sm:$0xff]
  %v6026 = vld [vmem:[%s6020 + $0x28] sm:$0xff]
  %v6027 = vld [vmem:[%s6020 + $0x30] sm:$0xff]
  %v6028 = vld [vmem:[%s6020 + $0x38] sm:$0xff]
  %v6029 = vld [vmem:[%s6020 + $0x40] sm:$0xff]
  %v6030 = vld [vmem:[%s6020 + $0x48] sm:$0xff]
  %v6031 = vld [vmem:[%s6020 + $0x50] sm:$0xff]
  %v6032 = vld [vmem:[%s6020 + $0x58] sm:$0xff]
  %v6033 = vld [vmem:[%s6020 + $0x60] sm:$0xff]
  %v6034 = vld [vmem:[%s6020 + $0x68] sm:$0xff]
  %v6035 = vld [vmem:[%s6020 + $0x70] sm:$0xff]
  %v6036 = vld [vmem:[%s6020 + $0x78] sm:$0xff]
  %6037 = vmatprep.subr.mxu0 0.0
  %6038 = vmatpush1.msra.mxu0 %v6021
  %6039 = vmatprep.subr.mxu0 0.0
  %6040 = vmatpush1.msra.mxu0 %v6022
  %6041 = vmatprep.subr.mxu0 0.0
  %6042 = vmatpush1.msra.mxu0 %v6023
  %6043 = vmatprep.subr.mxu0 0.0
  %6044 = vmatpush1.msra.mxu0 %v6024
  %6045 = vmatprep.subr.mxu0 0.0
  %6046 = vmatpush1.msra.mxu0 %v6025
  %6047 = vmatprep.subr.mxu0 0.0
  %6048 = vmatpush1.msra.mxu0 %v6026
  %6049 = vmatprep.subr.mxu0 0.0
  %6050 = vmatpush1.msra.mxu0 %v6027
  %6051 = vmatprep.subr.mxu0 0.0
  %6052 = vmatpush1.msra.mxu0 %v6028
  %6053 = vmatprep.subr.mxu0 0.0
  %6054 = vmatpush1.msra.mxu0 %v6029
  %6055 = vmatprep.subr.mxu0 0.0
  %6056 = vmatpush1.msra.mxu0 %v6030
  %6057 = vmatprep.subr.mxu0 0.0
  %6058 = vmatpush1.msra.mxu0 %v6031
  %6059 = vmatprep.subr.mxu0 0.0
  %6060 = vmatpush1.msra.mxu0 %v6032
  %6061 = vmatprep.subr.mxu0 0.0
  %6062 = vmatpush1.msra.mxu0 %v6033
  %6063 = vmatprep.subr.mxu0 0.0
  %6064 = vmatpush1.msra.mxu0 %v6034
  %6065 = vmatprep.subr.mxu0 0.0
  %6066 = vmatpush1.msra.mxu0 %v6035
  %6067 = vmatprep.subr.mxu0 0.0
  %6068 = vmatpush1.msra.mxu0 %v6036
  %6069 = vmatprep.subr.mxu0 0.0
  %6070 = vmatpush1.msra.mxu0 0.0
  %6071 = vmatprep.subr.mxu0 0.0
  %6072 = vmatpush1.msra.mxu0 0.0
  %6073 = vmatprep.subr.mxu0 0.0
  %6074 = vmatpush1.msra.mxu0 0.0
  %6075 = vmatprep.subr.mxu0 0.0
  %6076 = vmatpush1.msra.mxu0 0.0
  %6077 = vmatprep.subr.mxu0 0.0
  %6078 = vmatpush1.msra.mxu0 0.0
  %6079 = vmatprep.subr.mxu0 0.0
  %6080 = vmatpush1.msra.mxu0 0.0
  %6081 = vmatprep.subr.mxu0 0.0
  %6082 = vmatpush1.msra.mxu0 0.0
  %6083 = vmatprep.subr.mxu0 0.0
  %6084 = vmatpush1.msra.mxu0 0.0
  %6085 = vmatprep.subr.mxu0 0.0
  %6086 = vmatpush1.msra.mxu0 0.0
  %6087 = vmatprep.subr.mxu0 0.0
  %6088 = vmatpush1.msra.mxu0 0.0
  %6089 = vmatprep.subr.mxu0 0.0
  %6090 = vmatpush1.msra.mxu0 0.0
  %6091 = vmatprep.subr.mxu0 0.0
  %6092 = vmatpush1.msra.mxu0 0.0
  %6093 = vmatprep.subr.mxu0 0.0
  %6094 = vmatpush1.msra.mxu0 0.0
  %6095 = vmatprep.subr.mxu0 0.0
  %6096 = vmatpush1.msra.mxu0 0.0
  %6097 = vmatprep.subr.mxu0 0.0
  %6098 = vmatpush1.msra.mxu0 0.0
  %6099 = vmatprep.subr.mxu0 0.0
  %6100 = vmatpush1.msra.mxu0 0.0
  %6101 = vmatprep.mubr.f32.mxu0 0.0
  %6102 = vmatmul.mubr.f32.gmra.mrb[0].mxu0 %v6004
  %v6103 = vpop.f32.mrb[0].mxu0
  %v6104 = vadd.f32 0.0, %v6103
  %v6105 = vpop.f32.mrb[0].mxu0
  %6106 = vmatprep.mubr.f32.mxu0 0.0
  %6107 = vmatmul.mubr.f32.gmra.mrb[0].mxu0 %v6005
  %v6108 = vpop.f32.mrb[0].mxu0
  %v6109 = vadd.f32 0.0, %v6108
  %v6110 = vpop.f32.mrb[0].mxu0
  %6111 = vmatprep.mubr.f32.mxu0 0.0
  %6112 = vmatmul.mubr.f32.gmra.mrb[0].mxu0 %v6006
  %v6113 = vpop.f32.mrb[0].mxu0
  %v6114 = vadd.f32 0.0, %v6113
  %v6115 = vpop.f32.mrb[0].mxu0
  %6116 = vmatprep.mubr.f32.mxu0 0.0
  %6117 = vmatmul.mubr.f32.gmra.mrb[0].mxu0 %v6007
  %v6118 = vpop.f32.mrb[0].mxu0
  %v6119 = vadd.f32 0.0, %v6118
  %v6120 = vpop.f32.mrb[0].mxu0
  %6121 = vmatprep.mubr.f32.mxu0 0.0
  %6122 = vmatmul.mubr.f32.gmra.mrb[0].mxu0 %v6008
  %v6123 = vpop.f32.mrb[0].mxu0
  %v6124 = vadd.f32 0.0, %v6123
  %v6125 = vpop.f32.mrb[0].mxu0
  %6126 = vmatprep.mubr.f32.mxu0 0.0
  %6127 = vmatmul.mubr.f32.gmra.mrb[0].mxu0 %v6009
  %v6128 = vpop.f32.mrb[0].mxu0
  %v6129 = vadd.f32 0.0, %v6128
  %v6130 = vpop.f32.mrb[0].mxu0
  %6131 = vmatprep.mubr.f32.mxu0 0.0
  %6132 = vmatmul.mubr.f32.gmra.mrb[0].mxu0 %v6010
  %v6133 = vpop.f32.mrb[0].mxu0
  %v6134 = vadd.f32 0.0, %v6133
  %v6135 = vpop.f32.mrb[0].mxu0
  %6136 = vmatprep.mubr.f32.mxu0 0.0
  %6137 = vmatmul.mubr.f32.gmra.mrb[0].mxu0 %v6011
  %v6138 = vpop.f32.mrb[0].mxu0
  %v6139 = vadd.f32 0.0, %v6138
  %v6140 = vpop.f32.mrb[0].mxu0
  %6141 = vmatprep.mubr.f32.mxu0 0.0
  %6142 = vmatmul.mubr.f32.gmra.mrb[0].mxu0 %v6012
  %v6143 = vpop.f32.mrb[0].mxu0
  %v6144 = vadd.f32 0.0, %v6143
  %v6145 = vpop.f32.mrb[0].mxu0
  %6146 = vmatprep.mubr.f32.mxu0 0.0
  %6147 = vmatmul.mubr.f32.gmra.mrb[0].mxu0 %v6013
  %v6148 = vpop.f32.mrb[0].mxu0
  %v6149 = vadd.f32 0.0, %v6148
  %v6150 = vpop.f32.mrb[0].mxu0
  %6151 = vmatprep.mubr.f32.mxu0 0.0
  %6152 = vmatmul.mubr.f32.gmra.mrb[0].mxu0 %v6014
  %v6153 = vpop.f32.mrb[0].mxu0
  %v6154 = vadd.f32 0.0, %v6153
  %v6155 = vpop.f32.mrb[0].mxu0
  %6156 = vmatprep.mubr.f32.mxu0 0.0
  %6157 = vmatmul.mubr.f32.gmra.mrb[0].mxu0 %v6015
  %v6158 = vpop.f32.mrb[0].mxu0
  %v6159 = vadd.f32 0.0, %v6158
  %v6160 = vpop.f32.mrb[0].mxu0
  %6161 = vmatprep.mubr.f32.mxu0 0.0
  %6162 = vmatmul.mubr.f32.gmra.mrb[0].mxu0 %v6016
  %v6163 = vpop.f32.mrb[0].mxu0
  %v6164 = vadd.f32 0.0, %v6163
  %v6165 = vpop.f32.mrb[0].mxu0
  %6166 = vmatprep.mubr.f32.mxu0 0.0
  %6167 = vmatmul.mubr.f32.gmra.mrb[0].mxu0 %v6017
  %v6168 = vpop.f32.mrb[0].mxu0
  %v6169 = vadd.f32 0.0, %v6168
  %v6170 = vpop.f32.mrb[0].mxu0
  %6171 = vmatprep.mubr.f32.mxu0 0.0
  %6172 = vmatmul.mubr.f32.gmra.mrb[0].mxu0 %v6018
  %v6173 = vpop.f32.mrb[0].mxu0
  %v6174 = vadd.f32 0.0, %v6173
  %v6175 = vpop.f32.mrb[0].mxu0
  %6176 = vmatprep.mubr.f32.mxu0 0.0
  %6177 = vmatmul.mubr.f32.gmra.mrb[0].mxu0 %v6019
  %v6178 = vpop.f32.mrb[0].mxu0
  %v6179 = vadd.f32 0.0, %v6178
  %v6180 = vpop.f32.mrb[0].mxu0
  %6181 = vdwg.mxu0
  %v6182 = vadd.f32 %v5926, %v6104
  %v6183 = vadd.f32 %v5931, %v6109
  %v6184 = vadd.f32 %v5936, %v6114
  %v6185 = vadd.f32 %v5941, %v6119
  %v6186 = vadd.f32 %v5946, %v6124
  %v6187 = vadd.f32 %v5951, %v6129
  %v6188 = vadd.f32 %v5956, %v6134
  %v6189 = vadd.f32 %v5961, %v6139
  %v6190 = vadd.f32 %v5966, %v6144
  %v6191 = vadd.f32 %v5971, %v6149
  %v6192 = vadd.f32 %v5976, %v6154
  %v6193 = vadd.f32 %v5981, %v6159
  %v6194 = vadd.f32 %v5986, %v6164
  %v6195 = vadd.f32 %v5991, %v6169
  %v6196 = vadd.f32 %v5996, %v6174
  %v6197 = vadd.f32 %v6001, %v6179
  %v6198 = vld [vmem:[%s2071] sm:$0xff]
  %v6199 = vld [vmem:[%s2071 + $0x10] sm:$0xff]
  %v6200 = vld [vmem:[%s2071 + $0x20] sm:$0xff]
  %v6201 = vld [vmem:[%s2071 + $0x30] sm:$0xff]
  %v6202 = vld [vmem:[%s2071 + $0x40] sm:$0xff]
  %v6203 = vld [vmem:[%s2071 + $0x50] sm:$0xff]
  %v6204 = vld [vmem:[%s2071 + $0x60] sm:$0xff]
  %v6205 = vld [vmem:[%s2071 + $0x70] sm:$0xff]
  %v6206 = vld [vmem:[%s2071 + $0xa0] sm:$0xff]
  %v6207 = vld [vmem:[%s2071 + $0xb0] sm:$0xff]
  %v6208 = vld [vmem:[%s2071 + $0xc0] sm:$0xff]
  %v6209 = vld [vmem:[%s2071 + $0xd0] sm:$0xff]
  %v6210 = vld [vmem:[%s2071 + $0xe0] sm:$0xff]
  %v6211 = vld [vmem:[%s2071 + $0xf0] sm:$0xff]
  %v6212 = vld [vmem:[%s2071 + $0x100] sm:$0xff]
  %v6213 = vld [vmem:[%s2071 + $0x110] sm:$0xff]
  %s6214 = scalar_lea.vmem %s1, 3840
  %v6215 = vld [vmem:[%s6214] sm:$0xff]
  %v6216 = vld [vmem:[%s6214 + $0x8] sm:$0xff]
  %v6217 = vld [vmem:[%s6214 + $0x10] sm:$0xff]
  %v6218 = vld [vmem:[%s6214 + $0x18] sm:$0xff]
  %v6219 = vld [vmem:[%s6214 + $0x20] sm:$0xff]
  %v6220 = vld [vmem:[%s6214 + $0x28] sm:$0xff]
  %v6221 = vld [vmem:[%s6214 + $0x30] sm:$0xff]
  %v6222 = vld [vmem:[%s6214 + $0x38] sm:$0xff]
  %v6223 = vld [vmem:[%s6214 + $0x40] sm:$0xff]
  %v6224 = vld [vmem:[%s6214 + $0x48] sm:$0xff]
  %v6225 = vld [vmem:[%s6214 + $0x50] sm:$0xff]
  %v6226 = vld [vmem:[%s6214 + $0x58] sm:$0xff]
  %v6227 = vld [vmem:[%s6214 + $0x60] sm:$0xff]
  %v6228 = vld [vmem:[%s6214 + $0x68] sm:$0xff]
  %v6229 = vld [vmem:[%s6214 + $0x70] sm:$0xff]
  %v6230 = vld [vmem:[%s6214 + $0x78] sm:$0xff]
  %6231 = vmatprep.subr.mxu0 0.0
  %6232 = vmatpush1.msra.mxu0 %v6215
  %6233 = vmatprep.subr.mxu0 0.0
  %6234 = vmatpush1.msra.mxu0 %v6216
  %6235 = vmatprep.subr.mxu0 0.0
  %6236 = vmatpush1.msra.mxu0 %v6217
  %6237 = vmatprep.subr.mxu0 0.0
  %6238 = vmatpush1.msra.mxu0 %v6218
  %6239 = vmatprep.subr.mxu0 0.0
  %6240 = vmatpush1.msra.mxu0 %v6219
  %6241 = vmatprep.subr.mxu0 0.0
  %6242 = vmatpush1.msra.mxu0 %v6220
  %6243 = vmatprep.subr.mxu0 0.0
  %6244 = vmatpush1.msra.mxu0 %v6221
  %6245 = vmatprep.subr.mxu0 0.0
  %6246 = vmatpush1.msra.mxu0 %v6222
  %6247 = vmatprep.subr.mxu0 0.0
  %6248 = vmatpush1.msra.mxu0 %v6223
  %6249 = vmatprep.subr.mxu0 0.0
  %6250 = vmatpush1.msra.mxu0 %v6224
  %6251 = vmatprep.subr.mxu0 0.0
  %6252 = vmatpush1.msra.mxu0 %v6225
  %6253 = vmatprep.subr.mxu0 0.0
  %6254 = vmatpush1.msra.mxu0 %v6226
  %6255 = vmatprep.subr.mxu0 0.0
  %6256 = vmatpush1.msra.mxu0 %v6227
  %6257 = vmatprep.subr.mxu0 0.0
  %6258 = vmatpush1.msra.mxu0 %v6228
  %6259 = vmatprep.subr.mxu0 0.0
  %6260 = vmatpush1.msra.mxu0 %v6229
  %6261 = vmatprep.subr.mxu0 0.0
  %6262 = vmatpush1.msra.mxu0 %v6230
  %6263 = vmatprep.subr.mxu0 0.0
  %6264 = vmatpush1.msra.mxu0 0.0
  %6265 = vmatprep.subr.mxu0 0.0
  %6266 = vmatpush1.msra.mxu0 0.0
  %6267 = vmatprep.subr.mxu0 0.0
  %6268 = vmatpush1.msra.mxu0 0.0
  %6269 = vmatprep.subr.mxu0 0.0
  %6270 = vmatpush1.msra.mxu0 0.0
  %6271 = vmatprep.subr.mxu0 0.0
  %6272 = vmatpush1.msra.mxu0 0.0
  %6273 = vmatprep.subr.mxu0 0.0
  %6274 = vmatpush1.msra.mxu0 0.0
  %6275 = vmatprep.subr.mxu0 0.0
  %6276 = vmatpush1.msra.mxu0 0.0
  %6277 = vmatprep.subr.mxu0 0.0
  %6278 = vmatpush1.msra.mxu0 0.0
  %6279 = vmatprep.subr.mxu0 0.0
  %6280 = vmatpush1.msra.mxu0 0.0
  %6281 = vmatprep.subr.mxu0 0.0
  %6282 = vmatpush1.msra.mxu0 0.0
  %6283 = vmatprep.subr.mxu0 0.0
  %6284 = vmatpush1.msra.mxu0 0.0
  %6285 = vmatprep.subr.mxu0 0.0
  %6286 = vmatpush1.msra.mxu0 0.0
  %6287 = vmatprep.subr.mxu0 0.0
  %6288 = vmatpush1.msra.mxu0 0.0
  %6289 = vmatprep.subr.mxu0 0.0
  %6290 = vmatpush1.msra.mxu0 0.0
  %6291 = vmatprep.subr.mxu0 0.0
  %6292 = vmatpush1.msra.mxu0 0.0
  %6293 = vmatprep.subr.mxu0 0.0
  %6294 = vmatpush1.msra.mxu0 0.0
  %6295 = vmatprep.mubr.f32.mxu0 0.0
  %6296 = vmatmul.mubr.f32.gmra.mrb[0].mxu0 %v6198
  %v6297 = vpop.f32.mrb[0].mxu0
  %v6298 = vadd.f32 0.0, %v6297
  %v6299 = vpop.f32.mrb[0].mxu0
  %6300 = vmatprep.mubr.f32.mxu0 0.0
  %6301 = vmatmul.mubr.f32.gmra.mrb[0].mxu0 %v6199
  %v6302 = vpop.f32.mrb[0].mxu0
  %v6303 = vadd.f32 0.0, %v6302
  %v6304 = vpop.f32.mrb[0].mxu0
  %6305 = vmatprep.mubr.f32.mxu0 0.0
  %6306 = vmatmul.mubr.f32.gmra.mrb[0].mxu0 %v6200
  %v6307 = vpop.f32.mrb[0].mxu0
  %v6308 = vadd.f32 0.0, %v6307
  %v6309 = vpop.f32.mrb[0].mxu0
  %6310 = vmatprep.mubr.f32.mxu0 0.0
  %6311 = vmatmul.mubr.f32.gmra.mrb[0].mxu0 %v6201
  %v6312 = vpop.f32.mrb[0].mxu0
  %v6313 = vadd.f32 0.0, %v6312
  %v6314 = vpop.f32.mrb[0].mxu0
  %6315 = vmatprep.mubr.f32.mxu0 0.0
  %6316 = vmatmul.mubr.f32.gmra.mrb[0].mxu0 %v6202
  %v6317 = vpop.f32.mrb[0].mxu0
  %v6318 = vadd.f32 0.0, %v6317
  %v6319 = vpop.f32.mrb[0].mxu0
  %6320 = vmatprep.mubr.f32.mxu0 0.0
  %6321 = vmatmul.mubr.f32.gmra.mrb[0].mxu0 %v6203
  %v6322 = vpop.f32.mrb[0].mxu0
  %v6323 = vadd.f32 0.0, %v6322
  %v6324 = vpop.f32.mrb[0].mxu0
  %6325 = vmatprep.mubr.f32.mxu0 0.0
  %6326 = vmatmul.mubr.f32.gmra.mrb[0].mxu0 %v6204
  %v6327 = vpop.f32.mrb[0].mxu0
  %v6328 = vadd.f32 0.0, %v6327
  %v6329 = vpop.f32.mrb[0].mxu0
  %6330 = vmatprep.mubr.f32.mxu0 0.0
  %6331 = vmatmul.mubr.f32.gmra.mrb[0].mxu0 %v6205
  %v6332 = vpop.f32.mrb[0].mxu0
  %v6333 = vadd.f32 0.0, %v6332
  %v6334 = vpop.f32.mrb[0].mxu0
  %6335 = vmatprep.mubr.f32.mxu0 0.0
  %6336 = vmatmul.mubr.f32.gmra.mrb[0].mxu0 %v6206
  %v6337 = vpop.f32.mrb[0].mxu0
  %v6338 = vadd.f32 0.0, %v6337
  %v6339 = vpop.f32.mrb[0].mxu0
  %6340 = vmatprep.mubr.f32.mxu0 0.0
  %6341 = vmatmul.mubr.f32.gmra.mrb[0].mxu0 %v6207
  %v6342 = vpop.f32.mrb[0].mxu0
  %v6343 = vadd.f32 0.0, %v6342
  %v6344 = vpop.f32.mrb[0].mxu0
  %6345 = vmatprep.mubr.f32.mxu0 0.0
  %6346 = vmatmul.mubr.f32.gmra.mrb[0].mxu0 %v6208
  %v6347 = vpop.f32.mrb[0].mxu0
  %v6348 = vadd.f32 0.0, %v6347
  %v6349 = vpop.f32.mrb[0].mxu0
  %6350 = vmatprep.mubr.f32.mxu0 0.0
  %6351 = vmatmul.mubr.f32.gmra.mrb[0].mxu0 %v6209
  %v6352 = vpop.f32.mrb[0].mxu0
  %v6353 = vadd.f32 0.0, %v6352
  %v6354 = vpop.f32.mrb[0].mxu0
  %6355 = vmatprep.mubr.f32.mxu0 0.0
  %6356 = vmatmul.mubr.f32.gmra.mrb[0].mxu0 %v6210
  %v6357 = vpop.f32.mrb[0].mxu0
  %v6358 = vadd.f32 0.0, %v6357
  %v6359 = vpop.f32.mrb[0].mxu0
  %6360 = vmatprep.mubr.f32.mxu0 0.0
  %6361 = vmatmul.mubr.f32.gmra.mrb[0].mxu0 %v6211
  %v6362 = vpop.f32.mrb[0].mxu0
  %v6363 = vadd.f32 0.0, %v6362
  %v6364 = vpop.f32.mrb[0].mxu0
  %6365 = vmatprep.mubr.f32.mxu0 0.0
  %6366 = vmatmul.mubr.f32.gmra.mrb[0].mxu0 %v6212
  %v6367 = vpop.f32.mrb[0].mxu0
  %v6368 = vadd.f32 0.0, %v6367
  %v6369 = vpop.f32.mrb[0].mxu0
  %6370 = vmatprep.mubr.f32.mxu0 0.0
  %6371 = vmatmul.mubr.f32.gmra.mrb[0].mxu0 %v6213
  %v6372 = vpop.f32.mrb[0].mxu0
  %v6373 = vadd.f32 0.0, %v6372
  %v6374 = vpop.f32.mrb[0].mxu0
  %6375 = vdwg.mxu0
  %v6376 = vadd.f32 %v6182, %v6298
  %v6377 = vadd.f32 %v6183, %v6303
  %v6378 = vadd.f32 %v6184, %v6308
  %v6379 = vadd.f32 %v6185, %v6313
  %v6380 = vadd.f32 %v6186, %v6318
  %v6381 = vadd.f32 %v6187, %v6323
  %v6382 = vadd.f32 %v6188, %v6328
  %v6383 = vadd.f32 %v6189, %v6333
  %v6384 = vadd.f32 %v6190, %v6338
  %v6385 = vadd.f32 %v6191, %v6343
  %v6386 = vadd.f32 %v6192, %v6348
  %v6387 = vadd.f32 %v6193, %v6353
  %v6388 = vadd.f32 %v6194, %v6358
  %v6389 = vadd.f32 %v6195, %v6363
  %v6390 = vadd.f32 %v6196, %v6368
  %v6391 = vadd.f32 %v6197, %v6373
  %v6392 = vld [vmem:[%s2071 + $0x1] sm:$0xff]
  %v6393 = vld [vmem:[%s2071 + $0x11] sm:$0xff]
  %v6394 = vld [vmem:[%s2071 + $0x21] sm:$0xff]
  %v6395 = vld [vmem:[%s2071 + $0x31] sm:$0xff]
  %v6396 = vld [vmem:[%s2071 + $0x41] sm:$0xff]
  %v6397 = vld [vmem:[%s2071 + $0x51] sm:$0xff]
  %v6398 = vld [vmem:[%s2071 + $0x61] sm:$0xff]
  %v6399 = vld [vmem:[%s2071 + $0x71] sm:$0xff]
  %v6400 = vld [vmem:[%s2071 + $0xa1] sm:$0xff]
  %v6401 = vld [vmem:[%s2071 + $0xb1] sm:$0xff]
  %v6402 = vld [vmem:[%s2071 + $0xc1] sm:$0xff]
  %v6403 = vld [vmem:[%s2071 + $0xd1] sm:$0xff]
  %v6404 = vld [vmem:[%s2071 + $0xe1] sm:$0xff]
  %v6405 = vld [vmem:[%s2071 + $0xf1] sm:$0xff]
  %v6406 = vld [vmem:[%s2071 + $0x101] sm:$0xff]
  %v6407 = vld [vmem:[%s2071 + $0x111] sm:$0xff]
  %s6408 = scalar_lea.vmem %s1, 3968
  %v6409 = vld [vmem:[%s6408] sm:$0xff]
  %v6410 = vld [vmem:[%s6408 + $0x8] sm:$0xff]
  %v6411 = vld [vmem:[%s6408 + $0x10] sm:$0xff]
  %v6412 = vld [vmem:[%s6408 + $0x18] sm:$0xff]
  %v6413 = vld [vmem:[%s6408 + $0x20] sm:$0xff]
  %v6414 = vld [vmem:[%s6408 + $0x28] sm:$0xff]
  %v6415 = vld [vmem:[%s6408 + $0x30] sm:$0xff]
  %v6416 = vld [vmem:[%s6408 + $0x38] sm:$0xff]
  %v6417 = vld [vmem:[%s6408 + $0x40] sm:$0xff]
  %v6418 = vld [vmem:[%s6408 + $0x48] sm:$0xff]
  %v6419 = vld [vmem:[%s6408 + $0x50] sm:$0xff]
  %v6420 = vld [vmem:[%s6408 + $0x58] sm:$0xff]
  %v6421 = vld [vmem:[%s6408 + $0x60] sm:$0xff]
  %v6422 = vld [vmem:[%s6408 + $0x68] sm:$0xff]
  %v6423 = vld [vmem:[%s6408 + $0x70] sm:$0xff]
  %v6424 = vld [vmem:[%s6408 + $0x78] sm:$0xff]
  %6425 = vmatprep.subr.mxu0 0.0
  %6426 = vmatpush1.msra.mxu0 %v6409
  %6427 = vmatprep.subr.mxu0 0.0
  %6428 = vmatpush1.msra.mxu0 %v6410
  %6429 = vmatprep.subr.mxu0 0.0
  %6430 = vmatpush1.msra.mxu0 %v6411
  %6431 = vmatprep.subr.mxu0 0.0
  %6432 = vmatpush1.msra.mxu0 %v6412
  %6433 = vmatprep.subr.mxu0 0.0
  %6434 = vmatpush1.msra.mxu0 %v6413
  %6435 = vmatprep.subr.mxu0 0.0
  %6436 = vmatpush1.msra.mxu0 %v6414
  %6437 = vmatprep.subr.mxu0 0.0
  %6438 = vmatpush1.msra.mxu0 %v6415
  %6439 = vmatprep.subr.mxu0 0.0
  %6440 = vmatpush1.msra.mxu0 %v6416
  %6441 = vmatprep.subr.mxu0 0.0
  %6442 = vmatpush1.msra.mxu0 %v6417
  %6443 = vmatprep.subr.mxu0 0.0
  %6444 = vmatpush1.msra.mxu0 %v6418
  %6445 = vmatprep.subr.mxu0 0.0
  %6446 = vmatpush1.msra.mxu0 %v6419
  %6447 = vmatprep.subr.mxu0 0.0
  %6448 = vmatpush1.msra.mxu0 %v6420
  %6449 = vmatprep.subr.mxu0 0.0
  %6450 = vmatpush1.msra.mxu0 %v6421
  %6451 = vmatprep.subr.mxu0 0.0
  %6452 = vmatpush1.msra.mxu0 %v6422
  %6453 = vmatprep.subr.mxu0 0.0
  %6454 = vmatpush1.msra.mxu0 %v6423
  %6455 = vmatprep.subr.mxu0 0.0
  %6456 = vmatpush1.msra.mxu0 %v6424
  %6457 = vmatprep.subr.mxu0 0.0
  %6458 = vmatpush1.msra.mxu0 0.0
  %6459 = vmatprep.subr.mxu0 0.0
  %6460 = vmatpush1.msra.mxu0 0.0
  %6461 = vmatprep.subr.mxu0 0.0
  %6462 = vmatpush1.msra.mxu0 0.0
  %6463 = vmatprep.subr.mxu0 0.0
  %6464 = vmatpush1.msra.mxu0 0.0
  %6465 = vmatprep.subr.mxu0 0.0
  %6466 = vmatpush1.msra.mxu0 0.0
  %6467 = vmatprep.subr.mxu0 0.0
  %6468 = vmatpush1.msra.mxu0 0.0
  %6469 = vmatprep.subr.mxu0 0.0
  %6470 = vmatpush1.msra.mxu0 0.0
  %6471 = vmatprep.subr.mxu0 0.0
  %6472 = vmatpush1.msra.mxu0 0.0
  %6473 = vmatprep.subr.mxu0 0.0
  %6474 = vmatpush1.msra.mxu0 0.0
  %6475 = vmatprep.subr.mxu0 0.0
  %6476 = vmatpush1.msra.mxu0 0.0
  %6477 = vmatprep.subr.mxu0 0.0
  %6478 = vmatpush1.msra.mxu0 0.0
  %6479 = vmatprep.subr.mxu0 0.0
  %6480 = vmatpush1.msra.mxu0 0.0
  %6481 = vmatprep.subr.mxu0 0.0
  %6482 = vmatpush1.msra.mxu0 0.0
  %6483 = vmatprep.subr.mxu0 0.0
  %6484 = vmatpush1.msra.mxu0 0.0
  %6485 = vmatprep.subr.mxu0 0.0
  %6486 = vmatpush1.msra.mxu0 0.0
  %6487 = vmatprep.subr.mxu0 0.0
  %6488 = vmatpush1.msra.mxu0 0.0
  %6489 = vmatprep.mubr.f32.mxu0 0.0
  %6490 = vmatmul.mubr.f32.gmra.mrb[0].mxu0 %v6392
  %v6491 = vpop.f32.mrb[0].mxu0
  %v6492 = vadd.f32 0.0, %v6491
  %v6493 = vpop.f32.mrb[0].mxu0
  %6494 = vmatprep.mubr.f32.mxu0 0.0
  %6495 = vmatmul.mubr.f32.gmra.mrb[0].mxu0 %v6393
  %v6496 = vpop.f32.mrb[0].mxu0
  %v6497 = vadd.f32 0.0, %v6496
  %v6498 = vpop.f32.mrb[0].mxu0
  %6499 = vmatprep.mubr.f32.mxu0 0.0
  %6500 = vmatmul.mubr.f32.gmra.mrb[0].mxu0 %v6394
  %v6501 = vpop.f32.mrb[0].mxu0
  %v6502 = vadd.f32 0.0, %v6501
  %v6503 = vpop.f32.mrb[0].mxu0
  %6504 = vmatprep.mubr.f32.mxu0 0.0
  %6505 = vmatmul.mubr.f32.gmra.mrb[0].mxu0 %v6395
  %v6506 = vpop.f32.mrb[0].mxu0
  %v6507 = vadd.f32 0.0, %v6506
  %v6508 = vpop.f32.mrb[0].mxu0
  %6509 = vmatprep.mubr.f32.mxu0 0.0
  %6510 = vmatmul.mubr.f32.gmra.mrb[0].mxu0 %v6396
  %v6511 = vpop.f32.mrb[0].mxu0
  %v6512 = vadd.f32 0.0, %v6511
  %v6513 = vpop.f32.mrb[0].mxu0
  %6514 = vmatprep.mubr.f32.mxu0 0.0
  %6515 = vmatmul.mubr.f32.gmra.mrb[0].mxu0 %v6397
  %v6516 = vpop.f32.mrb[0].mxu0
  %v6517 = vadd.f32 0.0, %v6516
  %v6518 = vpop.f32.mrb[0].mxu0
  %6519 = vmatprep.mubr.f32.mxu0 0.0
  %6520 = vmatmul.mubr.f32.gmra.mrb[0].mxu0 %v6398
  %v6521 = vpop.f32.mrb[0].mxu0
  %v6522 = vadd.f32 0.0, %v6521
  %v6523 = vpop.f32.mrb[0].mxu0
  %6524 = vmatprep.mubr.f32.mxu0 0.0
  %6525 = vmatmul.mubr.f32.gmra.mrb[0].mxu0 %v6399
  %v6526 = vpop.f32.mrb[0].mxu0
  %v6527 = vadd.f32 0.0, %v6526
  %v6528 = vpop.f32.mrb[0].mxu0
  %6529 = vmatprep.mubr.f32.mxu0 0.0
  %6530 = vmatmul.mubr.f32.gmra.mrb[0].mxu0 %v6400
  %v6531 = vpop.f32.mrb[0].mxu0
  %v6532 = vadd.f32 0.0, %v6531
  %v6533 = vpop.f32.mrb[0].mxu0
  %6534 = vmatprep.mubr.f32.mxu0 0.0
  %6535 = vmatmul.mubr.f32.gmra.mrb[0].mxu0 %v6401
  %v6536 = vpop.f32.mrb[0].mxu0
  %v6537 = vadd.f32 0.0, %v6536
  %v6538 = vpop.f32.mrb[0].mxu0
  %6539 = vmatprep.mubr.f32.mxu0 0.0
  %6540 = vmatmul.mubr.f32.gmra.mrb[0].mxu0 %v6402
  %v6541 = vpop.f32.mrb[0].mxu0
  %v6542 = vadd.f32 0.0, %v6541
  %v6543 = vpop.f32.mrb[0].mxu0
  %6544 = vmatprep.mubr.f32.mxu0 0.0
  %6545 = vmatmul.mubr.f32.gmra.mrb[0].mxu0 %v6403
  %v6546 = vpop.f32.mrb[0].mxu0
  %v6547 = vadd.f32 0.0, %v6546
  %v6548 = vpop.f32.mrb[0].mxu0
  %6549 = vmatprep.mubr.f32.mxu0 0.0
  %6550 = vmatmul.mubr.f32.gmra.mrb[0].mxu0 %v6404
  %v6551 = vpop.f32.mrb[0].mxu0
  %v6552 = vadd.f32 0.0, %v6551
  %v6553 = vpop.f32.mrb[0].mxu0
  %6554 = vmatprep.mubr.f32.mxu0 0.0
  %6555 = vmatmul.mubr.f32.gmra.mrb[0].mxu0 %v6405
  %v6556 = vpop.f32.mrb[0].mxu0
  %v6557 = vadd.f32 0.0, %v6556
  %v6558 = vpop.f32.mrb[0].mxu0
  %6559 = vmatprep.mubr.f32.mxu0 0.0
  %6560 = vmatmul.mubr.f32.gmra.mrb[0].mxu0 %v6406
  %v6561 = vpop.f32.mrb[0].mxu0
  %v6562 = vadd.f32 0.0, %v6561
  %v6563 = vpop.f32.mrb[0].mxu0
  %6564 = vmatprep.mubr.f32.mxu0 0.0
  %6565 = vmatmul.mubr.f32.gmra.mrb[0].mxu0 %v6407
  %v6566 = vpop.f32.mrb[0].mxu0
  %v6567 = vadd.f32 0.0, %v6566
  %v6568 = vpop.f32.mrb[0].mxu0
  %6569 = vdwg.mxu0
  %v6570 = vadd.f32 %v6376, %v6492
  %v6571 = vadd.f32 %v6377, %v6497
  %v6572 = vadd.f32 %v6378, %v6502
  %v6573 = vadd.f32 %v6379, %v6507
  %v6574 = vadd.f32 %v6380, %v6512
  %v6575 = vadd.f32 %v6381, %v6517
  %v6576 = vadd.f32 %v6382, %v6522
  %v6577 = vadd.f32 %v6383, %v6527
  %v6578 = vadd.f32 %v6384, %v6532
  %v6579 = vadd.f32 %v6385, %v6537
  %v6580 = vadd.f32 %v6386, %v6542
  %v6581 = vadd.f32 %v6387, %v6547
  %v6582 = vadd.f32 %v6388, %v6552
  %v6583 = vadd.f32 %v6389, %v6557
  %v6584 = vadd.f32 %v6390, %v6562
  %v6585 = vadd.f32 %v6391, %v6567
  %v6586 = vld [vmem:[%s2071 + $0x2] sm:$0xff]
  %v6587 = vld [vmem:[%s2071 + $0x12] sm:$0xff]
  %v6588 = vld [vmem:[%s2071 + $0x22] sm:$0xff]
  %v6589 = vld [vmem:[%s2071 + $0x32] sm:$0xff]
  %v6590 = vld [vmem:[%s2071 + $0x42] sm:$0xff]
  %v6591 = vld [vmem:[%s2071 + $0x52] sm:$0xff]
  %v6592 = vld [vmem:[%s2071 + $0x62] sm:$0xff]
  %v6593 = vld [vmem:[%s2071 + $0x72] sm:$0xff]
  %v6594 = vld [vmem:[%s2071 + $0xa2] sm:$0xff]
  %v6595 = vld [vmem:[%s2071 + $0xb2] sm:$0xff]
  %v6596 = vld [vmem:[%s2071 + $0xc2] sm:$0xff]
  %v6597 = vld [vmem:[%s2071 + $0xd2] sm:$0xff]
  %v6598 = vld [vmem:[%s2071 + $0xe2] sm:$0xff]
  %v6599 = vld [vmem:[%s2071 + $0xf2] sm:$0xff]
  %v6600 = vld [vmem:[%s2071 + $0x102] sm:$0xff]
  %v6601 = vld [vmem:[%s2071 + $0x112] sm:$0xff]
  %s6602 = scalar_lea.vmem %s1, 4096
  %v6603 = vld [vmem:[%s6602] sm:$0xff]
  %v6604 = vld [vmem:[%s6602 + $0x8] sm:$0xff]
  %v6605 = vld [vmem:[%s6602 + $0x10] sm:$0xff]
  %v6606 = vld [vmem:[%s6602 + $0x18] sm:$0xff]
  %v6607 = vld [vmem:[%s6602 + $0x20] sm:$0xff]
  %v6608 = vld [vmem:[%s6602 + $0x28] sm:$0xff]
  %v6609 = vld [vmem:[%s6602 + $0x30] sm:$0xff]
  %v6610 = vld [vmem:[%s6602 + $0x38] sm:$0xff]
  %v6611 = vld [vmem:[%s6602 + $0x40] sm:$0xff]
  %v6612 = vld [vmem:[%s6602 + $0x48] sm:$0xff]
  %v6613 = vld [vmem:[%s6602 + $0x50] sm:$0xff]
  %v6614 = vld [vmem:[%s6602 + $0x58] sm:$0xff]
  %v6615 = vld [vmem:[%s6602 + $0x60] sm:$0xff]
  %v6616 = vld [vmem:[%s6602 + $0x68] sm:$0xff]
  %v6617 = vld [vmem:[%s6602 + $0x70] sm:$0xff]
  %v6618 = vld [vmem:[%s6602 + $0x78] sm:$0xff]
  %6619 = vmatprep.subr.mxu0 0.0
  %6620 = vmatpush1.msra.mxu0 %v6603
  %6621 = vmatprep.subr.mxu0 0.0
  %6622 = vmatpush1.msra.mxu0 %v6604
  %6623 = vmatprep.subr.mxu0 0.0
  %6624 = vmatpush1.msra.mxu0 %v6605
  %6625 = vmatprep.subr.mxu0 0.0
  %6626 = vmatpush1.msra.mxu0 %v6606
  %6627 = vmatprep.subr.mxu0 0.0
  %6628 = vmatpush1.msra.mxu0 %v6607
  %6629 = vmatprep.subr.mxu0 0.0
  %6630 = vmatpush1.msra.mxu0 %v6608
  %6631 = vmatprep.subr.mxu0 0.0
  %6632 = vmatpush1.msra.mxu0 %v6609
  %6633 = vmatprep.subr.mxu0 0.0
  %6634 = vmatpush1.msra.mxu0 %v6610
  %6635 = vmatprep.subr.mxu0 0.0
  %6636 = vmatpush1.msra.mxu0 %v6611
  %6637 = vmatprep.subr.mxu0 0.0
  %6638 = vmatpush1.msra.mxu0 %v6612
  %6639 = vmatprep.subr.mxu0 0.0
  %6640 = vmatpush1.msra.mxu0 %v6613
  %6641 = vmatprep.subr.mxu0 0.0
  %6642 = vmatpush1.msra.mxu0 %v6614
  %6643 = vmatprep.subr.mxu0 0.0
  %6644 = vmatpush1.msra.mxu0 %v6615
  %6645 = vmatprep.subr.mxu0 0.0
  %6646 = vmatpush1.msra.mxu0 %v6616
  %6647 = vmatprep.subr.mxu0 0.0
  %6648 = vmatpush1.msra.mxu0 %v6617
  %6649 = vmatprep.subr.mxu0 0.0
  %6650 = vmatpush1.msra.mxu0 %v6618
  %6651 = vmatprep.subr.mxu0 0.0
  %6652 = vmatpush1.msra.mxu0 0.0
  %6653 = vmatprep.subr.mxu0 0.0
  %6654 = vmatpush1.msra.mxu0 0.0
  %6655 = vmatprep.subr.mxu0 0.0
  %6656 = vmatpush1.msra.mxu0 0.0
  %6657 = vmatprep.subr.mxu0 0.0
  %6658 = vmatpush1.msra.mxu0 0.0
  %6659 = vmatprep.subr.mxu0 0.0
  %6660 = vmatpush1.msra.mxu0 0.0
  %6661 = vmatprep.subr.mxu0 0.0
  %6662 = vmatpush1.msra.mxu0 0.0
  %6663 = vmatprep.subr.mxu0 0.0
  %6664 = vmatpush1.msra.mxu0 0.0
  %6665 = vmatprep.subr.mxu0 0.0
  %6666 = vmatpush1.msra.mxu0 0.0
  %6667 = vmatprep.subr.mxu0 0.0
  %6668 = vmatpush1.msra.mxu0 0.0
  %6669 = vmatprep.subr.mxu0 0.0
  %6670 = vmatpush1.msra.mxu0 0.0
  %6671 = vmatprep.subr.mxu0 0.0
  %6672 = vmatpush1.msra.mxu0 0.0
  %6673 = vmatprep.subr.mxu0 0.0
  %6674 = vmatpush1.msra.mxu0 0.0
  %6675 = vmatprep.subr.mxu0 0.0
  %6676 = vmatpush1.msra.mxu0 0.0
  %6677 = vmatprep.subr.mxu0 0.0
  %6678 = vmatpush1.msra.mxu0 0.0
  %6679 = vmatprep.subr.mxu0 0.0
  %6680 = vmatpush1.msra.mxu0 0.0
  %6681 = vmatprep.subr.mxu0 0.0
  %6682 = vmatpush1.msra.mxu0 0.0
  %6683 = vmatprep.mubr.f32.mxu0 0.0
  %6684 = vmatmul.mubr.f32.gmra.mrb[0].mxu0 %v6586
  %v6685 = vpop.f32.mrb[0].mxu0
  %v6686 = vadd.f32 0.0, %v6685
  %v6687 = vpop.f32.mrb[0].mxu0
  %6688 = vmatprep.mubr.f32.mxu0 0.0
  %6689 = vmatmul.mubr.f32.gmra.mrb[0].mxu0 %v6587
  %v6690 = vpop.f32.mrb[0].mxu0
  %v6691 = vadd.f32 0.0, %v6690
  %v6692 = vpop.f32.mrb[0].mxu0
  %6693 = vmatprep.mubr.f32.mxu0 0.0
  %6694 = vmatmul.mubr.f32.gmra.mrb[0].mxu0 %v6588
  %v6695 = vpop.f32.mrb[0].mxu0
  %v6696 = vadd.f32 0.0, %v6695
  %v6697 = vpop.f32.mrb[0].mxu0
  %6698 = vmatprep.mubr.f32.mxu0 0.0
  %6699 = vmatmul.mubr.f32.gmra.mrb[0].mxu0 %v6589
  %v6700 = vpop.f32.mrb[0].mxu0
  %v6701 = vadd.f32 0.0, %v6700
  %v6702 = vpop.f32.mrb[0].mxu0
  %6703 = vmatprep.mubr.f32.mxu0 0.0
  %6704 = vmatmul.mubr.f32.gmra.mrb[0].mxu0 %v6590
  %v6705 = vpop.f32.mrb[0].mxu0
  %v6706 = vadd.f32 0.0, %v6705
  %v6707 = vpop.f32.mrb[0].mxu0
  %6708 = vmatprep.mubr.f32.mxu0 0.0
  %6709 = vmatmul.mubr.f32.gmra.mrb[0].mxu0 %v6591
  %v6710 = vpop.f32.mrb[0].mxu0
  %v6711 = vadd.f32 0.0, %v6710
  %v6712 = vpop.f32.mrb[0].mxu0
  %6713 = vmatprep.mubr.f32.mxu0 0.0
  %6714 = vmatmul.mubr.f32.gmra.mrb[0].mxu0 %v6592
  %v6715 = vpop.f32.mrb[0].mxu0
  %v6716 = vadd.f32 0.0, %v6715
  %v6717 = vpop.f32.mrb[0].mxu0
  %6718 = vmatprep.mubr.f32.mxu0 0.0
  %6719 = vmatmul.mubr.f32.gmra.mrb[0].mxu0 %v6593
  %v6720 = vpop.f32.mrb[0].mxu0
  %v6721 = vadd.f32 0.0, %v6720
  %v6722 = vpop.f32.mrb[0].mxu0
  %6723 = vmatprep.mubr.f32.mxu0 0.0
  %6724 = vmatmul.mubr.f32.gmra.mrb[0].mxu0 %v6594
  %v6725 = vpop.f32.mrb[0].mxu0
  %v6726 = vadd.f32 0.0, %v6725
  %v6727 = vpop.f32.mrb[0].mxu0
  %6728 = vmatprep.mubr.f32.mxu0 0.0
  %6729 = vmatmul.mubr.f32.gmra.mrb[0].mxu0 %v6595
  %v6730 = vpop.f32.mrb[0].mxu0
  %v6731 = vadd.f32 0.0, %v6730
  %v6732 = vpop.f32.mrb[0].mxu0
  %6733 = vmatprep.mubr.f32.mxu0 0.0
  %6734 = vmatmul.mubr.f32.gmra.mrb[0].mxu0 %v6596
  %v6735 = vpop.f32.mrb[0].mxu0
  %v6736 = vadd.f32 0.0, %v6735
  %v6737 = vpop.f32.mrb[0].mxu0
  %6738 = vmatprep.mubr.f32.mxu0 0.0
  %6739 = vmatmul.mubr.f32.gmra.mrb[0].mxu0 %v6597
  %v6740 = vpop.f32.mrb[0].mxu0
  %v6741 = vadd.f32 0.0, %v6740
  %v6742 = vpop.f32.mrb[0].mxu0
  %6743 = vmatprep.mubr.f32.mxu0 0.0
  %6744 = vmatmul.mubr.f32.gmra.mrb[0].mxu0 %v6598
  %v6745 = vpop.f32.mrb[0].mxu0
  %v6746 = vadd.f32 0.0, %v6745
  %v6747 = vpop.f32.mrb[0].mxu0
  %6748 = vmatprep.mubr.f32.mxu0 0.0
  %6749 = vmatmul.mubr.f32.gmra.mrb[0].mxu0 %v6599
  %v6750 = vpop.f32.mrb[0].mxu0
  %v6751 = vadd.f32 0.0, %v6750
  %v6752 = vpop.f32.mrb[0].mxu0
  %6753 = vmatprep.mubr.f32.mxu0 0.0
  %6754 = vmatmul.mubr.f32.gmra.mrb[0].mxu0 %v6600
  %v6755 = vpop.f32.mrb[0].mxu0
  %v6756 = vadd.f32 0.0, %v6755
  %v6757 = vpop.f32.mrb[0].mxu0
  %6758 = vmatprep.mubr.f32.mxu0 0.0
  %6759 = vmatmul.mubr.f32.gmra.mrb[0].mxu0 %v6601
  %v6760 = vpop.f32.mrb[0].mxu0
  %v6761 = vadd.f32 0.0, %v6760
  %v6762 = vpop.f32.mrb[0].mxu0
  %6763 = vdwg.mxu0
  %v6764 = vadd.f32 %v6570, %v6686
  %v6765 = vadd.f32 %v6571, %v6691
  %v6766 = vadd.f32 %v6572, %v6696
  %v6767 = vadd.f32 %v6573, %v6701
  %v6768 = vadd.f32 %v6574, %v6706
  %v6769 = vadd.f32 %v6575, %v6711
  %v6770 = vadd.f32 %v6576, %v6716
  %v6771 = vadd.f32 %v6577, %v6721
  %v6772 = vadd.f32 %v6578, %v6726
  %v6773 = vadd.f32 %v6579, %v6731
  %v6774 = vadd.f32 %v6580, %v6736
  %v6775 = vadd.f32 %v6581, %v6741
  %v6776 = vadd.f32 %v6582, %v6746
  %v6777 = vadd.f32 %v6583, %v6751
  %v6778 = vadd.f32 %v6584, %v6756
  %v6779 = vadd.f32 %v6585, %v6761
  %v6780 = vld [vmem:[%s3220] sm:$0xff]
  %v6781 = vld [vmem:[%s3220 + $0x10] sm:$0xff]
  %v6782 = vld [vmem:[%s3220 + $0x20] sm:$0xff]
  %v6783 = vld [vmem:[%s3220 + $0x30] sm:$0xff]
  %v6784 = vld [vmem:[%s3220 + $0x40] sm:$0xff]
  %v6785 = vld [vmem:[%s3220 + $0x50] sm:$0xff]
  %v6786 = vld [vmem:[%s3220 + $0x60] sm:$0xff]
  %v6787 = vld [vmem:[%s3220 + $0x70] sm:$0xff]
  %v6788 = vld [vmem:[%s3220 + $0xa0] sm:$0xff]
  %v6789 = vld [vmem:[%s3220 + $0xb0] sm:$0xff]
  %v6790 = vld [vmem:[%s3220 + $0xc0] sm:$0xff]
  %v6791 = vld [vmem:[%s3220 + $0xd0] sm:$0xff]
  %v6792 = vld [vmem:[%s3220 + $0xe0] sm:$0xff]
  %v6793 = vld [vmem:[%s3220 + $0xf0] sm:$0xff]
  %v6794 = vld [vmem:[%s3220 + $0x100] sm:$0xff]
  %v6795 = vld [vmem:[%s3220 + $0x110] sm:$0xff]
  %s6796 = scalar_lea.vmem %s1, 4224
  %v6797 = vld [vmem:[%s6796] sm:$0xff]
  %v6798 = vld [vmem:[%s6796 + $0x8] sm:$0xff]
  %v6799 = vld [vmem:[%s6796 + $0x10] sm:$0xff]
  %v6800 = vld [vmem:[%s6796 + $0x18] sm:$0xff]
  %v6801 = vld [vmem:[%s6796 + $0x20] sm:$0xff]
  %v6802 = vld [vmem:[%s6796 + $0x28] sm:$0xff]
  %v6803 = vld [vmem:[%s6796 + $0x30] sm:$0xff]
  %v6804 = vld [vmem:[%s6796 + $0x38] sm:$0xff]
  %v6805 = vld [vmem:[%s6796 + $0x40] sm:$0xff]
  %v6806 = vld [vmem:[%s6796 + $0x48] sm:$0xff]
  %v6807 = vld [vmem:[%s6796 + $0x50] sm:$0xff]
  %v6808 = vld [vmem:[%s6796 + $0x58] sm:$0xff]
  %v6809 = vld [vmem:[%s6796 + $0x60] sm:$0xff]
  %v6810 = vld [vmem:[%s6796 + $0x68] sm:$0xff]
  %v6811 = vld [vmem:[%s6796 + $0x70] sm:$0xff]
  %v6812 = vld [vmem:[%s6796 + $0x78] sm:$0xff]
  %6813 = vmatprep.subr.mxu0 0.0
  %6814 = vmatpush1.msra.mxu0 %v6797
  %6815 = vmatprep.subr.mxu0 0.0
  %6816 = vmatpush1.msra.mxu0 %v6798
  %6817 = vmatprep.subr.mxu0 0.0
  %6818 = vmatpush1.msra.mxu0 %v6799
  %6819 = vmatprep.subr.mxu0 0.0
  %6820 = vmatpush1.msra.mxu0 %v6800
  %6821 = vmatprep.subr.mxu0 0.0
  %6822 = vmatpush1.msra.mxu0 %v6801
  %6823 = vmatprep.subr.mxu0 0.0
  %6824 = vmatpush1.msra.mxu0 %v6802
  %6825 = vmatprep.subr.mxu0 0.0
  %6826 = vmatpush1.msra.mxu0 %v6803
  %6827 = vmatprep.subr.mxu0 0.0
  %6828 = vmatpush1.msra.mxu0 %v6804
  %6829 = vmatprep.subr.mxu0 0.0
  %6830 = vmatpush1.msra.mxu0 %v6805
  %6831 = vmatprep.subr.mxu0 0.0
  %6832 = vmatpush1.msra.mxu0 %v6806
  %6833 = vmatprep.subr.mxu0 0.0
  %6834 = vmatpush1.msra.mxu0 %v6807
  %6835 = vmatprep.subr.mxu0 0.0
  %6836 = vmatpush1.msra.mxu0 %v6808
  %6837 = vmatprep.subr.mxu0 0.0
  %6838 = vmatpush1.msra.mxu0 %v6809
  %6839 = vmatprep.subr.mxu0 0.0
  %6840 = vmatpush1.msra.mxu0 %v6810
  %6841 = vmatprep.subr.mxu0 0.0
  %6842 = vmatpush1.msra.mxu0 %v6811
  %6843 = vmatprep.subr.mxu0 0.0
  %6844 = vmatpush1.msra.mxu0 %v6812
  %6845 = vmatprep.subr.mxu0 0.0
  %6846 = vmatpush1.msra.mxu0 0.0
  %6847 = vmatprep.subr.mxu0 0.0
  %6848 = vmatpush1.msra.mxu0 0.0
  %6849 = vmatprep.subr.mxu0 0.0
  %6850 = vmatpush1.msra.mxu0 0.0
  %6851 = vmatprep.subr.mxu0 0.0
  %6852 = vmatpush1.msra.mxu0 0.0
  %6853 = vmatprep.subr.mxu0 0.0
  %6854 = vmatpush1.msra.mxu0 0.0
  %6855 = vmatprep.subr.mxu0 0.0
  %6856 = vmatpush1.msra.mxu0 0.0
  %6857 = vmatprep.subr.mxu0 0.0
  %6858 = vmatpush1.msra.mxu0 0.0
  %6859 = vmatprep.subr.mxu0 0.0
  %6860 = vmatpush1.msra.mxu0 0.0
  %6861 = vmatprep.subr.mxu0 0.0
  %6862 = vmatpush1.msra.mxu0 0.0
  %6863 = vmatprep.subr.mxu0 0.0
  %6864 = vmatpush1.msra.mxu0 0.0
  %6865 = vmatprep.subr.mxu0 0.0
  %6866 = vmatpush1.msra.mxu0 0.0
  %6867 = vmatprep.subr.mxu0 0.0
  %6868 = vmatpush1.msra.mxu0 0.0
  %6869 = vmatprep.subr.mxu0 0.0
  %6870 = vmatpush1.msra.mxu0 0.0
  %6871 = vmatprep.subr.mxu0 0.0
  %6872 = vmatpush1.msra.mxu0 0.0
  %6873 = vmatprep.subr.mxu0 0.0
  %6874 = vmatpush1.msra.mxu0 0.0
  %6875 = vmatprep.subr.mxu0 0.0
  %6876 = vmatpush1.msra.mxu0 0.0
  %6877 = vmatprep.mubr.f32.mxu0 0.0
  %6878 = vmatmul.mubr.f32.gmra.mrb[0].mxu0 %v6780
  %v6879 = vpop.f32.mrb[0].mxu0
  %v6880 = vadd.f32 0.0, %v6879
  %v6881 = vpop.f32.mrb[0].mxu0
  %6882 = vmatprep.mubr.f32.mxu0 0.0
  %6883 = vmatmul.mubr.f32.gmra.mrb[0].mxu0 %v6781
  %v6884 = vpop.f32.mrb[0].mxu0
  %v6885 = vadd.f32 0.0, %v6884
  %v6886 = vpop.f32.mrb[0].mxu0
  %6887 = vmatprep.mubr.f32.mxu0 0.0
  %6888 = vmatmul.mubr.f32.gmra.mrb[0].mxu0 %v6782
  %v6889 = vpop.f32.mrb[0].mxu0
  %v6890 = vadd.f32 0.0, %v6889
  %v6891 = vpop.f32.mrb[0].mxu0
  %6892 = vmatprep.mubr.f32.mxu0 0.0
  %6893 = vmatmul.mubr.f32.gmra.mrb[0].mxu0 %v6783
  %v6894 = vpop.f32.mrb[0].mxu0
  %v6895 = vadd.f32 0.0, %v6894
  %v6896 = vpop.f32.mrb[0].mxu0
  %6897 = vmatprep.mubr.f32.mxu0 0.0
  %6898 = vmatmul.mubr.f32.gmra.mrb[0].mxu0 %v6784
  %v6899 = vpop.f32.mrb[0].mxu0
  %v6900 = vadd.f32 0.0, %v6899
  %v6901 = vpop.f32.mrb[0].mxu0
  %6902 = vmatprep.mubr.f32.mxu0 0.0
  %6903 = vmatmul.mubr.f32.gmra.mrb[0].mxu0 %v6785
  %v6904 = vpop.f32.mrb[0].mxu0
  %v6905 = vadd.f32 0.0, %v6904
  %v6906 = vpop.f32.mrb[0].mxu0
  %6907 = vmatprep.mubr.f32.mxu0 0.0
  %6908 = vmatmul.mubr.f32.gmra.mrb[0].mxu0 %v6786
  %v6909 = vpop.f32.mrb[0].mxu0
  %v6910 = vadd.f32 0.0, %v6909
  %v6911 = vpop.f32.mrb[0].mxu0
  %6912 = vmatprep.mubr.f32.mxu0 0.0
  %6913 = vmatmul.mubr.f32.gmra.mrb[0].mxu0 %v6787
  %v6914 = vpop.f32.mrb[0].mxu0
  %v6915 = vadd.f32 0.0, %v6914
  %v6916 = vpop.f32.mrb[0].mxu0
  %6917 = vmatprep.mubr.f32.mxu0 0.0
  %6918 = vmatmul.mubr.f32.gmra.mrb[0].mxu0 %v6788
  %v6919 = vpop.f32.mrb[0].mxu0
  %v6920 = vadd.f32 0.0, %v6919
  %v6921 = vpop.f32.mrb[0].mxu0
  %6922 = vmatprep.mubr.f32.mxu0 0.0
  %6923 = vmatmul.mubr.f32.gmra.mrb[0].mxu0 %v6789
  %v6924 = vpop.f32.mrb[0].mxu0
  %v6925 = vadd.f32 0.0, %v6924
  %v6926 = vpop.f32.mrb[0].mxu0
  %6927 = vmatprep.mubr.f32.mxu0 0.0
  %6928 = vmatmul.mubr.f32.gmra.mrb[0].mxu0 %v6790
  %v6929 = vpop.f32.mrb[0].mxu0
  %v6930 = vadd.f32 0.0, %v6929
  %v6931 = vpop.f32.mrb[0].mxu0
  %6932 = vmatprep.mubr.f32.mxu0 0.0
  %6933 = vmatmul.mubr.f32.gmra.mrb[0].mxu0 %v6791
  %v6934 = vpop.f32.mrb[0].mxu0
  %v6935 = vadd.f32 0.0, %v6934
  %v6936 = vpop.f32.mrb[0].mxu0
  %6937 = vmatprep.mubr.f32.mxu0 0.0
  %6938 = vmatmul.mubr.f32.gmra.mrb[0].mxu0 %v6792
  %v6939 = vpop.f32.mrb[0].mxu0
  %v6940 = vadd.f32 0.0, %v6939
  %v6941 = vpop.f32.mrb[0].mxu0
  %6942 = vmatprep.mubr.f32.mxu0 0.0
  %6943 = vmatmul.mubr.f32.gmra.mrb[0].mxu0 %v6793
  %v6944 = vpop.f32.mrb[0].mxu0
  %v6945 = vadd.f32 0.0, %v6944
  %v6946 = vpop.f32.mrb[0].mxu0
  %6947 = vmatprep.mubr.f32.mxu0 0.0
  %6948 = vmatmul.mubr.f32.gmra.mrb[0].mxu0 %v6794
  %v6949 = vpop.f32.mrb[0].mxu0
  %v6950 = vadd.f32 0.0, %v6949
  %v6951 = vpop.f32.mrb[0].mxu0
  %6952 = vmatprep.mubr.f32.mxu0 0.0
  %6953 = vmatmul.mubr.f32.gmra.mrb[0].mxu0 %v6795
  %v6954 = vpop.f32.mrb[0].mxu0
  %v6955 = vadd.f32 0.0, %v6954
  %v6956 = vpop.f32.mrb[0].mxu0
  %6957 = vdwg.mxu0
  %v6958 = vadd.f32 %v6764, %v6880
  %v6959 = vadd.f32 %v6765, %v6885
  %v6960 = vadd.f32 %v6766, %v6890
  %v6961 = vadd.f32 %v6767, %v6895
  %v6962 = vadd.f32 %v6768, %v6900
  %v6963 = vadd.f32 %v6769, %v6905
  %v6964 = vadd.f32 %v6770, %v6910
  %v6965 = vadd.f32 %v6771, %v6915
  %v6966 = vadd.f32 %v6772, %v6920
  %v6967 = vadd.f32 %v6773, %v6925
  %v6968 = vadd.f32 %v6774, %v6930
  %v6969 = vadd.f32 %v6775, %v6935
  %v6970 = vadd.f32 %v6776, %v6940
  %v6971 = vadd.f32 %v6777, %v6945
  %v6972 = vadd.f32 %v6778, %v6950
  %v6973 = vadd.f32 %v6779, %v6955
  %v6974 = vld [vmem:[%s3220 + $0x1] sm:$0xff]
  %v6975 = vld [vmem:[%s3220 + $0x11] sm:$0xff]
  %v6976 = vld [vmem:[%s3220 + $0x21] sm:$0xff]
  %v6977 = vld [vmem:[%s3220 + $0x31] sm:$0xff]
  %v6978 = vld [vmem:[%s3220 + $0x41] sm:$0xff]
  %v6979 = vld [vmem:[%s3220 + $0x51] sm:$0xff]
  %v6980 = vld [vmem:[%s3220 + $0x61] sm:$0xff]
  %v6981 = vld [vmem:[%s3220 + $0x71] sm:$0xff]
  %v6982 = vld [vmem:[%s3220 + $0xa1] sm:$0xff]
  %v6983 = vld [vmem:[%s3220 + $0xb1] sm:$0xff]
  %v6984 = vld [vmem:[%s3220 + $0xc1] sm:$0xff]
  %v6985 = vld [vmem:[%s3220 + $0xd1] sm:$0xff]
  %v6986 = vld [vmem:[%s3220 + $0xe1] sm:$0xff]
  %v6987 = vld [vmem:[%s3220 + $0xf1] sm:$0xff]
  %v6988 = vld [vmem:[%s3220 + $0x101] sm:$0xff]
  %v6989 = vld [vmem:[%s3220 + $0x111] sm:$0xff]
  %s6990 = scalar_lea.vmem %s1, 4352
  %v6991 = vld [vmem:[%s6990] sm:$0xff]
  %v6992 = vld [vmem:[%s6990 + $0x8] sm:$0xff]
  %v6993 = vld [vmem:[%s6990 + $0x10] sm:$0xff]
  %v6994 = vld [vmem:[%s6990 + $0x18] sm:$0xff]
  %v6995 = vld [vmem:[%s6990 + $0x20] sm:$0xff]
  %v6996 = vld [vmem:[%s6990 + $0x28] sm:$0xff]
  %v6997 = vld [vmem:[%s6990 + $0x30] sm:$0xff]
  %v6998 = vld [vmem:[%s6990 + $0x38] sm:$0xff]
  %v6999 = vld [vmem:[%s6990 + $0x40] sm:$0xff]
  %v7000 = vld [vmem:[%s6990 + $0x48] sm:$0xff]
  %v7001 = vld [vmem:[%s6990 + $0x50] sm:$0xff]
  %v7002 = vld [vmem:[%s6990 + $0x58] sm:$0xff]
  %v7003 = vld [vmem:[%s6990 + $0x60] sm:$0xff]
  %v7004 = vld [vmem:[%s6990 + $0x68] sm:$0xff]
  %v7005 = vld [vmem:[%s6990 + $0x70] sm:$0xff]
  %v7006 = vld [vmem:[%s6990 + $0x78] sm:$0xff]
  %7007 = vmatprep.subr.mxu0 0.0
  %7008 = vmatpush1.msra.mxu0 %v6991
  %7009 = vmatprep.subr.mxu0 0.0
  %7010 = vmatpush1.msra.mxu0 %v6992
  %7011 = vmatprep.subr.mxu0 0.0
  %7012 = vmatpush1.msra.mxu0 %v6993
  %7013 = vmatprep.subr.mxu0 0.0
  %7014 = vmatpush1.msra.mxu0 %v6994
  %7015 = vmatprep.subr.mxu0 0.0
  %7016 = vmatpush1.msra.mxu0 %v6995
  %7017 = vmatprep.subr.mxu0 0.0
  %7018 = vmatpush1.msra.mxu0 %v6996
  %7019 = vmatprep.subr.mxu0 0.0
  %7020 = vmatpush1.msra.mxu0 %v6997
  %7021 = vmatprep.subr.mxu0 0.0
  %7022 = vmatpush1.msra.mxu0 %v6998
  %7023 = vmatprep.subr.mxu0 0.0
  %7024 = vmatpush1.msra.mxu0 %v6999
  %7025 = vmatprep.subr.mxu0 0.0
  %7026 = vmatpush1.msra.mxu0 %v7000
  %7027 = vmatprep.subr.mxu0 0.0
  %7028 = vmatpush1.msra.mxu0 %v7001
  %7029 = vmatprep.subr.mxu0 0.0
  %7030 = vmatpush1.msra.mxu0 %v7002
  %7031 = vmatprep.subr.mxu0 0.0
  %7032 = vmatpush1.msra.mxu0 %v7003
  %7033 = vmatprep.subr.mxu0 0.0
  %7034 = vmatpush1.msra.mxu0 %v7004
  %7035 = vmatprep.subr.mxu0 0.0
  %7036 = vmatpush1.msra.mxu0 %v7005
  %7037 = vmatprep.subr.mxu0 0.0
  %7038 = vmatpush1.msra.mxu0 %v7006
  %7039 = vmatprep.subr.mxu0 0.0
  %7040 = vmatpush1.msra.mxu0 0.0
  %7041 = vmatprep.subr.mxu0 0.0
  %7042 = vmatpush1.msra.mxu0 0.0
  %7043 = vmatprep.subr.mxu0 0.0
  %7044 = vmatpush1.msra.mxu0 0.0
  %7045 = vmatprep.subr.mxu0 0.0
  %7046 = vmatpush1.msra.mxu0 0.0
  %7047 = vmatprep.subr.mxu0 0.0
  %7048 = vmatpush1.msra.mxu0 0.0
  %7049 = vmatprep.subr.mxu0 0.0
  %7050 = vmatpush1.msra.mxu0 0.0
  %7051 = vmatprep.subr.mxu0 0.0
  %7052 = vmatpush1.msra.mxu0 0.0
  %7053 = vmatprep.subr.mxu0 0.0
  %7054 = vmatpush1.msra.mxu0 0.0
  %7055 = vmatprep.subr.mxu0 0.0
  %7056 = vmatpush1.msra.mxu0 0.0
  %7057 = vmatprep.subr.mxu0 0.0
  %7058 = vmatpush1.msra.mxu0 0.0
  %7059 = vmatprep.subr.mxu0 0.0
  %7060 = vmatpush1.msra.mxu0 0.0
  %7061 = vmatprep.subr.mxu0 0.0
  %7062 = vmatpush1.msra.mxu0 0.0
  %7063 = vmatprep.subr.mxu0 0.0
  %7064 = vmatpush1.msra.mxu0 0.0
  %7065 = vmatprep.subr.mxu0 0.0
  %7066 = vmatpush1.msra.mxu0 0.0
  %7067 = vmatprep.subr.mxu0 0.0
  %7068 = vmatpush1.msra.mxu0 0.0
  %7069 = vmatprep.subr.mxu0 0.0
  %7070 = vmatpush1.msra.mxu0 0.0
  %7071 = vmatprep.mubr.f32.mxu0 0.0
  %7072 = vmatmul.mubr.f32.gmra.mrb[0].mxu0 %v6974
  %v7073 = vpop.f32.mrb[0].mxu0
  %v7074 = vadd.f32 0.0, %v7073
  %v7075 = vpop.f32.mrb[0].mxu0
  %7076 = vmatprep.mubr.f32.mxu0 0.0
  %7077 = vmatmul.mubr.f32.gmra.mrb[0].mxu0 %v6975
  %v7078 = vpop.f32.mrb[0].mxu0
  %v7079 = vadd.f32 0.0, %v7078
  %v7080 = vpop.f32.mrb[0].mxu0
  %7081 = vmatprep.mubr.f32.mxu0 0.0
  %7082 = vmatmul.mubr.f32.gmra.mrb[0].mxu0 %v6976
  %v7083 = vpop.f32.mrb[0].mxu0
  %v7084 = vadd.f32 0.0, %v7083
  %v7085 = vpop.f32.mrb[0].mxu0
  %7086 = vmatprep.mubr.f32.mxu0 0.0
  %7087 = vmatmul.mubr.f32.gmra.mrb[0].mxu0 %v6977
  %v7088 = vpop.f32.mrb[0].mxu0
  %v7089 = vadd.f32 0.0, %v7088
  %v7090 = vpop.f32.mrb[0].mxu0
  %7091 = vmatprep.mubr.f32.mxu0 0.0
  %7092 = vmatmul.mubr.f32.gmra.mrb[0].mxu0 %v6978
  %v7093 = vpop.f32.mrb[0].mxu0
  %v7094 = vadd.f32 0.0, %v7093
  %v7095 = vpop.f32.mrb[0].mxu0
  %7096 = vmatprep.mubr.f32.mxu0 0.0
  %7097 = vmatmul.mubr.f32.gmra.mrb[0].mxu0 %v6979
  %v7098 = vpop.f32.mrb[0].mxu0
  %v7099 = vadd.f32 0.0, %v7098
  %v7100 = vpop.f32.mrb[0].mxu0
  %7101 = vmatprep.mubr.f32.mxu0 0.0
  %7102 = vmatmul.mubr.f32.gmra.mrb[0].mxu0 %v6980
  %v7103 = vpop.f32.mrb[0].mxu0
  %v7104 = vadd.f32 0.0, %v7103
  %v7105 = vpop.f32.mrb[0].mxu0
  %7106 = vmatprep.mubr.f32.mxu0 0.0
  %7107 = vmatmul.mubr.f32.gmra.mrb[0].mxu0 %v6981
  %v7108 = vpop.f32.mrb[0].mxu0
  %v7109 = vadd.f32 0.0, %v7108
  %v7110 = vpop.f32.mrb[0].mxu0
  %7111 = vmatprep.mubr.f32.mxu0 0.0
  %7112 = vmatmul.mubr.f32.gmra.mrb[0].mxu0 %v6982
  %v7113 = vpop.f32.mrb[0].mxu0
  %v7114 = vadd.f32 0.0, %v7113
  %v7115 = vpop.f32.mrb[0].mxu0
  %7116 = vmatprep.mubr.f32.mxu0 0.0
  %7117 = vmatmul.mubr.f32.gmra.mrb[0].mxu0 %v6983
  %v7118 = vpop.f32.mrb[0].mxu0
  %v7119 = vadd.f32 0.0, %v7118
  %v7120 = vpop.f32.mrb[0].mxu0
  %7121 = vmatprep.mubr.f32.mxu0 0.0
  %7122 = vmatmul.mubr.f32.gmra.mrb[0].mxu0 %v6984
  %v7123 = vpop.f32.mrb[0].mxu0
  %v7124 = vadd.f32 0.0, %v7123
  %v7125 = vpop.f32.mrb[0].mxu0
  %7126 = vmatprep.mubr.f32.mxu0 0.0
  %7127 = vmatmul.mubr.f32.gmra.mrb[0].mxu0 %v6985
  %v7128 = vpop.f32.mrb[0].mxu0
  %v7129 = vadd.f32 0.0, %v7128
  %v7130 = vpop.f32.mrb[0].mxu0
  %7131 = vmatprep.mubr.f32.mxu0 0.0
  %7132 = vmatmul.mubr.f32.gmra.mrb[0].mxu0 %v6986
  %v7133 = vpop.f32.mrb[0].mxu0
  %v7134 = vadd.f32 0.0, %v7133
  %v7135 = vpop.f32.mrb[0].mxu0
  %7136 = vmatprep.mubr.f32.mxu0 0.0
  %7137 = vmatmul.mubr.f32.gmra.mrb[0].mxu0 %v6987
  %v7138 = vpop.f32.mrb[0].mxu0
  %v7139 = vadd.f32 0.0, %v7138
  %v7140 = vpop.f32.mrb[0].mxu0
  %7141 = vmatprep.mubr.f32.mxu0 0.0
  %7142 = vmatmul.mubr.f32.gmra.mrb[0].mxu0 %v6988
  %v7143 = vpop.f32.mrb[0].mxu0
  %v7144 = vadd.f32 0.0, %v7143
  %v7145 = vpop.f32.mrb[0].mxu0
  %7146 = vmatprep.mubr.f32.mxu0 0.0
  %7147 = vmatmul.mubr.f32.gmra.mrb[0].mxu0 %v6989
  %v7148 = vpop.f32.mrb[0].mxu0
  %v7149 = vadd.f32 0.0, %v7148
  %v7150 = vpop.f32.mrb[0].mxu0
  %7151 = vdwg.mxu0
  %v7152 = vadd.f32 %v6958, %v7074
  %v7153 = vadd.f32 %v6959, %v7079
  %v7154 = vadd.f32 %v6960, %v7084
  %v7155 = vadd.f32 %v6961, %v7089
  %v7156 = vadd.f32 %v6962, %v7094
  %v7157 = vadd.f32 %v6963, %v7099
  %v7158 = vadd.f32 %v6964, %v7104
  %v7159 = vadd.f32 %v6965, %v7109
  %v7160 = vadd.f32 %v6966, %v7114
  %v7161 = vadd.f32 %v6967, %v7119
  %v7162 = vadd.f32 %v6968, %v7124
  %v7163 = vadd.f32 %v6969, %v7129
  %v7164 = vadd.f32 %v6970, %v7134
  %v7165 = vadd.f32 %v6971, %v7139
  %v7166 = vadd.f32 %v6972, %v7144
  %v7167 = vadd.f32 %v6973, %v7149
  %v7168 = vld [vmem:[%s3220 + $0x2] sm:$0xff]
  %v7169 = vld [vmem:[%s3220 + $0x12] sm:$0xff]
  %v7170 = vld [vmem:[%s3220 + $0x22] sm:$0xff]
  %v7171 = vld [vmem:[%s3220 + $0x32] sm:$0xff]
  %v7172 = vld [vmem:[%s3220 + $0x42] sm:$0xff]
  %v7173 = vld [vmem:[%s3220 + $0x52] sm:$0xff]
  %v7174 = vld [vmem:[%s3220 + $0x62] sm:$0xff]
  %v7175 = vld [vmem:[%s3220 + $0x72] sm:$0xff]
  %v7176 = vld [vmem:[%s3220 + $0xa2] sm:$0xff]
  %v7177 = vld [vmem:[%s3220 + $0xb2] sm:$0xff]
  %v7178 = vld [vmem:[%s3220 + $0xc2] sm:$0xff]
  %v7179 = vld [vmem:[%s3220 + $0xd2] sm:$0xff]
  %v7180 = vld [vmem:[%s3220 + $0xe2] sm:$0xff]
  %v7181 = vld [vmem:[%s3220 + $0xf2] sm:$0xff]
  %v7182 = vld [vmem:[%s3220 + $0x102] sm:$0xff]
  %v7183 = vld [vmem:[%s3220 + $0x112] sm:$0xff]
  %s7184 = scalar_lea.vmem %s1, 4480
  %v7185 = vld [vmem:[%s7184] sm:$0xff]
  %v7186 = vld [vmem:[%s7184 + $0x8] sm:$0xff]
  %v7187 = vld [vmem:[%s7184 + $0x10] sm:$0xff]
  %v7188 = vld [vmem:[%s7184 + $0x18] sm:$0xff]
  %v7189 = vld [vmem:[%s7184 + $0x20] sm:$0xff]
  %v7190 = vld [vmem:[%s7184 + $0x28] sm:$0xff]
  %v7191 = vld [vmem:[%s7184 + $0x30] sm:$0xff]
  %v7192 = vld [vmem:[%s7184 + $0x38] sm:$0xff]
  %v7193 = vld [vmem:[%s7184 + $0x40] sm:$0xff]
  %v7194 = vld [vmem:[%s7184 + $0x48] sm:$0xff]
  %v7195 = vld [vmem:[%s7184 + $0x50] sm:$0xff]
  %v7196 = vld [vmem:[%s7184 + $0x58] sm:$0xff]
  %v7197 = vld [vmem:[%s7184 + $0x60] sm:$0xff]
  %v7198 = vld [vmem:[%s7184 + $0x68] sm:$0xff]
  %v7199 = vld [vmem:[%s7184 + $0x70] sm:$0xff]
  %v7200 = vld [vmem:[%s7184 + $0x78] sm:$0xff]
  %7201 = vmatprep.subr.mxu0 0.0
  %7202 = vmatpush1.msra.mxu0 %v7185
  %7203 = vmatprep.subr.mxu0 0.0
  %7204 = vmatpush1.msra.mxu0 %v7186
  %7205 = vmatprep.subr.mxu0 0.0
  %7206 = vmatpush1.msra.mxu0 %v7187
  %7207 = vmatprep.subr.mxu0 0.0
  %7208 = vmatpush1.msra.mxu0 %v7188
  %7209 = vmatprep.subr.mxu0 0.0
  %7210 = vmatpush1.msra.mxu0 %v7189
  %7211 = vmatprep.subr.mxu0 0.0
  %7212 = vmatpush1.msra.mxu0 %v7190
  %7213 = vmatprep.subr.mxu0 0.0
  %7214 = vmatpush1.msra.mxu0 %v7191
  %7215 = vmatprep.subr.mxu0 0.0
  %7216 = vmatpush1.msra.mxu0 %v7192
  %7217 = vmatprep.subr.mxu0 0.0
  %7218 = vmatpush1.msra.mxu0 %v7193
  %7219 = vmatprep.subr.mxu0 0.0
  %7220 = vmatpush1.msra.mxu0 %v7194
  %7221 = vmatprep.subr.mxu0 0.0
  %7222 = vmatpush1.msra.mxu0 %v7195
  %7223 = vmatprep.subr.mxu0 0.0
  %7224 = vmatpush1.msra.mxu0 %v7196
  %7225 = vmatprep.subr.mxu0 0.0
  %7226 = vmatpush1.msra.mxu0 %v7197
  %7227 = vmatprep.subr.mxu0 0.0
  %7228 = vmatpush1.msra.mxu0 %v7198
  %7229 = vmatprep.subr.mxu0 0.0
  %7230 = vmatpush1.msra.mxu0 %v7199
  %7231 = vmatprep.subr.mxu0 0.0
  %7232 = vmatpush1.msra.mxu0 %v7200
  %7233 = vmatprep.subr.mxu0 0.0
  %7234 = vmatpush1.msra.mxu0 0.0
  %7235 = vmatprep.subr.mxu0 0.0
  %7236 = vmatpush1.msra.mxu0 0.0
  %7237 = vmatprep.subr.mxu0 0.0
  %7238 = vmatpush1.msra.mxu0 0.0
  %7239 = vmatprep.subr.mxu0 0.0
  %7240 = vmatpush1.msra.mxu0 0.0
  %7241 = vmatprep.subr.mxu0 0.0
  %7242 = vmatpush1.msra.mxu0 0.0
  %7243 = vmatprep.subr.mxu0 0.0
  %7244 = vmatpush1.msra.mxu0 0.0
  %7245 = vmatprep.subr.mxu0 0.0
  %7246 = vmatpush1.msra.mxu0 0.0
  %7247 = vmatprep.subr.mxu0 0.0
  %7248 = vmatpush1.msra.mxu0 0.0
  %7249 = vmatprep.subr.mxu0 0.0
  %7250 = vmatpush1.msra.mxu0 0.0
  %7251 = vmatprep.subr.mxu0 0.0
  %7252 = vmatpush1.msra.mxu0 0.0
  %7253 = vmatprep.subr.mxu0 0.0
  %7254 = vmatpush1.msra.mxu0 0.0
  %7255 = vmatprep.subr.mxu0 0.0
  %7256 = vmatpush1.msra.mxu0 0.0
  %7257 = vmatprep.subr.mxu0 0.0
  %7258 = vmatpush1.msra.mxu0 0.0
  %7259 = vmatprep.subr.mxu0 0.0
  %7260 = vmatpush1.msra.mxu0 0.0
  %7261 = vmatprep.subr.mxu0 0.0
  %7262 = vmatpush1.msra.mxu0 0.0
  %7263 = vmatprep.subr.mxu0 0.0
  %7264 = vmatpush1.msra.mxu0 0.0
  %7265 = vmatprep.mubr.f32.mxu0 0.0
  %7266 = vmatmul.mubr.f32.gmra.mrb[0].mxu0 %v7168
  %v7267 = vpop.f32.mrb[0].mxu0
  %v7268 = vadd.f32 0.0, %v7267
  %v7269 = vpop.f32.mrb[0].mxu0
  %7270 = vmatprep.mubr.f32.mxu0 0.0
  %7271 = vmatmul.mubr.f32.gmra.mrb[0].mxu0 %v7169
  %v7272 = vpop.f32.mrb[0].mxu0
  %v7273 = vadd.f32 0.0, %v7272
  %v7274 = vpop.f32.mrb[0].mxu0
  %7275 = vmatprep.mubr.f32.mxu0 0.0
  %7276 = vmatmul.mubr.f32.gmra.mrb[0].mxu0 %v7170
  %v7277 = vpop.f32.mrb[0].mxu0
  %v7278 = vadd.f32 0.0, %v7277
  %v7279 = vpop.f32.mrb[0].mxu0
  %7280 = vmatprep.mubr.f32.mxu0 0.0
  %7281 = vmatmul.mubr.f32.gmra.mrb[0].mxu0 %v7171
  %v7282 = vpop.f32.mrb[0].mxu0
  %v7283 = vadd.f32 0.0, %v7282
  %v7284 = vpop.f32.mrb[0].mxu0
  %7285 = vmatprep.mubr.f32.mxu0 0.0
  %7286 = vmatmul.mubr.f32.gmra.mrb[0].mxu0 %v7172
  %v7287 = vpop.f32.mrb[0].mxu0
  %v7288 = vadd.f32 0.0, %v7287
  %v7289 = vpop.f32.mrb[0].mxu0
  %7290 = vmatprep.mubr.f32.mxu0 0.0
  %7291 = vmatmul.mubr.f32.gmra.mrb[0].mxu0 %v7173
  %v7292 = vpop.f32.mrb[0].mxu0
  %v7293 = vadd.f32 0.0, %v7292
  %v7294 = vpop.f32.mrb[0].mxu0
  %7295 = vmatprep.mubr.f32.mxu0 0.0
  %7296 = vmatmul.mubr.f32.gmra.mrb[0].mxu0 %v7174
  %v7297 = vpop.f32.mrb[0].mxu0
  %v7298 = vadd.f32 0.0, %v7297
  %v7299 = vpop.f32.mrb[0].mxu0
  %7300 = vmatprep.mubr.f32.mxu0 0.0
  %7301 = vmatmul.mubr.f32.gmra.mrb[0].mxu0 %v7175
  %v7302 = vpop.f32.mrb[0].mxu0
  %v7303 = vadd.f32 0.0, %v7302
  %v7304 = vpop.f32.mrb[0].mxu0
  %7305 = vmatprep.mubr.f32.mxu0 0.0
  %7306 = vmatmul.mubr.f32.gmra.mrb[0].mxu0 %v7176
  %v7307 = vpop.f32.mrb[0].mxu0
  %v7308 = vadd.f32 0.0, %v7307
  %v7309 = vpop.f32.mrb[0].mxu0
  %7310 = vmatprep.mubr.f32.mxu0 0.0
  %7311 = vmatmul.mubr.f32.gmra.mrb[0].mxu0 %v7177
  %v7312 = vpop.f32.mrb[0].mxu0
  %v7313 = vadd.f32 0.0, %v7312
  %v7314 = vpop.f32.mrb[0].mxu0
  %7315 = vmatprep.mubr.f32.mxu0 0.0
  %7316 = vmatmul.mubr.f32.gmra.mrb[0].mxu0 %v7178
  %v7317 = vpop.f32.mrb[0].mxu0
  %v7318 = vadd.f32 0.0, %v7317
  %v7319 = vpop.f32.mrb[0].mxu0
  %7320 = vmatprep.mubr.f32.mxu0 0.0
  %7321 = vmatmul.mubr.f32.gmra.mrb[0].mxu0 %v7179
  %v7322 = vpop.f32.mrb[0].mxu0
  %v7323 = vadd.f32 0.0, %v7322
  %v7324 = vpop.f32.mrb[0].mxu0
  %7325 = vmatprep.mubr.f32.mxu0 0.0
  %7326 = vmatmul.mubr.f32.gmra.mrb[0].mxu0 %v7180
  %v7327 = vpop.f32.mrb[0].mxu0
  %v7328 = vadd.f32 0.0, %v7327
  %v7329 = vpop.f32.mrb[0].mxu0
  %7330 = vmatprep.mubr.f32.mxu0 0.0
  %7331 = vmatmul.mubr.f32.gmra.mrb[0].mxu0 %v7181
  %v7332 = vpop.f32.mrb[0].mxu0
  %v7333 = vadd.f32 0.0, %v7332
  %v7334 = vpop.f32.mrb[0].mxu0
  %7335 = vmatprep.mubr.f32.mxu0 0.0
  %7336 = vmatmul.mubr.f32.gmra.mrb[0].mxu0 %v7182
  %v7337 = vpop.f32.mrb[0].mxu0
  %v7338 = vadd.f32 0.0, %v7337
  %v7339 = vpop.f32.mrb[0].mxu0
  %7340 = vmatprep.mubr.f32.mxu0 0.0
  %7341 = vmatmul.mubr.f32.gmra.mrb[0].mxu0 %v7183
  %v7342 = vpop.f32.mrb[0].mxu0
  %v7343 = vadd.f32 0.0, %v7342
  %v7344 = vpop.f32.mrb[0].mxu0
  %7345 = vdwg.mxu0
  %v7346 = vadd.f32 %v7152, %v7268
  %v7347 = vadd.f32 %v7153, %v7273
  %v7348 = vadd.f32 %v7154, %v7278
  %v7349 = vadd.f32 %v7155, %v7283
  %v7350 = vadd.f32 %v7156, %v7288
  %v7351 = vadd.f32 %v7157, %v7293
  %v7352 = vadd.f32 %v7158, %v7298
  %v7353 = vadd.f32 %v7159, %v7303
  %v7354 = vadd.f32 %v7160, %v7308
  %v7355 = vadd.f32 %v7161, %v7313
  %v7356 = vadd.f32 %v7162, %v7318
  %v7357 = vadd.f32 %v7163, %v7323
  %v7358 = vadd.f32 %v7164, %v7328
  %v7359 = vadd.f32 %v7165, %v7333
  %v7360 = vadd.f32 %v7166, %v7338
  %v7361 = vadd.f32 %v7167, %v7343
  %s7362 = scalar_lea.vmem %s3, 4
  %v7363 = vld [vmem:[%s7362] sm:$0x1]
  %v7365 = vlaneseq
  %v7366 = vshrl.u32 %v7365, 7
  %v7367 = vsub.s32 0, %v7366
  %v7368 = vrot.slane %v7363, %v7367
  %v7370 = vadd.f32 %v7346, %v7368
  %v7371 = vadd.f32 %v7347, %v7368
  %v7372 = vadd.f32 %v7348, %v7368
  %v7373 = vadd.f32 %v7349, %v7368
  %v7374 = vadd.f32 %v7350, %v7368
  %v7375 = vadd.f32 %v7351, %v7368
  %v7376 = vadd.f32 %v7352, %v7368
  %v7377 = vadd.f32 %v7353, %v7368
  %v7378 = vadd.f32 %v7354, %v7368
  %v7379 = vadd.f32 %v7355, %v7368
  %v7380 = vadd.f32 %v7356, %v7368
  %v7381 = vadd.f32 %v7357, %v7368
  %v7382 = vadd.f32 %v7358, %v7368
  %v7383 = vadd.f32 %v7359, %v7368
  %v7384 = vadd.f32 %v7360, %v7368
  %v7385 = vadd.f32 %v7361, %v7368
  %v7386 = vadd.f32 %v7370, %v3843
  %v7387 = vadd.f32 %v7371, %v3844
  %v7388 = vadd.f32 %v7372, %v3845
  %v7389 = vadd.f32 %v7373, %v3846
  %v7390 = vadd.f32 %v7374, %v3847
  %v7391 = vadd.f32 %v7375, %v3848
  %v7392 = vadd.f32 %v7376, %v3849
  %v7393 = vadd.f32 %v7377, %v3850
  %v7394 = vadd.f32 %v7378, %v3851
  %v7395 = vadd.f32 %v7379, %v3852
  %v7396 = vadd.f32 %v7380, %v3853
  %v7397 = vadd.f32 %v7381, %v3854
  %v7398 = vadd.f32 %v7382, %v3855
  %v7399 = vadd.f32 %v7383, %v3856
  %v7400 = vadd.f32 %v7384, %v3857
  %v7401 = vadd.f32 %v7385, %v3858
  %v7402 = vmax.f32 %v7386, 0.0
  %v7403 = vmax.f32 %v7387, 0.0
  %v7404 = vmax.f32 %v7388, 0.0
  %v7405 = vmax.f32 %v7389, 0.0
  %v7406 = vmax.f32 %v7390, 0.0
  %v7407 = vmax.f32 %v7391, 0.0
  %v7408 = vmax.f32 %v7392, 0.0
  %v7409 = vmax.f32 %v7393, 0.0
  %v7410 = vmax.f32 %v7394, 0.0
  %v7411 = vmax.f32 %v7395, 0.0
  %v7412 = vmax.f32 %v7396, 0.0
  %v7413 = vmax.f32 %v7397, 0.0
  %v7414 = vmax.f32 %v7398, 0.0
  %v7415 = vmax.f32 %v7399, 0.0
  %v7416 = vmax.f32 %v7400, 0.0
  %v7417 = vmax.f32 %v7401, 0.0
  %s7418 = scalar_lea.vmem %s2, 128
  %v7419 = vld [vmem:[%s7418] sm:$0xff]
  %v7420 = vld [vmem:[%s7418 + $0x8] sm:$0xff]
  %v7421 = vld [vmem:[%s7418 + $0x10] sm:$0xff]
  %v7422 = vld [vmem:[%s7418 + $0x18] sm:$0xff]
  %v7423 = vld [vmem:[%s7418 + $0x20] sm:$0xff]
  %v7424 = vld [vmem:[%s7418 + $0x28] sm:$0xff]
  %v7425 = vld [vmem:[%s7418 + $0x30] sm:$0xff]
  %v7426 = vld [vmem:[%s7418 + $0x38] sm:$0xff]
  %v7427 = vld [vmem:[%s7418 + $0x40] sm:$0xff]
  %v7428 = vld [vmem:[%s7418 + $0x48] sm:$0xff]
  %v7429 = vld [vmem:[%s7418 + $0x50] sm:$0xff]
  %v7430 = vld [vmem:[%s7418 + $0x58] sm:$0xff]
  %v7431 = vld [vmem:[%s7418 + $0x60] sm:$0xff]
  %v7432 = vld [vmem:[%s7418 + $0x68] sm:$0xff]
  %v7433 = vld [vmem:[%s7418 + $0x70] sm:$0xff]
  %v7434 = vld [vmem:[%s7418 + $0x78] sm:$0xff]
  %s7435 = scalar_lea.vmem %s2, 256
  %v7436 = vld [vmem:[%s7435] sm:$0xff]
  %v7437 = vld [vmem:[%s7435 + $0x8] sm:$0xff]
  %v7438 = vld [vmem:[%s7435 + $0x10] sm:$0xff]
  %v7439 = vld [vmem:[%s7435 + $0x18] sm:$0xff]
  %v7440 = vld [vmem:[%s7435 + $0x20] sm:$0xff]
  %v7441 = vld [vmem:[%s7435 + $0x28] sm:$0xff]
  %v7442 = vld [vmem:[%s7435 + $0x30] sm:$0xff]
  %v7443 = vld [vmem:[%s7435 + $0x38] sm:$0xff]
  %v7444 = vld [vmem:[%s7435 + $0x40] sm:$0xff]
  %v7445 = vld [vmem:[%s7435 + $0x48] sm:$0xff]
  %v7446 = vld [vmem:[%s7435 + $0x50] sm:$0xff]
  %v7447 = vld [vmem:[%s7435 + $0x58] sm:$0xff]
  %v7448 = vld [vmem:[%s7435 + $0x60] sm:$0xff]
  %v7449 = vld [vmem:[%s7435 + $0x68] sm:$0xff]
  %v7450 = vld [vmem:[%s7435 + $0x70] sm:$0xff]
  %v7451 = vld [vmem:[%s7435 + $0x78] sm:$0xff]
  %7452 = vmatprep.subr.mxu0 0.0
  %7453 = vmatpush1.msra.mxu0 %v7436
  %7454 = vmatprep.subr.mxu0 0.0
  %7455 = vmatpush1.msra.mxu0 %v7437
  %7456 = vmatprep.subr.mxu0 0.0
  %7457 = vmatpush1.msra.mxu0 %v7438
  %7458 = vmatprep.subr.mxu0 0.0
  %7459 = vmatpush1.msra.mxu0 %v7439
  %7460 = vmatprep.subr.mxu0 0.0
  %7461 = vmatpush1.msra.mxu0 %v7440
  %7462 = vmatprep.subr.mxu0 0.0
  %7463 = vmatpush1.msra.mxu0 %v7441
  %7464 = vmatprep.subr.mxu0 0.0
  %7465 = vmatpush1.msra.mxu0 %v7442
  %7466 = vmatprep.subr.mxu0 0.0
  %7467 = vmatpush1.msra.mxu0 %v7443
  %7468 = vmatprep.subr.mxu0 0.0
  %7469 = vmatpush1.msra.mxu0 %v7444
  %7470 = vmatprep.subr.mxu0 0.0
  %7471 = vmatpush1.msra.mxu0 %v7445
  %7472 = vmatprep.subr.mxu0 0.0
  %7473 = vmatpush1.msra.mxu0 %v7446
  %7474 = vmatprep.subr.mxu0 0.0
  %7475 = vmatpush1.msra.mxu0 %v7447
  %7476 = vmatprep.subr.mxu0 0.0
  %7477 = vmatpush1.msra.mxu0 %v7448
  %7478 = vmatprep.subr.mxu0 0.0
  %7479 = vmatpush1.msra.mxu0 %v7449
  %7480 = vmatprep.subr.mxu0 0.0
  %7481 = vmatpush1.msra.mxu0 %v7450
  %7482 = vmatprep.subr.mxu0 0.0
  %7483 = vmatpush1.msra.mxu0 %v7451
  %7484 = vmatprep.subr.mxu0 0.0
  %7485 = vmatpush1.msra.mxu0 0.0
  %7486 = vmatprep.subr.mxu0 0.0
  %7487 = vmatpush1.msra.mxu0 0.0
  %7488 = vmatprep.subr.mxu0 0.0
  %7489 = vmatpush1.msra.mxu0 0.0
  %7490 = vmatprep.subr.mxu0 0.0
  %7491 = vmatpush1.msra.mxu0 0.0
  %7492 = vmatprep.subr.mxu0 0.0
  %7493 = vmatpush1.msra.mxu0 0.0
  %7494 = vmatprep.subr.mxu0 0.0
  %7495 = vmatpush1.msra.mxu0 0.0
  %7496 = vmatprep.subr.mxu0 0.0
  %7497 = vmatpush1.msra.mxu0 0.0
  %7498 = vmatprep.subr.mxu0 0.0
  %7499 = vmatpush1.msra.mxu0 0.0
  %7500 = vmatprep.subr.mxu0 0.0
  %7501 = vmatpush1.msra.mxu0 0.0
  %7502 = vmatprep.subr.mxu0 0.0
  %7503 = vmatpush1.msra.mxu0 0.0
  %7504 = vmatprep.subr.mxu0 0.0
  %7505 = vmatpush1.msra.mxu0 0.0
  %7506 = vmatprep.subr.mxu0 0.0
  %7507 = vmatpush1.msra.mxu0 0.0
  %7508 = vmatprep.subr.mxu0 0.0
  %7509 = vmatpush1.msra.mxu0 0.0
  %7510 = vmatprep.subr.mxu0 0.0
  %7511 = vmatpush1.msra.mxu0 0.0
  %7512 = vmatprep.subr.mxu0 0.0
  %7513 = vmatpush1.msra.mxu0 0.0
  %7514 = vmatprep.subr.mxu0 0.0
  %7515 = vmatpush1.msra.mxu0 0.0
  %7516 = vmatprep.mubr.f32.mxu0 0.0
  %7517 = vmatmul.mubr.f32.gmra.mrb[0].mxu0 %v3843
  %v7518 = vpop.f32.mrb[0].mxu0
  %v7519 = vadd.f32 0.0, %v7518
  %v7520 = vpop.f32.mrb[0].mxu0
  %7521 = vmatprep.mubr.f32.mxu0 0.0
  %7522 = vmatmul.mubr.f32.gmra.mrb[0].mxu0 %v3844
  %v7523 = vpop.f32.mrb[0].mxu0
  %v7524 = vadd.f32 0.0, %v7523
  %v7525 = vpop.f32.mrb[0].mxu0
  %7526 = vmatprep.mubr.f32.mxu0 0.0
  %7527 = vmatmul.mubr.f32.gmra.mrb[0].mxu0 %v3845
  %v7528 = vpop.f32.mrb[0].mxu0
  %v7529 = vadd.f32 0.0, %v7528
  %v7530 = vpop.f32.mrb[0].mxu0
  %7531 = vmatprep.mubr.f32.mxu0 0.0
  %7532 = vmatmul.mubr.f32.gmra.mrb[0].mxu0 %v3846
  %v7533 = vpop.f32.mrb[0].mxu0
  %v7534 = vadd.f32 0.0, %v7533
  %v7535 = vpop.f32.mrb[0].mxu0
  %7536 = vmatprep.mubr.f32.mxu0 0.0
  %7537 = vmatmul.mubr.f32.gmra.mrb[0].mxu0 %v3847
  %v7538 = vpop.f32.mrb[0].mxu0
  %v7539 = vadd.f32 0.0, %v7538
  %v7540 = vpop.f32.mrb[0].mxu0
  %7541 = vmatprep.mubr.f32.mxu0 0.0
  %7542 = vmatmul.mubr.f32.gmra.mrb[0].mxu0 %v3848
  %v7543 = vpop.f32.mrb[0].mxu0
  %v7544 = vadd.f32 0.0, %v7543
  %v7545 = vpop.f32.mrb[0].mxu0
  %7546 = vmatprep.mubr.f32.mxu0 0.0
  %7547 = vmatmul.mubr.f32.gmra.mrb[0].mxu0 %v3849
  %v7548 = vpop.f32.mrb[0].mxu0
  %v7549 = vadd.f32 0.0, %v7548
  %v7550 = vpop.f32.mrb[0].mxu0
  %7551 = vmatprep.mubr.f32.mxu0 0.0
  %7552 = vmatmul.mubr.f32.gmra.mrb[0].mxu0 %v3850
  %v7553 = vpop.f32.mrb[0].mxu0
  %v7554 = vadd.f32 0.0, %v7553
  %v7555 = vpop.f32.mrb[0].mxu0
  %7556 = vmatprep.mubr.f32.mxu0 0.0
  %7557 = vmatmul.mubr.f32.gmra.mrb[0].mxu0 %v3851
  %v7558 = vpop.f32.mrb[0].mxu0
  %v7559 = vadd.f32 0.0, %v7558
  %v7560 = vpop.f32.mrb[0].mxu0
  %7561 = vmatprep.mubr.f32.mxu0 0.0
  %7562 = vmatmul.mubr.f32.gmra.mrb[0].mxu0 %v3852
  %v7563 = vpop.f32.mrb[0].mxu0
  %v7564 = vadd.f32 0.0, %v7563
  %v7565 = vpop.f32.mrb[0].mxu0
  %7566 = vmatprep.mubr.f32.mxu0 0.0
  %7567 = vmatmul.mubr.f32.gmra.mrb[0].mxu0 %v3853
  %v7568 = vpop.f32.mrb[0].mxu0
  %v7569 = vadd.f32 0.0, %v7568
  %v7570 = vpop.f32.mrb[0].mxu0
  %7571 = vmatprep.mubr.f32.mxu0 0.0
  %7572 = vmatmul.mubr.f32.gmra.mrb[0].mxu0 %v3854
  %v7573 = vpop.f32.mrb[0].mxu0
  %v7574 = vadd.f32 0.0, %v7573
  %v7575 = vpop.f32.mrb[0].mxu0
  %7576 = vmatprep.mubr.f32.mxu0 0.0
  %7577 = vmatmul.mubr.f32.gmra.mrb[0].mxu0 %v3855
  %v7578 = vpop.f32.mrb[0].mxu0
  %v7579 = vadd.f32 0.0, %v7578
  %v7580 = vpop.f32.mrb[0].mxu0
  %7581 = vmatprep.mubr.f32.mxu0 0.0
  %7582 = vmatmul.mubr.f32.gmra.mrb[0].mxu0 %v3856
  %v7583 = vpop.f32.mrb[0].mxu0
  %v7584 = vadd.f32 0.0, %v7583
  %v7585 = vpop.f32.mrb[0].mxu0
  %7586 = vmatprep.mubr.f32.mxu0 0.0
  %7587 = vmatmul.mubr.f32.gmra.mrb[0].mxu0 %v3857
  %v7588 = vpop.f32.mrb[0].mxu0
  %v7589 = vadd.f32 0.0, %v7588
  %v7590 = vpop.f32.mrb[0].mxu0
  %7591 = vmatprep.mubr.f32.mxu0 0.0
  %7592 = vmatmul.mubr.f32.gmra.mrb[0].mxu0 %v3858
  %v7593 = vpop.f32.mrb[0].mxu0
  %v7594 = vadd.f32 0.0, %v7593
  %v7595 = vpop.f32.mrb[0].mxu0
  %7596 = vdwg.mxu0
  %7597 = vmatprep.subr.mxu0 0.0
  %7598 = vmatpush1.msra.mxu0 %v7419
  %7599 = vmatprep.subr.mxu0 0.0
  %7600 = vmatpush1.msra.mxu0 %v7420
  %7601 = vmatprep.subr.mxu0 0.0
  %7602 = vmatpush1.msra.mxu0 %v7421
  %7603 = vmatprep.subr.mxu0 0.0
  %7604 = vmatpush1.msra.mxu0 %v7422
  %7605 = vmatprep.subr.mxu0 0.0
  %7606 = vmatpush1.msra.mxu0 %v7423
  %7607 = vmatprep.subr.mxu0 0.0
  %7608 = vmatpush1.msra.mxu0 %v7424
  %7609 = vmatprep.subr.mxu0 0.0
  %7610 = vmatpush1.msra.mxu0 %v7425
  %7611 = vmatprep.subr.mxu0 0.0
  %7612 = vmatpush1.msra.mxu0 %v7426
  %7613 = vmatprep.subr.mxu0 0.0
  %7614 = vmatpush1.msra.mxu0 %v7427
  %7615 = vmatprep.subr.mxu0 0.0
  %7616 = vmatpush1.msra.mxu0 %v7428
  %7617 = vmatprep.subr.mxu0 0.0
  %7618 = vmatpush1.msra.mxu0 %v7429
  %7619 = vmatprep.subr.mxu0 0.0
  %7620 = vmatpush1.msra.mxu0 %v7430
  %7621 = vmatprep.subr.mxu0 0.0
  %7622 = vmatpush1.msra.mxu0 %v7431
  %7623 = vmatprep.subr.mxu0 0.0
  %7624 = vmatpush1.msra.mxu0 %v7432
  %7625 = vmatprep.subr.mxu0 0.0
  %7626 = vmatpush1.msra.mxu0 %v7433
  %7627 = vmatprep.subr.mxu0 0.0
  %7628 = vmatpush1.msra.mxu0 %v7434
  %7629 = vmatprep.subr.mxu0 0.0
  %7630 = vmatpush1.msra.mxu0 0.0
  %7631 = vmatprep.subr.mxu0 0.0
  %7632 = vmatpush1.msra.mxu0 0.0
  %7633 = vmatprep.subr.mxu0 0.0
  %7634 = vmatpush1.msra.mxu0 0.0
  %7635 = vmatprep.subr.mxu0 0.0
  %7636 = vmatpush1.msra.mxu0 0.0
  %7637 = vmatprep.subr.mxu0 0.0
  %7638 = vmatpush1.msra.mxu0 0.0
  %7639 = vmatprep.subr.mxu0 0.0
  %7640 = vmatpush1.msra.mxu0 0.0
  %7641 = vmatprep.subr.mxu0 0.0
  %7642 = vmatpush1.msra.mxu0 0.0
  %7643 = vmatprep.subr.mxu0 0.0
  %7644 = vmatpush1.msra.mxu0 0.0
  %7645 = vmatprep.subr.mxu0 0.0
  %7646 = vmatpush1.msra.mxu0 0.0
  %7647 = vmatprep.subr.mxu0 0.0
  %7648 = vmatpush1.msra.mxu0 0.0
  %7649 = vmatprep.subr.mxu0 0.0
  %7650 = vmatpush1.msra.mxu0 0.0
  %7651 = vmatprep.subr.mxu0 0.0
  %7652 = vmatpush1.msra.mxu0 0.0
  %7653 = vmatprep.subr.mxu0 0.0
  %7654 = vmatpush1.msra.mxu0 0.0
  %7655 = vmatprep.subr.mxu0 0.0
  %7656 = vmatpush1.msra.mxu0 0.0
  %7657 = vmatprep.subr.mxu0 0.0
  %7658 = vmatpush1.msra.mxu0 0.0
  %7659 = vmatprep.subr.mxu0 0.0
  %7660 = vmatpush1.msra.mxu0 0.0
  %7661 = vmatprep.mubr.f32.mxu0 0.0
  %7662 = vmatmul.mubr.f32.gmra.mrb[0].mxu0 %v7402
  %v7663 = vpop.f32.mrb[0].mxu0
  %v7664 = vadd.f32 %v7519, %v7663
  %v7665 = vpop.f32.mrb[0].mxu0
  %7666 = vmatprep.mubr.f32.mxu0 0.0
  %7667 = vmatmul.mubr.f32.gmra.mrb[0].mxu0 %v7403
  %v7668 = vpop.f32.mrb[0].mxu0
  %v7669 = vadd.f32 %v7524, %v7668
  %v7670 = vpop.f32.mrb[0].mxu0
  %7671 = vmatprep.mubr.f32.mxu0 0.0
  %7672 = vmatmul.mubr.f32.gmra.mrb[0].mxu0 %v7404
  %v7673 = vpop.f32.mrb[0].mxu0
  %v7674 = vadd.f32 %v7529, %v7673
  %v7675 = vpop.f32.mrb[0].mxu0
  %7676 = vmatprep.mubr.f32.mxu0 0.0
  %7677 = vmatmul.mubr.f32.gmra.mrb[0].mxu0 %v7405
  %v7678 = vpop.f32.mrb[0].mxu0
  %v7679 = vadd.f32 %v7534, %v7678
  %v7680 = vpop.f32.mrb[0].mxu0
  %7681 = vmatprep.mubr.f32.mxu0 0.0
  %7682 = vmatmul.mubr.f32.gmra.mrb[0].mxu0 %v7406
  %v7683 = vpop.f32.mrb[0].mxu0
  %v7684 = vadd.f32 %v7539, %v7683
  %v7685 = vpop.f32.mrb[0].mxu0
  %7686 = vmatprep.mubr.f32.mxu0 0.0
  %7687 = vmatmul.mubr.f32.gmra.mrb[0].mxu0 %v7407
  %v7688 = vpop.f32.mrb[0].mxu0
  %v7689 = vadd.f32 %v7544, %v7688
  %v7690 = vpop.f32.mrb[0].mxu0
  %7691 = vmatprep.mubr.f32.mxu0 0.0
  %7692 = vmatmul.mubr.f32.gmra.mrb[0].mxu0 %v7408
  %v7693 = vpop.f32.mrb[0].mxu0
  %v7694 = vadd.f32 %v7549, %v7693
  %v7695 = vpop.f32.mrb[0].mxu0
  %7696 = vmatprep.mubr.f32.mxu0 0.0
  %7697 = vmatmul.mubr.f32.gmra.mrb[0].mxu0 %v7409
  %v7698 = vpop.f32.mrb[0].mxu0
  %v7699 = vadd.f32 %v7554, %v7698
  %v7700 = vpop.f32.mrb[0].mxu0
  %7701 = vmatprep.mubr.f32.mxu0 0.0
  %7702 = vmatmul.mubr.f32.gmra.mrb[0].mxu0 %v7410
  %v7703 = vpop.f32.mrb[0].mxu0
  %v7704 = vadd.f32 %v7559, %v7703
  %v7705 = vpop.f32.mrb[0].mxu0
  %7706 = vmatprep.mubr.f32.mxu0 0.0
  %7707 = vmatmul.mubr.f32.gmra.mrb[0].mxu0 %v7411
  %v7708 = vpop.f32.mrb[0].mxu0
  %v7709 = vadd.f32 %v7564, %v7708
  %v7710 = vpop.f32.mrb[0].mxu0
  %7711 = vmatprep.mubr.f32.mxu0 0.0
  %7712 = vmatmul.mubr.f32.gmra.mrb[0].mxu0 %v7412
  %v7713 = vpop.f32.mrb[0].mxu0
  %v7714 = vadd.f32 %v7569, %v7713
  %v7715 = vpop.f32.mrb[0].mxu0
  %7716 = vmatprep.mubr.f32.mxu0 0.0
  %7717 = vmatmul.mubr.f32.gmra.mrb[0].mxu0 %v7413
  %v7718 = vpop.f32.mrb[0].mxu0
  %v7719 = vadd.f32 %v7574, %v7718
  %v7720 = vpop.f32.mrb[0].mxu0
  %7721 = vmatprep.mubr.f32.mxu0 0.0
  %7722 = vmatmul.mubr.f32.gmra.mrb[0].mxu0 %v7414
  %v7723 = vpop.f32.mrb[0].mxu0
  %v7724 = vadd.f32 %v7579, %v7723
  %v7725 = vpop.f32.mrb[0].mxu0
  %7726 = vmatprep.mubr.f32.mxu0 0.0
  %7727 = vmatmul.mubr.f32.gmra.mrb[0].mxu0 %v7415
  %v7728 = vpop.f32.mrb[0].mxu0
  %v7729 = vadd.f32 %v7584, %v7728
  %v7730 = vpop.f32.mrb[0].mxu0
  %7731 = vmatprep.mubr.f32.mxu0 0.0
  %7732 = vmatmul.mubr.f32.gmra.mrb[0].mxu0 %v7416
  %v7733 = vpop.f32.mrb[0].mxu0
  %v7734 = vadd.f32 %v7589, %v7733
  %v7735 = vpop.f32.mrb[0].mxu0
  %7736 = vmatprep.mubr.f32.mxu0 0.0
  %7737 = vmatmul.mubr.f32.gmra.mrb[0].mxu0 %v7417
  %v7738 = vpop.f32.mrb[0].mxu0
  %v7739 = vadd.f32 %v7594, %v7738
  %v7740 = vpop.f32.mrb[0].mxu0
  %7741 = vdwg.mxu0
  %s7742 = scalar_lea.vmem %s2, 384
  %v7743 = vld [vmem:[%s7742] sm:$0xff]
  %v7744 = vld [vmem:[%s7742 + $0x8] sm:$0xff]
  %v7745 = vld [vmem:[%s7742 + $0x10] sm:$0xff]
  %v7746 = vld [vmem:[%s7742 + $0x18] sm:$0xff]
  %v7747 = vld [vmem:[%s7742 + $0x20] sm:$0xff]
  %v7748 = vld [vmem:[%s7742 + $0x28] sm:$0xff]
  %v7749 = vld [vmem:[%s7742 + $0x30] sm:$0xff]
  %v7750 = vld [vmem:[%s7742 + $0x38] sm:$0xff]
  %v7751 = vld [vmem:[%s7742 + $0x40] sm:$0xff]
  %v7752 = vld [vmem:[%s7742 + $0x48] sm:$0xff]
  %v7753 = vld [vmem:[%s7742 + $0x50] sm:$0xff]
  %v7754 = vld [vmem:[%s7742 + $0x58] sm:$0xff]
  %v7755 = vld [vmem:[%s7742 + $0x60] sm:$0xff]
  %v7756 = vld [vmem:[%s7742 + $0x68] sm:$0xff]
  %v7757 = vld [vmem:[%s7742 + $0x70] sm:$0xff]
  %v7758 = vld [vmem:[%s7742 + $0x78] sm:$0xff]
  %7759 = vmatprep.subr.mxu0 0.0
  %7760 = vmatpush1.msra.mxu0 %v7743
  %7761 = vmatprep.subr.mxu0 0.0
  %7762 = vmatpush1.msra.mxu0 %v7744
  %7763 = vmatprep.subr.mxu0 0.0
  %7764 = vmatpush1.msra.mxu0 %v7745
  %7765 = vmatprep.subr.mxu0 0.0
  %7766 = vmatpush1.msra.mxu0 %v7746
  %7767 = vmatprep.subr.mxu0 0.0
  %7768 = vmatpush1.msra.mxu0 %v7747
  %7769 = vmatprep.subr.mxu0 0.0
  %7770 = vmatpush1.msra.mxu0 %v7748
  %7771 = vmatprep.subr.mxu0 0.0
  %7772 = vmatpush1.msra.mxu0 %v7749
  %7773 = vmatprep.subr.mxu0 0.0
  %7774 = vmatpush1.msra.mxu0 %v7750
  %7775 = vmatprep.subr.mxu0 0.0
  %7776 = vmatpush1.msra.mxu0 %v7751
  %7777 = vmatprep.subr.mxu0 0.0
  %7778 = vmatpush1.msra.mxu0 %v7752
  %7779 = vmatprep.subr.mxu0 0.0
  %7780 = vmatpush1.msra.mxu0 %v7753
  %7781 = vmatprep.subr.mxu0 0.0
  %7782 = vmatpush1.msra.mxu0 %v7754
  %7783 = vmatprep.subr.mxu0 0.0
  %7784 = vmatpush1.msra.mxu0 %v7755
  %7785 = vmatprep.subr.mxu0 0.0
  %7786 = vmatpush1.msra.mxu0 %v7756
  %7787 = vmatprep.subr.mxu0 0.0
  %7788 = vmatpush1.msra.mxu0 %v7757
  %7789 = vmatprep.subr.mxu0 0.0
  %7790 = vmatpush1.msra.mxu0 %v7758
  %7791 = vmatprep.subr.mxu0 0.0
  %7792 = vmatpush1.msra.mxu0 0.0
  %7793 = vmatprep.subr.mxu0 0.0
  %7794 = vmatpush1.msra.mxu0 0.0
  %7795 = vmatprep.subr.mxu0 0.0
  %7796 = vmatpush1.msra.mxu0 0.0
  %7797 = vmatprep.subr.mxu0 0.0
  %7798 = vmatpush1.msra.mxu0 0.0
  %7799 = vmatprep.subr.mxu0 0.0
  %7800 = vmatpush1.msra.mxu0 0.0
  %7801 = vmatprep.subr.mxu0 0.0
  %7802 = vmatpush1.msra.mxu0 0.0
  %7803 = vmatprep.subr.mxu0 0.0
  %7804 = vmatpush1.msra.mxu0 0.0
  %7805 = vmatprep.subr.mxu0 0.0
  %7806 = vmatpush1.msra.mxu0 0.0
  %7807 = vmatprep.subr.mxu0 0.0
  %7808 = vmatpush1.msra.mxu0 0.0
  %7809 = vmatprep.subr.mxu0 0.0
  %7810 = vmatpush1.msra.mxu0 0.0
  %7811 = vmatprep.subr.mxu0 0.0
  %7812 = vmatpush1.msra.mxu0 0.0
  %7813 = vmatprep.subr.mxu0 0.0
  %7814 = vmatpush1.msra.mxu0 0.0
  %7815 = vmatprep.subr.mxu0 0.0
  %7816 = vmatpush1.msra.mxu0 0.0
  %7817 = vmatprep.subr.mxu0 0.0
  %7818 = vmatpush1.msra.mxu0 0.0
  %7819 = vmatprep.subr.mxu0 0.0
  %7820 = vmatpush1.msra.mxu0 0.0
  %7821 = vmatprep.subr.mxu0 0.0
  %7822 = vmatpush1.msra.mxu0 0.0
  %7823 = vmatprep.mubr.f32.mxu0 0.0
  %7824 = vmatmul.mubr.f32.gmra.mrb[0].mxu0 %v197
  %v7825 = vpop.f32.mrb[0].mxu0
  %v7826 = vadd.f32 0.0, %v7825
  %v7827 = vpop.f32.mrb[0].mxu0
  %7828 = vmatprep.mubr.f32.mxu0 0.0
  %7829 = vmatmul.mubr.f32.gmra.mrb[0].mxu0 %v198
  %v7830 = vpop.f32.mrb[0].mxu0
  %v7831 = vadd.f32 0.0, %v7830
  %v7832 = vpop.f32.mrb[0].mxu0
  %7833 = vmatprep.mubr.f32.mxu0 0.0
  %7834 = vmatmul.mubr.f32.gmra.mrb[0].mxu0 %v199
  %v7835 = vpop.f32.mrb[0].mxu0
  %v7836 = vadd.f32 0.0, %v7835
  %v7837 = vpop.f32.mrb[0].mxu0
  %7838 = vmatprep.mubr.f32.mxu0 0.0
  %7839 = vmatmul.mubr.f32.gmra.mrb[0].mxu0 %v200
  %v7840 = vpop.f32.mrb[0].mxu0
  %v7841 = vadd.f32 0.0, %v7840
  %v7842 = vpop.f32.mrb[0].mxu0
  %7843 = vmatprep.mubr.f32.mxu0 0.0
  %7844 = vmatmul.mubr.f32.gmra.mrb[0].mxu0 %v201
  %v7845 = vpop.f32.mrb[0].mxu0
  %v7846 = vadd.f32 0.0, %v7845
  %v7847 = vpop.f32.mrb[0].mxu0
  %7848 = vmatprep.mubr.f32.mxu0 0.0
  %7849 = vmatmul.mubr.f32.gmra.mrb[0].mxu0 %v202
  %v7850 = vpop.f32.mrb[0].mxu0
  %v7851 = vadd.f32 0.0, %v7850
  %v7852 = vpop.f32.mrb[0].mxu0
  %7853 = vmatprep.mubr.f32.mxu0 0.0
  %7854 = vmatmul.mubr.f32.gmra.mrb[0].mxu0 %v203
  %v7855 = vpop.f32.mrb[0].mxu0
  %v7856 = vadd.f32 0.0, %v7855
  %v7857 = vpop.f32.mrb[0].mxu0
  %7858 = vmatprep.mubr.f32.mxu0 0.0
  %7859 = vmatmul.mubr.f32.gmra.mrb[0].mxu0 %v204
  %v7860 = vpop.f32.mrb[0].mxu0
  %v7861 = vadd.f32 0.0, %v7860
  %v7862 = vpop.f32.mrb[0].mxu0
  %7863 = vmatprep.mubr.f32.mxu0 0.0
  %7864 = vmatmul.mubr.f32.gmra.mrb[0].mxu0 %v205
  %v7865 = vpop.f32.mrb[0].mxu0
  %v7866 = vadd.f32 0.0, %v7865
  %v7867 = vpop.f32.mrb[0].mxu0
  %7868 = vmatprep.mubr.f32.mxu0 0.0
  %7869 = vmatmul.mubr.f32.gmra.mrb[0].mxu0 %v206
  %v7870 = vpop.f32.mrb[0].mxu0
  %v7871 = vadd.f32 0.0, %v7870
  %v7872 = vpop.f32.mrb[0].mxu0
  %7873 = vmatprep.mubr.f32.mxu0 0.0
  %7874 = vmatmul.mubr.f32.gmra.mrb[0].mxu0 %v207
  %v7875 = vpop.f32.mrb[0].mxu0
  %v7876 = vadd.f32 0.0, %v7875
  %v7877 = vpop.f32.mrb[0].mxu0
  %7878 = vmatprep.mubr.f32.mxu0 0.0
  %7879 = vmatmul.mubr.f32.gmra.mrb[0].mxu0 %v208
  %v7880 = vpop.f32.mrb[0].mxu0
  %v7881 = vadd.f32 0.0, %v7880
  %v7882 = vpop.f32.mrb[0].mxu0
  %7883 = vmatprep.mubr.f32.mxu0 0.0
  %7884 = vmatmul.mubr.f32.gmra.mrb[0].mxu0 %v209
  %v7885 = vpop.f32.mrb[0].mxu0
  %v7886 = vadd.f32 0.0, %v7885
  %v7887 = vpop.f32.mrb[0].mxu0
  %7888 = vmatprep.mubr.f32.mxu0 0.0
  %7889 = vmatmul.mubr.f32.gmra.mrb[0].mxu0 %v210
  %v7890 = vpop.f32.mrb[0].mxu0
  %v7891 = vadd.f32 0.0, %v7890
  %v7892 = vpop.f32.mrb[0].mxu0
  %7893 = vmatprep.mubr.f32.mxu0 0.0
  %7894 = vmatmul.mubr.f32.gmra.mrb[0].mxu0 %v211
  %v7895 = vpop.f32.mrb[0].mxu0
  %v7896 = vadd.f32 0.0, %v7895
  %v7897 = vpop.f32.mrb[0].mxu0
  %7898 = vmatprep.mubr.f32.mxu0 0.0
  %7899 = vmatmul.mubr.f32.gmra.mrb[0].mxu0 %v212
  %v7900 = vpop.f32.mrb[0].mxu0
  %v7901 = vadd.f32 0.0, %v7900
  %v7902 = vpop.f32.mrb[0].mxu0
  %7903 = vdwg.mxu0
  %v7904 = vadd.f32 %v7664, %v7826
  %v7905 = vadd.f32 %v7669, %v7831
  %v7906 = vadd.f32 %v7674, %v7836
  %v7907 = vadd.f32 %v7679, %v7841
  %v7908 = vadd.f32 %v7684, %v7846
  %v7909 = vadd.f32 %v7689, %v7851
  %v7910 = vadd.f32 %v7694, %v7856
  %v7911 = vadd.f32 %v7699, %v7861
  %v7912 = vadd.f32 %v7704, %v7866
  %v7913 = vadd.f32 %v7709, %v7871
  %v7914 = vadd.f32 %v7714, %v7876
  %v7915 = vadd.f32 %v7719, %v7881
  %v7916 = vadd.f32 %v7724, %v7886
  %v7917 = vadd.f32 %v7729, %v7891
  %v7918 = vadd.f32 %v7734, %v7896
  %v7919 = vadd.f32 %v7739, %v7901
  %s7920 = scalar_lea.vmem %s3, 5
  %v7921 = vld [vmem:[%s7920] sm:$0x1]
  %v7923 = vlaneseq
  %v7924 = vshrl.u32 %v7923, 7
  %v7925 = vsub.s32 0, %v7924
  %v7926 = vrot.slane %v7921, %v7925
  %v7928 = vadd.f32 %v7904, %v7926
  %v7929 = vadd.f32 %v7905, %v7926
  %v7930 = vadd.f32 %v7906, %v7926
  %v7931 = vadd.f32 %v7907, %v7926
  %v7932 = vadd.f32 %v7908, %v7926
  %v7933 = vadd.f32 %v7909, %v7926
  %v7934 = vadd.f32 %v7910, %v7926
  %v7935 = vadd.f32 %v7911, %v7926
  %v7936 = vadd.f32 %v7912, %v7926
  %v7937 = vadd.f32 %v7913, %v7926
  %v7938 = vadd.f32 %v7914, %v7926
  %v7939 = vadd.f32 %v7915, %v7926
  %v7940 = vadd.f32 %v7916, %v7926
  %v7941 = vadd.f32 %v7917, %v7926
  %v7942 = vadd.f32 %v7918, %v7926
  %v7943 = vadd.f32 %v7919, %v7926
  %v7944 = vmax.f32 %v7928, 0.0
  %v7945 = vmax.f32 %v7929, 0.0
  %v7946 = vmax.f32 %v7930, 0.0
  %v7947 = vmax.f32 %v7931, 0.0
  %v7948 = vmax.f32 %v7932, 0.0
  %v7949 = vmax.f32 %v7933, 0.0
  %v7950 = vmax.f32 %v7934, 0.0
  %v7951 = vmax.f32 %v7935, 0.0
  %v7952 = vmax.f32 %v7936, 0.0
  %v7953 = vmax.f32 %v7937, 0.0
  %v7954 = vmax.f32 %v7938, 0.0
  %v7955 = vmax.f32 %v7939, 0.0
  %v7956 = vmax.f32 %v7940, 0.0
  %v7957 = vmax.f32 %v7941, 0.0
  %v7958 = vmax.f32 %v7942, 0.0
  %v7959 = vmax.f32 %v7943, 0.0
  %7960 = vst [vmem:[%s4] sm:$0xff] %v7944
  %7961 = vst [vmem:[%s4 + $0x8] sm:$0xff] %v7945
  %7962 = vst [vmem:[%s4 + $0x10] sm:$0xff] %v7946
  %7963 = vst [vmem:[%s4 + $0x18] sm:$0xff] %v7947
  %7964 = vst [vmem:[%s4 + $0x20] sm:$0xff] %v7948
  %7965 = vst [vmem:[%s4 + $0x28] sm:$0xff] %v7949
  %7966 = vst [vmem:[%s4 + $0x30] sm:$0xff] %v7950
  %7967 = vst [vmem:[%s4 + $0x38] sm:$0xff] %v7951
  %7968 = vst [vmem:[%s4 + $0x40] sm:$0xff] %v7952
  %7969 = vst [vmem:[%s4 + $0x48] sm:$0xff] %v7953
  %7970 = vst [vmem:[%s4 + $0x50] sm:$0xff] %v7954
  %7971 = vst [vmem:[%s4 + $0x58] sm:$0xff] %v7955
  %7972 = vst [vmem:[%s4 + $0x60] sm:$0xff] %v7956
  %7973 = vst [vmem:[%s4 + $0x68] sm:$0xff] %v7957
  %7974 = vst [vmem:[%s4 + $0x70] sm:$0xff] %v7958
  %7975 = vst [vmem:[%s4 + $0x78] sm:$0xff] %v7959
  // Predicated region
  $region18: #{_tree_forward_impl.1} parent=0 // pred_check
    _
  $region19: #{_tree_forward_impl.1} parent=0 // pred_check_branch
    %7977 = sbr.rel (0) target = $region21
  $region20: #{_tree_forward_impl.1} parent=0 // pred_region
    _
  $region21: #{_tree_forward_impl.1} parent=0 // pred_fallthru
    _
  // Predicated region
  $region22: #{_tree_forward_impl.1} parent=0 // pred_check
    _
  $region23: #{_tree_forward_impl.1} parent=0 // pred_check_branch
    %7979 = sbr.rel (0) target = $region25
  $region24: #{_tree_forward_impl.1} parent=0 // pred_region
    _
  $region25: #{_tree_forward_impl.1} parent=0 // pred_fallthru
    _

</llo_original>
